<compile_context>
chip_gen: v6e
topology: v6e:2x2x1
jax: 0.10.0
libtpu: 0.0.40
codegen_flags: <defaults>
</compile_context>

<pallas_src>
import jax
import jax.numpy as jnp
import numpy as np
from jax.experimental import pallas as pl
from jax.experimental.pallas import tpu as pltpu


def _basic_block_kernel(x_ref, w1_ref, b1_ref, p_ref, w2_ref, b2_ref, o_ref):
    # fc1 + PReLU: tiny (batch, hidden) — recomputed per output tile so that
    # every grid step is independent (safe under "parallel" semantics).
    h = jnp.dot(x_ref[...], w1_ref[...], preferred_element_type=jnp.float32)
    h = h + b1_ref[...]
    h = jnp.where(h >= 0, h, p_ref[...] * h)          # per-channel PReLU

    # fc3 tile: (batch, hidden) @ (hidden, tn) + bias tile.
    y = jnp.dot(h, w2_ref[...], preferred_element_type=jnp.float32) + b2_ref[...]
    o_ref[...] = y.astype(o_ref.dtype)


def basic_block_forward(x, w1, b1, prelu_w, w2, b2, *, tn=19968):
    """Forward of BasicBlock.

    x:       (batch, planes)
    w1:      (planes, hidden)   = torch fc1.weight.T
    b1:      (1, hidden)
    prelu_w: (1, hidden)        = torch PReLU weight
    w2:      (hidden, N)        = torch fc3.weight.T,  N = 53215*3
    b2:      (1, N)
    """
    batch, planes = x.shape
    hidden = w1.shape[1]
    N = w2.shape[1]
    assert w1.shape == (planes, hidden)
    assert b1.shape == (1, hidden) and prelu_w.shape == (1, hidden)
    assert w2.shape == (hidden, N) and b2.shape == (1, N)

    if N <= tn:
        # Small output: single full-extent block, no padding needed.
        tn_eff = N
        n_pad = N
        w2_p, b2_p = w2, b2
    else:
        assert tn % 128 == 0
        tn_eff = tn
        # Pad N up to a multiple of tn so every tile is full-width: unmasked
        # lane-dense stores, full-width W2 DMAs, balanced steps for the v7x
        # 2-TC split.  (In production, pad the weights once at load time.)
        n_pad = pl.cdiv(N, tn) * tn
        pad = n_pad - N
        if pad:
            w2_p = jnp.pad(w2, ((0, 0), (0, pad)))
            b2_p = jnp.pad(b2, ((0, 0), (0, pad)))
        else:
            w2_p, b2_p = w2, b2

    grid = (n_pad // tn_eff,)

    itemsize = jnp.dtype(x.dtype).itemsize
    cost = pl.CostEstimate(
        flops=2 * batch * planes * hidden + 2 * batch * hidden * n_pad,
        transcendentals=0,
        bytes_accessed=(hidden * n_pad + n_pad + batch * n_pad
                        + batch * planes + planes * hidden + 2 * hidden) * itemsize,
    )

    out = pl.pallas_call(
        _basic_block_kernel,
        out_shape=jax.ShapeDtypeStruct((batch, n_pad), x.dtype),
        grid_spec=pltpu.PrefetchScalarGridSpec(
            num_scalar_prefetch=0,
            grid=grid,
            in_specs=[
                pl.BlockSpec((batch, planes), lambda j: (0, 0)),   # x (resident)
                pl.BlockSpec((planes, hidden), lambda j: (0, 0)),  # W1^T (resident)
                pl.BlockSpec((1, hidden), lambda j: (0, 0)),       # b1 (resident)
                pl.BlockSpec((1, hidden), lambda j: (0, 0)),       # PReLU w (resident)
                pl.BlockSpec((hidden, tn_eff), lambda j: (0, j)),  # W2^T column tile
                pl.BlockSpec((1, tn_eff), lambda j: (0, j)),       # b2 tile
            ],
            out_specs=pl.BlockSpec((batch, tn_eff), lambda j: (0, j)),
        ),
        compiler_params=pltpu.CompilerParams(
            dimension_semantics=("parallel",),
        ),
        cost_estimate=cost,
    )(x, w1, b1, prelu_w, w2_p, b2_p)

    if n_pad != N:
        out = out[:, :N]
    return out


if __name__ == "__main__":
    # Small shapes consistent with the module: planes is a constructor arg,
    # expansion defaults to 8, fc3 output dim is hard-coded to 53215*3.
    planes, expansion, batch = 4, 8, 2
    hidden = planes * expansion            # 32
    out_dim = 53215 * 3                    # 159645 (fixed by the module)

    key = jax.random.PRNGKey(0)
    k0, k1, k2, k3, k4, k5 = jax.random.split(key, 6)
    x = jax.random.normal(k0, (batch, planes), jnp.float32)
    # Kernel takes (in, out) layouts == torch weight transposes.
    w1 = jax.random.normal(k1, (planes, hidden), jnp.float32) / np.sqrt(planes)
    b1 = 0.1 * jax.random.normal(k2, (1, hidden), jnp.float32)
    # torch PReLU init is 0.25; perturb per channel to exercise the broadcast.
    prelu_w = 0.25 + 0.05 * jax.random.normal(k3, (1, hidden), jnp.float32)
    w2 = jax.random.normal(k4, (hidden, out_dim), jnp.float32) / np.sqrt(hidden)
    b2 = 0.1 * jax.random.normal(k5, (1, out_dim), jnp.float32)

    out = jax.jit(basic_block_forward)(x, w1, b1, prelu_w, w2, b2)
    jax.block_until_ready(out)
    assert out.shape == (batch, out_dim)

    # Pure-JAX reference check (same semantics as the torch module).
    h_ref = x @ w1 + b1
    h_ref = jnp.where(h_ref >= 0, h_ref, prelu_w * h_ref)
    ref = h_ref @ w2 + b2
    np.testing.assert_allclose(np.asarray(out), np.asarray(ref),
                               rtol=1e-5, atol=1e-4)

    print("KERNEL_OK")
</pallas_src>

<mosaic_0001>
module attributes {stable_mosaic.version = 11 : i64} {
  func.func @_basic_block_kernel(%arg0: i32, %arg1: memref<2x4xf32, #tpu.memory_space<vmem>>, %arg2: memref<4x32xf32, #tpu.memory_space<vmem>>, %arg3: memref<1x32xf32, #tpu.memory_space<vmem>>, %arg4: memref<1x32xf32, #tpu.memory_space<vmem>>, %arg5: memref<32x19968xf32, #tpu.memory_space<vmem>>, %arg6: memref<1x19968xf32, #tpu.memory_space<vmem>>, %arg7: memref<2x19968xf32, #tpu.memory_space<vmem>>) attributes {dimension_semantics = [#tpu.dimension_semantics<parallel>], iteration_bounds = array<i64: 8>, scalar_prefetch = 0 : i64, scratch_operands = 0 : i64, tpu.core_type = #tpu.core_type<tc>, window_params = [{pipeline_mode = #tpu.pipeline_mode<synchronous>, transform_indices = @transform_0, window_bounds = array<i64: 2, 4>}, {pipeline_mode = #tpu.pipeline_mode<synchronous>, transform_indices = @transform_1, window_bounds = array<i64: 4, 32>}, {pipeline_mode = #tpu.pipeline_mode<synchronous>, transform_indices = @transform_2, window_bounds = array<i64: 1, 32>}, {pipeline_mode = #tpu.pipeline_mode<synchronous>, transform_indices = @transform_3, window_bounds = array<i64: 1, 32>}, {transform_indices = @transform_4, window_bounds = array<i64: 32, 19968>}, {transform_indices = @transform_5, window_bounds = array<i64: 1, 19968>}, {transform_indices = @transform_6, window_bounds = array<i64: 2, 19968>}]} {
    %c0 = arith.constant 0 : index
    %c0_0 = arith.constant 0 : index
    %0 = vector.load %arg1[%c0, %c0_0] : memref<2x4xf32, #tpu.memory_space<vmem>>, vector<2x4xf32>
    %c0_1 = arith.constant 0 : index
    %c0_2 = arith.constant 0 : index
    %1 = vector.load %arg2[%c0_1, %c0_2] : memref<4x32xf32, #tpu.memory_space<vmem>>, vector<4x32xf32>
    %cst = arith.constant dense<0.000000e+00> : vector<2x32xf32>
    %2 = tpu.matmul %0, %1, %cst {dimension_numbers = #tpu.dot_dimension_numbers<[1], [0], [0], [1], [0, 0, 1, 1], [], []>} : vector<2x4xf32>, vector<4x32xf32>, vector<2x32xf32> -> vector<2x32xf32>
    %c0_3 = arith.constant 0 : index
    %c0_4 = arith.constant 0 : index
    %3 = vector.load %arg3[%c0_3, %c0_4] : memref<1x32xf32, #tpu.memory_space<vmem>>, vector<1x32xf32>
    %4 = vector.broadcast %3 : vector<1x32xf32> to vector<2x32xf32>
    %5 = arith.addf %2, %4 : vector<2x32xf32>
    %cst_5 = arith.constant 0.000000e+00 : f32
    %6 = vector.broadcast %cst_5 : f32 to vector<2x32xf32>
    %7 = arith.cmpf oge, %5, %6 : vector<2x32xf32>
    %c0_6 = arith.constant 0 : index
    %c0_7 = arith.constant 0 : index
    %8 = vector.load %arg4[%c0_6, %c0_7] : memref<1x32xf32, #tpu.memory_space<vmem>>, vector<1x32xf32>
    %9 = vector.broadcast %8 : vector<1x32xf32> to vector<2x32xf32>
    %10 = arith.mulf %9, %5 : vector<2x32xf32>
    %11 = arith.select %7, %5, %10 : vector<2x32xi1>, vector<2x32xf32>
    %c0_8 = arith.constant 0 : index
    %c0_9 = arith.constant 0 : index
    %12 = vector.load %arg5[%c0_8, %c0_9] : memref<32x19968xf32, #tpu.memory_space<vmem>>, vector<32x19968xf32>
    %cst_10 = arith.constant dense<0.000000e+00> : vector<2x19968xf32>
    %13 = tpu.matmul %11, %12, %cst_10 {dimension_numbers = #tpu.dot_dimension_numbers<[1], [0], [0], [1], [0, 0, 1, 1], [], []>} : vector<2x32xf32>, vector<32x19968xf32>, vector<2x19968xf32> -> vector<2x19968xf32>
    %c0_11 = arith.constant 0 : index
    %c0_12 = arith.constant 0 : index
    %14 = vector.load %arg6[%c0_11, %c0_12] : memref<1x19968xf32, #tpu.memory_space<vmem>>, vector<1x19968xf32>
    %15 = vector.broadcast %14 : vector<1x19968xf32> to vector<2x19968xf32>
    %16 = arith.addf %13, %15 : vector<2x19968xf32>
    %c0_13 = arith.constant 0 : index
    %c0_14 = arith.constant 0 : index
    %17 = vector.load %arg7[%c0_13, %c0_14] : memref<2x19968xf32, #tpu.memory_space<vmem>>, vector<2x19968xf32>
    tpu.vector_store %arg7[%c0_13, %c0_14], %16 {strides = array<i32>} : memref<2x19968xf32, #tpu.memory_space<vmem>>, vector<2x19968xf32>,
    return
  }
  func.func @transform_0(%arg0: i32) -> (i32, i32) {
    %c0_i32 = arith.constant 0 : i32
    %c0_i32_0 = arith.constant 0 : i32
    %c0_i32_1 = arith.constant 0 : i32
    return %c0_i32, %c0_i32_0 : i32, i32
  }
  func.func @transform_1(%arg0: i32) -> (i32, i32) {
    %c0_i32 = arith.constant 0 : i32
    %c0_i32_0 = arith.constant 0 : i32
    %c0_i32_1 = arith.constant 0 : i32
    return %c0_i32, %c0_i32_0 : i32, i32
  }
  func.func @transform_2(%arg0: i32) -> (i32, i32) {
    %c0_i32 = arith.constant 0 : i32
    %c0_i32_0 = arith.constant 0 : i32
    %c0_i32_1 = arith.constant 0 : i32
    return %c0_i32, %c0_i32_0 : i32, i32
  }
  func.func @transform_3(%arg0: i32) -> (i32, i32) {
    %c0_i32 = arith.constant 0 : i32
    %c0_i32_0 = arith.constant 0 : i32
    %c0_i32_1 = arith.constant 0 : i32
    return %c0_i32, %c0_i32_0 : i32, i32
  }
  func.func @transform_4(%arg0: i32) -> (i32, i32) {
    %c0_i32 = arith.constant 0 : i32
    %c0_i32_0 = arith.constant 0 : i32
    return %c0_i32, %arg0 : i32, i32
  }
  func.func @transform_5(%arg0: i32) -> (i32, i32) {
    %c0_i32 = arith.constant 0 : i32
    %c0_i32_0 = arith.constant 0 : i32
    return %c0_i32, %arg0 : i32, i32
  }
  func.func @transform_6(%arg0: i32) -> (i32, i32) {
    %c0_i32 = arith.constant 0 : i32
    %c0_i32_0 = arith.constant 0 : i32
    return %c0_i32, %arg0 : i32, i32
  }
}

</mosaic_0001>

<llo_original>
// kernel: basic_block_forward.1
$region0: #{basic_block_forward.1}
  #allocation0 [shape = 'u32[]', space=smem, size = 0x4, offset = 0x4, fixed_abs, tag = 'smem constant byte address 0x4 - core index']
  #allocation1 [shape = 'u32[144,128]{1,0:T(1,128)}', space=vmem, size = 0x12000, scoped, tag = 'internal scratch']
  %s0 = inlined_call_operand.vmem [shape: f32[2,4], index: 0, kind: input, shape index: {}]
  %s1 = inlined_call_operand.vmem [shape: f32[4,32], index: 1, kind: input, shape index: {}]
  %s2 = inlined_call_operand.vmem [shape: f32[1,32], index: 2, kind: input, shape index: {}]
  %s3 = inlined_call_operand.vmem [shape: f32[1,32], index: 3, kind: input, shape index: {}]
  %s4 = inlined_call_operand.vmem [shape: f32[32,159744], index: 4, kind: input, shape index: {}]
  %s5 = inlined_call_operand.vmem [shape: f32[1,159744], index: 5, kind: input, shape index: {}]
  %s6 = inlined_call_operand.hbm [shape: f32[2,159744], index: 6, kind: output, shape index: {}]
  %s7 = sld [smem:[#allocation0]]
  $region80: #{basic_block_forward.1} parent=0
    _
  %s9 = ssub.s32 1, %s7
  %s10 = scalar_select 0, %s9, %s7
  $region1: #{basic_block_forward.1} parent=0
    #allocation2 [shape = 'u8[5111808]{0}', space=vmem, size = 0x4e0000, scoped, tag = 'input window, operand 4']
    #allocation3 [shape = 'u8[319488]{0}', space=vmem, size = 0x4e000, scoped, tag = 'output window, operand 0']
    #allocation4 [shape = 's32[2]{0}', space=sflag, size = 0x8, scoped, tag = 'scoped memory for basic_block_forward.1']
    %11 = vsyncpa [#allocation4], 0
    %s12 = scalar_lea.sflag [#allocation4], 1
    %13 = vsyncpa %s12, 0
    loop: start=0, step=1, limit=10
    $region2: #{basic_block_forward.1} parent=1 // loop_pre_header
      _
    $region3: #{basic_block_forward.1} parent=1 // loop_header
      %s15 = sphi 0, %s19
      %p16 = scmp.ge.s32.totalorder %s15, 10
      %s23 = sphi 0, %s23
      %s25 = sphi 0, %s23
      %s26 = sphi 0, %s25
      %s40 = sphi 0, %s26
      %s44 = sphi 0, %s44
      %s46 = sphi 0, %s44
      %s47 = sphi 0, %s46
      %s61 = sphi 0, %s47
      %s65 = sphi 0, %s65
      %s67 = sphi 0, %s65
      %s68 = sphi 0, %s67
      %s82 = sphi 0, %s68
      %s86 = sphi 0, %s86
      %s88 = sphi 0, %s86
      %s89 = sphi 0, %s88
      %s103 = sphi 0, %s89
      %s109 = sphi 0, %s111
      %s112 = sphi 0, %s109
      %s113 = sphi 0, %s112
      %s129 = sphi 0, %s113
      %s135 = sphi 0, %s137
      %s138 = sphi 0, %s135
      %s139 = sphi 0, %s138
      %s155 = sphi 0, %s139
      %s161 = sphi 0, %s163
      %s164 = sphi 0, %s161
      %s165 = sphi 0, %s164
      %s181 = sphi 0, %s165
    $region4: #{basic_block_forward.1} parent=1 // loop_header_branch
      %18 = sbr.rel (%p16) target = $region8
    $region5: #{basic_block_forward.1} parent=1 // loop_body
      %s20 = ssub.s32 %s15, 1
      %s21 = ssub.s32 %s15, 2
      %s22 = sadd.s32 %s15, 1
      %s24 = sadd.s32 %s23, 1
      %p27 = scmp.eq.s32.totalorder %s15, 7
      %p28 = scmp.ne.s32.totalorder %s23, %s25
      %p29 = scmp.eq.s32.totalorder %s15, 0
      %p30 = por %p28, %p29
      %p31 = scmp.ne.s32.totalorder %s23, %s25
      %p32 = scmp.eq.s32.totalorder %s20, 7
      %p33 = por %p31, %p32
      %p34 = scmp.ne.s32.totalorder %s25, %s26
      %p35 = scmp.eq.s32.totalorder %s20, 0
      %p36 = por %p34, %p35
      %p37 = scmp.ne.s32.totalorder %s25, %s26
      %p38 = scmp.eq.s32.totalorder %s21, 7
      %p39 = por %p37, %p38
      %p41 = scmp.ne.s32.totalorder %s26, %s40
      %p42 = scmp.eq.s32.totalorder %s21, 0
      %p43 = por %p41, %p42
      %s45 = sadd.s32 %s44, 1
      %p48 = scmp.eq.s32.totalorder %s15, 7
      %p49 = scmp.ne.s32.totalorder %s44, %s46
      %p50 = scmp.eq.s32.totalorder %s15, 0
      %p51 = por %p49, %p50
      %p52 = scmp.ne.s32.totalorder %s44, %s46
      %p53 = scmp.eq.s32.totalorder %s20, 7
      %p54 = por %p52, %p53
      %p55 = scmp.ne.s32.totalorder %s46, %s47
      %p56 = scmp.eq.s32.totalorder %s20, 0
      %p57 = por %p55, %p56
      %p58 = scmp.ne.s32.totalorder %s46, %s47
      %p59 = scmp.eq.s32.totalorder %s21, 7
      %p60 = por %p58, %p59
      %p62 = scmp.ne.s32.totalorder %s47, %s61
      %p63 = scmp.eq.s32.totalorder %s21, 0
      %p64 = por %p62, %p63
      %s66 = sadd.s32 %s65, 1
      %p69 = scmp.eq.s32.totalorder %s15, 7
      %p70 = scmp.ne.s32.totalorder %s65, %s67
      %p71 = scmp.eq.s32.totalorder %s15, 0
      %p72 = por %p70, %p71
      %p73 = scmp.ne.s32.totalorder %s65, %s67
      %p74 = scmp.eq.s32.totalorder %s20, 7
      %p75 = por %p73, %p74
      %p76 = scmp.ne.s32.totalorder %s67, %s68
      %p77 = scmp.eq.s32.totalorder %s20, 0
      %p78 = por %p76, %p77
      %p79 = scmp.ne.s32.totalorder %s67, %s68
      %p80 = scmp.eq.s32.totalorder %s21, 7
      %p81 = por %p79, %p80
      %p83 = scmp.ne.s32.totalorder %s68, %s82
      %p84 = scmp.eq.s32.totalorder %s21, 0
      %p85 = por %p83, %p84
      %s87 = sadd.s32 %s86, 1
      %p90 = scmp.eq.s32.totalorder %s15, 7
      %p91 = scmp.ne.s32.totalorder %s86, %s88
      %p92 = scmp.eq.s32.totalorder %s15, 0
      %p93 = por %p91, %p92
      %p94 = scmp.ne.s32.totalorder %s86, %s88
      %p95 = scmp.eq.s32.totalorder %s20, 7
      %p96 = por %p94, %p95
      %p97 = scmp.ne.s32.totalorder %s88, %s89
      %p98 = scmp.eq.s32.totalorder %s20, 0
      %p99 = por %p97, %p98
      %p100 = scmp.ne.s32.totalorder %s88, %s89
      %p101 = scmp.eq.s32.totalorder %s21, 7
      %p102 = por %p100, %p101
      %p104 = scmp.ne.s32.totalorder %s89, %s103
      %p105 = scmp.eq.s32.totalorder %s21, 0
      %p106 = por %p104, %p105
      %s107 = ssub.s32 %s15, %s22
      %p108 = scmp.eq.s32.totalorder %s107, 0
      %s110 = sadd.s32 %s109, 1
      %s111 = scalar_select %p108, %s109, %s110
      %p114 = pneg %p108
      %p115 = scmp.eq.s32.totalorder %s15, 7
      %p116 = por %p114, %p115
      %p117 = scmp.ne.s32.totalorder %s109, %s112
      %p118 = scmp.eq.s32.totalorder %s15, 0
      %p119 = por %p117, %p118
      %p120 = scmp.ne.s32.totalorder %s109, %s112
      %p121 = scmp.eq.s32.totalorder %s20, 7
      %p122 = por %p120, %p121
      %p123 = scmp.ne.s32.totalorder %s112, %s113
      %p124 = scmp.eq.s32.totalorder %s20, 0
      %p125 = por %p123, %p124
      %p126 = scmp.ne.s32.totalorder %s112, %s113
      %p127 = scmp.eq.s32.totalorder %s21, 7
      %p128 = por %p126, %p127
      %p130 = scmp.ne.s32.totalorder %s113, %s129
      %p131 = scmp.eq.s32.totalorder %s21, 0
      %p132 = por %p130, %p131
      %s133 = ssub.s32 %s15, %s22
      %p134 = scmp.eq.s32.totalorder %s133, 0
      %s136 = sadd.s32 %s135, 1
      %s137 = scalar_select %p134, %s135, %s136
      %p140 = pneg %p134
      %p141 = scmp.eq.s32.totalorder %s15, 7
      %p142 = por %p140, %p141
      %p143 = scmp.ne.s32.totalorder %s135, %s138
      %p144 = scmp.eq.s32.totalorder %s15, 0
      %p145 = por %p143, %p144
      %p146 = scmp.ne.s32.totalorder %s135, %s138
      %p147 = scmp.eq.s32.totalorder %s20, 7
      %p148 = por %p146, %p147
      %p149 = scmp.ne.s32.totalorder %s138, %s139
      %p150 = scmp.eq.s32.totalorder %s20, 0
      %p151 = por %p149, %p150
      %p152 = scmp.ne.s32.totalorder %s138, %s139
      %p153 = scmp.eq.s32.totalorder %s21, 7
      %p154 = por %p152, %p153
      %p156 = scmp.ne.s32.totalorder %s139, %s155
      %p157 = scmp.eq.s32.totalorder %s21, 0
      %p158 = por %p156, %p157
      %s159 = ssub.s32 %s15, %s22
      %p160 = scmp.eq.s32.totalorder %s159, 0
      %s162 = sadd.s32 %s161, 1
      %s163 = scalar_select %p160, %s161, %s162
      %p166 = pneg %p160
      %p167 = scmp.eq.s32.totalorder %s15, 7
      %p168 = por %p166, %p167
      %p169 = scmp.ne.s32.totalorder %s161, %s164
      %p170 = scmp.eq.s32.totalorder %s15, 0
      %p171 = por %p169, %p170
      %p172 = scmp.ne.s32.totalorder %s161, %s164
      %p173 = scmp.eq.s32.totalorder %s20, 7
      %p174 = por %p172, %p173
      %p175 = scmp.ne.s32.totalorder %s164, %s165
      %p176 = scmp.eq.s32.totalorder %s20, 0
      %p177 = por %p175, %p176
      %p178 = scmp.ne.s32.totalorder %s164, %s165
      %p179 = scmp.eq.s32.totalorder %s21, 7
      %p180 = por %p178, %p179
      %p182 = scmp.ne.s32.totalorder %s165, %s181
      %p183 = scmp.eq.s32.totalorder %s21, 0
      %p184 = por %p182, %p183
      %p185 = scmp.le.s32.totalorder 1, %s15
      %p186 = scmp.lt.s32.totalorder %s15, 9
      %p187 = pnand %p185, %p186
      %p188 = pneg %p187
      // Predicated region
      $region9: #{basic_block_forward.1} parent=5 // pred_check
        _
      $region10: #{basic_block_forward.1} parent=5 // pred_check_branch
        %190 = sbr.rel (%p187) target = $region12
      $region11: #{basic_block_forward.1} parent=5 // pred_region
        %s191 = ssub.s32 %s15, 1
        // Predicated region
        $region13: #{basic_block_forward.1} parent=11 // pred_check
          %p192 = pneg %p36
        $region14: #{basic_block_forward.1} parent=11 // pred_check_branch
          %194 = sbr.rel (%p192) target = $region16
        $region15: #{basic_block_forward.1} parent=11 // pred_region
          _
        $region16: #{basic_block_forward.1} parent=11 // pred_fallthru
          _
        // Predicated region
        $region17: #{basic_block_forward.1} parent=11 // pred_check
          %p195 = pneg %p57
        $region18: #{basic_block_forward.1} parent=11 // pred_check_branch
          %197 = sbr.rel (%p195) target = $region20
        $region19: #{basic_block_forward.1} parent=11 // pred_region
          _
        $region20: #{basic_block_forward.1} parent=11 // pred_fallthru
          _
        // Predicated region
        $region21: #{basic_block_forward.1} parent=11 // pred_check
          %p198 = pneg %p78
        $region22: #{basic_block_forward.1} parent=11 // pred_check_branch
          %200 = sbr.rel (%p198) target = $region24
        $region23: #{basic_block_forward.1} parent=11 // pred_region
          _
        $region24: #{basic_block_forward.1} parent=11 // pred_fallthru
          _
        // Predicated region
        $region25: #{basic_block_forward.1} parent=11 // pred_check
          %p201 = pneg %p99
        $region26: #{basic_block_forward.1} parent=11 // pred_check_branch
          %203 = sbr.rel (%p201) target = $region28
        $region27: #{basic_block_forward.1} parent=11 // pred_region
          _
        $region28: #{basic_block_forward.1} parent=11 // pred_fallthru
          _
      $region12: #{basic_block_forward.1} parent=5 // pred_fallthru
        _
      %p204 = scmp.lt.s32.totalorder %s15, 8
      // Predicated region
      $region29: #{basic_block_forward.1} parent=5 // pred_check
        %p205 = pneg %p204
      $region30: #{basic_block_forward.1} parent=5 // pred_check_branch
        %207 = sbr.rel (%p205) target = $region32
      $region31: #{basic_block_forward.1} parent=5 // pred_region
        // Predicated region
        $region33: #{basic_block_forward.1} parent=31 // pred_check
          %p208 = pneg %p119
        $region34: #{basic_block_forward.1} parent=31 // pred_check_branch
          %210 = sbr.rel (%p208) target = $region36
        $region35: #{basic_block_forward.1} parent=31 // pred_region
          %s211 = sand.u32 %s109, 1
          %s212 = sand.u32 %s109, 1
          %s213 = smul.addr %s212, 4992
          %s214 = scalar_lea.vmem [#allocation2], %s213
          %s215 = smul.u32 156, %s15
          %s216 = smul.addr %s215, 8
          %s217 = scalar_lea.vmem %s4, %s216
          // Predicated region
          $region37: #{basic_block_forward.1} parent=35 // pred_check
            _
          $region38: #{basic_block_forward.1} parent=35 // pred_check_branch
            %219 = sbr.rel (0) target = $region40
          $region39: #{basic_block_forward.1} parent=35 // pred_region
            // Predicated region
            $region41: #{basic_block_forward.1} parent=39 // pred_check
              _
            $region42: #{basic_block_forward.1} parent=39 // pred_check_branch
              %221 = sbr.rel (0) target = $region44
            $region43: #{basic_block_forward.1} parent=39 // pred_region
              loop: start=0, step=1, limit=1
              $region45: #{basic_block_forward.1} parent=43 // loop_pre_header
                _
              $region46: #{basic_block_forward.1} parent=43 // loop_header
                %s223 = sphi 0, %s227
                %p224 = scmp.ge.s32.totalorder %s223, 1
                %s228 = sphi %s217, %s217
                %s229 = sphi %s214, %s214
              $region47: #{basic_block_forward.1} parent=43 // loop_header_branch
                %226 = sbr.rel (%p224) target = $region51
              $region48: #{basic_block_forward.1} parent=43 // loop_body
                %v230 = vld [vmem:[%s228] sm:$0xff]
                %231 = vst [vmem:[%s229] sm:$0xff] %v230
                %v232 = vld [vmem:[%s228 + $0x8] sm:$0xff]
                %233 = vst [vmem:[%s229 + $0x8] sm:$0xff] %v232
                %v234 = vld [vmem:[%s228 + $0x10] sm:$0xff]
                %235 = vst [vmem:[%s229 + $0x10] sm:$0xff] %v234
                %v236 = vld [vmem:[%s228 + $0x18] sm:$0xff]
                %237 = vst [vmem:[%s229 + $0x18] sm:$0xff] %v236
                %v238 = vld [vmem:[%s228 + $0x20] sm:$0xff]
                %239 = vst [vmem:[%s229 + $0x20] sm:$0xff] %v238
                %v240 = vld [vmem:[%s228 + $0x28] sm:$0xff]
                %241 = vst [vmem:[%s229 + $0x28] sm:$0xff] %v240
                %v242 = vld [vmem:[%s228 + $0x30] sm:$0xff]
                %243 = vst [vmem:[%s229 + $0x30] sm:$0xff] %v242
                %v244 = vld [vmem:[%s228 + $0x38] sm:$0xff]
                %245 = vst [vmem:[%s229 + $0x38] sm:$0xff] %v244
                %v246 = vld [vmem:[%s228 + $0x40] sm:$0xff]
                %247 = vst [vmem:[%s229 + $0x40] sm:$0xff] %v246
                %v248 = vld [vmem:[%s228 + $0x48] sm:$0xff]
                %249 = vst [vmem:[%s229 + $0x48] sm:$0xff] %v248
                %v250 = vld [vmem:[%s228 + $0x50] sm:$0xff]
                %251 = vst [vmem:[%s229 + $0x50] sm:$0xff] %v250
                %v252 = vld [vmem:[%s228 + $0x58] sm:$0xff]
                %253 = vst [vmem:[%s229 + $0x58] sm:$0xff] %v252
                %v254 = vld [vmem:[%s228 + $0x60] sm:$0xff]
                %255 = vst [vmem:[%s229 + $0x60] sm:$0xff] %v254
                %v256 = vld [vmem:[%s228 + $0x68] sm:$0xff]
                %257 = vst [vmem:[%s229 + $0x68] sm:$0xff] %v256
                %v258 = vld [vmem:[%s228 + $0x70] sm:$0xff]
                %259 = vst [vmem:[%s229 + $0x70] sm:$0xff] %v258
                %v260 = vld [vmem:[%s228 + $0x78] sm:$0xff]
                %261 = vst [vmem:[%s229 + $0x78] sm:$0xff] %v260
                %v262 = vld [vmem:[%s228 + $0x80] sm:$0xff]
                %263 = vst [vmem:[%s229 + $0x80] sm:$0xff] %v262
                %v264 = vld [vmem:[%s228 + $0x88] sm:$0xff]
                %265 = vst [vmem:[%s229 + $0x88] sm:$0xff] %v264
                %v266 = vld [vmem:[%s228 + $0x90] sm:$0xff]
                %267 = vst [vmem:[%s229 + $0x90] sm:$0xff] %v266
                %v268 = vld [vmem:[%s228 + $0x98] sm:$0xff]
                %269 = vst [vmem:[%s229 + $0x98] sm:$0xff] %v268
                %v270 = vld [vmem:[%s228 + $0xa0] sm:$0xff]
                %271 = vst [vmem:[%s229 + $0xa0] sm:$0xff] %v270
                %v272 = vld [vmem:[%s228 + $0xa8] sm:$0xff]
                %273 = vst [vmem:[%s229 + $0xa8] sm:$0xff] %v272
                %v274 = vld [vmem:[%s228 + $0xb0] sm:$0xff]
                %275 = vst [vmem:[%s229 + $0xb0] sm:$0xff] %v274
                %v276 = vld [vmem:[%s228 + $0xb8] sm:$0xff]
                %277 = vst [vmem:[%s229 + $0xb8] sm:$0xff] %v276
                %v278 = vld [vmem:[%s228 + $0xc0] sm:$0xff]
                %279 = vst [vmem:[%s229 + $0xc0] sm:$0xff] %v278
                %v280 = vld [vmem:[%s228 + $0xc8] sm:$0xff]
                %281 = vst [vmem:[%s229 + $0xc8] sm:$0xff] %v280
                %v282 = vld [vmem:[%s228 + $0xd0] sm:$0xff]
                %283 = vst [vmem:[%s229 + $0xd0] sm:$0xff] %v282
                %v284 = vld [vmem:[%s228 + $0xd8] sm:$0xff]
                %285 = vst [vmem:[%s229 + $0xd8] sm:$0xff] %v284
                %v286 = vld [vmem:[%s228 + $0xe0] sm:$0xff]
                %287 = vst [vmem:[%s229 + $0xe0] sm:$0xff] %v286
                %v288 = vld [vmem:[%s228 + $0xe8] sm:$0xff]
                %289 = vst [vmem:[%s229 + $0xe8] sm:$0xff] %v288
                %v290 = vld [vmem:[%s228 + $0xf0] sm:$0xff]
                %291 = vst [vmem:[%s229 + $0xf0] sm:$0xff] %v290
                %v292 = vld [vmem:[%s228 + $0xf8] sm:$0xff]
                %293 = vst [vmem:[%s229 + $0xf8] sm:$0xff] %v292
                %v294 = vld [vmem:[%s228 + $0x100] sm:$0xff]
                %295 = vst [vmem:[%s229 + $0x100] sm:$0xff] %v294
                %v296 = vld [vmem:[%s228 + $0x108] sm:$0xff]
                %297 = vst [vmem:[%s229 + $0x108] sm:$0xff] %v296
                %v298 = vld [vmem:[%s228 + $0x110] sm:$0xff]
                %299 = vst [vmem:[%s229 + $0x110] sm:$0xff] %v298
                %v300 = vld [vmem:[%s228 + $0x118] sm:$0xff]
                %301 = vst [vmem:[%s229 + $0x118] sm:$0xff] %v300
                %v302 = vld [vmem:[%s228 + $0x120] sm:$0xff]
                %303 = vst [vmem:[%s229 + $0x120] sm:$0xff] %v302
                %v304 = vld [vmem:[%s228 + $0x128] sm:$0xff]
                %305 = vst [vmem:[%s229 + $0x128] sm:$0xff] %v304
                %v306 = vld [vmem:[%s228 + $0x130] sm:$0xff]
                %307 = vst [vmem:[%s229 + $0x130] sm:$0xff] %v306
                %v308 = vld [vmem:[%s228 + $0x138] sm:$0xff]
                %309 = vst [vmem:[%s229 + $0x138] sm:$0xff] %v308
                %v310 = vld [vmem:[%s228 + $0x140] sm:$0xff]
                %311 = vst [vmem:[%s229 + $0x140] sm:$0xff] %v310
                %v312 = vld [vmem:[%s228 + $0x148] sm:$0xff]
                %313 = vst [vmem:[%s229 + $0x148] sm:$0xff] %v312
                %v314 = vld [vmem:[%s228 + $0x150] sm:$0xff]
                %315 = vst [vmem:[%s229 + $0x150] sm:$0xff] %v314
                %v316 = vld [vmem:[%s228 + $0x158] sm:$0xff]
                %317 = vst [vmem:[%s229 + $0x158] sm:$0xff] %v316
                %v318 = vld [vmem:[%s228 + $0x160] sm:$0xff]
                %319 = vst [vmem:[%s229 + $0x160] sm:$0xff] %v318
                %v320 = vld [vmem:[%s228 + $0x168] sm:$0xff]
                %321 = vst [vmem:[%s229 + $0x168] sm:$0xff] %v320
                %v322 = vld [vmem:[%s228 + $0x170] sm:$0xff]
                %323 = vst [vmem:[%s229 + $0x170] sm:$0xff] %v322
                %v324 = vld [vmem:[%s228 + $0x178] sm:$0xff]
                %325 = vst [vmem:[%s229 + $0x178] sm:$0xff] %v324
                %v326 = vld [vmem:[%s228 + $0x180] sm:$0xff]
                %327 = vst [vmem:[%s229 + $0x180] sm:$0xff] %v326
                %v328 = vld [vmem:[%s228 + $0x188] sm:$0xff]
                %329 = vst [vmem:[%s229 + $0x188] sm:$0xff] %v328
                %v330 = vld [vmem:[%s228 + $0x190] sm:$0xff]
                %331 = vst [vmem:[%s229 + $0x190] sm:$0xff] %v330
                %v332 = vld [vmem:[%s228 + $0x198] sm:$0xff]
                %333 = vst [vmem:[%s229 + $0x198] sm:$0xff] %v332
                %v334 = vld [vmem:[%s228 + $0x1a0] sm:$0xff]
                %335 = vst [vmem:[%s229 + $0x1a0] sm:$0xff] %v334
                %v336 = vld [vmem:[%s228 + $0x1a8] sm:$0xff]
                %337 = vst [vmem:[%s229 + $0x1a8] sm:$0xff] %v336
                %v338 = vld [vmem:[%s228 + $0x1b0] sm:$0xff]
                %339 = vst [vmem:[%s229 + $0x1b0] sm:$0xff] %v338
                %v340 = vld [vmem:[%s228 + $0x1b8] sm:$0xff]
                %341 = vst [vmem:[%s229 + $0x1b8] sm:$0xff] %v340
                %v342 = vld [vmem:[%s228 + $0x1c0] sm:$0xff]
                %343 = vst [vmem:[%s229 + $0x1c0] sm:$0xff] %v342
                %v344 = vld [vmem:[%s228 + $0x1c8] sm:$0xff]
                %345 = vst [vmem:[%s229 + $0x1c8] sm:$0xff] %v344
                %v346 = vld [vmem:[%s228 + $0x1d0] sm:$0xff]
                %347 = vst [vmem:[%s229 + $0x1d0] sm:$0xff] %v346
                %v348 = vld [vmem:[%s228 + $0x1d8] sm:$0xff]
                %349 = vst [vmem:[%s229 + $0x1d8] sm:$0xff] %v348
                %v350 = vld [vmem:[%s228 + $0x1e0] sm:$0xff]
                %351 = vst [vmem:[%s229 + $0x1e0] sm:$0xff] %v350
                %v352 = vld [vmem:[%s228 + $0x1e8] sm:$0xff]
                %353 = vst [vmem:[%s229 + $0x1e8] sm:$0xff] %v352
                %v354 = vld [vmem:[%s228 + $0x1f0] sm:$0xff]
                %355 = vst [vmem:[%s229 + $0x1f0] sm:$0xff] %v354
                %v356 = vld [vmem:[%s228 + $0x1f8] sm:$0xff]
                %357 = vst [vmem:[%s229 + $0x1f8] sm:$0xff] %v356
                %v358 = vld [vmem:[%s228 + $0x200] sm:$0xff]
                %359 = vst [vmem:[%s229 + $0x200] sm:$0xff] %v358
                %v360 = vld [vmem:[%s228 + $0x208] sm:$0xff]
                %361 = vst [vmem:[%s229 + $0x208] sm:$0xff] %v360
                %v362 = vld [vmem:[%s228 + $0x210] sm:$0xff]
                %363 = vst [vmem:[%s229 + $0x210] sm:$0xff] %v362
                %v364 = vld [vmem:[%s228 + $0x218] sm:$0xff]
                %365 = vst [vmem:[%s229 + $0x218] sm:$0xff] %v364
                %v366 = vld [vmem:[%s228 + $0x220] sm:$0xff]
                %367 = vst [vmem:[%s229 + $0x220] sm:$0xff] %v366
                %v368 = vld [vmem:[%s228 + $0x228] sm:$0xff]
                %369 = vst [vmem:[%s229 + $0x228] sm:$0xff] %v368
                %v370 = vld [vmem:[%s228 + $0x230] sm:$0xff]
                %371 = vst [vmem:[%s229 + $0x230] sm:$0xff] %v370
                %v372 = vld [vmem:[%s228 + $0x238] sm:$0xff]
                %373 = vst [vmem:[%s229 + $0x238] sm:$0xff] %v372
                %v374 = vld [vmem:[%s228 + $0x240] sm:$0xff]
                %375 = vst [vmem:[%s229 + $0x240] sm:$0xff] %v374
                %v376 = vld [vmem:[%s228 + $0x248] sm:$0xff]
                %377 = vst [vmem:[%s229 + $0x248] sm:$0xff] %v376
                %v378 = vld [vmem:[%s228 + $0x250] sm:$0xff]
                %379 = vst [vmem:[%s229 + $0x250] sm:$0xff] %v378
                %v380 = vld [vmem:[%s228 + $0x258] sm:$0xff]
                %381 = vst [vmem:[%s229 + $0x258] sm:$0xff] %v380
                %v382 = vld [vmem:[%s228 + $0x260] sm:$0xff]
                %383 = vst [vmem:[%s229 + $0x260] sm:$0xff] %v382
                %v384 = vld [vmem:[%s228 + $0x268] sm:$0xff]
                %385 = vst [vmem:[%s229 + $0x268] sm:$0xff] %v384
                %v386 = vld [vmem:[%s228 + $0x270] sm:$0xff]
                %387 = vst [vmem:[%s229 + $0x270] sm:$0xff] %v386
                %v388 = vld [vmem:[%s228 + $0x278] sm:$0xff]
                %389 = vst [vmem:[%s229 + $0x278] sm:$0xff] %v388
                %v390 = vld [vmem:[%s228 + $0x280] sm:$0xff]
                %391 = vst [vmem:[%s229 + $0x280] sm:$0xff] %v390
                %v392 = vld [vmem:[%s228 + $0x288] sm:$0xff]
                %393 = vst [vmem:[%s229 + $0x288] sm:$0xff] %v392
                %v394 = vld [vmem:[%s228 + $0x290] sm:$0xff]
                %395 = vst [vmem:[%s229 + $0x290] sm:$0xff] %v394
                %v396 = vld [vmem:[%s228 + $0x298] sm:$0xff]
                %397 = vst [vmem:[%s229 + $0x298] sm:$0xff] %v396
                %v398 = vld [vmem:[%s228 + $0x2a0] sm:$0xff]
                %399 = vst [vmem:[%s229 + $0x2a0] sm:$0xff] %v398
                %v400 = vld [vmem:[%s228 + $0x2a8] sm:$0xff]
                %401 = vst [vmem:[%s229 + $0x2a8] sm:$0xff] %v400
                %v402 = vld [vmem:[%s228 + $0x2b0] sm:$0xff]
                %403 = vst [vmem:[%s229 + $0x2b0] sm:$0xff] %v402
                %v404 = vld [vmem:[%s228 + $0x2b8] sm:$0xff]
                %405 = vst [vmem:[%s229 + $0x2b8] sm:$0xff] %v404
                %v406 = vld [vmem:[%s228 + $0x2c0] sm:$0xff]
                %407 = vst [vmem:[%s229 + $0x2c0] sm:$0xff] %v406
                %v408 = vld [vmem:[%s228 + $0x2c8] sm:$0xff]
                %409 = vst [vmem:[%s229 + $0x2c8] sm:$0xff] %v408
                %v410 = vld [vmem:[%s228 + $0x2d0] sm:$0xff]
                %411 = vst [vmem:[%s229 + $0x2d0] sm:$0xff] %v410
                %v412 = vld [vmem:[%s228 + $0x2d8] sm:$0xff]
                %413 = vst [vmem:[%s229 + $0x2d8] sm:$0xff] %v412
                %v414 = vld [vmem:[%s228 + $0x2e0] sm:$0xff]
                %415 = vst [vmem:[%s229 + $0x2e0] sm:$0xff] %v414
                %v416 = vld [vmem:[%s228 + $0x2e8] sm:$0xff]
                %417 = vst [vmem:[%s229 + $0x2e8] sm:$0xff] %v416
                %v418 = vld [vmem:[%s228 + $0x2f0] sm:$0xff]
                %419 = vst [vmem:[%s229 + $0x2f0] sm:$0xff] %v418
                %v420 = vld [vmem:[%s228 + $0x2f8] sm:$0xff]
                %421 = vst [vmem:[%s229 + $0x2f8] sm:$0xff] %v420
                %v422 = vld [vmem:[%s228 + $0x300] sm:$0xff]
                %423 = vst [vmem:[%s229 + $0x300] sm:$0xff] %v422
                %v424 = vld [vmem:[%s228 + $0x308] sm:$0xff]
                %425 = vst [vmem:[%s229 + $0x308] sm:$0xff] %v424
                %v426 = vld [vmem:[%s228 + $0x310] sm:$0xff]
                %427 = vst [vmem:[%s229 + $0x310] sm:$0xff] %v426
                %v428 = vld [vmem:[%s228 + $0x318] sm:$0xff]
                %429 = vst [vmem:[%s229 + $0x318] sm:$0xff] %v428
                %v430 = vld [vmem:[%s228 + $0x320] sm:$0xff]
                %431 = vst [vmem:[%s229 + $0x320] sm:$0xff] %v430
                %v432 = vld [vmem:[%s228 + $0x328] sm:$0xff]
                %433 = vst [vmem:[%s229 + $0x328] sm:$0xff] %v432
                %v434 = vld [vmem:[%s228 + $0x330] sm:$0xff]
                %435 = vst [vmem:[%s229 + $0x330] sm:$0xff] %v434
                %v436 = vld [vmem:[%s228 + $0x338] sm:$0xff]
                %437 = vst [vmem:[%s229 + $0x338] sm:$0xff] %v436
                %v438 = vld [vmem:[%s228 + $0x340] sm:$0xff]
                %439 = vst [vmem:[%s229 + $0x340] sm:$0xff] %v438
                %v440 = vld [vmem:[%s228 + $0x348] sm:$0xff]
                %441 = vst [vmem:[%s229 + $0x348] sm:$0xff] %v440
                %v442 = vld [vmem:[%s228 + $0x350] sm:$0xff]
                %443 = vst [vmem:[%s229 + $0x350] sm:$0xff] %v442
                %v444 = vld [vmem:[%s228 + $0x358] sm:$0xff]
                %445 = vst [vmem:[%s229 + $0x358] sm:$0xff] %v444
                %v446 = vld [vmem:[%s228 + $0x360] sm:$0xff]
                %447 = vst [vmem:[%s229 + $0x360] sm:$0xff] %v446
                %v448 = vld [vmem:[%s228 + $0x368] sm:$0xff]
                %449 = vst [vmem:[%s229 + $0x368] sm:$0xff] %v448
                %v450 = vld [vmem:[%s228 + $0x370] sm:$0xff]
                %451 = vst [vmem:[%s229 + $0x370] sm:$0xff] %v450
                %v452 = vld [vmem:[%s228 + $0x378] sm:$0xff]
                %453 = vst [vmem:[%s229 + $0x378] sm:$0xff] %v452
                %v454 = vld [vmem:[%s228 + $0x380] sm:$0xff]
                %455 = vst [vmem:[%s229 + $0x380] sm:$0xff] %v454
                %v456 = vld [vmem:[%s228 + $0x388] sm:$0xff]
                %457 = vst [vmem:[%s229 + $0x388] sm:$0xff] %v456
                %v458 = vld [vmem:[%s228 + $0x390] sm:$0xff]
                %459 = vst [vmem:[%s229 + $0x390] sm:$0xff] %v458
                %v460 = vld [vmem:[%s228 + $0x398] sm:$0xff]
                %461 = vst [vmem:[%s229 + $0x398] sm:$0xff] %v460
                %v462 = vld [vmem:[%s228 + $0x3a0] sm:$0xff]
                %463 = vst [vmem:[%s229 + $0x3a0] sm:$0xff] %v462
                %v464 = vld [vmem:[%s228 + $0x3a8] sm:$0xff]
                %465 = vst [vmem:[%s229 + $0x3a8] sm:$0xff] %v464
                %v466 = vld [vmem:[%s228 + $0x3b0] sm:$0xff]
                %467 = vst [vmem:[%s229 + $0x3b0] sm:$0xff] %v466
                %v468 = vld [vmem:[%s228 + $0x3b8] sm:$0xff]
                %469 = vst [vmem:[%s229 + $0x3b8] sm:$0xff] %v468
                %v470 = vld [vmem:[%s228 + $0x3c0] sm:$0xff]
                %471 = vst [vmem:[%s229 + $0x3c0] sm:$0xff] %v470
                %v472 = vld [vmem:[%s228 + $0x3c8] sm:$0xff]
                %473 = vst [vmem:[%s229 + $0x3c8] sm:$0xff] %v472
                %v474 = vld [vmem:[%s228 + $0x3d0] sm:$0xff]
                %475 = vst [vmem:[%s229 + $0x3d0] sm:$0xff] %v474
                %v476 = vld [vmem:[%s228 + $0x3d8] sm:$0xff]
                %477 = vst [vmem:[%s229 + $0x3d8] sm:$0xff] %v476
                %v478 = vld [vmem:[%s228 + $0x3e0] sm:$0xff]
                %479 = vst [vmem:[%s229 + $0x3e0] sm:$0xff] %v478
                %v480 = vld [vmem:[%s228 + $0x3e8] sm:$0xff]
                %481 = vst [vmem:[%s229 + $0x3e8] sm:$0xff] %v480
                %v482 = vld [vmem:[%s228 + $0x3f0] sm:$0xff]
                %483 = vst [vmem:[%s229 + $0x3f0] sm:$0xff] %v482
                %v484 = vld [vmem:[%s228 + $0x3f8] sm:$0xff]
                %485 = vst [vmem:[%s229 + $0x3f8] sm:$0xff] %v484
                %v486 = vld [vmem:[%s228 + $0x400] sm:$0xff]
                %487 = vst [vmem:[%s229 + $0x400] sm:$0xff] %v486
                %v488 = vld [vmem:[%s228 + $0x408] sm:$0xff]
                %489 = vst [vmem:[%s229 + $0x408] sm:$0xff] %v488
                %v490 = vld [vmem:[%s228 + $0x410] sm:$0xff]
                %491 = vst [vmem:[%s229 + $0x410] sm:$0xff] %v490
                %v492 = vld [vmem:[%s228 + $0x418] sm:$0xff]
                %493 = vst [vmem:[%s229 + $0x418] sm:$0xff] %v492
                %v494 = vld [vmem:[%s228 + $0x420] sm:$0xff]
                %495 = vst [vmem:[%s229 + $0x420] sm:$0xff] %v494
                %v496 = vld [vmem:[%s228 + $0x428] sm:$0xff]
                %497 = vst [vmem:[%s229 + $0x428] sm:$0xff] %v496
                %v498 = vld [vmem:[%s228 + $0x430] sm:$0xff]
                %499 = vst [vmem:[%s229 + $0x430] sm:$0xff] %v498
                %v500 = vld [vmem:[%s228 + $0x438] sm:$0xff]
                %501 = vst [vmem:[%s229 + $0x438] sm:$0xff] %v500
                %v502 = vld [vmem:[%s228 + $0x440] sm:$0xff]
                %503 = vst [vmem:[%s229 + $0x440] sm:$0xff] %v502
                %v504 = vld [vmem:[%s228 + $0x448] sm:$0xff]
                %505 = vst [vmem:[%s229 + $0x448] sm:$0xff] %v504
                %v506 = vld [vmem:[%s228 + $0x450] sm:$0xff]
                %507 = vst [vmem:[%s229 + $0x450] sm:$0xff] %v506
                %v508 = vld [vmem:[%s228 + $0x458] sm:$0xff]
                %509 = vst [vmem:[%s229 + $0x458] sm:$0xff] %v508
                %v510 = vld [vmem:[%s228 + $0x460] sm:$0xff]
                %511 = vst [vmem:[%s229 + $0x460] sm:$0xff] %v510
                %v512 = vld [vmem:[%s228 + $0x468] sm:$0xff]
                %513 = vst [vmem:[%s229 + $0x468] sm:$0xff] %v512
                %v514 = vld [vmem:[%s228 + $0x470] sm:$0xff]
                %515 = vst [vmem:[%s229 + $0x470] sm:$0xff] %v514
                %v516 = vld [vmem:[%s228 + $0x478] sm:$0xff]
                %517 = vst [vmem:[%s229 + $0x478] sm:$0xff] %v516
                %v518 = vld [vmem:[%s228 + $0x480] sm:$0xff]
                %519 = vst [vmem:[%s229 + $0x480] sm:$0xff] %v518
                %v520 = vld [vmem:[%s228 + $0x488] sm:$0xff]
                %521 = vst [vmem:[%s229 + $0x488] sm:$0xff] %v520
                %v522 = vld [vmem:[%s228 + $0x490] sm:$0xff]
                %523 = vst [vmem:[%s229 + $0x490] sm:$0xff] %v522
                %v524 = vld [vmem:[%s228 + $0x498] sm:$0xff]
                %525 = vst [vmem:[%s229 + $0x498] sm:$0xff] %v524
                %v526 = vld [vmem:[%s228 + $0x4a0] sm:$0xff]
                %527 = vst [vmem:[%s229 + $0x4a0] sm:$0xff] %v526
                %v528 = vld [vmem:[%s228 + $0x4a8] sm:$0xff]
                %529 = vst [vmem:[%s229 + $0x4a8] sm:$0xff] %v528
                %v530 = vld [vmem:[%s228 + $0x4b0] sm:$0xff]
                %531 = vst [vmem:[%s229 + $0x4b0] sm:$0xff] %v530
                %v532 = vld [vmem:[%s228 + $0x4b8] sm:$0xff]
                %533 = vst [vmem:[%s229 + $0x4b8] sm:$0xff] %v532
                %v534 = vld [vmem:[%s228 + $0x4c0] sm:$0xff]
                %535 = vst [vmem:[%s229 + $0x4c0] sm:$0xff] %v534
                %v536 = vld [vmem:[%s228 + $0x4c8] sm:$0xff]
                %537 = vst [vmem:[%s229 + $0x4c8] sm:$0xff] %v536
                %v538 = vld [vmem:[%s228 + $0x4d0] sm:$0xff]
                %539 = vst [vmem:[%s229 + $0x4d0] sm:$0xff] %v538
                %v540 = vld [vmem:[%s228 + $0x4d8] sm:$0xff]
                %541 = vst [vmem:[%s229 + $0x4d8] sm:$0xff] %v540
                %v542 = vld [vmem:[%s228 + $0x2700] sm:$0xff]
                %543 = vst [vmem:[%s229 + $0x4e0] sm:$0xff] %v542
                %v544 = vld [vmem:[%s228 + $0x2708] sm:$0xff]
                %545 = vst [vmem:[%s229 + $0x4e8] sm:$0xff] %v544
                %v546 = vld [vmem:[%s228 + $0x2710] sm:$0xff]
                %547 = vst [vmem:[%s229 + $0x4f0] sm:$0xff] %v546
                %v548 = vld [vmem:[%s228 + $0x2718] sm:$0xff]
                %549 = vst [vmem:[%s229 + $0x4f8] sm:$0xff] %v548
                %v550 = vld [vmem:[%s228 + $0x2720] sm:$0xff]
                %551 = vst [vmem:[%s229 + $0x500] sm:$0xff] %v550
                %v552 = vld [vmem:[%s228 + $0x2728] sm:$0xff]
                %553 = vst [vmem:[%s229 + $0x508] sm:$0xff] %v552
                %v554 = vld [vmem:[%s228 + $0x2730] sm:$0xff]
                %555 = vst [vmem:[%s229 + $0x510] sm:$0xff] %v554
                %v556 = vld [vmem:[%s228 + $0x2738] sm:$0xff]
                %557 = vst [vmem:[%s229 + $0x518] sm:$0xff] %v556
                %v558 = vld [vmem:[%s228 + $0x2740] sm:$0xff]
                %559 = vst [vmem:[%s229 + $0x520] sm:$0xff] %v558
                %v560 = vld [vmem:[%s228 + $0x2748] sm:$0xff]
                %561 = vst [vmem:[%s229 + $0x528] sm:$0xff] %v560
                %v562 = vld [vmem:[%s228 + $0x2750] sm:$0xff]
                %563 = vst [vmem:[%s229 + $0x530] sm:$0xff] %v562
                %v564 = vld [vmem:[%s228 + $0x2758] sm:$0xff]
                %565 = vst [vmem:[%s229 + $0x538] sm:$0xff] %v564
                %v566 = vld [vmem:[%s228 + $0x2760] sm:$0xff]
                %567 = vst [vmem:[%s229 + $0x540] sm:$0xff] %v566
                %v568 = vld [vmem:[%s228 + $0x2768] sm:$0xff]
                %569 = vst [vmem:[%s229 + $0x548] sm:$0xff] %v568
                %v570 = vld [vmem:[%s228 + $0x2770] sm:$0xff]
                %571 = vst [vmem:[%s229 + $0x550] sm:$0xff] %v570
                %v572 = vld [vmem:[%s228 + $0x2778] sm:$0xff]
                %573 = vst [vmem:[%s229 + $0x558] sm:$0xff] %v572
                %v574 = vld [vmem:[%s228 + $0x2780] sm:$0xff]
                %575 = vst [vmem:[%s229 + $0x560] sm:$0xff] %v574
                %v576 = vld [vmem:[%s228 + $0x2788] sm:$0xff]
                %577 = vst [vmem:[%s229 + $0x568] sm:$0xff] %v576
                %v578 = vld [vmem:[%s228 + $0x2790] sm:$0xff]
                %579 = vst [vmem:[%s229 + $0x570] sm:$0xff] %v578
                %v580 = vld [vmem:[%s228 + $0x2798] sm:$0xff]
                %581 = vst [vmem:[%s229 + $0x578] sm:$0xff] %v580
                %v582 = vld [vmem:[%s228 + $0x27a0] sm:$0xff]
                %583 = vst [vmem:[%s229 + $0x580] sm:$0xff] %v582
                %v584 = vld [vmem:[%s228 + $0x27a8] sm:$0xff]
                %585 = vst [vmem:[%s229 + $0x588] sm:$0xff] %v584
                %v586 = vld [vmem:[%s228 + $0x27b0] sm:$0xff]
                %587 = vst [vmem:[%s229 + $0x590] sm:$0xff] %v586
                %v588 = vld [vmem:[%s228 + $0x27b8] sm:$0xff]
                %589 = vst [vmem:[%s229 + $0x598] sm:$0xff] %v588
                %v590 = vld [vmem:[%s228 + $0x27c0] sm:$0xff]
                %591 = vst [vmem:[%s229 + $0x5a0] sm:$0xff] %v590
                %v592 = vld [vmem:[%s228 + $0x27c8] sm:$0xff]
                %593 = vst [vmem:[%s229 + $0x5a8] sm:$0xff] %v592
                %v594 = vld [vmem:[%s228 + $0x27d0] sm:$0xff]
                %595 = vst [vmem:[%s229 + $0x5b0] sm:$0xff] %v594
                %v596 = vld [vmem:[%s228 + $0x27d8] sm:$0xff]
                %597 = vst [vmem:[%s229 + $0x5b8] sm:$0xff] %v596
                %v598 = vld [vmem:[%s228 + $0x27e0] sm:$0xff]
                %599 = vst [vmem:[%s229 + $0x5c0] sm:$0xff] %v598
                %v600 = vld [vmem:[%s228 + $0x27e8] sm:$0xff]
                %601 = vst [vmem:[%s229 + $0x5c8] sm:$0xff] %v600
                %v602 = vld [vmem:[%s228 + $0x27f0] sm:$0xff]
                %603 = vst [vmem:[%s229 + $0x5d0] sm:$0xff] %v602
                %v604 = vld [vmem:[%s228 + $0x27f8] sm:$0xff]
                %605 = vst [vmem:[%s229 + $0x5d8] sm:$0xff] %v604
                %v606 = vld [vmem:[%s228 + $0x2800] sm:$0xff]
                %607 = vst [vmem:[%s229 + $0x5e0] sm:$0xff] %v606
                %v608 = vld [vmem:[%s228 + $0x2808] sm:$0xff]
                %609 = vst [vmem:[%s229 + $0x5e8] sm:$0xff] %v608
                %v610 = vld [vmem:[%s228 + $0x2810] sm:$0xff]
                %611 = vst [vmem:[%s229 + $0x5f0] sm:$0xff] %v610
                %v612 = vld [vmem:[%s228 + $0x2818] sm:$0xff]
                %613 = vst [vmem:[%s229 + $0x5f8] sm:$0xff] %v612
                %v614 = vld [vmem:[%s228 + $0x2820] sm:$0xff]
                %615 = vst [vmem:[%s229 + $0x600] sm:$0xff] %v614
                %v616 = vld [vmem:[%s228 + $0x2828] sm:$0xff]
                %617 = vst [vmem:[%s229 + $0x608] sm:$0xff] %v616
                %v618 = vld [vmem:[%s228 + $0x2830] sm:$0xff]
                %619 = vst [vmem:[%s229 + $0x610] sm:$0xff] %v618
                %v620 = vld [vmem:[%s228 + $0x2838] sm:$0xff]
                %621 = vst [vmem:[%s229 + $0x618] sm:$0xff] %v620
                %v622 = vld [vmem:[%s228 + $0x2840] sm:$0xff]
                %623 = vst [vmem:[%s229 + $0x620] sm:$0xff] %v622
                %v624 = vld [vmem:[%s228 + $0x2848] sm:$0xff]
                %625 = vst [vmem:[%s229 + $0x628] sm:$0xff] %v624
                %v626 = vld [vmem:[%s228 + $0x2850] sm:$0xff]
                %627 = vst [vmem:[%s229 + $0x630] sm:$0xff] %v626
                %v628 = vld [vmem:[%s228 + $0x2858] sm:$0xff]
                %629 = vst [vmem:[%s229 + $0x638] sm:$0xff] %v628
                %v630 = vld [vmem:[%s228 + $0x2860] sm:$0xff]
                %631 = vst [vmem:[%s229 + $0x640] sm:$0xff] %v630
                %v632 = vld [vmem:[%s228 + $0x2868] sm:$0xff]
                %633 = vst [vmem:[%s229 + $0x648] sm:$0xff] %v632
                %v634 = vld [vmem:[%s228 + $0x2870] sm:$0xff]
                %635 = vst [vmem:[%s229 + $0x650] sm:$0xff] %v634
                %v636 = vld [vmem:[%s228 + $0x2878] sm:$0xff]
                %637 = vst [vmem:[%s229 + $0x658] sm:$0xff] %v636
                %v638 = vld [vmem:[%s228 + $0x2880] sm:$0xff]
                %639 = vst [vmem:[%s229 + $0x660] sm:$0xff] %v638
                %v640 = vld [vmem:[%s228 + $0x2888] sm:$0xff]
                %641 = vst [vmem:[%s229 + $0x668] sm:$0xff] %v640
                %v642 = vld [vmem:[%s228 + $0x2890] sm:$0xff]
                %643 = vst [vmem:[%s229 + $0x670] sm:$0xff] %v642
                %v644 = vld [vmem:[%s228 + $0x2898] sm:$0xff]
                %645 = vst [vmem:[%s229 + $0x678] sm:$0xff] %v644
                %v646 = vld [vmem:[%s228 + $0x28a0] sm:$0xff]
                %647 = vst [vmem:[%s229 + $0x680] sm:$0xff] %v646
                %v648 = vld [vmem:[%s228 + $0x28a8] sm:$0xff]
                %649 = vst [vmem:[%s229 + $0x688] sm:$0xff] %v648
                %v650 = vld [vmem:[%s228 + $0x28b0] sm:$0xff]
                %651 = vst [vmem:[%s229 + $0x690] sm:$0xff] %v650
                %v652 = vld [vmem:[%s228 + $0x28b8] sm:$0xff]
                %653 = vst [vmem:[%s229 + $0x698] sm:$0xff] %v652
                %v654 = vld [vmem:[%s228 + $0x28c0] sm:$0xff]
                %655 = vst [vmem:[%s229 + $0x6a0] sm:$0xff] %v654
                %v656 = vld [vmem:[%s228 + $0x28c8] sm:$0xff]
                %657 = vst [vmem:[%s229 + $0x6a8] sm:$0xff] %v656
                %v658 = vld [vmem:[%s228 + $0x28d0] sm:$0xff]
                %659 = vst [vmem:[%s229 + $0x6b0] sm:$0xff] %v658
                %v660 = vld [vmem:[%s228 + $0x28d8] sm:$0xff]
                %661 = vst [vmem:[%s229 + $0x6b8] sm:$0xff] %v660
                %v662 = vld [vmem:[%s228 + $0x28e0] sm:$0xff]
                %663 = vst [vmem:[%s229 + $0x6c0] sm:$0xff] %v662
                %v664 = vld [vmem:[%s228 + $0x28e8] sm:$0xff]
                %665 = vst [vmem:[%s229 + $0x6c8] sm:$0xff] %v664
                %v666 = vld [vmem:[%s228 + $0x28f0] sm:$0xff]
                %667 = vst [vmem:[%s229 + $0x6d0] sm:$0xff] %v666
                %v668 = vld [vmem:[%s228 + $0x28f8] sm:$0xff]
                %669 = vst [vmem:[%s229 + $0x6d8] sm:$0xff] %v668
                %v670 = vld [vmem:[%s228 + $0x2900] sm:$0xff]
                %671 = vst [vmem:[%s229 + $0x6e0] sm:$0xff] %v670
                %v672 = vld [vmem:[%s228 + $0x2908] sm:$0xff]
                %673 = vst [vmem:[%s229 + $0x6e8] sm:$0xff] %v672
                %v674 = vld [vmem:[%s228 + $0x2910] sm:$0xff]
                %675 = vst [vmem:[%s229 + $0x6f0] sm:$0xff] %v674
                %v676 = vld [vmem:[%s228 + $0x2918] sm:$0xff]
                %677 = vst [vmem:[%s229 + $0x6f8] sm:$0xff] %v676
                %v678 = vld [vmem:[%s228 + $0x2920] sm:$0xff]
                %679 = vst [vmem:[%s229 + $0x700] sm:$0xff] %v678
                %v680 = vld [vmem:[%s228 + $0x2928] sm:$0xff]
                %681 = vst [vmem:[%s229 + $0x708] sm:$0xff] %v680
                %v682 = vld [vmem:[%s228 + $0x2930] sm:$0xff]
                %683 = vst [vmem:[%s229 + $0x710] sm:$0xff] %v682
                %v684 = vld [vmem:[%s228 + $0x2938] sm:$0xff]
                %685 = vst [vmem:[%s229 + $0x718] sm:$0xff] %v684
                %v686 = vld [vmem:[%s228 + $0x2940] sm:$0xff]
                %687 = vst [vmem:[%s229 + $0x720] sm:$0xff] %v686
                %v688 = vld [vmem:[%s228 + $0x2948] sm:$0xff]
                %689 = vst [vmem:[%s229 + $0x728] sm:$0xff] %v688
                %v690 = vld [vmem:[%s228 + $0x2950] sm:$0xff]
                %691 = vst [vmem:[%s229 + $0x730] sm:$0xff] %v690
                %v692 = vld [vmem:[%s228 + $0x2958] sm:$0xff]
                %693 = vst [vmem:[%s229 + $0x738] sm:$0xff] %v692
                %v694 = vld [vmem:[%s228 + $0x2960] sm:$0xff]
                %695 = vst [vmem:[%s229 + $0x740] sm:$0xff] %v694
                %v696 = vld [vmem:[%s228 + $0x2968] sm:$0xff]
                %697 = vst [vmem:[%s229 + $0x748] sm:$0xff] %v696
                %v698 = vld [vmem:[%s228 + $0x2970] sm:$0xff]
                %699 = vst [vmem:[%s229 + $0x750] sm:$0xff] %v698
                %v700 = vld [vmem:[%s228 + $0x2978] sm:$0xff]
                %701 = vst [vmem:[%s229 + $0x758] sm:$0xff] %v700
                %v702 = vld [vmem:[%s228 + $0x2980] sm:$0xff]
                %703 = vst [vmem:[%s229 + $0x760] sm:$0xff] %v702
                %v704 = vld [vmem:[%s228 + $0x2988] sm:$0xff]
                %705 = vst [vmem:[%s229 + $0x768] sm:$0xff] %v704
                %v706 = vld [vmem:[%s228 + $0x2990] sm:$0xff]
                %707 = vst [vmem:[%s229 + $0x770] sm:$0xff] %v706
                %v708 = vld [vmem:[%s228 + $0x2998] sm:$0xff]
                %709 = vst [vmem:[%s229 + $0x778] sm:$0xff] %v708
                %v710 = vld [vmem:[%s228 + $0x29a0] sm:$0xff]
                %711 = vst [vmem:[%s229 + $0x780] sm:$0xff] %v710
                %v712 = vld [vmem:[%s228 + $0x29a8] sm:$0xff]
                %713 = vst [vmem:[%s229 + $0x788] sm:$0xff] %v712
                %v714 = vld [vmem:[%s228 + $0x29b0] sm:$0xff]
                %715 = vst [vmem:[%s229 + $0x790] sm:$0xff] %v714
                %v716 = vld [vmem:[%s228 + $0x29b8] sm:$0xff]
                %717 = vst [vmem:[%s229 + $0x798] sm:$0xff] %v716
                %v718 = vld [vmem:[%s228 + $0x29c0] sm:$0xff]
                %719 = vst [vmem:[%s229 + $0x7a0] sm:$0xff] %v718
                %v720 = vld [vmem:[%s228 + $0x29c8] sm:$0xff]
                %721 = vst [vmem:[%s229 + $0x7a8] sm:$0xff] %v720
                %v722 = vld [vmem:[%s228 + $0x29d0] sm:$0xff]
                %723 = vst [vmem:[%s229 + $0x7b0] sm:$0xff] %v722
                %v724 = vld [vmem:[%s228 + $0x29d8] sm:$0xff]
                %725 = vst [vmem:[%s229 + $0x7b8] sm:$0xff] %v724
                %v726 = vld [vmem:[%s228 + $0x29e0] sm:$0xff]
                %727 = vst [vmem:[%s229 + $0x7c0] sm:$0xff] %v726
                %v728 = vld [vmem:[%s228 + $0x29e8] sm:$0xff]
                %729 = vst [vmem:[%s229 + $0x7c8] sm:$0xff] %v728
                %v730 = vld [vmem:[%s228 + $0x29f0] sm:$0xff]
                %731 = vst [vmem:[%s229 + $0x7d0] sm:$0xff] %v730
                %v732 = vld [vmem:[%s228 + $0x29f8] sm:$0xff]
                %733 = vst [vmem:[%s229 + $0x7d8] sm:$0xff] %v732
                %v734 = vld [vmem:[%s228 + $0x2a00] sm:$0xff]
                %735 = vst [vmem:[%s229 + $0x7e0] sm:$0xff] %v734
                %v736 = vld [vmem:[%s228 + $0x2a08] sm:$0xff]
                %737 = vst [vmem:[%s229 + $0x7e8] sm:$0xff] %v736
                %v738 = vld [vmem:[%s228 + $0x2a10] sm:$0xff]
                %739 = vst [vmem:[%s229 + $0x7f0] sm:$0xff] %v738
                %v740 = vld [vmem:[%s228 + $0x2a18] sm:$0xff]
                %741 = vst [vmem:[%s229 + $0x7f8] sm:$0xff] %v740
                %v742 = vld [vmem:[%s228 + $0x2a20] sm:$0xff]
                %743 = vst [vmem:[%s229 + $0x800] sm:$0xff] %v742
                %v744 = vld [vmem:[%s228 + $0x2a28] sm:$0xff]
                %745 = vst [vmem:[%s229 + $0x808] sm:$0xff] %v744
                %v746 = vld [vmem:[%s228 + $0x2a30] sm:$0xff]
                %747 = vst [vmem:[%s229 + $0x810] sm:$0xff] %v746
                %v748 = vld [vmem:[%s228 + $0x2a38] sm:$0xff]
                %749 = vst [vmem:[%s229 + $0x818] sm:$0xff] %v748
                %v750 = vld [vmem:[%s228 + $0x2a40] sm:$0xff]
                %751 = vst [vmem:[%s229 + $0x820] sm:$0xff] %v750
                %v752 = vld [vmem:[%s228 + $0x2a48] sm:$0xff]
                %753 = vst [vmem:[%s229 + $0x828] sm:$0xff] %v752
                %v754 = vld [vmem:[%s228 + $0x2a50] sm:$0xff]
                %755 = vst [vmem:[%s229 + $0x830] sm:$0xff] %v754
                %v756 = vld [vmem:[%s228 + $0x2a58] sm:$0xff]
                %757 = vst [vmem:[%s229 + $0x838] sm:$0xff] %v756
                %v758 = vld [vmem:[%s228 + $0x2a60] sm:$0xff]
                %759 = vst [vmem:[%s229 + $0x840] sm:$0xff] %v758
                %v760 = vld [vmem:[%s228 + $0x2a68] sm:$0xff]
                %761 = vst [vmem:[%s229 + $0x848] sm:$0xff] %v760
                %v762 = vld [vmem:[%s228 + $0x2a70] sm:$0xff]
                %763 = vst [vmem:[%s229 + $0x850] sm:$0xff] %v762
                %v764 = vld [vmem:[%s228 + $0x2a78] sm:$0xff]
                %765 = vst [vmem:[%s229 + $0x858] sm:$0xff] %v764
                %v766 = vld [vmem:[%s228 + $0x2a80] sm:$0xff]
                %767 = vst [vmem:[%s229 + $0x860] sm:$0xff] %v766
                %v768 = vld [vmem:[%s228 + $0x2a88] sm:$0xff]
                %769 = vst [vmem:[%s229 + $0x868] sm:$0xff] %v768
                %v770 = vld [vmem:[%s228 + $0x2a90] sm:$0xff]
                %771 = vst [vmem:[%s229 + $0x870] sm:$0xff] %v770
                %v772 = vld [vmem:[%s228 + $0x2a98] sm:$0xff]
                %773 = vst [vmem:[%s229 + $0x878] sm:$0xff] %v772
                %v774 = vld [vmem:[%s228 + $0x2aa0] sm:$0xff]
                %775 = vst [vmem:[%s229 + $0x880] sm:$0xff] %v774
                %v776 = vld [vmem:[%s228 + $0x2aa8] sm:$0xff]
                %777 = vst [vmem:[%s229 + $0x888] sm:$0xff] %v776
                %v778 = vld [vmem:[%s228 + $0x2ab0] sm:$0xff]
                %779 = vst [vmem:[%s229 + $0x890] sm:$0xff] %v778
                %v780 = vld [vmem:[%s228 + $0x2ab8] sm:$0xff]
                %781 = vst [vmem:[%s229 + $0x898] sm:$0xff] %v780
                %v782 = vld [vmem:[%s228 + $0x2ac0] sm:$0xff]
                %783 = vst [vmem:[%s229 + $0x8a0] sm:$0xff] %v782
                %v784 = vld [vmem:[%s228 + $0x2ac8] sm:$0xff]
                %785 = vst [vmem:[%s229 + $0x8a8] sm:$0xff] %v784
                %v786 = vld [vmem:[%s228 + $0x2ad0] sm:$0xff]
                %787 = vst [vmem:[%s229 + $0x8b0] sm:$0xff] %v786
                %v788 = vld [vmem:[%s228 + $0x2ad8] sm:$0xff]
                %789 = vst [vmem:[%s229 + $0x8b8] sm:$0xff] %v788
                %v790 = vld [vmem:[%s228 + $0x2ae0] sm:$0xff]
                %791 = vst [vmem:[%s229 + $0x8c0] sm:$0xff] %v790
                %v792 = vld [vmem:[%s228 + $0x2ae8] sm:$0xff]
                %793 = vst [vmem:[%s229 + $0x8c8] sm:$0xff] %v792
                %v794 = vld [vmem:[%s228 + $0x2af0] sm:$0xff]
                %795 = vst [vmem:[%s229 + $0x8d0] sm:$0xff] %v794
                %v796 = vld [vmem:[%s228 + $0x2af8] sm:$0xff]
                %797 = vst [vmem:[%s229 + $0x8d8] sm:$0xff] %v796
                %v798 = vld [vmem:[%s228 + $0x2b00] sm:$0xff]
                %799 = vst [vmem:[%s229 + $0x8e0] sm:$0xff] %v798
                %v800 = vld [vmem:[%s228 + $0x2b08] sm:$0xff]
                %801 = vst [vmem:[%s229 + $0x8e8] sm:$0xff] %v800
                %v802 = vld [vmem:[%s228 + $0x2b10] sm:$0xff]
                %803 = vst [vmem:[%s229 + $0x8f0] sm:$0xff] %v802
                %v804 = vld [vmem:[%s228 + $0x2b18] sm:$0xff]
                %805 = vst [vmem:[%s229 + $0x8f8] sm:$0xff] %v804
                %v806 = vld [vmem:[%s228 + $0x2b20] sm:$0xff]
                %807 = vst [vmem:[%s229 + $0x900] sm:$0xff] %v806
                %v808 = vld [vmem:[%s228 + $0x2b28] sm:$0xff]
                %809 = vst [vmem:[%s229 + $0x908] sm:$0xff] %v808
                %v810 = vld [vmem:[%s228 + $0x2b30] sm:$0xff]
                %811 = vst [vmem:[%s229 + $0x910] sm:$0xff] %v810
                %v812 = vld [vmem:[%s228 + $0x2b38] sm:$0xff]
                %813 = vst [vmem:[%s229 + $0x918] sm:$0xff] %v812
                %v814 = vld [vmem:[%s228 + $0x2b40] sm:$0xff]
                %815 = vst [vmem:[%s229 + $0x920] sm:$0xff] %v814
                %v816 = vld [vmem:[%s228 + $0x2b48] sm:$0xff]
                %817 = vst [vmem:[%s229 + $0x928] sm:$0xff] %v816
                %v818 = vld [vmem:[%s228 + $0x2b50] sm:$0xff]
                %819 = vst [vmem:[%s229 + $0x930] sm:$0xff] %v818
                %v820 = vld [vmem:[%s228 + $0x2b58] sm:$0xff]
                %821 = vst [vmem:[%s229 + $0x938] sm:$0xff] %v820
                %v822 = vld [vmem:[%s228 + $0x2b60] sm:$0xff]
                %823 = vst [vmem:[%s229 + $0x940] sm:$0xff] %v822
                %v824 = vld [vmem:[%s228 + $0x2b68] sm:$0xff]
                %825 = vst [vmem:[%s229 + $0x948] sm:$0xff] %v824
                %v826 = vld [vmem:[%s228 + $0x2b70] sm:$0xff]
                %827 = vst [vmem:[%s229 + $0x950] sm:$0xff] %v826
                %v828 = vld [vmem:[%s228 + $0x2b78] sm:$0xff]
                %829 = vst [vmem:[%s229 + $0x958] sm:$0xff] %v828
                %v830 = vld [vmem:[%s228 + $0x2b80] sm:$0xff]
                %831 = vst [vmem:[%s229 + $0x960] sm:$0xff] %v830
                %v832 = vld [vmem:[%s228 + $0x2b88] sm:$0xff]
                %833 = vst [vmem:[%s229 + $0x968] sm:$0xff] %v832
                %v834 = vld [vmem:[%s228 + $0x2b90] sm:$0xff]
                %835 = vst [vmem:[%s229 + $0x970] sm:$0xff] %v834
                %v836 = vld [vmem:[%s228 + $0x2b98] sm:$0xff]
                %837 = vst [vmem:[%s229 + $0x978] sm:$0xff] %v836
                %v838 = vld [vmem:[%s228 + $0x2ba0] sm:$0xff]
                %839 = vst [vmem:[%s229 + $0x980] sm:$0xff] %v838
                %v840 = vld [vmem:[%s228 + $0x2ba8] sm:$0xff]
                %841 = vst [vmem:[%s229 + $0x988] sm:$0xff] %v840
                %v842 = vld [vmem:[%s228 + $0x2bb0] sm:$0xff]
                %843 = vst [vmem:[%s229 + $0x990] sm:$0xff] %v842
                %v844 = vld [vmem:[%s228 + $0x2bb8] sm:$0xff]
                %845 = vst [vmem:[%s229 + $0x998] sm:$0xff] %v844
                %v846 = vld [vmem:[%s228 + $0x2bc0] sm:$0xff]
                %847 = vst [vmem:[%s229 + $0x9a0] sm:$0xff] %v846
                %v848 = vld [vmem:[%s228 + $0x2bc8] sm:$0xff]
                %849 = vst [vmem:[%s229 + $0x9a8] sm:$0xff] %v848
                %v850 = vld [vmem:[%s228 + $0x2bd0] sm:$0xff]
                %851 = vst [vmem:[%s229 + $0x9b0] sm:$0xff] %v850
                %v852 = vld [vmem:[%s228 + $0x2bd8] sm:$0xff]
                %853 = vst [vmem:[%s229 + $0x9b8] sm:$0xff] %v852
                %v854 = vld [vmem:[%s228 + $0x4e00] sm:$0xff]
                %855 = vst [vmem:[%s229 + $0x9c0] sm:$0xff] %v854
                %v856 = vld [vmem:[%s228 + $0x4e08] sm:$0xff]
                %857 = vst [vmem:[%s229 + $0x9c8] sm:$0xff] %v856
                %v858 = vld [vmem:[%s228 + $0x4e10] sm:$0xff]
                %859 = vst [vmem:[%s229 + $0x9d0] sm:$0xff] %v858
                %v860 = vld [vmem:[%s228 + $0x4e18] sm:$0xff]
                %861 = vst [vmem:[%s229 + $0x9d8] sm:$0xff] %v860
                %v862 = vld [vmem:[%s228 + $0x4e20] sm:$0xff]
                %863 = vst [vmem:[%s229 + $0x9e0] sm:$0xff] %v862
                %v864 = vld [vmem:[%s228 + $0x4e28] sm:$0xff]
                %865 = vst [vmem:[%s229 + $0x9e8] sm:$0xff] %v864
                %v866 = vld [vmem:[%s228 + $0x4e30] sm:$0xff]
                %867 = vst [vmem:[%s229 + $0x9f0] sm:$0xff] %v866
                %v868 = vld [vmem:[%s228 + $0x4e38] sm:$0xff]
                %869 = vst [vmem:[%s229 + $0x9f8] sm:$0xff] %v868
                %v870 = vld [vmem:[%s228 + $0x4e40] sm:$0xff]
                %871 = vst [vmem:[%s229 + $0xa00] sm:$0xff] %v870
                %v872 = vld [vmem:[%s228 + $0x4e48] sm:$0xff]
                %873 = vst [vmem:[%s229 + $0xa08] sm:$0xff] %v872
                %v874 = vld [vmem:[%s228 + $0x4e50] sm:$0xff]
                %875 = vst [vmem:[%s229 + $0xa10] sm:$0xff] %v874
                %v876 = vld [vmem:[%s228 + $0x4e58] sm:$0xff]
                %877 = vst [vmem:[%s229 + $0xa18] sm:$0xff] %v876
                %v878 = vld [vmem:[%s228 + $0x4e60] sm:$0xff]
                %879 = vst [vmem:[%s229 + $0xa20] sm:$0xff] %v878
                %v880 = vld [vmem:[%s228 + $0x4e68] sm:$0xff]
                %881 = vst [vmem:[%s229 + $0xa28] sm:$0xff] %v880
                %v882 = vld [vmem:[%s228 + $0x4e70] sm:$0xff]
                %883 = vst [vmem:[%s229 + $0xa30] sm:$0xff] %v882
                %v884 = vld [vmem:[%s228 + $0x4e78] sm:$0xff]
                %885 = vst [vmem:[%s229 + $0xa38] sm:$0xff] %v884
                %v886 = vld [vmem:[%s228 + $0x4e80] sm:$0xff]
                %887 = vst [vmem:[%s229 + $0xa40] sm:$0xff] %v886
                %v888 = vld [vmem:[%s228 + $0x4e88] sm:$0xff]
                %889 = vst [vmem:[%s229 + $0xa48] sm:$0xff] %v888
                %v890 = vld [vmem:[%s228 + $0x4e90] sm:$0xff]
                %891 = vst [vmem:[%s229 + $0xa50] sm:$0xff] %v890
                %v892 = vld [vmem:[%s228 + $0x4e98] sm:$0xff]
                %893 = vst [vmem:[%s229 + $0xa58] sm:$0xff] %v892
                %v894 = vld [vmem:[%s228 + $0x4ea0] sm:$0xff]
                %895 = vst [vmem:[%s229 + $0xa60] sm:$0xff] %v894
                %v896 = vld [vmem:[%s228 + $0x4ea8] sm:$0xff]
                %897 = vst [vmem:[%s229 + $0xa68] sm:$0xff] %v896
                %v898 = vld [vmem:[%s228 + $0x4eb0] sm:$0xff]
                %899 = vst [vmem:[%s229 + $0xa70] sm:$0xff] %v898
                %v900 = vld [vmem:[%s228 + $0x4eb8] sm:$0xff]
                %901 = vst [vmem:[%s229 + $0xa78] sm:$0xff] %v900
                %v902 = vld [vmem:[%s228 + $0x4ec0] sm:$0xff]
                %903 = vst [vmem:[%s229 + $0xa80] sm:$0xff] %v902
                %v904 = vld [vmem:[%s228 + $0x4ec8] sm:$0xff]
                %905 = vst [vmem:[%s229 + $0xa88] sm:$0xff] %v904
                %v906 = vld [vmem:[%s228 + $0x4ed0] sm:$0xff]
                %907 = vst [vmem:[%s229 + $0xa90] sm:$0xff] %v906
                %v908 = vld [vmem:[%s228 + $0x4ed8] sm:$0xff]
                %909 = vst [vmem:[%s229 + $0xa98] sm:$0xff] %v908
                %v910 = vld [vmem:[%s228 + $0x4ee0] sm:$0xff]
                %911 = vst [vmem:[%s229 + $0xaa0] sm:$0xff] %v910
                %v912 = vld [vmem:[%s228 + $0x4ee8] sm:$0xff]
                %913 = vst [vmem:[%s229 + $0xaa8] sm:$0xff] %v912
                %v914 = vld [vmem:[%s228 + $0x4ef0] sm:$0xff]
                %915 = vst [vmem:[%s229 + $0xab0] sm:$0xff] %v914
                %v916 = vld [vmem:[%s228 + $0x4ef8] sm:$0xff]
                %917 = vst [vmem:[%s229 + $0xab8] sm:$0xff] %v916
                %v918 = vld [vmem:[%s228 + $0x4f00] sm:$0xff]
                %919 = vst [vmem:[%s229 + $0xac0] sm:$0xff] %v918
                %v920 = vld [vmem:[%s228 + $0x4f08] sm:$0xff]
                %921 = vst [vmem:[%s229 + $0xac8] sm:$0xff] %v920
                %v922 = vld [vmem:[%s228 + $0x4f10] sm:$0xff]
                %923 = vst [vmem:[%s229 + $0xad0] sm:$0xff] %v922
                %v924 = vld [vmem:[%s228 + $0x4f18] sm:$0xff]
                %925 = vst [vmem:[%s229 + $0xad8] sm:$0xff] %v924
                %v926 = vld [vmem:[%s228 + $0x4f20] sm:$0xff]
                %927 = vst [vmem:[%s229 + $0xae0] sm:$0xff] %v926
                %v928 = vld [vmem:[%s228 + $0x4f28] sm:$0xff]
                %929 = vst [vmem:[%s229 + $0xae8] sm:$0xff] %v928
                %v930 = vld [vmem:[%s228 + $0x4f30] sm:$0xff]
                %931 = vst [vmem:[%s229 + $0xaf0] sm:$0xff] %v930
                %v932 = vld [vmem:[%s228 + $0x4f38] sm:$0xff]
                %933 = vst [vmem:[%s229 + $0xaf8] sm:$0xff] %v932
                %v934 = vld [vmem:[%s228 + $0x4f40] sm:$0xff]
                %935 = vst [vmem:[%s229 + $0xb00] sm:$0xff] %v934
                %v936 = vld [vmem:[%s228 + $0x4f48] sm:$0xff]
                %937 = vst [vmem:[%s229 + $0xb08] sm:$0xff] %v936
                %v938 = vld [vmem:[%s228 + $0x4f50] sm:$0xff]
                %939 = vst [vmem:[%s229 + $0xb10] sm:$0xff] %v938
                %v940 = vld [vmem:[%s228 + $0x4f58] sm:$0xff]
                %941 = vst [vmem:[%s229 + $0xb18] sm:$0xff] %v940
                %v942 = vld [vmem:[%s228 + $0x4f60] sm:$0xff]
                %943 = vst [vmem:[%s229 + $0xb20] sm:$0xff] %v942
                %v944 = vld [vmem:[%s228 + $0x4f68] sm:$0xff]
                %945 = vst [vmem:[%s229 + $0xb28] sm:$0xff] %v944
                %v946 = vld [vmem:[%s228 + $0x4f70] sm:$0xff]
                %947 = vst [vmem:[%s229 + $0xb30] sm:$0xff] %v946
                %v948 = vld [vmem:[%s228 + $0x4f78] sm:$0xff]
                %949 = vst [vmem:[%s229 + $0xb38] sm:$0xff] %v948
                %v950 = vld [vmem:[%s228 + $0x4f80] sm:$0xff]
                %951 = vst [vmem:[%s229 + $0xb40] sm:$0xff] %v950
                %v952 = vld [vmem:[%s228 + $0x4f88] sm:$0xff]
                %953 = vst [vmem:[%s229 + $0xb48] sm:$0xff] %v952
                %v954 = vld [vmem:[%s228 + $0x4f90] sm:$0xff]
                %955 = vst [vmem:[%s229 + $0xb50] sm:$0xff] %v954
                %v956 = vld [vmem:[%s228 + $0x4f98] sm:$0xff]
                %957 = vst [vmem:[%s229 + $0xb58] sm:$0xff] %v956
                %v958 = vld [vmem:[%s228 + $0x4fa0] sm:$0xff]
                %959 = vst [vmem:[%s229 + $0xb60] sm:$0xff] %v958
                %v960 = vld [vmem:[%s228 + $0x4fa8] sm:$0xff]
                %961 = vst [vmem:[%s229 + $0xb68] sm:$0xff] %v960
                %v962 = vld [vmem:[%s228 + $0x4fb0] sm:$0xff]
                %963 = vst [vmem:[%s229 + $0xb70] sm:$0xff] %v962
                %v964 = vld [vmem:[%s228 + $0x4fb8] sm:$0xff]
                %965 = vst [vmem:[%s229 + $0xb78] sm:$0xff] %v964
                %v966 = vld [vmem:[%s228 + $0x4fc0] sm:$0xff]
                %967 = vst [vmem:[%s229 + $0xb80] sm:$0xff] %v966
                %v968 = vld [vmem:[%s228 + $0x4fc8] sm:$0xff]
                %969 = vst [vmem:[%s229 + $0xb88] sm:$0xff] %v968
                %v970 = vld [vmem:[%s228 + $0x4fd0] sm:$0xff]
                %971 = vst [vmem:[%s229 + $0xb90] sm:$0xff] %v970
                %v972 = vld [vmem:[%s228 + $0x4fd8] sm:$0xff]
                %973 = vst [vmem:[%s229 + $0xb98] sm:$0xff] %v972
                %v974 = vld [vmem:[%s228 + $0x4fe0] sm:$0xff]
                %975 = vst [vmem:[%s229 + $0xba0] sm:$0xff] %v974
                %v976 = vld [vmem:[%s228 + $0x4fe8] sm:$0xff]
                %977 = vst [vmem:[%s229 + $0xba8] sm:$0xff] %v976
                %v978 = vld [vmem:[%s228 + $0x4ff0] sm:$0xff]
                %979 = vst [vmem:[%s229 + $0xbb0] sm:$0xff] %v978
                %v980 = vld [vmem:[%s228 + $0x4ff8] sm:$0xff]
                %981 = vst [vmem:[%s229 + $0xbb8] sm:$0xff] %v980
                %v982 = vld [vmem:[%s228 + $0x5000] sm:$0xff]
                %983 = vst [vmem:[%s229 + $0xbc0] sm:$0xff] %v982
                %v984 = vld [vmem:[%s228 + $0x5008] sm:$0xff]
                %985 = vst [vmem:[%s229 + $0xbc8] sm:$0xff] %v984
                %v986 = vld [vmem:[%s228 + $0x5010] sm:$0xff]
                %987 = vst [vmem:[%s229 + $0xbd0] sm:$0xff] %v986
                %v988 = vld [vmem:[%s228 + $0x5018] sm:$0xff]
                %989 = vst [vmem:[%s229 + $0xbd8] sm:$0xff] %v988
                %v990 = vld [vmem:[%s228 + $0x5020] sm:$0xff]
                %991 = vst [vmem:[%s229 + $0xbe0] sm:$0xff] %v990
                %v992 = vld [vmem:[%s228 + $0x5028] sm:$0xff]
                %993 = vst [vmem:[%s229 + $0xbe8] sm:$0xff] %v992
                %v994 = vld [vmem:[%s228 + $0x5030] sm:$0xff]
                %995 = vst [vmem:[%s229 + $0xbf0] sm:$0xff] %v994
                %v996 = vld [vmem:[%s228 + $0x5038] sm:$0xff]
                %997 = vst [vmem:[%s229 + $0xbf8] sm:$0xff] %v996
                %v998 = vld [vmem:[%s228 + $0x5040] sm:$0xff]
                %999 = vst [vmem:[%s229 + $0xc00] sm:$0xff] %v998
                %v1000 = vld [vmem:[%s228 + $0x5048] sm:$0xff]
                %1001 = vst [vmem:[%s229 + $0xc08] sm:$0xff] %v1000
                %v1002 = vld [vmem:[%s228 + $0x5050] sm:$0xff]
                %1003 = vst [vmem:[%s229 + $0xc10] sm:$0xff] %v1002
                %v1004 = vld [vmem:[%s228 + $0x5058] sm:$0xff]
                %1005 = vst [vmem:[%s229 + $0xc18] sm:$0xff] %v1004
                %v1006 = vld [vmem:[%s228 + $0x5060] sm:$0xff]
                %1007 = vst [vmem:[%s229 + $0xc20] sm:$0xff] %v1006
                %v1008 = vld [vmem:[%s228 + $0x5068] sm:$0xff]
                %1009 = vst [vmem:[%s229 + $0xc28] sm:$0xff] %v1008
                %v1010 = vld [vmem:[%s228 + $0x5070] sm:$0xff]
                %1011 = vst [vmem:[%s229 + $0xc30] sm:$0xff] %v1010
                %v1012 = vld [vmem:[%s228 + $0x5078] sm:$0xff]
                %1013 = vst [vmem:[%s229 + $0xc38] sm:$0xff] %v1012
                %v1014 = vld [vmem:[%s228 + $0x5080] sm:$0xff]
                %1015 = vst [vmem:[%s229 + $0xc40] sm:$0xff] %v1014
                %v1016 = vld [vmem:[%s228 + $0x5088] sm:$0xff]
                %1017 = vst [vmem:[%s229 + $0xc48] sm:$0xff] %v1016
                %v1018 = vld [vmem:[%s228 + $0x5090] sm:$0xff]
                %1019 = vst [vmem:[%s229 + $0xc50] sm:$0xff] %v1018
                %v1020 = vld [vmem:[%s228 + $0x5098] sm:$0xff]
                %1021 = vst [vmem:[%s229 + $0xc58] sm:$0xff] %v1020
                %v1022 = vld [vmem:[%s228 + $0x50a0] sm:$0xff]
                %1023 = vst [vmem:[%s229 + $0xc60] sm:$0xff] %v1022
                %v1024 = vld [vmem:[%s228 + $0x50a8] sm:$0xff]
                %1025 = vst [vmem:[%s229 + $0xc68] sm:$0xff] %v1024
                %v1026 = vld [vmem:[%s228 + $0x50b0] sm:$0xff]
                %1027 = vst [vmem:[%s229 + $0xc70] sm:$0xff] %v1026
                %v1028 = vld [vmem:[%s228 + $0x50b8] sm:$0xff]
                %1029 = vst [vmem:[%s229 + $0xc78] sm:$0xff] %v1028
                %v1030 = vld [vmem:[%s228 + $0x50c0] sm:$0xff]
                %1031 = vst [vmem:[%s229 + $0xc80] sm:$0xff] %v1030
                %v1032 = vld [vmem:[%s228 + $0x50c8] sm:$0xff]
                %1033 = vst [vmem:[%s229 + $0xc88] sm:$0xff] %v1032
                %v1034 = vld [vmem:[%s228 + $0x50d0] sm:$0xff]
                %1035 = vst [vmem:[%s229 + $0xc90] sm:$0xff] %v1034
                %v1036 = vld [vmem:[%s228 + $0x50d8] sm:$0xff]
                %1037 = vst [vmem:[%s229 + $0xc98] sm:$0xff] %v1036
                %v1038 = vld [vmem:[%s228 + $0x50e0] sm:$0xff]
                %1039 = vst [vmem:[%s229 + $0xca0] sm:$0xff] %v1038
                %v1040 = vld [vmem:[%s228 + $0x50e8] sm:$0xff]
                %1041 = vst [vmem:[%s229 + $0xca8] sm:$0xff] %v1040
                %v1042 = vld [vmem:[%s228 + $0x50f0] sm:$0xff]
                %1043 = vst [vmem:[%s229 + $0xcb0] sm:$0xff] %v1042
                %v1044 = vld [vmem:[%s228 + $0x50f8] sm:$0xff]
                %1045 = vst [vmem:[%s229 + $0xcb8] sm:$0xff] %v1044
                %v1046 = vld [vmem:[%s228 + $0x5100] sm:$0xff]
                %1047 = vst [vmem:[%s229 + $0xcc0] sm:$0xff] %v1046
                %v1048 = vld [vmem:[%s228 + $0x5108] sm:$0xff]
                %1049 = vst [vmem:[%s229 + $0xcc8] sm:$0xff] %v1048
                %v1050 = vld [vmem:[%s228 + $0x5110] sm:$0xff]
                %1051 = vst [vmem:[%s229 + $0xcd0] sm:$0xff] %v1050
                %v1052 = vld [vmem:[%s228 + $0x5118] sm:$0xff]
                %1053 = vst [vmem:[%s229 + $0xcd8] sm:$0xff] %v1052
                %v1054 = vld [vmem:[%s228 + $0x5120] sm:$0xff]
                %1055 = vst [vmem:[%s229 + $0xce0] sm:$0xff] %v1054
                %v1056 = vld [vmem:[%s228 + $0x5128] sm:$0xff]
                %1057 = vst [vmem:[%s229 + $0xce8] sm:$0xff] %v1056
                %v1058 = vld [vmem:[%s228 + $0x5130] sm:$0xff]
                %1059 = vst [vmem:[%s229 + $0xcf0] sm:$0xff] %v1058
                %v1060 = vld [vmem:[%s228 + $0x5138] sm:$0xff]
                %1061 = vst [vmem:[%s229 + $0xcf8] sm:$0xff] %v1060
                %v1062 = vld [vmem:[%s228 + $0x5140] sm:$0xff]
                %1063 = vst [vmem:[%s229 + $0xd00] sm:$0xff] %v1062
                %v1064 = vld [vmem:[%s228 + $0x5148] sm:$0xff]
                %1065 = vst [vmem:[%s229 + $0xd08] sm:$0xff] %v1064
                %v1066 = vld [vmem:[%s228 + $0x5150] sm:$0xff]
                %1067 = vst [vmem:[%s229 + $0xd10] sm:$0xff] %v1066
                %v1068 = vld [vmem:[%s228 + $0x5158] sm:$0xff]
                %1069 = vst [vmem:[%s229 + $0xd18] sm:$0xff] %v1068
                %v1070 = vld [vmem:[%s228 + $0x5160] sm:$0xff]
                %1071 = vst [vmem:[%s229 + $0xd20] sm:$0xff] %v1070
                %v1072 = vld [vmem:[%s228 + $0x5168] sm:$0xff]
                %1073 = vst [vmem:[%s229 + $0xd28] sm:$0xff] %v1072
                %v1074 = vld [vmem:[%s228 + $0x5170] sm:$0xff]
                %1075 = vst [vmem:[%s229 + $0xd30] sm:$0xff] %v1074
                %v1076 = vld [vmem:[%s228 + $0x5178] sm:$0xff]
                %1077 = vst [vmem:[%s229 + $0xd38] sm:$0xff] %v1076
                %v1078 = vld [vmem:[%s228 + $0x5180] sm:$0xff]
                %1079 = vst [vmem:[%s229 + $0xd40] sm:$0xff] %v1078
                %v1080 = vld [vmem:[%s228 + $0x5188] sm:$0xff]
                %1081 = vst [vmem:[%s229 + $0xd48] sm:$0xff] %v1080
                %v1082 = vld [vmem:[%s228 + $0x5190] sm:$0xff]
                %1083 = vst [vmem:[%s229 + $0xd50] sm:$0xff] %v1082
                %v1084 = vld [vmem:[%s228 + $0x5198] sm:$0xff]
                %1085 = vst [vmem:[%s229 + $0xd58] sm:$0xff] %v1084
                %v1086 = vld [vmem:[%s228 + $0x51a0] sm:$0xff]
                %1087 = vst [vmem:[%s229 + $0xd60] sm:$0xff] %v1086
                %v1088 = vld [vmem:[%s228 + $0x51a8] sm:$0xff]
                %1089 = vst [vmem:[%s229 + $0xd68] sm:$0xff] %v1088
                %v1090 = vld [vmem:[%s228 + $0x51b0] sm:$0xff]
                %1091 = vst [vmem:[%s229 + $0xd70] sm:$0xff] %v1090
                %v1092 = vld [vmem:[%s228 + $0x51b8] sm:$0xff]
                %1093 = vst [vmem:[%s229 + $0xd78] sm:$0xff] %v1092
                %v1094 = vld [vmem:[%s228 + $0x51c0] sm:$0xff]
                %1095 = vst [vmem:[%s229 + $0xd80] sm:$0xff] %v1094
                %v1096 = vld [vmem:[%s228 + $0x51c8] sm:$0xff]
                %1097 = vst [vmem:[%s229 + $0xd88] sm:$0xff] %v1096
                %v1098 = vld [vmem:[%s228 + $0x51d0] sm:$0xff]
                %1099 = vst [vmem:[%s229 + $0xd90] sm:$0xff] %v1098
                %v1100 = vld [vmem:[%s228 + $0x51d8] sm:$0xff]
                %1101 = vst [vmem:[%s229 + $0xd98] sm:$0xff] %v1100
                %v1102 = vld [vmem:[%s228 + $0x51e0] sm:$0xff]
                %1103 = vst [vmem:[%s229 + $0xda0] sm:$0xff] %v1102
                %v1104 = vld [vmem:[%s228 + $0x51e8] sm:$0xff]
                %1105 = vst [vmem:[%s229 + $0xda8] sm:$0xff] %v1104
                %v1106 = vld [vmem:[%s228 + $0x51f0] sm:$0xff]
                %1107 = vst [vmem:[%s229 + $0xdb0] sm:$0xff] %v1106
                %v1108 = vld [vmem:[%s228 + $0x51f8] sm:$0xff]
                %1109 = vst [vmem:[%s229 + $0xdb8] sm:$0xff] %v1108
                %v1110 = vld [vmem:[%s228 + $0x5200] sm:$0xff]
                %1111 = vst [vmem:[%s229 + $0xdc0] sm:$0xff] %v1110
                %v1112 = vld [vmem:[%s228 + $0x5208] sm:$0xff]
                %1113 = vst [vmem:[%s229 + $0xdc8] sm:$0xff] %v1112
                %v1114 = vld [vmem:[%s228 + $0x5210] sm:$0xff]
                %1115 = vst [vmem:[%s229 + $0xdd0] sm:$0xff] %v1114
                %v1116 = vld [vmem:[%s228 + $0x5218] sm:$0xff]
                %1117 = vst [vmem:[%s229 + $0xdd8] sm:$0xff] %v1116
                %v1118 = vld [vmem:[%s228 + $0x5220] sm:$0xff]
                %1119 = vst [vmem:[%s229 + $0xde0] sm:$0xff] %v1118
                %v1120 = vld [vmem:[%s228 + $0x5228] sm:$0xff]
                %1121 = vst [vmem:[%s229 + $0xde8] sm:$0xff] %v1120
                %v1122 = vld [vmem:[%s228 + $0x5230] sm:$0xff]
                %1123 = vst [vmem:[%s229 + $0xdf0] sm:$0xff] %v1122
                %v1124 = vld [vmem:[%s228 + $0x5238] sm:$0xff]
                %1125 = vst [vmem:[%s229 + $0xdf8] sm:$0xff] %v1124
                %v1126 = vld [vmem:[%s228 + $0x5240] sm:$0xff]
                %1127 = vst [vmem:[%s229 + $0xe00] sm:$0xff] %v1126
                %v1128 = vld [vmem:[%s228 + $0x5248] sm:$0xff]
                %1129 = vst [vmem:[%s229 + $0xe08] sm:$0xff] %v1128
                %v1130 = vld [vmem:[%s228 + $0x5250] sm:$0xff]
                %1131 = vst [vmem:[%s229 + $0xe10] sm:$0xff] %v1130
                %v1132 = vld [vmem:[%s228 + $0x5258] sm:$0xff]
                %1133 = vst [vmem:[%s229 + $0xe18] sm:$0xff] %v1132
                %v1134 = vld [vmem:[%s228 + $0x5260] sm:$0xff]
                %1135 = vst [vmem:[%s229 + $0xe20] sm:$0xff] %v1134
                %v1136 = vld [vmem:[%s228 + $0x5268] sm:$0xff]
                %1137 = vst [vmem:[%s229 + $0xe28] sm:$0xff] %v1136
                %v1138 = vld [vmem:[%s228 + $0x5270] sm:$0xff]
                %1139 = vst [vmem:[%s229 + $0xe30] sm:$0xff] %v1138
                %v1140 = vld [vmem:[%s228 + $0x5278] sm:$0xff]
                %1141 = vst [vmem:[%s229 + $0xe38] sm:$0xff] %v1140
                %v1142 = vld [vmem:[%s228 + $0x5280] sm:$0xff]
                %1143 = vst [vmem:[%s229 + $0xe40] sm:$0xff] %v1142
                %v1144 = vld [vmem:[%s228 + $0x5288] sm:$0xff]
                %1145 = vst [vmem:[%s229 + $0xe48] sm:$0xff] %v1144
                %v1146 = vld [vmem:[%s228 + $0x5290] sm:$0xff]
                %1147 = vst [vmem:[%s229 + $0xe50] sm:$0xff] %v1146
                %v1148 = vld [vmem:[%s228 + $0x5298] sm:$0xff]
                %1149 = vst [vmem:[%s229 + $0xe58] sm:$0xff] %v1148
                %v1150 = vld [vmem:[%s228 + $0x52a0] sm:$0xff]
                %1151 = vst [vmem:[%s229 + $0xe60] sm:$0xff] %v1150
                %v1152 = vld [vmem:[%s228 + $0x52a8] sm:$0xff]
                %1153 = vst [vmem:[%s229 + $0xe68] sm:$0xff] %v1152
                %v1154 = vld [vmem:[%s228 + $0x52b0] sm:$0xff]
                %1155 = vst [vmem:[%s229 + $0xe70] sm:$0xff] %v1154
                %v1156 = vld [vmem:[%s228 + $0x52b8] sm:$0xff]
                %1157 = vst [vmem:[%s229 + $0xe78] sm:$0xff] %v1156
                %v1158 = vld [vmem:[%s228 + $0x52c0] sm:$0xff]
                %1159 = vst [vmem:[%s229 + $0xe80] sm:$0xff] %v1158
                %v1160 = vld [vmem:[%s228 + $0x52c8] sm:$0xff]
                %1161 = vst [vmem:[%s229 + $0xe88] sm:$0xff] %v1160
                %v1162 = vld [vmem:[%s228 + $0x52d0] sm:$0xff]
                %1163 = vst [vmem:[%s229 + $0xe90] sm:$0xff] %v1162
                %v1164 = vld [vmem:[%s228 + $0x52d8] sm:$0xff]
                %1165 = vst [vmem:[%s229 + $0xe98] sm:$0xff] %v1164
                %v1166 = vld [vmem:[%s228 + $0x7500] sm:$0xff]
                %1167 = vst [vmem:[%s229 + $0xea0] sm:$0xff] %v1166
                %v1168 = vld [vmem:[%s228 + $0x7508] sm:$0xff]
                %1169 = vst [vmem:[%s229 + $0xea8] sm:$0xff] %v1168
                %v1170 = vld [vmem:[%s228 + $0x7510] sm:$0xff]
                %1171 = vst [vmem:[%s229 + $0xeb0] sm:$0xff] %v1170
                %v1172 = vld [vmem:[%s228 + $0x7518] sm:$0xff]
                %1173 = vst [vmem:[%s229 + $0xeb8] sm:$0xff] %v1172
                %v1174 = vld [vmem:[%s228 + $0x7520] sm:$0xff]
                %1175 = vst [vmem:[%s229 + $0xec0] sm:$0xff] %v1174
                %v1176 = vld [vmem:[%s228 + $0x7528] sm:$0xff]
                %1177 = vst [vmem:[%s229 + $0xec8] sm:$0xff] %v1176
                %v1178 = vld [vmem:[%s228 + $0x7530] sm:$0xff]
                %1179 = vst [vmem:[%s229 + $0xed0] sm:$0xff] %v1178
                %v1180 = vld [vmem:[%s228 + $0x7538] sm:$0xff]
                %1181 = vst [vmem:[%s229 + $0xed8] sm:$0xff] %v1180
                %v1182 = vld [vmem:[%s228 + $0x7540] sm:$0xff]
                %1183 = vst [vmem:[%s229 + $0xee0] sm:$0xff] %v1182
                %v1184 = vld [vmem:[%s228 + $0x7548] sm:$0xff]
                %1185 = vst [vmem:[%s229 + $0xee8] sm:$0xff] %v1184
                %v1186 = vld [vmem:[%s228 + $0x7550] sm:$0xff]
                %1187 = vst [vmem:[%s229 + $0xef0] sm:$0xff] %v1186
                %v1188 = vld [vmem:[%s228 + $0x7558] sm:$0xff]
                %1189 = vst [vmem:[%s229 + $0xef8] sm:$0xff] %v1188
                %v1190 = vld [vmem:[%s228 + $0x7560] sm:$0xff]
                %1191 = vst [vmem:[%s229 + $0xf00] sm:$0xff] %v1190
                %v1192 = vld [vmem:[%s228 + $0x7568] sm:$0xff]
                %1193 = vst [vmem:[%s229 + $0xf08] sm:$0xff] %v1192
                %v1194 = vld [vmem:[%s228 + $0x7570] sm:$0xff]
                %1195 = vst [vmem:[%s229 + $0xf10] sm:$0xff] %v1194
                %v1196 = vld [vmem:[%s228 + $0x7578] sm:$0xff]
                %1197 = vst [vmem:[%s229 + $0xf18] sm:$0xff] %v1196
                %v1198 = vld [vmem:[%s228 + $0x7580] sm:$0xff]
                %1199 = vst [vmem:[%s229 + $0xf20] sm:$0xff] %v1198
                %v1200 = vld [vmem:[%s228 + $0x7588] sm:$0xff]
                %1201 = vst [vmem:[%s229 + $0xf28] sm:$0xff] %v1200
                %v1202 = vld [vmem:[%s228 + $0x7590] sm:$0xff]
                %1203 = vst [vmem:[%s229 + $0xf30] sm:$0xff] %v1202
                %v1204 = vld [vmem:[%s228 + $0x7598] sm:$0xff]
                %1205 = vst [vmem:[%s229 + $0xf38] sm:$0xff] %v1204
                %v1206 = vld [vmem:[%s228 + $0x75a0] sm:$0xff]
                %1207 = vst [vmem:[%s229 + $0xf40] sm:$0xff] %v1206
                %v1208 = vld [vmem:[%s228 + $0x75a8] sm:$0xff]
                %1209 = vst [vmem:[%s229 + $0xf48] sm:$0xff] %v1208
                %v1210 = vld [vmem:[%s228 + $0x75b0] sm:$0xff]
                %1211 = vst [vmem:[%s229 + $0xf50] sm:$0xff] %v1210
                %v1212 = vld [vmem:[%s228 + $0x75b8] sm:$0xff]
                %1213 = vst [vmem:[%s229 + $0xf58] sm:$0xff] %v1212
                %v1214 = vld [vmem:[%s228 + $0x75c0] sm:$0xff]
                %1215 = vst [vmem:[%s229 + $0xf60] sm:$0xff] %v1214
                %v1216 = vld [vmem:[%s228 + $0x75c8] sm:$0xff]
                %1217 = vst [vmem:[%s229 + $0xf68] sm:$0xff] %v1216
                %v1218 = vld [vmem:[%s228 + $0x75d0] sm:$0xff]
                %1219 = vst [vmem:[%s229 + $0xf70] sm:$0xff] %v1218
                %v1220 = vld [vmem:[%s228 + $0x75d8] sm:$0xff]
                %1221 = vst [vmem:[%s229 + $0xf78] sm:$0xff] %v1220
                %v1222 = vld [vmem:[%s228 + $0x75e0] sm:$0xff]
                %1223 = vst [vmem:[%s229 + $0xf80] sm:$0xff] %v1222
                %v1224 = vld [vmem:[%s228 + $0x75e8] sm:$0xff]
                %1225 = vst [vmem:[%s229 + $0xf88] sm:$0xff] %v1224
                %v1226 = vld [vmem:[%s228 + $0x75f0] sm:$0xff]
                %1227 = vst [vmem:[%s229 + $0xf90] sm:$0xff] %v1226
                %v1228 = vld [vmem:[%s228 + $0x75f8] sm:$0xff]
                %1229 = vst [vmem:[%s229 + $0xf98] sm:$0xff] %v1228
                %v1230 = vld [vmem:[%s228 + $0x7600] sm:$0xff]
                %1231 = vst [vmem:[%s229 + $0xfa0] sm:$0xff] %v1230
                %v1232 = vld [vmem:[%s228 + $0x7608] sm:$0xff]
                %1233 = vst [vmem:[%s229 + $0xfa8] sm:$0xff] %v1232
                %v1234 = vld [vmem:[%s228 + $0x7610] sm:$0xff]
                %1235 = vst [vmem:[%s229 + $0xfb0] sm:$0xff] %v1234
                %v1236 = vld [vmem:[%s228 + $0x7618] sm:$0xff]
                %1237 = vst [vmem:[%s229 + $0xfb8] sm:$0xff] %v1236
                %v1238 = vld [vmem:[%s228 + $0x7620] sm:$0xff]
                %1239 = vst [vmem:[%s229 + $0xfc0] sm:$0xff] %v1238
                %v1240 = vld [vmem:[%s228 + $0x7628] sm:$0xff]
                %1241 = vst [vmem:[%s229 + $0xfc8] sm:$0xff] %v1240
                %v1242 = vld [vmem:[%s228 + $0x7630] sm:$0xff]
                %1243 = vst [vmem:[%s229 + $0xfd0] sm:$0xff] %v1242
                %v1244 = vld [vmem:[%s228 + $0x7638] sm:$0xff]
                %1245 = vst [vmem:[%s229 + $0xfd8] sm:$0xff] %v1244
                %v1246 = vld [vmem:[%s228 + $0x7640] sm:$0xff]
                %1247 = vst [vmem:[%s229 + $0xfe0] sm:$0xff] %v1246
                %v1248 = vld [vmem:[%s228 + $0x7648] sm:$0xff]
                %1249 = vst [vmem:[%s229 + $0xfe8] sm:$0xff] %v1248
                %v1250 = vld [vmem:[%s228 + $0x7650] sm:$0xff]
                %1251 = vst [vmem:[%s229 + $0xff0] sm:$0xff] %v1250
                %v1252 = vld [vmem:[%s228 + $0x7658] sm:$0xff]
                %1253 = vst [vmem:[%s229 + $0xff8] sm:$0xff] %v1252
                %v1254 = vld [vmem:[%s228 + $0x7660] sm:$0xff]
                %1255 = vst [vmem:[%s229 + $0x1000] sm:$0xff] %v1254
                %v1256 = vld [vmem:[%s228 + $0x7668] sm:$0xff]
                %1257 = vst [vmem:[%s229 + $0x1008] sm:$0xff] %v1256
                %v1258 = vld [vmem:[%s228 + $0x7670] sm:$0xff]
                %1259 = vst [vmem:[%s229 + $0x1010] sm:$0xff] %v1258
                %v1260 = vld [vmem:[%s228 + $0x7678] sm:$0xff]
                %1261 = vst [vmem:[%s229 + $0x1018] sm:$0xff] %v1260
                %v1262 = vld [vmem:[%s228 + $0x7680] sm:$0xff]
                %1263 = vst [vmem:[%s229 + $0x1020] sm:$0xff] %v1262
                %v1264 = vld [vmem:[%s228 + $0x7688] sm:$0xff]
                %1265 = vst [vmem:[%s229 + $0x1028] sm:$0xff] %v1264
                %v1266 = vld [vmem:[%s228 + $0x7690] sm:$0xff]
                %1267 = vst [vmem:[%s229 + $0x1030] sm:$0xff] %v1266
                %v1268 = vld [vmem:[%s228 + $0x7698] sm:$0xff]
                %1269 = vst [vmem:[%s229 + $0x1038] sm:$0xff] %v1268
                %v1270 = vld [vmem:[%s228 + $0x76a0] sm:$0xff]
                %1271 = vst [vmem:[%s229 + $0x1040] sm:$0xff] %v1270
                %v1272 = vld [vmem:[%s228 + $0x76a8] sm:$0xff]
                %1273 = vst [vmem:[%s229 + $0x1048] sm:$0xff] %v1272
                %v1274 = vld [vmem:[%s228 + $0x76b0] sm:$0xff]
                %1275 = vst [vmem:[%s229 + $0x1050] sm:$0xff] %v1274
                %v1276 = vld [vmem:[%s228 + $0x76b8] sm:$0xff]
                %1277 = vst [vmem:[%s229 + $0x1058] sm:$0xff] %v1276
                %v1278 = vld [vmem:[%s228 + $0x76c0] sm:$0xff]
                %1279 = vst [vmem:[%s229 + $0x1060] sm:$0xff] %v1278
                %v1280 = vld [vmem:[%s228 + $0x76c8] sm:$0xff]
                %1281 = vst [vmem:[%s229 + $0x1068] sm:$0xff] %v1280
                %v1282 = vld [vmem:[%s228 + $0x76d0] sm:$0xff]
                %1283 = vst [vmem:[%s229 + $0x1070] sm:$0xff] %v1282
                %v1284 = vld [vmem:[%s228 + $0x76d8] sm:$0xff]
                %1285 = vst [vmem:[%s229 + $0x1078] sm:$0xff] %v1284
                %v1286 = vld [vmem:[%s228 + $0x76e0] sm:$0xff]
                %1287 = vst [vmem:[%s229 + $0x1080] sm:$0xff] %v1286
                %v1288 = vld [vmem:[%s228 + $0x76e8] sm:$0xff]
                %1289 = vst [vmem:[%s229 + $0x1088] sm:$0xff] %v1288
                %v1290 = vld [vmem:[%s228 + $0x76f0] sm:$0xff]
                %1291 = vst [vmem:[%s229 + $0x1090] sm:$0xff] %v1290
                %v1292 = vld [vmem:[%s228 + $0x76f8] sm:$0xff]
                %1293 = vst [vmem:[%s229 + $0x1098] sm:$0xff] %v1292
                %v1294 = vld [vmem:[%s228 + $0x7700] sm:$0xff]
                %1295 = vst [vmem:[%s229 + $0x10a0] sm:$0xff] %v1294
                %v1296 = vld [vmem:[%s228 + $0x7708] sm:$0xff]
                %1297 = vst [vmem:[%s229 + $0x10a8] sm:$0xff] %v1296
                %v1298 = vld [vmem:[%s228 + $0x7710] sm:$0xff]
                %1299 = vst [vmem:[%s229 + $0x10b0] sm:$0xff] %v1298
                %v1300 = vld [vmem:[%s228 + $0x7718] sm:$0xff]
                %1301 = vst [vmem:[%s229 + $0x10b8] sm:$0xff] %v1300
                %v1302 = vld [vmem:[%s228 + $0x7720] sm:$0xff]
                %1303 = vst [vmem:[%s229 + $0x10c0] sm:$0xff] %v1302
                %v1304 = vld [vmem:[%s228 + $0x7728] sm:$0xff]
                %1305 = vst [vmem:[%s229 + $0x10c8] sm:$0xff] %v1304
                %v1306 = vld [vmem:[%s228 + $0x7730] sm:$0xff]
                %1307 = vst [vmem:[%s229 + $0x10d0] sm:$0xff] %v1306
                %v1308 = vld [vmem:[%s228 + $0x7738] sm:$0xff]
                %1309 = vst [vmem:[%s229 + $0x10d8] sm:$0xff] %v1308
                %v1310 = vld [vmem:[%s228 + $0x7740] sm:$0xff]
                %1311 = vst [vmem:[%s229 + $0x10e0] sm:$0xff] %v1310
                %v1312 = vld [vmem:[%s228 + $0x7748] sm:$0xff]
                %1313 = vst [vmem:[%s229 + $0x10e8] sm:$0xff] %v1312
                %v1314 = vld [vmem:[%s228 + $0x7750] sm:$0xff]
                %1315 = vst [vmem:[%s229 + $0x10f0] sm:$0xff] %v1314
                %v1316 = vld [vmem:[%s228 + $0x7758] sm:$0xff]
                %1317 = vst [vmem:[%s229 + $0x10f8] sm:$0xff] %v1316
                %v1318 = vld [vmem:[%s228 + $0x7760] sm:$0xff]
                %1319 = vst [vmem:[%s229 + $0x1100] sm:$0xff] %v1318
                %v1320 = vld [vmem:[%s228 + $0x7768] sm:$0xff]
                %1321 = vst [vmem:[%s229 + $0x1108] sm:$0xff] %v1320
                %v1322 = vld [vmem:[%s228 + $0x7770] sm:$0xff]
                %1323 = vst [vmem:[%s229 + $0x1110] sm:$0xff] %v1322
                %v1324 = vld [vmem:[%s228 + $0x7778] sm:$0xff]
                %1325 = vst [vmem:[%s229 + $0x1118] sm:$0xff] %v1324
                %v1326 = vld [vmem:[%s228 + $0x7780] sm:$0xff]
                %1327 = vst [vmem:[%s229 + $0x1120] sm:$0xff] %v1326
                %v1328 = vld [vmem:[%s228 + $0x7788] sm:$0xff]
                %1329 = vst [vmem:[%s229 + $0x1128] sm:$0xff] %v1328
                %v1330 = vld [vmem:[%s228 + $0x7790] sm:$0xff]
                %1331 = vst [vmem:[%s229 + $0x1130] sm:$0xff] %v1330
                %v1332 = vld [vmem:[%s228 + $0x7798] sm:$0xff]
                %1333 = vst [vmem:[%s229 + $0x1138] sm:$0xff] %v1332
                %v1334 = vld [vmem:[%s228 + $0x77a0] sm:$0xff]
                %1335 = vst [vmem:[%s229 + $0x1140] sm:$0xff] %v1334
                %v1336 = vld [vmem:[%s228 + $0x77a8] sm:$0xff]
                %1337 = vst [vmem:[%s229 + $0x1148] sm:$0xff] %v1336
                %v1338 = vld [vmem:[%s228 + $0x77b0] sm:$0xff]
                %1339 = vst [vmem:[%s229 + $0x1150] sm:$0xff] %v1338
                %v1340 = vld [vmem:[%s228 + $0x77b8] sm:$0xff]
                %1341 = vst [vmem:[%s229 + $0x1158] sm:$0xff] %v1340
                %v1342 = vld [vmem:[%s228 + $0x77c0] sm:$0xff]
                %1343 = vst [vmem:[%s229 + $0x1160] sm:$0xff] %v1342
                %v1344 = vld [vmem:[%s228 + $0x77c8] sm:$0xff]
                %1345 = vst [vmem:[%s229 + $0x1168] sm:$0xff] %v1344
                %v1346 = vld [vmem:[%s228 + $0x77d0] sm:$0xff]
                %1347 = vst [vmem:[%s229 + $0x1170] sm:$0xff] %v1346
                %v1348 = vld [vmem:[%s228 + $0x77d8] sm:$0xff]
                %1349 = vst [vmem:[%s229 + $0x1178] sm:$0xff] %v1348
                %v1350 = vld [vmem:[%s228 + $0x77e0] sm:$0xff]
                %1351 = vst [vmem:[%s229 + $0x1180] sm:$0xff] %v1350
                %v1352 = vld [vmem:[%s228 + $0x77e8] sm:$0xff]
                %1353 = vst [vmem:[%s229 + $0x1188] sm:$0xff] %v1352
                %v1354 = vld [vmem:[%s228 + $0x77f0] sm:$0xff]
                %1355 = vst [vmem:[%s229 + $0x1190] sm:$0xff] %v1354
                %v1356 = vld [vmem:[%s228 + $0x77f8] sm:$0xff]
                %1357 = vst [vmem:[%s229 + $0x1198] sm:$0xff] %v1356
                %v1358 = vld [vmem:[%s228 + $0x7800] sm:$0xff]
                %1359 = vst [vmem:[%s229 + $0x11a0] sm:$0xff] %v1358
                %v1360 = vld [vmem:[%s228 + $0x7808] sm:$0xff]
                %1361 = vst [vmem:[%s229 + $0x11a8] sm:$0xff] %v1360
                %v1362 = vld [vmem:[%s228 + $0x7810] sm:$0xff]
                %1363 = vst [vmem:[%s229 + $0x11b0] sm:$0xff] %v1362
                %v1364 = vld [vmem:[%s228 + $0x7818] sm:$0xff]
                %1365 = vst [vmem:[%s229 + $0x11b8] sm:$0xff] %v1364
                %v1366 = vld [vmem:[%s228 + $0x7820] sm:$0xff]
                %1367 = vst [vmem:[%s229 + $0x11c0] sm:$0xff] %v1366
                %v1368 = vld [vmem:[%s228 + $0x7828] sm:$0xff]
                %1369 = vst [vmem:[%s229 + $0x11c8] sm:$0xff] %v1368
                %v1370 = vld [vmem:[%s228 + $0x7830] sm:$0xff]
                %1371 = vst [vmem:[%s229 + $0x11d0] sm:$0xff] %v1370
                %v1372 = vld [vmem:[%s228 + $0x7838] sm:$0xff]
                %1373 = vst [vmem:[%s229 + $0x11d8] sm:$0xff] %v1372
                %v1374 = vld [vmem:[%s228 + $0x7840] sm:$0xff]
                %1375 = vst [vmem:[%s229 + $0x11e0] sm:$0xff] %v1374
                %v1376 = vld [vmem:[%s228 + $0x7848] sm:$0xff]
                %1377 = vst [vmem:[%s229 + $0x11e8] sm:$0xff] %v1376
                %v1378 = vld [vmem:[%s228 + $0x7850] sm:$0xff]
                %1379 = vst [vmem:[%s229 + $0x11f0] sm:$0xff] %v1378
                %v1380 = vld [vmem:[%s228 + $0x7858] sm:$0xff]
                %1381 = vst [vmem:[%s229 + $0x11f8] sm:$0xff] %v1380
                %v1382 = vld [vmem:[%s228 + $0x7860] sm:$0xff]
                %1383 = vst [vmem:[%s229 + $0x1200] sm:$0xff] %v1382
                %v1384 = vld [vmem:[%s228 + $0x7868] sm:$0xff]
                %1385 = vst [vmem:[%s229 + $0x1208] sm:$0xff] %v1384
                %v1386 = vld [vmem:[%s228 + $0x7870] sm:$0xff]
                %1387 = vst [vmem:[%s229 + $0x1210] sm:$0xff] %v1386
                %v1388 = vld [vmem:[%s228 + $0x7878] sm:$0xff]
                %1389 = vst [vmem:[%s229 + $0x1218] sm:$0xff] %v1388
                %v1390 = vld [vmem:[%s228 + $0x7880] sm:$0xff]
                %1391 = vst [vmem:[%s229 + $0x1220] sm:$0xff] %v1390
                %v1392 = vld [vmem:[%s228 + $0x7888] sm:$0xff]
                %1393 = vst [vmem:[%s229 + $0x1228] sm:$0xff] %v1392
                %v1394 = vld [vmem:[%s228 + $0x7890] sm:$0xff]
                %1395 = vst [vmem:[%s229 + $0x1230] sm:$0xff] %v1394
                %v1396 = vld [vmem:[%s228 + $0x7898] sm:$0xff]
                %1397 = vst [vmem:[%s229 + $0x1238] sm:$0xff] %v1396
                %v1398 = vld [vmem:[%s228 + $0x78a0] sm:$0xff]
                %1399 = vst [vmem:[%s229 + $0x1240] sm:$0xff] %v1398
                %v1400 = vld [vmem:[%s228 + $0x78a8] sm:$0xff]
                %1401 = vst [vmem:[%s229 + $0x1248] sm:$0xff] %v1400
                %v1402 = vld [vmem:[%s228 + $0x78b0] sm:$0xff]
                %1403 = vst [vmem:[%s229 + $0x1250] sm:$0xff] %v1402
                %v1404 = vld [vmem:[%s228 + $0x78b8] sm:$0xff]
                %1405 = vst [vmem:[%s229 + $0x1258] sm:$0xff] %v1404
                %v1406 = vld [vmem:[%s228 + $0x78c0] sm:$0xff]
                %1407 = vst [vmem:[%s229 + $0x1260] sm:$0xff] %v1406
                %v1408 = vld [vmem:[%s228 + $0x78c8] sm:$0xff]
                %1409 = vst [vmem:[%s229 + $0x1268] sm:$0xff] %v1408
                %v1410 = vld [vmem:[%s228 + $0x78d0] sm:$0xff]
                %1411 = vst [vmem:[%s229 + $0x1270] sm:$0xff] %v1410
                %v1412 = vld [vmem:[%s228 + $0x78d8] sm:$0xff]
                %1413 = vst [vmem:[%s229 + $0x1278] sm:$0xff] %v1412
                %v1414 = vld [vmem:[%s228 + $0x78e0] sm:$0xff]
                %1415 = vst [vmem:[%s229 + $0x1280] sm:$0xff] %v1414
                %v1416 = vld [vmem:[%s228 + $0x78e8] sm:$0xff]
                %1417 = vst [vmem:[%s229 + $0x1288] sm:$0xff] %v1416
                %v1418 = vld [vmem:[%s228 + $0x78f0] sm:$0xff]
                %1419 = vst [vmem:[%s229 + $0x1290] sm:$0xff] %v1418
                %v1420 = vld [vmem:[%s228 + $0x78f8] sm:$0xff]
                %1421 = vst [vmem:[%s229 + $0x1298] sm:$0xff] %v1420
                %v1422 = vld [vmem:[%s228 + $0x7900] sm:$0xff]
                %1423 = vst [vmem:[%s229 + $0x12a0] sm:$0xff] %v1422
                %v1424 = vld [vmem:[%s228 + $0x7908] sm:$0xff]
                %1425 = vst [vmem:[%s229 + $0x12a8] sm:$0xff] %v1424
                %v1426 = vld [vmem:[%s228 + $0x7910] sm:$0xff]
                %1427 = vst [vmem:[%s229 + $0x12b0] sm:$0xff] %v1426
                %v1428 = vld [vmem:[%s228 + $0x7918] sm:$0xff]
                %1429 = vst [vmem:[%s229 + $0x12b8] sm:$0xff] %v1428
                %v1430 = vld [vmem:[%s228 + $0x7920] sm:$0xff]
                %1431 = vst [vmem:[%s229 + $0x12c0] sm:$0xff] %v1430
                %v1432 = vld [vmem:[%s228 + $0x7928] sm:$0xff]
                %1433 = vst [vmem:[%s229 + $0x12c8] sm:$0xff] %v1432
                %v1434 = vld [vmem:[%s228 + $0x7930] sm:$0xff]
                %1435 = vst [vmem:[%s229 + $0x12d0] sm:$0xff] %v1434
                %v1436 = vld [vmem:[%s228 + $0x7938] sm:$0xff]
                %1437 = vst [vmem:[%s229 + $0x12d8] sm:$0xff] %v1436
                %v1438 = vld [vmem:[%s228 + $0x7940] sm:$0xff]
                %1439 = vst [vmem:[%s229 + $0x12e0] sm:$0xff] %v1438
                %v1440 = vld [vmem:[%s228 + $0x7948] sm:$0xff]
                %1441 = vst [vmem:[%s229 + $0x12e8] sm:$0xff] %v1440
                %v1442 = vld [vmem:[%s228 + $0x7950] sm:$0xff]
                %1443 = vst [vmem:[%s229 + $0x12f0] sm:$0xff] %v1442
                %v1444 = vld [vmem:[%s228 + $0x7958] sm:$0xff]
                %1445 = vst [vmem:[%s229 + $0x12f8] sm:$0xff] %v1444
                %v1446 = vld [vmem:[%s228 + $0x7960] sm:$0xff]
                %1447 = vst [vmem:[%s229 + $0x1300] sm:$0xff] %v1446
                %v1448 = vld [vmem:[%s228 + $0x7968] sm:$0xff]
                %1449 = vst [vmem:[%s229 + $0x1308] sm:$0xff] %v1448
                %v1450 = vld [vmem:[%s228 + $0x7970] sm:$0xff]
                %1451 = vst [vmem:[%s229 + $0x1310] sm:$0xff] %v1450
                %v1452 = vld [vmem:[%s228 + $0x7978] sm:$0xff]
                %1453 = vst [vmem:[%s229 + $0x1318] sm:$0xff] %v1452
                %v1454 = vld [vmem:[%s228 + $0x7980] sm:$0xff]
                %1455 = vst [vmem:[%s229 + $0x1320] sm:$0xff] %v1454
                %v1456 = vld [vmem:[%s228 + $0x7988] sm:$0xff]
                %1457 = vst [vmem:[%s229 + $0x1328] sm:$0xff] %v1456
                %v1458 = vld [vmem:[%s228 + $0x7990] sm:$0xff]
                %1459 = vst [vmem:[%s229 + $0x1330] sm:$0xff] %v1458
                %v1460 = vld [vmem:[%s228 + $0x7998] sm:$0xff]
                %1461 = vst [vmem:[%s229 + $0x1338] sm:$0xff] %v1460
                %v1462 = vld [vmem:[%s228 + $0x79a0] sm:$0xff]
                %1463 = vst [vmem:[%s229 + $0x1340] sm:$0xff] %v1462
                %v1464 = vld [vmem:[%s228 + $0x79a8] sm:$0xff]
                %1465 = vst [vmem:[%s229 + $0x1348] sm:$0xff] %v1464
                %v1466 = vld [vmem:[%s228 + $0x79b0] sm:$0xff]
                %1467 = vst [vmem:[%s229 + $0x1350] sm:$0xff] %v1466
                %v1468 = vld [vmem:[%s228 + $0x79b8] sm:$0xff]
                %1469 = vst [vmem:[%s229 + $0x1358] sm:$0xff] %v1468
                %v1470 = vld [vmem:[%s228 + $0x79c0] sm:$0xff]
                %1471 = vst [vmem:[%s229 + $0x1360] sm:$0xff] %v1470
                %v1472 = vld [vmem:[%s228 + $0x79c8] sm:$0xff]
                %1473 = vst [vmem:[%s229 + $0x1368] sm:$0xff] %v1472
                %v1474 = vld [vmem:[%s228 + $0x79d0] sm:$0xff]
                %1475 = vst [vmem:[%s229 + $0x1370] sm:$0xff] %v1474
                %v1476 = vld [vmem:[%s228 + $0x79d8] sm:$0xff]
                %1477 = vst [vmem:[%s229 + $0x1378] sm:$0xff] %v1476
              $region49: #{basic_block_forward.1} parent=43 // loop_footer
                %s227 = sadd.s32 1, %s223
              $region50: #{basic_block_forward.1} parent=43 // loop_footer_branch
                %222 = sbr.rel target = $region46
              $region51: #{basic_block_forward.1} parent=43 // loop_exit
                _
            $region44: #{basic_block_forward.1} parent=39 // pred_fallthru
              _
            // Predicated region
            $region52: #{basic_block_forward.1} parent=39 // pred_check
              _
            $region53: #{basic_block_forward.1} parent=39 // pred_check_branch
              %1479 = sbr.rel target = $region55
            $region54: #{basic_block_forward.1} parent=39 // pred_region
              _
            $region55: #{basic_block_forward.1} parent=39 // pred_fallthru
              _
          $region40: #{basic_block_forward.1} parent=35 // pred_fallthru
            _
          %1480 = vnop
        $region36: #{basic_block_forward.1} parent=31 // pred_fallthru
          _
        // Predicated region
        $region56: #{basic_block_forward.1} parent=31 // pred_check
          %p1481 = pneg %p145
        $region57: #{basic_block_forward.1} parent=31 // pred_check_branch
          %1483 = sbr.rel (%p1481) target = $region59
        $region58: #{basic_block_forward.1} parent=31 // pred_region
          %s1484 = smul.u32 156, %s15
          %p1485 = scmp.lt.s32.totalorder %s1484, 1247
          %s1486 = scalar_select %p1485, %s1484, 1247
          %s1487 = scalar_lea.vmem %s5, %s1486
          %s1488 = smul.u32 156, %s15
        $region59: #{basic_block_forward.1} parent=31 // pred_fallthru
          _
      $region32: #{basic_block_forward.1} parent=5 // pred_fallthru
        _
      %p1489 = scmp.le.s32.totalorder 1, %s15
      %p1490 = scmp.lt.s32.totalorder %s15, 9
      %p1491 = pnand %p1489, %p1490
      %p1492 = pneg %p1491
      // Predicated region
      $region60: #{basic_block_forward.1} parent=5 // pred_check
        _
      $region61: #{basic_block_forward.1} parent=5 // pred_check_branch
        %1494 = sbr.rel (%p1491) target = $region63
      $region62: #{basic_block_forward.1} parent=5 // pred_region
        %s1495 = ssub.s32 %s15, 1
        %s1496 = sand.u32 %s112, 1
        %s1497 = sand.u32 %s112, 1
        %s1498 = smul.addr %s1497, 4992
        %s1499 = scalar_lea.vmem [#allocation2], %s1498
        // Predicated region
        $region64: #{basic_block_forward.1} parent=62 // pred_check
          %p1500 = pneg %p125
        $region65: #{basic_block_forward.1} parent=62 // pred_check_branch
          %1502 = sbr.rel (%p1500) target = $region67
        $region66: #{basic_block_forward.1} parent=62 // pred_region
          _
        $region67: #{basic_block_forward.1} parent=62 // pred_fallthru
          _
        %p1503 = pneg %p36
        %p1504 = pneg %p33
        %p1505 = pneg %p57
        %p1506 = pneg %p54
        %p1507 = pneg %p78
        %p1508 = pneg %p75
        %p1509 = pneg %p99
        %p1510 = pneg %p96
        %s1511 = sand.u32 %s112, 1
        %s1512 = sand.u32 %s112, 1
        %s1513 = smul.addr %s1512, 4992
        %s1514 = scalar_lea.vmem [#allocation2], %s1513
        %p1515 = pneg %p125
        %p1516 = pneg %p122
        %s1517 = smul.u32 156, %s20
        %p1518 = scmp.lt.s32.totalorder %s1517, 1247
        %s1519 = scalar_select %p1518, %s1517, 1247
        %s1520 = scalar_lea.vmem %s5, %s1519
        %p1521 = pneg %p151
        %p1522 = pneg %p148
        %p1523 = pneg %p177
        %p1524 = pneg %p174
        %s1525 = sand.u32 %s164, 1
        %s1526 = scalar_lea.sflag [#allocation4], %s1525
        %s1527 = sand.u32 %s164, 1
        %s1528 = smul.addr %s1527, 312
        %s1529 = scalar_lea.vmem [#allocation3], %s1528
        %s1530 = smul.u32 156, %s20
        %s1531 = smul.u32 156, %s20
        %p1532 = scmp.lt.s32.totalorder %s1531, 1247
        %s1533 = scalar_select %p1532, %s1531, 1247
        %s1534 = scalar_lea.vmem %s5, %s1533
        %s1535 = smul.u32 156, %s20
        %s1536 = smul.u32 156, %s20
        %v1537 = vld [vmem:[%s0] sm:$0x3]
        %v1538 = vld [vmem:[%s1] sm:$0xf]
        %v1539 = vld [vmem:[%s2] sm:$0x1]
        %v1541 = vlaneseq
        %v1542 = vshrl.u32 %v1541, 7
        %v1543 = vsub.s32 0, %v1542
        %v1544 = vrot.slane %v1539, %v1543
        %vm1546 = vcmask 31744
        %v1548 = vsel %vm1546, %v1537, 0
        %vm1550 = vcmask 1043456
        %v1552 = vsel %vm1550, %v1538, 0
        %1554 = vmatprep.subr.mxu0 0.0
        %1555 = vmatpush1.msra.mxu0 0.0
        %1556 = vmatprep.subr.mxu0 0.0
        %1557 = vmatpush1.msra.mxu0 0.0
        %1558 = vmatprep.subr.mxu0 0.0
        %1559 = vmatpush1.msra.mxu0 0.0
        %1560 = vmatprep.subr.mxu0 0.0
        %1561 = vmatpush1.msra.mxu0 0.0
        %1562 = vmatprep.subr.mxu0 0.0
        %1563 = vmatpush1.msra.mxu0 0.0
        %1564 = vmatprep.subr.mxu0 0.0
        %1565 = vmatpush1.msra.mxu0 0.0
        %1566 = vmatprep.subr.mxu0 0.0
        %1567 = vmatpush1.msra.mxu0 0.0
        %1568 = vmatprep.subr.mxu0 0.0
        %1569 = vmatpush1.msra.mxu0 0.0
        %1570 = vmatprep.subr.mxu0 0.0
        %1571 = vmatpush1.msra.mxu0 0.0
        %1572 = vmatprep.subr.mxu0 0.0
        %1573 = vmatpush1.msra.mxu0 0.0
        %1574 = vmatprep.subr.mxu0 0.0
        %1575 = vmatpush1.msra.mxu0 0.0
        %1576 = vmatprep.subr.mxu0 0.0
        %1577 = vmatpush1.msra.mxu0 0.0
        %1578 = vmatprep.subr.mxu0 0.0
        %1579 = vmatpush1.msra.mxu0 0.0
        %1580 = vmatprep.subr.mxu0 0.0
        %1581 = vmatpush1.msra.mxu0 0.0
        %1582 = vmatprep.subr.mxu0 0.0
        %1583 = vmatpush1.msra.mxu0 0.0
        %1584 = vmatprep.subr.mxu0 0.0
        %1585 = vmatpush1.msra.mxu0 %v1552
        %1586 = vmatprep.subr.mxu0 0.0
        %1587 = vmatpush2.msra.mxu0 0.0
        %1588 = vmatprep.subr.mxu0 0.0
        %1589 = vmatpush2.msra.mxu0 0.0
        %1590 = vmatprep.subr.mxu0 0.0
        %1591 = vmatpush2.msra.mxu0 0.0
        %1592 = vmatprep.subr.mxu0 0.0
        %1593 = vmatpush2.msra.mxu0 0.0
        %1594 = vmatprep.subr.mxu0 0.0
        %1595 = vmatpush2.msra.mxu0 0.0
        %1596 = vmatprep.subr.mxu0 0.0
        %1597 = vmatpush2.msra.mxu0 0.0
        %1598 = vmatprep.subr.mxu0 0.0
        %1599 = vmatpush2.msra.mxu0 0.0
        %1600 = vmatprep.subr.mxu0 0.0
        %1601 = vmatpush2.msra.mxu0 0.0
        %1602 = vmatprep.subr.mxu0 0.0
        %1603 = vmatpush2.msra.mxu0 0.0
        %1604 = vmatprep.subr.mxu0 0.0
        %1605 = vmatpush2.msra.mxu0 0.0
        %1606 = vmatprep.subr.mxu0 0.0
        %1607 = vmatpush2.msra.mxu0 0.0
        %1608 = vmatprep.subr.mxu0 0.0
        %1609 = vmatpush2.msra.mxu0 0.0
        %1610 = vmatprep.subr.mxu0 0.0
        %1611 = vmatpush2.msra.mxu0 0.0
        %1612 = vmatprep.subr.mxu0 0.0
        %1613 = vmatpush2.msra.mxu0 0.0
        %1614 = vmatprep.subr.mxu0 0.0
        %1615 = vmatpush2.msra.mxu0 0.0
        %1616 = vmatprep.subr.mxu0 0.0
        %1617 = vmatpush2.msra.mxu0 0.0
        %1618 = vmatprep.mubr.f32.mxu0 0.0
        %1619 = vmatmul.mubr.f32.gmra.mxu0 %v1548
        %v1620 = vpop.f32.mrf.mxu0
        %v1621 = vadd.f32 %v1544, %v1620
        %v1622 = vpop.f32.mrf.mxu0
        %1623 = vdwg.mxu0
        %vm1624 = vcmp.ge.f32.partialorder %v1621, 0.0
        %v1625 = vld [vmem:[%s3] sm:$0x1]
        %v1627 = vlaneseq
        %v1628 = vshrl.u32 %v1627, 7
        %v1629 = vsub.s32 0, %v1628
        %v1630 = vrot.slane %v1625, %v1629
        %v1632 = vmul.f32 %v1630, %v1621
        %v1633 = vsel %vm1624, %v1621, %v1632
        %v1634 = vld [vmem:[%s1499] sm:$0xff]
        %v1635 = vld [vmem:[%s1499 + $0x8] sm:$0xff]
        %v1636 = vld [vmem:[%s1499 + $0x10] sm:$0xff]
        %v1637 = vld [vmem:[%s1499 + $0x18] sm:$0xff]
        %v1638 = vld [vmem:[%s1499 + $0x20] sm:$0xff]
        %v1639 = vld [vmem:[%s1499 + $0x28] sm:$0xff]
        %v1640 = vld [vmem:[%s1499 + $0x30] sm:$0xff]
        %v1641 = vld [vmem:[%s1499 + $0x38] sm:$0xff]
        %v1642 = vld [vmem:[%s1499 + $0x40] sm:$0xff]
        %v1643 = vld [vmem:[%s1499 + $0x48] sm:$0xff]
        %v1644 = vld [vmem:[%s1499 + $0x50] sm:$0xff]
        %v1645 = vld [vmem:[%s1499 + $0x58] sm:$0xff]
        %v1646 = vld [vmem:[%s1499 + $0x60] sm:$0xff]
        %v1647 = vld [vmem:[%s1499 + $0x68] sm:$0xff]
        %v1648 = vld [vmem:[%s1499 + $0x70] sm:$0xff]
        %v1649 = vld [vmem:[%s1499 + $0x78] sm:$0xff]
        %v1650 = vld [vmem:[%s1499 + $0x80] sm:$0xff]
        %v1651 = vld [vmem:[%s1499 + $0x88] sm:$0xff]
        %v1652 = vld [vmem:[%s1499 + $0x90] sm:$0xff]
        %v1653 = vld [vmem:[%s1499 + $0x98] sm:$0xff]
        %v1654 = vld [vmem:[%s1499 + $0xa0] sm:$0xff]
        %v1655 = vld [vmem:[%s1499 + $0xa8] sm:$0xff]
        %v1656 = vld [vmem:[%s1499 + $0xb0] sm:$0xff]
        %v1657 = vld [vmem:[%s1499 + $0xb8] sm:$0xff]
        %v1658 = vld [vmem:[%s1499 + $0xc0] sm:$0xff]
        %v1659 = vld [vmem:[%s1499 + $0xc8] sm:$0xff]
        %v1660 = vld [vmem:[%s1499 + $0xd0] sm:$0xff]
        %v1661 = vld [vmem:[%s1499 + $0xd8] sm:$0xff]
        %v1662 = vld [vmem:[%s1499 + $0xe0] sm:$0xff]
        %v1663 = vld [vmem:[%s1499 + $0xe8] sm:$0xff]
        %v1664 = vld [vmem:[%s1499 + $0xf0] sm:$0xff]
        %v1665 = vld [vmem:[%s1499 + $0xf8] sm:$0xff]
        %v1666 = vld [vmem:[%s1499 + $0x100] sm:$0xff]
        %v1667 = vld [vmem:[%s1499 + $0x108] sm:$0xff]
        %v1668 = vld [vmem:[%s1499 + $0x110] sm:$0xff]
        %v1669 = vld [vmem:[%s1499 + $0x118] sm:$0xff]
        %v1670 = vld [vmem:[%s1499 + $0x120] sm:$0xff]
        %v1671 = vld [vmem:[%s1499 + $0x128] sm:$0xff]
        %v1672 = vld [vmem:[%s1499 + $0x130] sm:$0xff]
        %v1673 = vld [vmem:[%s1499 + $0x138] sm:$0xff]
        %v1674 = vld [vmem:[%s1499 + $0x140] sm:$0xff]
        %v1675 = vld [vmem:[%s1499 + $0x148] sm:$0xff]
        %v1676 = vld [vmem:[%s1499 + $0x150] sm:$0xff]
        %v1677 = vld [vmem:[%s1499 + $0x158] sm:$0xff]
        %v1678 = vld [vmem:[%s1499 + $0x160] sm:$0xff]
        %v1679 = vld [vmem:[%s1499 + $0x168] sm:$0xff]
        %v1680 = vld [vmem:[%s1499 + $0x170] sm:$0xff]
        %v1681 = vld [vmem:[%s1499 + $0x178] sm:$0xff]
        %v1682 = vld [vmem:[%s1499 + $0x180] sm:$0xff]
        %v1683 = vld [vmem:[%s1499 + $0x188] sm:$0xff]
        %v1684 = vld [vmem:[%s1499 + $0x190] sm:$0xff]
        %v1685 = vld [vmem:[%s1499 + $0x198] sm:$0xff]
        %v1686 = vld [vmem:[%s1499 + $0x1a0] sm:$0xff]
        %v1687 = vld [vmem:[%s1499 + $0x1a8] sm:$0xff]
        %v1688 = vld [vmem:[%s1499 + $0x1b0] sm:$0xff]
        %v1689 = vld [vmem:[%s1499 + $0x1b8] sm:$0xff]
        %v1690 = vld [vmem:[%s1499 + $0x1c0] sm:$0xff]
        %v1691 = vld [vmem:[%s1499 + $0x1c8] sm:$0xff]
        %v1692 = vld [vmem:[%s1499 + $0x1d0] sm:$0xff]
        %v1693 = vld [vmem:[%s1499 + $0x1d8] sm:$0xff]
        %v1694 = vld [vmem:[%s1499 + $0x1e0] sm:$0xff]
        %v1695 = vld [vmem:[%s1499 + $0x1e8] sm:$0xff]
        %v1696 = vld [vmem:[%s1499 + $0x1f0] sm:$0xff]
        %v1697 = vld [vmem:[%s1499 + $0x1f8] sm:$0xff]
        %v1698 = vld [vmem:[%s1499 + $0x200] sm:$0xff]
        %v1699 = vld [vmem:[%s1499 + $0x208] sm:$0xff]
        %v1700 = vld [vmem:[%s1499 + $0x210] sm:$0xff]
        %v1701 = vld [vmem:[%s1499 + $0x218] sm:$0xff]
        %v1702 = vld [vmem:[%s1499 + $0x220] sm:$0xff]
        %v1703 = vld [vmem:[%s1499 + $0x228] sm:$0xff]
        %v1704 = vld [vmem:[%s1499 + $0x230] sm:$0xff]
        %v1705 = vld [vmem:[%s1499 + $0x238] sm:$0xff]
        %v1706 = vld [vmem:[%s1499 + $0x240] sm:$0xff]
        %v1707 = vld [vmem:[%s1499 + $0x248] sm:$0xff]
        %v1708 = vld [vmem:[%s1499 + $0x250] sm:$0xff]
        %v1709 = vld [vmem:[%s1499 + $0x258] sm:$0xff]
        %v1710 = vld [vmem:[%s1499 + $0x260] sm:$0xff]
        %v1711 = vld [vmem:[%s1499 + $0x268] sm:$0xff]
        %v1712 = vld [vmem:[%s1499 + $0x270] sm:$0xff]
        %v1713 = vld [vmem:[%s1499 + $0x278] sm:$0xff]
        %v1714 = vld [vmem:[%s1499 + $0x280] sm:$0xff]
        %v1715 = vld [vmem:[%s1499 + $0x288] sm:$0xff]
        %v1716 = vld [vmem:[%s1499 + $0x290] sm:$0xff]
        %v1717 = vld [vmem:[%s1499 + $0x298] sm:$0xff]
        %v1718 = vld [vmem:[%s1499 + $0x2a0] sm:$0xff]
        %v1719 = vld [vmem:[%s1499 + $0x2a8] sm:$0xff]
        %v1720 = vld [vmem:[%s1499 + $0x2b0] sm:$0xff]
        %v1721 = vld [vmem:[%s1499 + $0x2b8] sm:$0xff]
        %v1722 = vld [vmem:[%s1499 + $0x2c0] sm:$0xff]
        %v1723 = vld [vmem:[%s1499 + $0x2c8] sm:$0xff]
        %v1724 = vld [vmem:[%s1499 + $0x2d0] sm:$0xff]
        %v1725 = vld [vmem:[%s1499 + $0x2d8] sm:$0xff]
        %v1726 = vld [vmem:[%s1499 + $0x2e0] sm:$0xff]
        %v1727 = vld [vmem:[%s1499 + $0x2e8] sm:$0xff]
        %v1728 = vld [vmem:[%s1499 + $0x2f0] sm:$0xff]
        %v1729 = vld [vmem:[%s1499 + $0x2f8] sm:$0xff]
        %v1730 = vld [vmem:[%s1499 + $0x300] sm:$0xff]
        %v1731 = vld [vmem:[%s1499 + $0x308] sm:$0xff]
        %v1732 = vld [vmem:[%s1499 + $0x310] sm:$0xff]
        %v1733 = vld [vmem:[%s1499 + $0x318] sm:$0xff]
        %v1734 = vld [vmem:[%s1499 + $0x320] sm:$0xff]
        %v1735 = vld [vmem:[%s1499 + $0x328] sm:$0xff]
        %v1736 = vld [vmem:[%s1499 + $0x330] sm:$0xff]
        %v1737 = vld [vmem:[%s1499 + $0x338] sm:$0xff]
        %v1738 = vld [vmem:[%s1499 + $0x340] sm:$0xff]
        %v1739 = vld [vmem:[%s1499 + $0x348] sm:$0xff]
        %v1740 = vld [vmem:[%s1499 + $0x350] sm:$0xff]
        %v1741 = vld [vmem:[%s1499 + $0x358] sm:$0xff]
        %v1742 = vld [vmem:[%s1499 + $0x360] sm:$0xff]
        %v1743 = vld [vmem:[%s1499 + $0x368] sm:$0xff]
        %v1744 = vld [vmem:[%s1499 + $0x370] sm:$0xff]
        %v1745 = vld [vmem:[%s1499 + $0x378] sm:$0xff]
        %v1746 = vld [vmem:[%s1499 + $0x380] sm:$0xff]
        %v1747 = vld [vmem:[%s1499 + $0x388] sm:$0xff]
        %v1748 = vld [vmem:[%s1499 + $0x390] sm:$0xff]
        %v1749 = vld [vmem:[%s1499 + $0x398] sm:$0xff]
        %v1750 = vld [vmem:[%s1499 + $0x3a0] sm:$0xff]
        %v1751 = vld [vmem:[%s1499 + $0x3a8] sm:$0xff]
        %v1752 = vld [vmem:[%s1499 + $0x3b0] sm:$0xff]
        %v1753 = vld [vmem:[%s1499 + $0x3b8] sm:$0xff]
        %v1754 = vld [vmem:[%s1499 + $0x3c0] sm:$0xff]
        %v1755 = vld [vmem:[%s1499 + $0x3c8] sm:$0xff]
        %v1756 = vld [vmem:[%s1499 + $0x3d0] sm:$0xff]
        %v1757 = vld [vmem:[%s1499 + $0x3d8] sm:$0xff]
        %v1758 = vld [vmem:[%s1499 + $0x3e0] sm:$0xff]
        %v1759 = vld [vmem:[%s1499 + $0x3e8] sm:$0xff]
        %v1760 = vld [vmem:[%s1499 + $0x3f0] sm:$0xff]
        %v1761 = vld [vmem:[%s1499 + $0x3f8] sm:$0xff]
        %v1762 = vld [vmem:[%s1499 + $0x400] sm:$0xff]
        %v1763 = vld [vmem:[%s1499 + $0x408] sm:$0xff]
        %v1764 = vld [vmem:[%s1499 + $0x410] sm:$0xff]
        %v1765 = vld [vmem:[%s1499 + $0x418] sm:$0xff]
        %v1766 = vld [vmem:[%s1499 + $0x420] sm:$0xff]
        %v1767 = vld [vmem:[%s1499 + $0x428] sm:$0xff]
        %v1768 = vld [vmem:[%s1499 + $0x430] sm:$0xff]
        %v1769 = vld [vmem:[%s1499 + $0x438] sm:$0xff]
        %v1770 = vld [vmem:[%s1499 + $0x440] sm:$0xff]
        %v1771 = vld [vmem:[%s1499 + $0x448] sm:$0xff]
        %v1772 = vld [vmem:[%s1499 + $0x450] sm:$0xff]
        %v1773 = vld [vmem:[%s1499 + $0x458] sm:$0xff]
        %v1774 = vld [vmem:[%s1499 + $0x460] sm:$0xff]
        %v1775 = vld [vmem:[%s1499 + $0x468] sm:$0xff]
        %v1776 = vld [vmem:[%s1499 + $0x470] sm:$0xff]
        %v1777 = vld [vmem:[%s1499 + $0x478] sm:$0xff]
        %v1778 = vld [vmem:[%s1499 + $0x480] sm:$0xff]
        %v1779 = vld [vmem:[%s1499 + $0x488] sm:$0xff]
        %v1780 = vld [vmem:[%s1499 + $0x490] sm:$0xff]
        %v1781 = vld [vmem:[%s1499 + $0x498] sm:$0xff]
        %v1782 = vld [vmem:[%s1499 + $0x4a0] sm:$0xff]
        %v1783 = vld [vmem:[%s1499 + $0x4a8] sm:$0xff]
        %v1784 = vld [vmem:[%s1499 + $0x4b0] sm:$0xff]
        %v1785 = vld [vmem:[%s1499 + $0x4b8] sm:$0xff]
        %v1786 = vld [vmem:[%s1499 + $0x4c0] sm:$0xff]
        %v1787 = vld [vmem:[%s1499 + $0x4c8] sm:$0xff]
        %v1788 = vld [vmem:[%s1499 + $0x4d0] sm:$0xff]
        %v1789 = vld [vmem:[%s1499 + $0x4d8] sm:$0xff]
        %v1790 = vld [vmem:[%s1499 + $0x4e0] sm:$0xff]
        %v1791 = vld [vmem:[%s1499 + $0x4e8] sm:$0xff]
        %v1792 = vld [vmem:[%s1499 + $0x4f0] sm:$0xff]
        %v1793 = vld [vmem:[%s1499 + $0x4f8] sm:$0xff]
        %v1794 = vld [vmem:[%s1499 + $0x500] sm:$0xff]
        %v1795 = vld [vmem:[%s1499 + $0x508] sm:$0xff]
        %v1796 = vld [vmem:[%s1499 + $0x510] sm:$0xff]
        %v1797 = vld [vmem:[%s1499 + $0x518] sm:$0xff]
        %v1798 = vld [vmem:[%s1499 + $0x520] sm:$0xff]
        %v1799 = vld [vmem:[%s1499 + $0x528] sm:$0xff]
        %v1800 = vld [vmem:[%s1499 + $0x530] sm:$0xff]
        %v1801 = vld [vmem:[%s1499 + $0x538] sm:$0xff]
        %v1802 = vld [vmem:[%s1499 + $0x540] sm:$0xff]
        %v1803 = vld [vmem:[%s1499 + $0x548] sm:$0xff]
        %v1804 = vld [vmem:[%s1499 + $0x550] sm:$0xff]
        %v1805 = vld [vmem:[%s1499 + $0x558] sm:$0xff]
        %v1806 = vld [vmem:[%s1499 + $0x560] sm:$0xff]
        %v1807 = vld [vmem:[%s1499 + $0x568] sm:$0xff]
        %v1808 = vld [vmem:[%s1499 + $0x570] sm:$0xff]
        %v1809 = vld [vmem:[%s1499 + $0x578] sm:$0xff]
        %v1810 = vld [vmem:[%s1499 + $0x580] sm:$0xff]
        %v1811 = vld [vmem:[%s1499 + $0x588] sm:$0xff]
        %v1812 = vld [vmem:[%s1499 + $0x590] sm:$0xff]
        %v1813 = vld [vmem:[%s1499 + $0x598] sm:$0xff]
        %v1814 = vld [vmem:[%s1499 + $0x5a0] sm:$0xff]
        %v1815 = vld [vmem:[%s1499 + $0x5a8] sm:$0xff]
        %v1816 = vld [vmem:[%s1499 + $0x5b0] sm:$0xff]
        %v1817 = vld [vmem:[%s1499 + $0x5b8] sm:$0xff]
        %v1818 = vld [vmem:[%s1499 + $0x5c0] sm:$0xff]
        %v1819 = vld [vmem:[%s1499 + $0x5c8] sm:$0xff]
        %v1820 = vld [vmem:[%s1499 + $0x5d0] sm:$0xff]
        %v1821 = vld [vmem:[%s1499 + $0x5d8] sm:$0xff]
        %v1822 = vld [vmem:[%s1499 + $0x5e0] sm:$0xff]
        %v1823 = vld [vmem:[%s1499 + $0x5e8] sm:$0xff]
        %v1824 = vld [vmem:[%s1499 + $0x5f0] sm:$0xff]
        %v1825 = vld [vmem:[%s1499 + $0x5f8] sm:$0xff]
        %v1826 = vld [vmem:[%s1499 + $0x600] sm:$0xff]
        %v1827 = vld [vmem:[%s1499 + $0x608] sm:$0xff]
        %v1828 = vld [vmem:[%s1499 + $0x610] sm:$0xff]
        %v1829 = vld [vmem:[%s1499 + $0x618] sm:$0xff]
        %v1830 = vld [vmem:[%s1499 + $0x620] sm:$0xff]
        %v1831 = vld [vmem:[%s1499 + $0x628] sm:$0xff]
        %v1832 = vld [vmem:[%s1499 + $0x630] sm:$0xff]
        %v1833 = vld [vmem:[%s1499 + $0x638] sm:$0xff]
        %v1834 = vld [vmem:[%s1499 + $0x640] sm:$0xff]
        %v1835 = vld [vmem:[%s1499 + $0x648] sm:$0xff]
        %v1836 = vld [vmem:[%s1499 + $0x650] sm:$0xff]
        %v1837 = vld [vmem:[%s1499 + $0x658] sm:$0xff]
        %v1838 = vld [vmem:[%s1499 + $0x660] sm:$0xff]
        %v1839 = vld [vmem:[%s1499 + $0x668] sm:$0xff]
        %v1840 = vld [vmem:[%s1499 + $0x670] sm:$0xff]
        %v1841 = vld [vmem:[%s1499 + $0x678] sm:$0xff]
        %v1842 = vld [vmem:[%s1499 + $0x680] sm:$0xff]
        %v1843 = vld [vmem:[%s1499 + $0x688] sm:$0xff]
        %v1844 = vld [vmem:[%s1499 + $0x690] sm:$0xff]
        %v1845 = vld [vmem:[%s1499 + $0x698] sm:$0xff]
        %v1846 = vld [vmem:[%s1499 + $0x6a0] sm:$0xff]
        %v1847 = vld [vmem:[%s1499 + $0x6a8] sm:$0xff]
        %v1848 = vld [vmem:[%s1499 + $0x6b0] sm:$0xff]
        %v1849 = vld [vmem:[%s1499 + $0x6b8] sm:$0xff]
        %v1850 = vld [vmem:[%s1499 + $0x6c0] sm:$0xff]
        %v1851 = vld [vmem:[%s1499 + $0x6c8] sm:$0xff]
        %v1852 = vld [vmem:[%s1499 + $0x6d0] sm:$0xff]
        %v1853 = vld [vmem:[%s1499 + $0x6d8] sm:$0xff]
        %v1854 = vld [vmem:[%s1499 + $0x6e0] sm:$0xff]
        %v1855 = vld [vmem:[%s1499 + $0x6e8] sm:$0xff]
        %v1856 = vld [vmem:[%s1499 + $0x6f0] sm:$0xff]
        %v1857 = vld [vmem:[%s1499 + $0x6f8] sm:$0xff]
        %v1858 = vld [vmem:[%s1499 + $0x700] sm:$0xff]
        %v1859 = vld [vmem:[%s1499 + $0x708] sm:$0xff]
        %v1860 = vld [vmem:[%s1499 + $0x710] sm:$0xff]
        %v1861 = vld [vmem:[%s1499 + $0x718] sm:$0xff]
        %v1862 = vld [vmem:[%s1499 + $0x720] sm:$0xff]
        %v1863 = vld [vmem:[%s1499 + $0x728] sm:$0xff]
        %v1864 = vld [vmem:[%s1499 + $0x730] sm:$0xff]
        %v1865 = vld [vmem:[%s1499 + $0x738] sm:$0xff]
        %v1866 = vld [vmem:[%s1499 + $0x740] sm:$0xff]
        %v1867 = vld [vmem:[%s1499 + $0x748] sm:$0xff]
        %v1868 = vld [vmem:[%s1499 + $0x750] sm:$0xff]
        %v1869 = vld [vmem:[%s1499 + $0x758] sm:$0xff]
        %v1870 = vld [vmem:[%s1499 + $0x760] sm:$0xff]
        %v1871 = vld [vmem:[%s1499 + $0x768] sm:$0xff]
        %v1872 = vld [vmem:[%s1499 + $0x770] sm:$0xff]
        %v1873 = vld [vmem:[%s1499 + $0x778] sm:$0xff]
        %v1874 = vld [vmem:[%s1499 + $0x780] sm:$0xff]
        %v1875 = vld [vmem:[%s1499 + $0x788] sm:$0xff]
        %v1876 = vld [vmem:[%s1499 + $0x790] sm:$0xff]
        %v1877 = vld [vmem:[%s1499 + $0x798] sm:$0xff]
        %v1878 = vld [vmem:[%s1499 + $0x7a0] sm:$0xff]
        %v1879 = vld [vmem:[%s1499 + $0x7a8] sm:$0xff]
        %v1880 = vld [vmem:[%s1499 + $0x7b0] sm:$0xff]
        %v1881 = vld [vmem:[%s1499 + $0x7b8] sm:$0xff]
        %v1882 = vld [vmem:[%s1499 + $0x7c0] sm:$0xff]
        %v1883 = vld [vmem:[%s1499 + $0x7c8] sm:$0xff]
        %v1884 = vld [vmem:[%s1499 + $0x7d0] sm:$0xff]
        %v1885 = vld [vmem:[%s1499 + $0x7d8] sm:$0xff]
        %v1886 = vld [vmem:[%s1499 + $0x7e0] sm:$0xff]
        %v1887 = vld [vmem:[%s1499 + $0x7e8] sm:$0xff]
        %v1888 = vld [vmem:[%s1499 + $0x7f0] sm:$0xff]
        %v1889 = vld [vmem:[%s1499 + $0x7f8] sm:$0xff]
        %v1890 = vld [vmem:[%s1499 + $0x800] sm:$0xff]
        %v1891 = vld [vmem:[%s1499 + $0x808] sm:$0xff]
        %v1892 = vld [vmem:[%s1499 + $0x810] sm:$0xff]
        %v1893 = vld [vmem:[%s1499 + $0x818] sm:$0xff]
        %v1894 = vld [vmem:[%s1499 + $0x820] sm:$0xff]
        %v1895 = vld [vmem:[%s1499 + $0x828] sm:$0xff]
        %v1896 = vld [vmem:[%s1499 + $0x830] sm:$0xff]
        %v1897 = vld [vmem:[%s1499 + $0x838] sm:$0xff]
        %v1898 = vld [vmem:[%s1499 + $0x840] sm:$0xff]
        %v1899 = vld [vmem:[%s1499 + $0x848] sm:$0xff]
        %v1900 = vld [vmem:[%s1499 + $0x850] sm:$0xff]
        %v1901 = vld [vmem:[%s1499 + $0x858] sm:$0xff]
        %v1902 = vld [vmem:[%s1499 + $0x860] sm:$0xff]
        %v1903 = vld [vmem:[%s1499 + $0x868] sm:$0xff]
        %v1904 = vld [vmem:[%s1499 + $0x870] sm:$0xff]
        %v1905 = vld [vmem:[%s1499 + $0x878] sm:$0xff]
        %v1906 = vld [vmem:[%s1499 + $0x880] sm:$0xff]
        %v1907 = vld [vmem:[%s1499 + $0x888] sm:$0xff]
        %v1908 = vld [vmem:[%s1499 + $0x890] sm:$0xff]
        %v1909 = vld [vmem:[%s1499 + $0x898] sm:$0xff]
        %v1910 = vld [vmem:[%s1499 + $0x8a0] sm:$0xff]
        %v1911 = vld [vmem:[%s1499 + $0x8a8] sm:$0xff]
        %v1912 = vld [vmem:[%s1499 + $0x8b0] sm:$0xff]
        %v1913 = vld [vmem:[%s1499 + $0x8b8] sm:$0xff]
        %v1914 = vld [vmem:[%s1499 + $0x8c0] sm:$0xff]
        %v1915 = vld [vmem:[%s1499 + $0x8c8] sm:$0xff]
        %v1916 = vld [vmem:[%s1499 + $0x8d0] sm:$0xff]
        %v1917 = vld [vmem:[%s1499 + $0x8d8] sm:$0xff]
        %v1918 = vld [vmem:[%s1499 + $0x8e0] sm:$0xff]
        %v1919 = vld [vmem:[%s1499 + $0x8e8] sm:$0xff]
        %v1920 = vld [vmem:[%s1499 + $0x8f0] sm:$0xff]
        %v1921 = vld [vmem:[%s1499 + $0x8f8] sm:$0xff]
        %v1922 = vld [vmem:[%s1499 + $0x900] sm:$0xff]
        %v1923 = vld [vmem:[%s1499 + $0x908] sm:$0xff]
        %v1924 = vld [vmem:[%s1499 + $0x910] sm:$0xff]
        %v1925 = vld [vmem:[%s1499 + $0x918] sm:$0xff]
        %v1926 = vld [vmem:[%s1499 + $0x920] sm:$0xff]
        %v1927 = vld [vmem:[%s1499 + $0x928] sm:$0xff]
        %v1928 = vld [vmem:[%s1499 + $0x930] sm:$0xff]
        %v1929 = vld [vmem:[%s1499 + $0x938] sm:$0xff]
        %v1930 = vld [vmem:[%s1499 + $0x940] sm:$0xff]
        %v1931 = vld [vmem:[%s1499 + $0x948] sm:$0xff]
        %v1932 = vld [vmem:[%s1499 + $0x950] sm:$0xff]
        %v1933 = vld [vmem:[%s1499 + $0x958] sm:$0xff]
        %v1934 = vld [vmem:[%s1499 + $0x960] sm:$0xff]
        %v1935 = vld [vmem:[%s1499 + $0x968] sm:$0xff]
        %v1936 = vld [vmem:[%s1499 + $0x970] sm:$0xff]
        %v1937 = vld [vmem:[%s1499 + $0x978] sm:$0xff]
        %v1938 = vld [vmem:[%s1499 + $0x980] sm:$0xff]
        %v1939 = vld [vmem:[%s1499 + $0x988] sm:$0xff]
        %v1940 = vld [vmem:[%s1499 + $0x990] sm:$0xff]
        %v1941 = vld [vmem:[%s1499 + $0x998] sm:$0xff]
        %v1942 = vld [vmem:[%s1499 + $0x9a0] sm:$0xff]
        %v1943 = vld [vmem:[%s1499 + $0x9a8] sm:$0xff]
        %v1944 = vld [vmem:[%s1499 + $0x9b0] sm:$0xff]
        %v1945 = vld [vmem:[%s1499 + $0x9b8] sm:$0xff]
        %v1946 = vld [vmem:[%s1499 + $0x9c0] sm:$0xff]
        %v1947 = vld [vmem:[%s1499 + $0x9c8] sm:$0xff]
        %v1948 = vld [vmem:[%s1499 + $0x9d0] sm:$0xff]
        %v1949 = vld [vmem:[%s1499 + $0x9d8] sm:$0xff]
        %v1950 = vld [vmem:[%s1499 + $0x9e0] sm:$0xff]
        %v1951 = vld [vmem:[%s1499 + $0x9e8] sm:$0xff]
        %v1952 = vld [vmem:[%s1499 + $0x9f0] sm:$0xff]
        %v1953 = vld [vmem:[%s1499 + $0x9f8] sm:$0xff]
        %v1954 = vld [vmem:[%s1499 + $0xa00] sm:$0xff]
        %v1955 = vld [vmem:[%s1499 + $0xa08] sm:$0xff]
        %v1956 = vld [vmem:[%s1499 + $0xa10] sm:$0xff]
        %v1957 = vld [vmem:[%s1499 + $0xa18] sm:$0xff]
        %v1958 = vld [vmem:[%s1499 + $0xa20] sm:$0xff]
        %v1959 = vld [vmem:[%s1499 + $0xa28] sm:$0xff]
        %v1960 = vld [vmem:[%s1499 + $0xa30] sm:$0xff]
        %v1961 = vld [vmem:[%s1499 + $0xa38] sm:$0xff]
        %v1962 = vld [vmem:[%s1499 + $0xa40] sm:$0xff]
        %v1963 = vld [vmem:[%s1499 + $0xa48] sm:$0xff]
        %v1964 = vld [vmem:[%s1499 + $0xa50] sm:$0xff]
        %v1965 = vld [vmem:[%s1499 + $0xa58] sm:$0xff]
        %v1966 = vld [vmem:[%s1499 + $0xa60] sm:$0xff]
        %v1967 = vld [vmem:[%s1499 + $0xa68] sm:$0xff]
        %v1968 = vld [vmem:[%s1499 + $0xa70] sm:$0xff]
        %v1969 = vld [vmem:[%s1499 + $0xa78] sm:$0xff]
        %v1970 = vld [vmem:[%s1499 + $0xa80] sm:$0xff]
        %v1971 = vld [vmem:[%s1499 + $0xa88] sm:$0xff]
        %v1972 = vld [vmem:[%s1499 + $0xa90] sm:$0xff]
        %v1973 = vld [vmem:[%s1499 + $0xa98] sm:$0xff]
        %v1974 = vld [vmem:[%s1499 + $0xaa0] sm:$0xff]
        %v1975 = vld [vmem:[%s1499 + $0xaa8] sm:$0xff]
        %v1976 = vld [vmem:[%s1499 + $0xab0] sm:$0xff]
        %v1977 = vld [vmem:[%s1499 + $0xab8] sm:$0xff]
        %v1978 = vld [vmem:[%s1499 + $0xac0] sm:$0xff]
        %v1979 = vld [vmem:[%s1499 + $0xac8] sm:$0xff]
        %v1980 = vld [vmem:[%s1499 + $0xad0] sm:$0xff]
        %v1981 = vld [vmem:[%s1499 + $0xad8] sm:$0xff]
        %v1982 = vld [vmem:[%s1499 + $0xae0] sm:$0xff]
        %v1983 = vld [vmem:[%s1499 + $0xae8] sm:$0xff]
        %v1984 = vld [vmem:[%s1499 + $0xaf0] sm:$0xff]
        %v1985 = vld [vmem:[%s1499 + $0xaf8] sm:$0xff]
        %v1986 = vld [vmem:[%s1499 + $0xb00] sm:$0xff]
        %v1987 = vld [vmem:[%s1499 + $0xb08] sm:$0xff]
        %v1988 = vld [vmem:[%s1499 + $0xb10] sm:$0xff]
        %v1989 = vld [vmem:[%s1499 + $0xb18] sm:$0xff]
        %v1990 = vld [vmem:[%s1499 + $0xb20] sm:$0xff]
        %v1991 = vld [vmem:[%s1499 + $0xb28] sm:$0xff]
        %v1992 = vld [vmem:[%s1499 + $0xb30] sm:$0xff]
        %v1993 = vld [vmem:[%s1499 + $0xb38] sm:$0xff]
        %v1994 = vld [vmem:[%s1499 + $0xb40] sm:$0xff]
        %v1995 = vld [vmem:[%s1499 + $0xb48] sm:$0xff]
        %v1996 = vld [vmem:[%s1499 + $0xb50] sm:$0xff]
        %v1997 = vld [vmem:[%s1499 + $0xb58] sm:$0xff]
        %v1998 = vld [vmem:[%s1499 + $0xb60] sm:$0xff]
        %v1999 = vld [vmem:[%s1499 + $0xb68] sm:$0xff]
        %v2000 = vld [vmem:[%s1499 + $0xb70] sm:$0xff]
        %v2001 = vld [vmem:[%s1499 + $0xb78] sm:$0xff]
        %v2002 = vld [vmem:[%s1499 + $0xb80] sm:$0xff]
        %v2003 = vld [vmem:[%s1499 + $0xb88] sm:$0xff]
        %v2004 = vld [vmem:[%s1499 + $0xb90] sm:$0xff]
        %v2005 = vld [vmem:[%s1499 + $0xb98] sm:$0xff]
        %v2006 = vld [vmem:[%s1499 + $0xba0] sm:$0xff]
        %v2007 = vld [vmem:[%s1499 + $0xba8] sm:$0xff]
        %v2008 = vld [vmem:[%s1499 + $0xbb0] sm:$0xff]
        %v2009 = vld [vmem:[%s1499 + $0xbb8] sm:$0xff]
        %v2010 = vld [vmem:[%s1499 + $0xbc0] sm:$0xff]
        %v2011 = vld [vmem:[%s1499 + $0xbc8] sm:$0xff]
        %v2012 = vld [vmem:[%s1499 + $0xbd0] sm:$0xff]
        %v2013 = vld [vmem:[%s1499 + $0xbd8] sm:$0xff]
        %v2014 = vld [vmem:[%s1499 + $0xbe0] sm:$0xff]
        %v2015 = vld [vmem:[%s1499 + $0xbe8] sm:$0xff]
        %v2016 = vld [vmem:[%s1499 + $0xbf0] sm:$0xff]
        %v2017 = vld [vmem:[%s1499 + $0xbf8] sm:$0xff]
        %v2018 = vld [vmem:[%s1499 + $0xc00] sm:$0xff]
        %v2019 = vld [vmem:[%s1499 + $0xc08] sm:$0xff]
        %v2020 = vld [vmem:[%s1499 + $0xc10] sm:$0xff]
        %v2021 = vld [vmem:[%s1499 + $0xc18] sm:$0xff]
        %v2022 = vld [vmem:[%s1499 + $0xc20] sm:$0xff]
        %v2023 = vld [vmem:[%s1499 + $0xc28] sm:$0xff]
        %v2024 = vld [vmem:[%s1499 + $0xc30] sm:$0xff]
        %v2025 = vld [vmem:[%s1499 + $0xc38] sm:$0xff]
        %v2026 = vld [vmem:[%s1499 + $0xc40] sm:$0xff]
        %v2027 = vld [vmem:[%s1499 + $0xc48] sm:$0xff]
        %v2028 = vld [vmem:[%s1499 + $0xc50] sm:$0xff]
        %v2029 = vld [vmem:[%s1499 + $0xc58] sm:$0xff]
        %v2030 = vld [vmem:[%s1499 + $0xc60] sm:$0xff]
        %v2031 = vld [vmem:[%s1499 + $0xc68] sm:$0xff]
        %v2032 = vld [vmem:[%s1499 + $0xc70] sm:$0xff]
        %v2033 = vld [vmem:[%s1499 + $0xc78] sm:$0xff]
        %v2034 = vld [vmem:[%s1499 + $0xc80] sm:$0xff]
        %v2035 = vld [vmem:[%s1499 + $0xc88] sm:$0xff]
        %v2036 = vld [vmem:[%s1499 + $0xc90] sm:$0xff]
        %v2037 = vld [vmem:[%s1499 + $0xc98] sm:$0xff]
        %v2038 = vld [vmem:[%s1499 + $0xca0] sm:$0xff]
        %v2039 = vld [vmem:[%s1499 + $0xca8] sm:$0xff]
        %v2040 = vld [vmem:[%s1499 + $0xcb0] sm:$0xff]
        %v2041 = vld [vmem:[%s1499 + $0xcb8] sm:$0xff]
        %v2042 = vld [vmem:[%s1499 + $0xcc0] sm:$0xff]
        %v2043 = vld [vmem:[%s1499 + $0xcc8] sm:$0xff]
        %v2044 = vld [vmem:[%s1499 + $0xcd0] sm:$0xff]
        %v2045 = vld [vmem:[%s1499 + $0xcd8] sm:$0xff]
        %v2046 = vld [vmem:[%s1499 + $0xce0] sm:$0xff]
        %v2047 = vld [vmem:[%s1499 + $0xce8] sm:$0xff]
        %v2048 = vld [vmem:[%s1499 + $0xcf0] sm:$0xff]
        %v2049 = vld [vmem:[%s1499 + $0xcf8] sm:$0xff]
        %v2050 = vld [vmem:[%s1499 + $0xd00] sm:$0xff]
        %v2051 = vld [vmem:[%s1499 + $0xd08] sm:$0xff]
        %v2052 = vld [vmem:[%s1499 + $0xd10] sm:$0xff]
        %v2053 = vld [vmem:[%s1499 + $0xd18] sm:$0xff]
        %v2054 = vld [vmem:[%s1499 + $0xd20] sm:$0xff]
        %v2055 = vld [vmem:[%s1499 + $0xd28] sm:$0xff]
        %v2056 = vld [vmem:[%s1499 + $0xd30] sm:$0xff]
        %v2057 = vld [vmem:[%s1499 + $0xd38] sm:$0xff]
        %v2058 = vld [vmem:[%s1499 + $0xd40] sm:$0xff]
        %v2059 = vld [vmem:[%s1499 + $0xd48] sm:$0xff]
        %v2060 = vld [vmem:[%s1499 + $0xd50] sm:$0xff]
        %v2061 = vld [vmem:[%s1499 + $0xd58] sm:$0xff]
        %v2062 = vld [vmem:[%s1499 + $0xd60] sm:$0xff]
        %v2063 = vld [vmem:[%s1499 + $0xd68] sm:$0xff]
        %v2064 = vld [vmem:[%s1499 + $0xd70] sm:$0xff]
        %v2065 = vld [vmem:[%s1499 + $0xd78] sm:$0xff]
        %v2066 = vld [vmem:[%s1499 + $0xd80] sm:$0xff]
        %v2067 = vld [vmem:[%s1499 + $0xd88] sm:$0xff]
        %v2068 = vld [vmem:[%s1499 + $0xd90] sm:$0xff]
        %v2069 = vld [vmem:[%s1499 + $0xd98] sm:$0xff]
        %v2070 = vld [vmem:[%s1499 + $0xda0] sm:$0xff]
        %v2071 = vld [vmem:[%s1499 + $0xda8] sm:$0xff]
        %v2072 = vld [vmem:[%s1499 + $0xdb0] sm:$0xff]
        %v2073 = vld [vmem:[%s1499 + $0xdb8] sm:$0xff]
        %v2074 = vld [vmem:[%s1499 + $0xdc0] sm:$0xff]
        %v2075 = vld [vmem:[%s1499 + $0xdc8] sm:$0xff]
        %v2076 = vld [vmem:[%s1499 + $0xdd0] sm:$0xff]
        %v2077 = vld [vmem:[%s1499 + $0xdd8] sm:$0xff]
        %v2078 = vld [vmem:[%s1499 + $0xde0] sm:$0xff]
        %v2079 = vld [vmem:[%s1499 + $0xde8] sm:$0xff]
        %v2080 = vld [vmem:[%s1499 + $0xdf0] sm:$0xff]
        %v2081 = vld [vmem:[%s1499 + $0xdf8] sm:$0xff]
        %v2082 = vld [vmem:[%s1499 + $0xe00] sm:$0xff]
        %v2083 = vld [vmem:[%s1499 + $0xe08] sm:$0xff]
        %v2084 = vld [vmem:[%s1499 + $0xe10] sm:$0xff]
        %v2085 = vld [vmem:[%s1499 + $0xe18] sm:$0xff]
        %v2086 = vld [vmem:[%s1499 + $0xe20] sm:$0xff]
        %v2087 = vld [vmem:[%s1499 + $0xe28] sm:$0xff]
        %v2088 = vld [vmem:[%s1499 + $0xe30] sm:$0xff]
        %v2089 = vld [vmem:[%s1499 + $0xe38] sm:$0xff]
        %v2090 = vld [vmem:[%s1499 + $0xe40] sm:$0xff]
        %v2091 = vld [vmem:[%s1499 + $0xe48] sm:$0xff]
        %v2092 = vld [vmem:[%s1499 + $0xe50] sm:$0xff]
        %v2093 = vld [vmem:[%s1499 + $0xe58] sm:$0xff]
        %v2094 = vld [vmem:[%s1499 + $0xe60] sm:$0xff]
        %v2095 = vld [vmem:[%s1499 + $0xe68] sm:$0xff]
        %v2096 = vld [vmem:[%s1499 + $0xe70] sm:$0xff]
        %v2097 = vld [vmem:[%s1499 + $0xe78] sm:$0xff]
        %v2098 = vld [vmem:[%s1499 + $0xe80] sm:$0xff]
        %v2099 = vld [vmem:[%s1499 + $0xe88] sm:$0xff]
        %v2100 = vld [vmem:[%s1499 + $0xe90] sm:$0xff]
        %v2101 = vld [vmem:[%s1499 + $0xe98] sm:$0xff]
        %v2102 = vld [vmem:[%s1499 + $0xea0] sm:$0xff]
        %v2103 = vld [vmem:[%s1499 + $0xea8] sm:$0xff]
        %v2104 = vld [vmem:[%s1499 + $0xeb0] sm:$0xff]
        %v2105 = vld [vmem:[%s1499 + $0xeb8] sm:$0xff]
        %v2106 = vld [vmem:[%s1499 + $0xec0] sm:$0xff]
        %v2107 = vld [vmem:[%s1499 + $0xec8] sm:$0xff]
        %v2108 = vld [vmem:[%s1499 + $0xed0] sm:$0xff]
        %v2109 = vld [vmem:[%s1499 + $0xed8] sm:$0xff]
        %v2110 = vld [vmem:[%s1499 + $0xee0] sm:$0xff]
        %v2111 = vld [vmem:[%s1499 + $0xee8] sm:$0xff]
        %v2112 = vld [vmem:[%s1499 + $0xef0] sm:$0xff]
        %v2113 = vld [vmem:[%s1499 + $0xef8] sm:$0xff]
        %v2114 = vld [vmem:[%s1499 + $0xf00] sm:$0xff]
        %v2115 = vld [vmem:[%s1499 + $0xf08] sm:$0xff]
        %v2116 = vld [vmem:[%s1499 + $0xf10] sm:$0xff]
        %v2117 = vld [vmem:[%s1499 + $0xf18] sm:$0xff]
        %v2118 = vld [vmem:[%s1499 + $0xf20] sm:$0xff]
        %v2119 = vld [vmem:[%s1499 + $0xf28] sm:$0xff]
        %v2120 = vld [vmem:[%s1499 + $0xf30] sm:$0xff]
        %v2121 = vld [vmem:[%s1499 + $0xf38] sm:$0xff]
        %v2122 = vld [vmem:[%s1499 + $0xf40] sm:$0xff]
        %v2123 = vld [vmem:[%s1499 + $0xf48] sm:$0xff]
        %v2124 = vld [vmem:[%s1499 + $0xf50] sm:$0xff]
        %v2125 = vld [vmem:[%s1499 + $0xf58] sm:$0xff]
        %v2126 = vld [vmem:[%s1499 + $0xf60] sm:$0xff]
        %v2127 = vld [vmem:[%s1499 + $0xf68] sm:$0xff]
        %v2128 = vld [vmem:[%s1499 + $0xf70] sm:$0xff]
        %v2129 = vld [vmem:[%s1499 + $0xf78] sm:$0xff]
        %v2130 = vld [vmem:[%s1499 + $0xf80] sm:$0xff]
        %v2131 = vld [vmem:[%s1499 + $0xf88] sm:$0xff]
        %v2132 = vld [vmem:[%s1499 + $0xf90] sm:$0xff]
        %v2133 = vld [vmem:[%s1499 + $0xf98] sm:$0xff]
        %v2134 = vld [vmem:[%s1499 + $0xfa0] sm:$0xff]
        %v2135 = vld [vmem:[%s1499 + $0xfa8] sm:$0xff]
        %v2136 = vld [vmem:[%s1499 + $0xfb0] sm:$0xff]
        %v2137 = vld [vmem:[%s1499 + $0xfb8] sm:$0xff]
        %v2138 = vld [vmem:[%s1499 + $0xfc0] sm:$0xff]
        %v2139 = vld [vmem:[%s1499 + $0xfc8] sm:$0xff]
        %v2140 = vld [vmem:[%s1499 + $0xfd0] sm:$0xff]
        %v2141 = vld [vmem:[%s1499 + $0xfd8] sm:$0xff]
        %v2142 = vld [vmem:[%s1499 + $0xfe0] sm:$0xff]
        %v2143 = vld [vmem:[%s1499 + $0xfe8] sm:$0xff]
        %v2144 = vld [vmem:[%s1499 + $0xff0] sm:$0xff]
        %v2145 = vld [vmem:[%s1499 + $0xff8] sm:$0xff]
        %v2146 = vld [vmem:[%s1499 + $0x1000] sm:$0xff]
        %v2147 = vld [vmem:[%s1499 + $0x1008] sm:$0xff]
        %v2148 = vld [vmem:[%s1499 + $0x1010] sm:$0xff]
        %v2149 = vld [vmem:[%s1499 + $0x1018] sm:$0xff]
        %v2150 = vld [vmem:[%s1499 + $0x1020] sm:$0xff]
        %v2151 = vld [vmem:[%s1499 + $0x1028] sm:$0xff]
        %v2152 = vld [vmem:[%s1499 + $0x1030] sm:$0xff]
        %v2153 = vld [vmem:[%s1499 + $0x1038] sm:$0xff]
        %v2154 = vld [vmem:[%s1499 + $0x1040] sm:$0xff]
        %v2155 = vld [vmem:[%s1499 + $0x1048] sm:$0xff]
        %v2156 = vld [vmem:[%s1499 + $0x1050] sm:$0xff]
        %v2157 = vld [vmem:[%s1499 + $0x1058] sm:$0xff]
        %v2158 = vld [vmem:[%s1499 + $0x1060] sm:$0xff]
        %v2159 = vld [vmem:[%s1499 + $0x1068] sm:$0xff]
        %v2160 = vld [vmem:[%s1499 + $0x1070] sm:$0xff]
        %v2161 = vld [vmem:[%s1499 + $0x1078] sm:$0xff]
        %v2162 = vld [vmem:[%s1499 + $0x1080] sm:$0xff]
        %v2163 = vld [vmem:[%s1499 + $0x1088] sm:$0xff]
        %v2164 = vld [vmem:[%s1499 + $0x1090] sm:$0xff]
        %v2165 = vld [vmem:[%s1499 + $0x1098] sm:$0xff]
        %v2166 = vld [vmem:[%s1499 + $0x10a0] sm:$0xff]
        %v2167 = vld [vmem:[%s1499 + $0x10a8] sm:$0xff]
        %v2168 = vld [vmem:[%s1499 + $0x10b0] sm:$0xff]
        %v2169 = vld [vmem:[%s1499 + $0x10b8] sm:$0xff]
        %v2170 = vld [vmem:[%s1499 + $0x10c0] sm:$0xff]
        %v2171 = vld [vmem:[%s1499 + $0x10c8] sm:$0xff]
        %v2172 = vld [vmem:[%s1499 + $0x10d0] sm:$0xff]
        %v2173 = vld [vmem:[%s1499 + $0x10d8] sm:$0xff]
        %v2174 = vld [vmem:[%s1499 + $0x10e0] sm:$0xff]
        %v2175 = vld [vmem:[%s1499 + $0x10e8] sm:$0xff]
        %v2176 = vld [vmem:[%s1499 + $0x10f0] sm:$0xff]
        %v2177 = vld [vmem:[%s1499 + $0x10f8] sm:$0xff]
        %v2178 = vld [vmem:[%s1499 + $0x1100] sm:$0xff]
        %v2179 = vld [vmem:[%s1499 + $0x1108] sm:$0xff]
        %v2180 = vld [vmem:[%s1499 + $0x1110] sm:$0xff]
        %v2181 = vld [vmem:[%s1499 + $0x1118] sm:$0xff]
        %v2182 = vld [vmem:[%s1499 + $0x1120] sm:$0xff]
        %v2183 = vld [vmem:[%s1499 + $0x1128] sm:$0xff]
        %v2184 = vld [vmem:[%s1499 + $0x1130] sm:$0xff]
        %v2185 = vld [vmem:[%s1499 + $0x1138] sm:$0xff]
        %v2186 = vld [vmem:[%s1499 + $0x1140] sm:$0xff]
        %v2187 = vld [vmem:[%s1499 + $0x1148] sm:$0xff]
        %v2188 = vld [vmem:[%s1499 + $0x1150] sm:$0xff]
        %v2189 = vld [vmem:[%s1499 + $0x1158] sm:$0xff]
        %v2190 = vld [vmem:[%s1499 + $0x1160] sm:$0xff]
        %v2191 = vld [vmem:[%s1499 + $0x1168] sm:$0xff]
        %v2192 = vld [vmem:[%s1499 + $0x1170] sm:$0xff]
        %v2193 = vld [vmem:[%s1499 + $0x1178] sm:$0xff]
        %v2194 = vld [vmem:[%s1499 + $0x1180] sm:$0xff]
        %v2195 = vld [vmem:[%s1499 + $0x1188] sm:$0xff]
        %v2196 = vld [vmem:[%s1499 + $0x1190] sm:$0xff]
        %v2197 = vld [vmem:[%s1499 + $0x1198] sm:$0xff]
        %v2198 = vld [vmem:[%s1499 + $0x11a0] sm:$0xff]
        %v2199 = vld [vmem:[%s1499 + $0x11a8] sm:$0xff]
        %v2200 = vld [vmem:[%s1499 + $0x11b0] sm:$0xff]
        %v2201 = vld [vmem:[%s1499 + $0x11b8] sm:$0xff]
        %v2202 = vld [vmem:[%s1499 + $0x11c0] sm:$0xff]
        %v2203 = vld [vmem:[%s1499 + $0x11c8] sm:$0xff]
        %v2204 = vld [vmem:[%s1499 + $0x11d0] sm:$0xff]
        %v2205 = vld [vmem:[%s1499 + $0x11d8] sm:$0xff]
        %v2206 = vld [vmem:[%s1499 + $0x11e0] sm:$0xff]
        %v2207 = vld [vmem:[%s1499 + $0x11e8] sm:$0xff]
        %v2208 = vld [vmem:[%s1499 + $0x11f0] sm:$0xff]
        %v2209 = vld [vmem:[%s1499 + $0x11f8] sm:$0xff]
        %v2210 = vld [vmem:[%s1499 + $0x1200] sm:$0xff]
        %v2211 = vld [vmem:[%s1499 + $0x1208] sm:$0xff]
        %v2212 = vld [vmem:[%s1499 + $0x1210] sm:$0xff]
        %v2213 = vld [vmem:[%s1499 + $0x1218] sm:$0xff]
        %v2214 = vld [vmem:[%s1499 + $0x1220] sm:$0xff]
        %v2215 = vld [vmem:[%s1499 + $0x1228] sm:$0xff]
        %v2216 = vld [vmem:[%s1499 + $0x1230] sm:$0xff]
        %v2217 = vld [vmem:[%s1499 + $0x1238] sm:$0xff]
        %v2218 = vld [vmem:[%s1499 + $0x1240] sm:$0xff]
        %v2219 = vld [vmem:[%s1499 + $0x1248] sm:$0xff]
        %v2220 = vld [vmem:[%s1499 + $0x1250] sm:$0xff]
        %v2221 = vld [vmem:[%s1499 + $0x1258] sm:$0xff]
        %v2222 = vld [vmem:[%s1499 + $0x1260] sm:$0xff]
        %v2223 = vld [vmem:[%s1499 + $0x1268] sm:$0xff]
        %v2224 = vld [vmem:[%s1499 + $0x1270] sm:$0xff]
        %v2225 = vld [vmem:[%s1499 + $0x1278] sm:$0xff]
        %v2226 = vld [vmem:[%s1499 + $0x1280] sm:$0xff]
        %v2227 = vld [vmem:[%s1499 + $0x1288] sm:$0xff]
        %v2228 = vld [vmem:[%s1499 + $0x1290] sm:$0xff]
        %v2229 = vld [vmem:[%s1499 + $0x1298] sm:$0xff]
        %v2230 = vld [vmem:[%s1499 + $0x12a0] sm:$0xff]
        %v2231 = vld [vmem:[%s1499 + $0x12a8] sm:$0xff]
        %v2232 = vld [vmem:[%s1499 + $0x12b0] sm:$0xff]
        %v2233 = vld [vmem:[%s1499 + $0x12b8] sm:$0xff]
        %v2234 = vld [vmem:[%s1499 + $0x12c0] sm:$0xff]
        %v2235 = vld [vmem:[%s1499 + $0x12c8] sm:$0xff]
        %v2236 = vld [vmem:[%s1499 + $0x12d0] sm:$0xff]
        %v2237 = vld [vmem:[%s1499 + $0x12d8] sm:$0xff]
        %v2238 = vld [vmem:[%s1499 + $0x12e0] sm:$0xff]
        %v2239 = vld [vmem:[%s1499 + $0x12e8] sm:$0xff]
        %v2240 = vld [vmem:[%s1499 + $0x12f0] sm:$0xff]
        %v2241 = vld [vmem:[%s1499 + $0x12f8] sm:$0xff]
        %v2242 = vld [vmem:[%s1499 + $0x1300] sm:$0xff]
        %v2243 = vld [vmem:[%s1499 + $0x1308] sm:$0xff]
        %v2244 = vld [vmem:[%s1499 + $0x1310] sm:$0xff]
        %v2245 = vld [vmem:[%s1499 + $0x1318] sm:$0xff]
        %v2246 = vld [vmem:[%s1499 + $0x1320] sm:$0xff]
        %v2247 = vld [vmem:[%s1499 + $0x1328] sm:$0xff]
        %v2248 = vld [vmem:[%s1499 + $0x1330] sm:$0xff]
        %v2249 = vld [vmem:[%s1499 + $0x1338] sm:$0xff]
        %v2250 = vld [vmem:[%s1499 + $0x1340] sm:$0xff]
        %v2251 = vld [vmem:[%s1499 + $0x1348] sm:$0xff]
        %v2252 = vld [vmem:[%s1499 + $0x1350] sm:$0xff]
        %v2253 = vld [vmem:[%s1499 + $0x1358] sm:$0xff]
        %v2254 = vld [vmem:[%s1499 + $0x1360] sm:$0xff]
        %v2255 = vld [vmem:[%s1499 + $0x1368] sm:$0xff]
        %v2256 = vld [vmem:[%s1499 + $0x1370] sm:$0xff]
        %v2257 = vld [vmem:[%s1499 + $0x1378] sm:$0xff]
        %v2258 = vld [vmem:[%s1534] sm:$0xff]
        %v2259 = vld [vmem:[%s1534 + $0x8] sm:$0xff]
        %v2260 = vld [vmem:[%s1534 + $0x10] sm:$0xff]
        %v2261 = vld [vmem:[%s1534 + $0x18] sm:$0xff]
        %v2262 = vld [vmem:[%s1534 + $0x20] sm:$0xff]
        %v2263 = vld [vmem:[%s1534 + $0x28] sm:$0xff]
        %v2264 = vld [vmem:[%s1534 + $0x30] sm:$0xff]
        %v2265 = vld [vmem:[%s1534 + $0x38] sm:$0xff]
        %v2266 = vld [vmem:[%s1534 + $0x40] sm:$0xff]
        %v2267 = vld [vmem:[%s1534 + $0x48] sm:$0xff]
        %v2268 = vld [vmem:[%s1534 + $0x50] sm:$0xff]
        %v2269 = vld [vmem:[%s1534 + $0x58] sm:$0xff]
        %v2270 = vld [vmem:[%s1534 + $0x60] sm:$0xff]
        %v2271 = vld [vmem:[%s1534 + $0x68] sm:$0xff]
        %v2272 = vld [vmem:[%s1534 + $0x70] sm:$0xff]
        %v2273 = vld [vmem:[%s1534 + $0x78] sm:$0xff]
        %v2274 = vld [vmem:[%s1534 + $0x80] sm:$0xff]
        %v2275 = vld [vmem:[%s1534 + $0x88] sm:$0xff]
        %v2276 = vld [vmem:[%s1534 + $0x90] sm:$0xff]
        %v2277 = vld [vmem:[%s1534 + $0x98] sm:$0xf]
        %v2298 = vlaneseq
        %v2299 = vshrl.u32 %v2298, 7
        %v2300 = vsub.s32 0, %v2299
        %v2301 = vrot.slane %v2258, %v2300
        %v2302 = vlaneseq
        %v2303 = vshrl.u32 %v2302, 7
        %v2304 = vsub.s32 1, %v2303
        %v2305 = vrot.slane %v2258, %v2304
        %v2306 = vlaneseq
        %v2307 = vshrl.u32 %v2306, 7
        %v2308 = vsub.s32 2, %v2307
        %v2309 = vrot.slane %v2258, %v2308
        %v2310 = vlaneseq
        %v2311 = vshrl.u32 %v2310, 7
        %v2312 = vsub.s32 3, %v2311
        %v2313 = vrot.slane %v2258, %v2312
        %v2314 = vlaneseq
        %v2315 = vshrl.u32 %v2314, 7
        %v2316 = vsub.s32 4, %v2315
        %v2317 = vrot.slane %v2258, %v2316
        %v2318 = vlaneseq
        %v2319 = vshrl.u32 %v2318, 7
        %v2320 = vsub.s32 5, %v2319
        %v2321 = vrot.slane %v2258, %v2320
        %v2322 = vlaneseq
        %v2323 = vshrl.u32 %v2322, 7
        %v2324 = vsub.s32 6, %v2323
        %v2325 = vrot.slane %v2258, %v2324
        %v2326 = vlaneseq
        %v2327 = vshrl.u32 %v2326, 7
        %v2328 = vsub.s32 7, %v2327
        %v2329 = vrot.slane %v2258, %v2328
        %v2330 = vlaneseq
        %v2331 = vshrl.u32 %v2330, 7
        %v2332 = vsub.s32 0, %v2331
        %v2333 = vrot.slane %v2259, %v2332
        %v2334 = vlaneseq
        %v2335 = vshrl.u32 %v2334, 7
        %v2336 = vsub.s32 1, %v2335
        %v2337 = vrot.slane %v2259, %v2336
        %v2338 = vlaneseq
        %v2339 = vshrl.u32 %v2338, 7
        %v2340 = vsub.s32 2, %v2339
        %v2341 = vrot.slane %v2259, %v2340
        %v2342 = vlaneseq
        %v2343 = vshrl.u32 %v2342, 7
        %v2344 = vsub.s32 3, %v2343
        %v2345 = vrot.slane %v2259, %v2344
        %v2346 = vlaneseq
        %v2347 = vshrl.u32 %v2346, 7
        %v2348 = vsub.s32 4, %v2347
        %v2349 = vrot.slane %v2259, %v2348
        %v2350 = vlaneseq
        %v2351 = vshrl.u32 %v2350, 7
        %v2352 = vsub.s32 5, %v2351
        %v2353 = vrot.slane %v2259, %v2352
        %v2354 = vlaneseq
        %v2355 = vshrl.u32 %v2354, 7
        %v2356 = vsub.s32 6, %v2355
        %v2357 = vrot.slane %v2259, %v2356
        %v2358 = vlaneseq
        %v2359 = vshrl.u32 %v2358, 7
        %v2360 = vsub.s32 7, %v2359
        %v2361 = vrot.slane %v2259, %v2360
        %v2362 = vlaneseq
        %v2363 = vshrl.u32 %v2362, 7
        %v2364 = vsub.s32 0, %v2363
        %v2365 = vrot.slane %v2260, %v2364
        %v2366 = vlaneseq
        %v2367 = vshrl.u32 %v2366, 7
        %v2368 = vsub.s32 1, %v2367
        %v2369 = vrot.slane %v2260, %v2368
        %v2370 = vlaneseq
        %v2371 = vshrl.u32 %v2370, 7
        %v2372 = vsub.s32 2, %v2371
        %v2373 = vrot.slane %v2260, %v2372
        %v2374 = vlaneseq
        %v2375 = vshrl.u32 %v2374, 7
        %v2376 = vsub.s32 3, %v2375
        %v2377 = vrot.slane %v2260, %v2376
        %v2378 = vlaneseq
        %v2379 = vshrl.u32 %v2378, 7
        %v2380 = vsub.s32 4, %v2379
        %v2381 = vrot.slane %v2260, %v2380
        %v2382 = vlaneseq
        %v2383 = vshrl.u32 %v2382, 7
        %v2384 = vsub.s32 5, %v2383
        %v2385 = vrot.slane %v2260, %v2384
        %v2386 = vlaneseq
        %v2387 = vshrl.u32 %v2386, 7
        %v2388 = vsub.s32 6, %v2387
        %v2389 = vrot.slane %v2260, %v2388
        %v2390 = vlaneseq
        %v2391 = vshrl.u32 %v2390, 7
        %v2392 = vsub.s32 7, %v2391
        %v2393 = vrot.slane %v2260, %v2392
        %v2394 = vlaneseq
        %v2395 = vshrl.u32 %v2394, 7
        %v2396 = vsub.s32 0, %v2395
        %v2397 = vrot.slane %v2261, %v2396
        %v2398 = vlaneseq
        %v2399 = vshrl.u32 %v2398, 7
        %v2400 = vsub.s32 1, %v2399
        %v2401 = vrot.slane %v2261, %v2400
        %v2402 = vlaneseq
        %v2403 = vshrl.u32 %v2402, 7
        %v2404 = vsub.s32 2, %v2403
        %v2405 = vrot.slane %v2261, %v2404
        %v2406 = vlaneseq
        %v2407 = vshrl.u32 %v2406, 7
        %v2408 = vsub.s32 3, %v2407
        %v2409 = vrot.slane %v2261, %v2408
        %v2410 = vlaneseq
        %v2411 = vshrl.u32 %v2410, 7
        %v2412 = vsub.s32 4, %v2411
        %v2413 = vrot.slane %v2261, %v2412
        %v2414 = vlaneseq
        %v2415 = vshrl.u32 %v2414, 7
        %v2416 = vsub.s32 5, %v2415
        %v2417 = vrot.slane %v2261, %v2416
        %v2418 = vlaneseq
        %v2419 = vshrl.u32 %v2418, 7
        %v2420 = vsub.s32 6, %v2419
        %v2421 = vrot.slane %v2261, %v2420
        %v2422 = vlaneseq
        %v2423 = vshrl.u32 %v2422, 7
        %v2424 = vsub.s32 7, %v2423
        %v2425 = vrot.slane %v2261, %v2424
        %v2426 = vlaneseq
        %v2427 = vshrl.u32 %v2426, 7
        %v2428 = vsub.s32 0, %v2427
        %v2429 = vrot.slane %v2262, %v2428
        %v2430 = vlaneseq
        %v2431 = vshrl.u32 %v2430, 7
        %v2432 = vsub.s32 1, %v2431
        %v2433 = vrot.slane %v2262, %v2432
        %v2434 = vlaneseq
        %v2435 = vshrl.u32 %v2434, 7
        %v2436 = vsub.s32 2, %v2435
        %v2437 = vrot.slane %v2262, %v2436
        %v2438 = vlaneseq
        %v2439 = vshrl.u32 %v2438, 7
        %v2440 = vsub.s32 3, %v2439
        %v2441 = vrot.slane %v2262, %v2440
        %v2442 = vlaneseq
        %v2443 = vshrl.u32 %v2442, 7
        %v2444 = vsub.s32 4, %v2443
        %v2445 = vrot.slane %v2262, %v2444
        %v2446 = vlaneseq
        %v2447 = vshrl.u32 %v2446, 7
        %v2448 = vsub.s32 5, %v2447
        %v2449 = vrot.slane %v2262, %v2448
        %v2450 = vlaneseq
        %v2451 = vshrl.u32 %v2450, 7
        %v2452 = vsub.s32 6, %v2451
        %v2453 = vrot.slane %v2262, %v2452
        %v2454 = vlaneseq
        %v2455 = vshrl.u32 %v2454, 7
        %v2456 = vsub.s32 7, %v2455
        %v2457 = vrot.slane %v2262, %v2456
        %v2458 = vlaneseq
        %v2459 = vshrl.u32 %v2458, 7
        %v2460 = vsub.s32 0, %v2459
        %v2461 = vrot.slane %v2263, %v2460
        %v2462 = vlaneseq
        %v2463 = vshrl.u32 %v2462, 7
        %v2464 = vsub.s32 1, %v2463
        %v2465 = vrot.slane %v2263, %v2464
        %v2466 = vlaneseq
        %v2467 = vshrl.u32 %v2466, 7
        %v2468 = vsub.s32 2, %v2467
        %v2469 = vrot.slane %v2263, %v2468
        %v2470 = vlaneseq
        %v2471 = vshrl.u32 %v2470, 7
        %v2472 = vsub.s32 3, %v2471
        %v2473 = vrot.slane %v2263, %v2472
        %v2474 = vlaneseq
        %v2475 = vshrl.u32 %v2474, 7
        %v2476 = vsub.s32 4, %v2475
        %v2477 = vrot.slane %v2263, %v2476
        %v2478 = vlaneseq
        %v2479 = vshrl.u32 %v2478, 7
        %v2480 = vsub.s32 5, %v2479
        %v2481 = vrot.slane %v2263, %v2480
        %v2482 = vlaneseq
        %v2483 = vshrl.u32 %v2482, 7
        %v2484 = vsub.s32 6, %v2483
        %v2485 = vrot.slane %v2263, %v2484
        %v2486 = vlaneseq
        %v2487 = vshrl.u32 %v2486, 7
        %v2488 = vsub.s32 7, %v2487
        %v2489 = vrot.slane %v2263, %v2488
        %v2490 = vlaneseq
        %v2491 = vshrl.u32 %v2490, 7
        %v2492 = vsub.s32 0, %v2491
        %v2493 = vrot.slane %v2264, %v2492
        %v2494 = vlaneseq
        %v2495 = vshrl.u32 %v2494, 7
        %v2496 = vsub.s32 1, %v2495
        %v2497 = vrot.slane %v2264, %v2496
        %v2498 = vlaneseq
        %v2499 = vshrl.u32 %v2498, 7
        %v2500 = vsub.s32 2, %v2499
        %v2501 = vrot.slane %v2264, %v2500
        %v2502 = vlaneseq
        %v2503 = vshrl.u32 %v2502, 7
        %v2504 = vsub.s32 3, %v2503
        %v2505 = vrot.slane %v2264, %v2504
        %v2506 = vlaneseq
        %v2507 = vshrl.u32 %v2506, 7
        %v2508 = vsub.s32 4, %v2507
        %v2509 = vrot.slane %v2264, %v2508
        %v2510 = vlaneseq
        %v2511 = vshrl.u32 %v2510, 7
        %v2512 = vsub.s32 5, %v2511
        %v2513 = vrot.slane %v2264, %v2512
        %v2514 = vlaneseq
        %v2515 = vshrl.u32 %v2514, 7
        %v2516 = vsub.s32 6, %v2515
        %v2517 = vrot.slane %v2264, %v2516
        %v2518 = vlaneseq
        %v2519 = vshrl.u32 %v2518, 7
        %v2520 = vsub.s32 7, %v2519
        %v2521 = vrot.slane %v2264, %v2520
        %v2522 = vlaneseq
        %v2523 = vshrl.u32 %v2522, 7
        %v2524 = vsub.s32 0, %v2523
        %v2525 = vrot.slane %v2265, %v2524
        %v2526 = vlaneseq
        %v2527 = vshrl.u32 %v2526, 7
        %v2528 = vsub.s32 1, %v2527
        %v2529 = vrot.slane %v2265, %v2528
        %v2530 = vlaneseq
        %v2531 = vshrl.u32 %v2530, 7
        %v2532 = vsub.s32 2, %v2531
        %v2533 = vrot.slane %v2265, %v2532
        %v2534 = vlaneseq
        %v2535 = vshrl.u32 %v2534, 7
        %v2536 = vsub.s32 3, %v2535
        %v2537 = vrot.slane %v2265, %v2536
        %v2538 = vlaneseq
        %v2539 = vshrl.u32 %v2538, 7
        %v2540 = vsub.s32 4, %v2539
        %v2541 = vrot.slane %v2265, %v2540
        %v2542 = vlaneseq
        %v2543 = vshrl.u32 %v2542, 7
        %v2544 = vsub.s32 5, %v2543
        %v2545 = vrot.slane %v2265, %v2544
        %v2546 = vlaneseq
        %v2547 = vshrl.u32 %v2546, 7
        %v2548 = vsub.s32 6, %v2547
        %v2549 = vrot.slane %v2265, %v2548
        %v2550 = vlaneseq
        %v2551 = vshrl.u32 %v2550, 7
        %v2552 = vsub.s32 7, %v2551
        %v2553 = vrot.slane %v2265, %v2552
        %v2554 = vlaneseq
        %v2555 = vshrl.u32 %v2554, 7
        %v2556 = vsub.s32 0, %v2555
        %v2557 = vrot.slane %v2266, %v2556
        %v2558 = vlaneseq
        %v2559 = vshrl.u32 %v2558, 7
        %v2560 = vsub.s32 1, %v2559
        %v2561 = vrot.slane %v2266, %v2560
        %v2562 = vlaneseq
        %v2563 = vshrl.u32 %v2562, 7
        %v2564 = vsub.s32 2, %v2563
        %v2565 = vrot.slane %v2266, %v2564
        %v2566 = vlaneseq
        %v2567 = vshrl.u32 %v2566, 7
        %v2568 = vsub.s32 3, %v2567
        %v2569 = vrot.slane %v2266, %v2568
        %v2570 = vlaneseq
        %v2571 = vshrl.u32 %v2570, 7
        %v2572 = vsub.s32 4, %v2571
        %v2573 = vrot.slane %v2266, %v2572
        %v2574 = vlaneseq
        %v2575 = vshrl.u32 %v2574, 7
        %v2576 = vsub.s32 5, %v2575
        %v2577 = vrot.slane %v2266, %v2576
        %v2578 = vlaneseq
        %v2579 = vshrl.u32 %v2578, 7
        %v2580 = vsub.s32 6, %v2579
        %v2581 = vrot.slane %v2266, %v2580
        %v2582 = vlaneseq
        %v2583 = vshrl.u32 %v2582, 7
        %v2584 = vsub.s32 7, %v2583
        %v2585 = vrot.slane %v2266, %v2584
        %v2586 = vlaneseq
        %v2587 = vshrl.u32 %v2586, 7
        %v2588 = vsub.s32 0, %v2587
        %v2589 = vrot.slane %v2267, %v2588
        %v2590 = vlaneseq
        %v2591 = vshrl.u32 %v2590, 7
        %v2592 = vsub.s32 1, %v2591
        %v2593 = vrot.slane %v2267, %v2592
        %v2594 = vlaneseq
        %v2595 = vshrl.u32 %v2594, 7
        %v2596 = vsub.s32 2, %v2595
        %v2597 = vrot.slane %v2267, %v2596
        %v2598 = vlaneseq
        %v2599 = vshrl.u32 %v2598, 7
        %v2600 = vsub.s32 3, %v2599
        %v2601 = vrot.slane %v2267, %v2600
        %v2602 = vlaneseq
        %v2603 = vshrl.u32 %v2602, 7
        %v2604 = vsub.s32 4, %v2603
        %v2605 = vrot.slane %v2267, %v2604
        %v2606 = vlaneseq
        %v2607 = vshrl.u32 %v2606, 7
        %v2608 = vsub.s32 5, %v2607
        %v2609 = vrot.slane %v2267, %v2608
        %v2610 = vlaneseq
        %v2611 = vshrl.u32 %v2610, 7
        %v2612 = vsub.s32 6, %v2611
        %v2613 = vrot.slane %v2267, %v2612
        %v2614 = vlaneseq
        %v2615 = vshrl.u32 %v2614, 7
        %v2616 = vsub.s32 7, %v2615
        %v2617 = vrot.slane %v2267, %v2616
        %v2618 = vlaneseq
        %v2619 = vshrl.u32 %v2618, 7
        %v2620 = vsub.s32 0, %v2619
        %v2621 = vrot.slane %v2268, %v2620
        %v2622 = vlaneseq
        %v2623 = vshrl.u32 %v2622, 7
        %v2624 = vsub.s32 1, %v2623
        %v2625 = vrot.slane %v2268, %v2624
        %v2626 = vlaneseq
        %v2627 = vshrl.u32 %v2626, 7
        %v2628 = vsub.s32 2, %v2627
        %v2629 = vrot.slane %v2268, %v2628
        %v2630 = vlaneseq
        %v2631 = vshrl.u32 %v2630, 7
        %v2632 = vsub.s32 3, %v2631
        %v2633 = vrot.slane %v2268, %v2632
        %v2634 = vlaneseq
        %v2635 = vshrl.u32 %v2634, 7
        %v2636 = vsub.s32 4, %v2635
        %v2637 = vrot.slane %v2268, %v2636
        %v2638 = vlaneseq
        %v2639 = vshrl.u32 %v2638, 7
        %v2640 = vsub.s32 5, %v2639
        %v2641 = vrot.slane %v2268, %v2640
        %v2642 = vlaneseq
        %v2643 = vshrl.u32 %v2642, 7
        %v2644 = vsub.s32 6, %v2643
        %v2645 = vrot.slane %v2268, %v2644
        %v2646 = vlaneseq
        %v2647 = vshrl.u32 %v2646, 7
        %v2648 = vsub.s32 7, %v2647
        %v2649 = vrot.slane %v2268, %v2648
        %v2650 = vlaneseq
        %v2651 = vshrl.u32 %v2650, 7
        %v2652 = vsub.s32 0, %v2651
        %v2653 = vrot.slane %v2269, %v2652
        %v2654 = vlaneseq
        %v2655 = vshrl.u32 %v2654, 7
        %v2656 = vsub.s32 1, %v2655
        %v2657 = vrot.slane %v2269, %v2656
        %v2658 = vlaneseq
        %v2659 = vshrl.u32 %v2658, 7
        %v2660 = vsub.s32 2, %v2659
        %v2661 = vrot.slane %v2269, %v2660
        %v2662 = vlaneseq
        %v2663 = vshrl.u32 %v2662, 7
        %v2664 = vsub.s32 3, %v2663
        %v2665 = vrot.slane %v2269, %v2664
        %v2666 = vlaneseq
        %v2667 = vshrl.u32 %v2666, 7
        %v2668 = vsub.s32 4, %v2667
        %v2669 = vrot.slane %v2269, %v2668
        %v2670 = vlaneseq
        %v2671 = vshrl.u32 %v2670, 7
        %v2672 = vsub.s32 5, %v2671
        %v2673 = vrot.slane %v2269, %v2672
        %v2674 = vlaneseq
        %v2675 = vshrl.u32 %v2674, 7
        %v2676 = vsub.s32 6, %v2675
        %v2677 = vrot.slane %v2269, %v2676
        %v2678 = vlaneseq
        %v2679 = vshrl.u32 %v2678, 7
        %v2680 = vsub.s32 7, %v2679
        %v2681 = vrot.slane %v2269, %v2680
        %v2682 = vlaneseq
        %v2683 = vshrl.u32 %v2682, 7
        %v2684 = vsub.s32 0, %v2683
        %v2685 = vrot.slane %v2270, %v2684
        %v2686 = vlaneseq
        %v2687 = vshrl.u32 %v2686, 7
        %v2688 = vsub.s32 1, %v2687
        %v2689 = vrot.slane %v2270, %v2688
        %v2690 = vlaneseq
        %v2691 = vshrl.u32 %v2690, 7
        %v2692 = vsub.s32 2, %v2691
        %v2693 = vrot.slane %v2270, %v2692
        %v2694 = vlaneseq
        %v2695 = vshrl.u32 %v2694, 7
        %v2696 = vsub.s32 3, %v2695
        %v2697 = vrot.slane %v2270, %v2696
        %v2698 = vlaneseq
        %v2699 = vshrl.u32 %v2698, 7
        %v2700 = vsub.s32 4, %v2699
        %v2701 = vrot.slane %v2270, %v2700
        %v2702 = vlaneseq
        %v2703 = vshrl.u32 %v2702, 7
        %v2704 = vsub.s32 5, %v2703
        %v2705 = vrot.slane %v2270, %v2704
        %v2706 = vlaneseq
        %v2707 = vshrl.u32 %v2706, 7
        %v2708 = vsub.s32 6, %v2707
        %v2709 = vrot.slane %v2270, %v2708
        %v2710 = vlaneseq
        %v2711 = vshrl.u32 %v2710, 7
        %v2712 = vsub.s32 7, %v2711
        %v2713 = vrot.slane %v2270, %v2712
        %v2714 = vlaneseq
        %v2715 = vshrl.u32 %v2714, 7
        %v2716 = vsub.s32 0, %v2715
        %v2717 = vrot.slane %v2271, %v2716
        %v2718 = vlaneseq
        %v2719 = vshrl.u32 %v2718, 7
        %v2720 = vsub.s32 1, %v2719
        %v2721 = vrot.slane %v2271, %v2720
        %v2722 = vlaneseq
        %v2723 = vshrl.u32 %v2722, 7
        %v2724 = vsub.s32 2, %v2723
        %v2725 = vrot.slane %v2271, %v2724
        %v2726 = vlaneseq
        %v2727 = vshrl.u32 %v2726, 7
        %v2728 = vsub.s32 3, %v2727
        %v2729 = vrot.slane %v2271, %v2728
        %v2730 = vlaneseq
        %v2731 = vshrl.u32 %v2730, 7
        %v2732 = vsub.s32 4, %v2731
        %v2733 = vrot.slane %v2271, %v2732
        %v2734 = vlaneseq
        %v2735 = vshrl.u32 %v2734, 7
        %v2736 = vsub.s32 5, %v2735
        %v2737 = vrot.slane %v2271, %v2736
        %v2738 = vlaneseq
        %v2739 = vshrl.u32 %v2738, 7
        %v2740 = vsub.s32 6, %v2739
        %v2741 = vrot.slane %v2271, %v2740
        %v2742 = vlaneseq
        %v2743 = vshrl.u32 %v2742, 7
        %v2744 = vsub.s32 7, %v2743
        %v2745 = vrot.slane %v2271, %v2744
        %v2746 = vlaneseq
        %v2747 = vshrl.u32 %v2746, 7
        %v2748 = vsub.s32 0, %v2747
        %v2749 = vrot.slane %v2272, %v2748
        %v2750 = vlaneseq
        %v2751 = vshrl.u32 %v2750, 7
        %v2752 = vsub.s32 1, %v2751
        %v2753 = vrot.slane %v2272, %v2752
        %v2754 = vlaneseq
        %v2755 = vshrl.u32 %v2754, 7
        %v2756 = vsub.s32 2, %v2755
        %v2757 = vrot.slane %v2272, %v2756
        %v2758 = vlaneseq
        %v2759 = vshrl.u32 %v2758, 7
        %v2760 = vsub.s32 3, %v2759
        %v2761 = vrot.slane %v2272, %v2760
        %v2762 = vlaneseq
        %v2763 = vshrl.u32 %v2762, 7
        %v2764 = vsub.s32 4, %v2763
        %v2765 = vrot.slane %v2272, %v2764
        %v2766 = vlaneseq
        %v2767 = vshrl.u32 %v2766, 7
        %v2768 = vsub.s32 5, %v2767
        %v2769 = vrot.slane %v2272, %v2768
        %v2770 = vlaneseq
        %v2771 = vshrl.u32 %v2770, 7
        %v2772 = vsub.s32 6, %v2771
        %v2773 = vrot.slane %v2272, %v2772
        %v2774 = vlaneseq
        %v2775 = vshrl.u32 %v2774, 7
        %v2776 = vsub.s32 7, %v2775
        %v2777 = vrot.slane %v2272, %v2776
        %v2778 = vlaneseq
        %v2779 = vshrl.u32 %v2778, 7
        %v2780 = vsub.s32 0, %v2779
        %v2781 = vrot.slane %v2273, %v2780
        %v2782 = vlaneseq
        %v2783 = vshrl.u32 %v2782, 7
        %v2784 = vsub.s32 1, %v2783
        %v2785 = vrot.slane %v2273, %v2784
        %v2786 = vlaneseq
        %v2787 = vshrl.u32 %v2786, 7
        %v2788 = vsub.s32 2, %v2787
        %v2789 = vrot.slane %v2273, %v2788
        %v2790 = vlaneseq
        %v2791 = vshrl.u32 %v2790, 7
        %v2792 = vsub.s32 3, %v2791
        %v2793 = vrot.slane %v2273, %v2792
        %v2794 = vlaneseq
        %v2795 = vshrl.u32 %v2794, 7
        %v2796 = vsub.s32 4, %v2795
        %v2797 = vrot.slane %v2273, %v2796
        %v2798 = vlaneseq
        %v2799 = vshrl.u32 %v2798, 7
        %v2800 = vsub.s32 5, %v2799
        %v2801 = vrot.slane %v2273, %v2800
        %v2802 = vlaneseq
        %v2803 = vshrl.u32 %v2802, 7
        %v2804 = vsub.s32 6, %v2803
        %v2805 = vrot.slane %v2273, %v2804
        %v2806 = vlaneseq
        %v2807 = vshrl.u32 %v2806, 7
        %v2808 = vsub.s32 7, %v2807
        %v2809 = vrot.slane %v2273, %v2808
        %v2810 = vlaneseq
        %v2811 = vshrl.u32 %v2810, 7
        %v2812 = vsub.s32 0, %v2811
        %v2813 = vrot.slane %v2274, %v2812
        %v2814 = vlaneseq
        %v2815 = vshrl.u32 %v2814, 7
        %v2816 = vsub.s32 1, %v2815
        %v2817 = vrot.slane %v2274, %v2816
        %v2818 = vlaneseq
        %v2819 = vshrl.u32 %v2818, 7
        %v2820 = vsub.s32 2, %v2819
        %v2821 = vrot.slane %v2274, %v2820
        %v2822 = vlaneseq
        %v2823 = vshrl.u32 %v2822, 7
        %v2824 = vsub.s32 3, %v2823
        %v2825 = vrot.slane %v2274, %v2824
        %v2826 = vlaneseq
        %v2827 = vshrl.u32 %v2826, 7
        %v2828 = vsub.s32 4, %v2827
        %v2829 = vrot.slane %v2274, %v2828
        %v2830 = vlaneseq
        %v2831 = vshrl.u32 %v2830, 7
        %v2832 = vsub.s32 5, %v2831
        %v2833 = vrot.slane %v2274, %v2832
        %v2834 = vlaneseq
        %v2835 = vshrl.u32 %v2834, 7
        %v2836 = vsub.s32 6, %v2835
        %v2837 = vrot.slane %v2274, %v2836
        %v2838 = vlaneseq
        %v2839 = vshrl.u32 %v2838, 7
        %v2840 = vsub.s32 7, %v2839
        %v2841 = vrot.slane %v2274, %v2840
        %v2842 = vlaneseq
        %v2843 = vshrl.u32 %v2842, 7
        %v2844 = vsub.s32 0, %v2843
        %v2845 = vrot.slane %v2275, %v2844
        %v2846 = vlaneseq
        %v2847 = vshrl.u32 %v2846, 7
        %v2848 = vsub.s32 1, %v2847
        %v2849 = vrot.slane %v2275, %v2848
        %v2850 = vlaneseq
        %v2851 = vshrl.u32 %v2850, 7
        %v2852 = vsub.s32 2, %v2851
        %v2853 = vrot.slane %v2275, %v2852
        %v2854 = vlaneseq
        %v2855 = vshrl.u32 %v2854, 7
        %v2856 = vsub.s32 3, %v2855
        %v2857 = vrot.slane %v2275, %v2856
        %v2858 = vlaneseq
        %v2859 = vshrl.u32 %v2858, 7
        %v2860 = vsub.s32 4, %v2859
        %v2861 = vrot.slane %v2275, %v2860
        %v2862 = vlaneseq
        %v2863 = vshrl.u32 %v2862, 7
        %v2864 = vsub.s32 5, %v2863
        %v2865 = vrot.slane %v2275, %v2864
        %v2866 = vlaneseq
        %v2867 = vshrl.u32 %v2866, 7
        %v2868 = vsub.s32 6, %v2867
        %v2869 = vrot.slane %v2275, %v2868
        %v2870 = vlaneseq
        %v2871 = vshrl.u32 %v2870, 7
        %v2872 = vsub.s32 7, %v2871
        %v2873 = vrot.slane %v2275, %v2872
        %v2874 = vlaneseq
        %v2875 = vshrl.u32 %v2874, 7
        %v2876 = vsub.s32 0, %v2875
        %v2877 = vrot.slane %v2276, %v2876
        %v2878 = vlaneseq
        %v2879 = vshrl.u32 %v2878, 7
        %v2880 = vsub.s32 1, %v2879
        %v2881 = vrot.slane %v2276, %v2880
        %v2882 = vlaneseq
        %v2883 = vshrl.u32 %v2882, 7
        %v2884 = vsub.s32 2, %v2883
        %v2885 = vrot.slane %v2276, %v2884
        %v2886 = vlaneseq
        %v2887 = vshrl.u32 %v2886, 7
        %v2888 = vsub.s32 3, %v2887
        %v2889 = vrot.slane %v2276, %v2888
        %v2890 = vlaneseq
        %v2891 = vshrl.u32 %v2890, 7
        %v2892 = vsub.s32 4, %v2891
        %v2893 = vrot.slane %v2276, %v2892
        %v2894 = vlaneseq
        %v2895 = vshrl.u32 %v2894, 7
        %v2896 = vsub.s32 5, %v2895
        %v2897 = vrot.slane %v2276, %v2896
        %v2898 = vlaneseq
        %v2899 = vshrl.u32 %v2898, 7
        %v2900 = vsub.s32 6, %v2899
        %v2901 = vrot.slane %v2276, %v2900
        %v2902 = vlaneseq
        %v2903 = vshrl.u32 %v2902, 7
        %v2904 = vsub.s32 7, %v2903
        %v2905 = vrot.slane %v2276, %v2904
        %v2906 = vlaneseq
        %v2907 = vshrl.u32 %v2906, 7
        %v2908 = vsub.s32 0, %v2907
        %v2909 = vrot.slane %v2277, %v2908
        %v2910 = vlaneseq
        %v2911 = vshrl.u32 %v2910, 7
        %v2912 = vsub.s32 1, %v2911
        %v2913 = vrot.slane %v2277, %v2912
        %v2914 = vlaneseq
        %v2915 = vshrl.u32 %v2914, 7
        %v2916 = vsub.s32 2, %v2915
        %v2917 = vrot.slane %v2277, %v2916
        %v2918 = vlaneseq
        %v2919 = vshrl.u32 %v2918, 7
        %v2920 = vsub.s32 3, %v2919
        %v2921 = vrot.slane %v2277, %v2920
        %vm3078 = vcmask 261120
        %v3080 = vsel %vm3078, %v1633, 0
        %3082 = vmatprep.subr.mxu0 0.0
        %3083 = vmatpush1.msra.mxu0 0.0
        %3084 = vmatprep.subr.mxu0 0.0
        %3085 = vmatpush1.msra.mxu0 0.0
        %3086 = vmatprep.subr.mxu0 0.0
        %3087 = vmatpush1.msra.mxu0 0.0
        %3088 = vmatprep.subr.mxu0 0.0
        %3089 = vmatpush1.msra.mxu0 0.0
        %3090 = vmatprep.subr.mxu0 0.0
        %3091 = vmatpush1.msra.mxu0 0.0
        %3092 = vmatprep.subr.mxu0 0.0
        %3093 = vmatpush1.msra.mxu0 0.0
        %3094 = vmatprep.subr.mxu0 0.0
        %3095 = vmatpush1.msra.mxu0 0.0
        %3096 = vmatprep.subr.mxu0 0.0
        %3097 = vmatpush1.msra.mxu0 0.0
        %3098 = vmatprep.subr.mxu0 0.0
        %3099 = vmatpush1.msra.mxu0 0.0
        %3100 = vmatprep.subr.mxu0 0.0
        %3101 = vmatpush1.msra.mxu0 0.0
        %3102 = vmatprep.subr.mxu0 0.0
        %3103 = vmatpush1.msra.mxu0 0.0
        %3104 = vmatprep.subr.mxu0 0.0
        %3105 = vmatpush1.msra.mxu0 0.0
        %3106 = vmatprep.subr.mxu0 %v2103
        %3107 = vmatpush1.msra.mxu0 %v2102
        %3108 = vmatprep.subr.mxu0 %v1947
        %3109 = vmatpush1.msra.mxu0 %v1946
        %3110 = vmatprep.subr.mxu0 %v1791
        %3111 = vmatpush1.msra.mxu0 %v1790
        %3112 = vmatprep.subr.mxu0 %v1635
        %3113 = vmatpush1.msra.mxu0 %v1634
        %3114 = vmatprep.subr.mxu0 0.0
        %3115 = vmatpush2.msra.mxu0 0.0
        %3116 = vmatprep.subr.mxu0 0.0
        %3117 = vmatpush2.msra.mxu0 0.0
        %3118 = vmatprep.subr.mxu0 0.0
        %3119 = vmatpush2.msra.mxu0 0.0
        %3120 = vmatprep.subr.mxu0 0.0
        %3121 = vmatpush2.msra.mxu0 0.0
        %3122 = vmatprep.subr.mxu0 0.0
        %3123 = vmatpush2.msra.mxu0 0.0
        %3124 = vmatprep.subr.mxu0 0.0
        %3125 = vmatpush2.msra.mxu0 0.0
        %3126 = vmatprep.subr.mxu0 0.0
        %3127 = vmatpush2.msra.mxu0 0.0
        %3128 = vmatprep.subr.mxu0 0.0
        %3129 = vmatpush2.msra.mxu0 0.0
        %3130 = vmatprep.subr.mxu0 0.0
        %3131 = vmatpush2.msra.mxu0 0.0
        %3132 = vmatprep.subr.mxu0 0.0
        %3133 = vmatpush2.msra.mxu0 0.0
        %3134 = vmatprep.subr.mxu0 0.0
        %3135 = vmatpush2.msra.mxu0 0.0
        %3136 = vmatprep.subr.mxu0 0.0
        %3137 = vmatpush2.msra.mxu0 0.0
        %3138 = vmatprep.subr.mxu0 0.0
        %3139 = vmatpush2.msra.mxu0 0.0
        %3140 = vmatprep.subr.mxu0 0.0
        %3141 = vmatpush2.msra.mxu0 0.0
        %3142 = vmatprep.subr.mxu0 0.0
        %3143 = vmatpush2.msra.mxu0 0.0
        %3144 = vmatprep.subr.mxu0 0.0
        %3145 = vmatpush2.msra.mxu0 0.0
        %3146 = vmatprep.mubr.f32.mxu0 0.0
        %3147 = vmatmul.mubr.f32.gmra.mxu0 %v3080
        %v3148 = vpop.f32.mrf.mxu0
        %v3149 = vadd.f32 %v2301, %v3148
        %v3150 = vpop.f32.mrf.mxu0
        %v3151 = vadd.f32 %v2305, %v3150
        %3152 = vdwg.mxu0
        %3153 = vmatprep.subr.mxu0 0.0
        %3154 = vmatpush1.msra.mxu0 0.0
        %3155 = vmatprep.subr.mxu0 0.0
        %3156 = vmatpush1.msra.mxu0 0.0
        %3157 = vmatprep.subr.mxu0 0.0
        %3158 = vmatpush1.msra.mxu0 0.0
        %3159 = vmatprep.subr.mxu0 0.0
        %3160 = vmatpush1.msra.mxu0 0.0
        %3161 = vmatprep.subr.mxu0 0.0
        %3162 = vmatpush1.msra.mxu0 0.0
        %3163 = vmatprep.subr.mxu0 0.0
        %3164 = vmatpush1.msra.mxu0 0.0
        %3165 = vmatprep.subr.mxu0 0.0
        %3166 = vmatpush1.msra.mxu0 0.0
        %3167 = vmatprep.subr.mxu0 0.0
        %3168 = vmatpush1.msra.mxu0 0.0
        %3169 = vmatprep.subr.mxu0 0.0
        %3170 = vmatpush1.msra.mxu0 0.0
        %3171 = vmatprep.subr.mxu0 0.0
        %3172 = vmatpush1.msra.mxu0 0.0
        %3173 = vmatprep.subr.mxu0 0.0
        %3174 = vmatpush1.msra.mxu0 0.0
        %3175 = vmatprep.subr.mxu0 0.0
        %3176 = vmatpush1.msra.mxu0 0.0
        %3177 = vmatprep.subr.mxu0 %v2105
        %3178 = vmatpush1.msra.mxu0 %v2104
        %3179 = vmatprep.subr.mxu0 %v1949
        %3180 = vmatpush1.msra.mxu0 %v1948
        %3181 = vmatprep.subr.mxu0 %v1793
        %3182 = vmatpush1.msra.mxu0 %v1792
        %3183 = vmatprep.subr.mxu0 %v1637
        %3184 = vmatpush1.msra.mxu0 %v1636
        %3185 = vmatprep.subr.mxu0 0.0
        %3186 = vmatpush2.msra.mxu0 0.0
        %3187 = vmatprep.subr.mxu0 0.0
        %3188 = vmatpush2.msra.mxu0 0.0
        %3189 = vmatprep.subr.mxu0 0.0
        %3190 = vmatpush2.msra.mxu0 0.0
        %3191 = vmatprep.subr.mxu0 0.0
        %3192 = vmatpush2.msra.mxu0 0.0
        %3193 = vmatprep.subr.mxu0 0.0
        %3194 = vmatpush2.msra.mxu0 0.0
        %3195 = vmatprep.subr.mxu0 0.0
        %3196 = vmatpush2.msra.mxu0 0.0
        %3197 = vmatprep.subr.mxu0 0.0
        %3198 = vmatpush2.msra.mxu0 0.0
        %3199 = vmatprep.subr.mxu0 0.0
        %3200 = vmatpush2.msra.mxu0 0.0
        %3201 = vmatprep.subr.mxu0 0.0
        %3202 = vmatpush2.msra.mxu0 0.0
        %3203 = vmatprep.subr.mxu0 0.0
        %3204 = vmatpush2.msra.mxu0 0.0
        %3205 = vmatprep.subr.mxu0 0.0
        %3206 = vmatpush2.msra.mxu0 0.0
        %3207 = vmatprep.subr.mxu0 0.0
        %3208 = vmatpush2.msra.mxu0 0.0
        %3209 = vmatprep.subr.mxu0 0.0
        %3210 = vmatpush2.msra.mxu0 0.0
        %3211 = vmatprep.subr.mxu0 0.0
        %3212 = vmatpush2.msra.mxu0 0.0
        %3213 = vmatprep.subr.mxu0 0.0
        %3214 = vmatpush2.msra.mxu0 0.0
        %3215 = vmatprep.subr.mxu0 0.0
        %3216 = vmatpush2.msra.mxu0 0.0
        %3217 = vmatprep.mubr.f32.mxu0 0.0
        %3218 = vmatmul.mubr.f32.gmra.mxu0 %v3080
        %v3219 = vpop.f32.mrf.mxu0
        %v3220 = vadd.f32 %v2309, %v3219
        %v3221 = vpop.f32.mrf.mxu0
        %v3222 = vadd.f32 %v2313, %v3221
        %3223 = vdwg.mxu0
        %3224 = vmatprep.subr.mxu0 0.0
        %3225 = vmatpush1.msra.mxu0 0.0
        %3226 = vmatprep.subr.mxu0 0.0
        %3227 = vmatpush1.msra.mxu0 0.0
        %3228 = vmatprep.subr.mxu0 0.0
        %3229 = vmatpush1.msra.mxu0 0.0
        %3230 = vmatprep.subr.mxu0 0.0
        %3231 = vmatpush1.msra.mxu0 0.0
        %3232 = vmatprep.subr.mxu0 0.0
        %3233 = vmatpush1.msra.mxu0 0.0
        %3234 = vmatprep.subr.mxu0 0.0
        %3235 = vmatpush1.msra.mxu0 0.0
        %3236 = vmatprep.subr.mxu0 0.0
        %3237 = vmatpush1.msra.mxu0 0.0
        %3238 = vmatprep.subr.mxu0 0.0
        %3239 = vmatpush1.msra.mxu0 0.0
        %3240 = vmatprep.subr.mxu0 0.0
        %3241 = vmatpush1.msra.mxu0 0.0
        %3242 = vmatprep.subr.mxu0 0.0
        %3243 = vmatpush1.msra.mxu0 0.0
        %3244 = vmatprep.subr.mxu0 0.0
        %3245 = vmatpush1.msra.mxu0 0.0
        %3246 = vmatprep.subr.mxu0 0.0
        %3247 = vmatpush1.msra.mxu0 0.0
        %3248 = vmatprep.subr.mxu0 %v2107
        %3249 = vmatpush1.msra.mxu0 %v2106
        %3250 = vmatprep.subr.mxu0 %v1951
        %3251 = vmatpush1.msra.mxu0 %v1950
        %3252 = vmatprep.subr.mxu0 %v1795
        %3253 = vmatpush1.msra.mxu0 %v1794
        %3254 = vmatprep.subr.mxu0 %v1639
        %3255 = vmatpush1.msra.mxu0 %v1638
        %3256 = vmatprep.subr.mxu0 0.0
        %3257 = vmatpush2.msra.mxu0 0.0
        %3258 = vmatprep.subr.mxu0 0.0
        %3259 = vmatpush2.msra.mxu0 0.0
        %3260 = vmatprep.subr.mxu0 0.0
        %3261 = vmatpush2.msra.mxu0 0.0
        %3262 = vmatprep.subr.mxu0 0.0
        %3263 = vmatpush2.msra.mxu0 0.0
        %3264 = vmatprep.subr.mxu0 0.0
        %3265 = vmatpush2.msra.mxu0 0.0
        %3266 = vmatprep.subr.mxu0 0.0
        %3267 = vmatpush2.msra.mxu0 0.0
        %3268 = vmatprep.subr.mxu0 0.0
        %3269 = vmatpush2.msra.mxu0 0.0
        %3270 = vmatprep.subr.mxu0 0.0
        %3271 = vmatpush2.msra.mxu0 0.0
        %3272 = vmatprep.subr.mxu0 0.0
        %3273 = vmatpush2.msra.mxu0 0.0
        %3274 = vmatprep.subr.mxu0 0.0
        %3275 = vmatpush2.msra.mxu0 0.0
        %3276 = vmatprep.subr.mxu0 0.0
        %3277 = vmatpush2.msra.mxu0 0.0
        %3278 = vmatprep.subr.mxu0 0.0
        %3279 = vmatpush2.msra.mxu0 0.0
        %3280 = vmatprep.subr.mxu0 0.0
        %3281 = vmatpush2.msra.mxu0 0.0
        %3282 = vmatprep.subr.mxu0 0.0
        %3283 = vmatpush2.msra.mxu0 0.0
        %3284 = vmatprep.subr.mxu0 0.0
        %3285 = vmatpush2.msra.mxu0 0.0
        %3286 = vmatprep.subr.mxu0 0.0
        %3287 = vmatpush2.msra.mxu0 0.0
        %3288 = vmatprep.mubr.f32.mxu0 0.0
        %3289 = vmatmul.mubr.f32.gmra.mxu0 %v3080
        %v3290 = vpop.f32.mrf.mxu0
        %v3291 = vadd.f32 %v2317, %v3290
        %v3292 = vpop.f32.mrf.mxu0
        %v3293 = vadd.f32 %v2321, %v3292
        %3294 = vdwg.mxu0
        %3295 = vmatprep.subr.mxu0 0.0
        %3296 = vmatpush1.msra.mxu0 0.0
        %3297 = vmatprep.subr.mxu0 0.0
        %3298 = vmatpush1.msra.mxu0 0.0
        %3299 = vmatprep.subr.mxu0 0.0
        %3300 = vmatpush1.msra.mxu0 0.0
        %3301 = vmatprep.subr.mxu0 0.0
        %3302 = vmatpush1.msra.mxu0 0.0
        %3303 = vmatprep.subr.mxu0 0.0
        %3304 = vmatpush1.msra.mxu0 0.0
        %3305 = vmatprep.subr.mxu0 0.0
        %3306 = vmatpush1.msra.mxu0 0.0
        %3307 = vmatprep.subr.mxu0 0.0
        %3308 = vmatpush1.msra.mxu0 0.0
        %3309 = vmatprep.subr.mxu0 0.0
        %3310 = vmatpush1.msra.mxu0 0.0
        %3311 = vmatprep.subr.mxu0 0.0
        %3312 = vmatpush1.msra.mxu0 0.0
        %3313 = vmatprep.subr.mxu0 0.0
        %3314 = vmatpush1.msra.mxu0 0.0
        %3315 = vmatprep.subr.mxu0 0.0
        %3316 = vmatpush1.msra.mxu0 0.0
        %3317 = vmatprep.subr.mxu0 0.0
        %3318 = vmatpush1.msra.mxu0 0.0
        %3319 = vmatprep.subr.mxu0 %v2109
        %3320 = vmatpush1.msra.mxu0 %v2108
        %3321 = vmatprep.subr.mxu0 %v1953
        %3322 = vmatpush1.msra.mxu0 %v1952
        %3323 = vmatprep.subr.mxu0 %v1797
        %3324 = vmatpush1.msra.mxu0 %v1796
        %3325 = vmatprep.subr.mxu0 %v1641
        %3326 = vmatpush1.msra.mxu0 %v1640
        %3327 = vmatprep.subr.mxu0 0.0
        %3328 = vmatpush2.msra.mxu0 0.0
        %3329 = vmatprep.subr.mxu0 0.0
        %3330 = vmatpush2.msra.mxu0 0.0
        %3331 = vmatprep.subr.mxu0 0.0
        %3332 = vmatpush2.msra.mxu0 0.0
        %3333 = vmatprep.subr.mxu0 0.0
        %3334 = vmatpush2.msra.mxu0 0.0
        %3335 = vmatprep.subr.mxu0 0.0
        %3336 = vmatpush2.msra.mxu0 0.0
        %3337 = vmatprep.subr.mxu0 0.0
        %3338 = vmatpush2.msra.mxu0 0.0
        %3339 = vmatprep.subr.mxu0 0.0
        %3340 = vmatpush2.msra.mxu0 0.0
        %3341 = vmatprep.subr.mxu0 0.0
        %3342 = vmatpush2.msra.mxu0 0.0
        %3343 = vmatprep.subr.mxu0 0.0
        %3344 = vmatpush2.msra.mxu0 0.0
        %3345 = vmatprep.subr.mxu0 0.0
        %3346 = vmatpush2.msra.mxu0 0.0
        %3347 = vmatprep.subr.mxu0 0.0
        %3348 = vmatpush2.msra.mxu0 0.0
        %3349 = vmatprep.subr.mxu0 0.0
        %3350 = vmatpush2.msra.mxu0 0.0
        %3351 = vmatprep.subr.mxu0 0.0
        %3352 = vmatpush2.msra.mxu0 0.0
        %3353 = vmatprep.subr.mxu0 0.0
        %3354 = vmatpush2.msra.mxu0 0.0
        %3355 = vmatprep.subr.mxu0 0.0
        %3356 = vmatpush2.msra.mxu0 0.0
        %3357 = vmatprep.subr.mxu0 0.0
        %3358 = vmatpush2.msra.mxu0 0.0
        %3359 = vmatprep.mubr.f32.mxu0 0.0
        %3360 = vmatmul.mubr.f32.gmra.mxu0 %v3080
        %v3361 = vpop.f32.mrf.mxu0
        %v3362 = vadd.f32 %v2325, %v3361
        %v3363 = vpop.f32.mrf.mxu0
        %v3364 = vadd.f32 %v2329, %v3363
        %3365 = vdwg.mxu0
        %3366 = vmatprep.subr.mxu0 0.0
        %3367 = vmatpush1.msra.mxu0 0.0
        %3368 = vmatprep.subr.mxu0 0.0
        %3369 = vmatpush1.msra.mxu0 0.0
        %3370 = vmatprep.subr.mxu0 0.0
        %3371 = vmatpush1.msra.mxu0 0.0
        %3372 = vmatprep.subr.mxu0 0.0
        %3373 = vmatpush1.msra.mxu0 0.0
        %3374 = vmatprep.subr.mxu0 0.0
        %3375 = vmatpush1.msra.mxu0 0.0
        %3376 = vmatprep.subr.mxu0 0.0
        %3377 = vmatpush1.msra.mxu0 0.0
        %3378 = vmatprep.subr.mxu0 0.0
        %3379 = vmatpush1.msra.mxu0 0.0
        %3380 = vmatprep.subr.mxu0 0.0
        %3381 = vmatpush1.msra.mxu0 0.0
        %3382 = vmatprep.subr.mxu0 0.0
        %3383 = vmatpush1.msra.mxu0 0.0
        %3384 = vmatprep.subr.mxu0 0.0
        %3385 = vmatpush1.msra.mxu0 0.0
        %3386 = vmatprep.subr.mxu0 0.0
        %3387 = vmatpush1.msra.mxu0 0.0
        %3388 = vmatprep.subr.mxu0 0.0
        %3389 = vmatpush1.msra.mxu0 0.0
        %3390 = vmatprep.subr.mxu0 %v2111
        %3391 = vmatpush1.msra.mxu0 %v2110
        %3392 = vmatprep.subr.mxu0 %v1955
        %3393 = vmatpush1.msra.mxu0 %v1954
        %3394 = vmatprep.subr.mxu0 %v1799
        %3395 = vmatpush1.msra.mxu0 %v1798
        %3396 = vmatprep.subr.mxu0 %v1643
        %3397 = vmatpush1.msra.mxu0 %v1642
        %3398 = vmatprep.subr.mxu0 0.0
        %3399 = vmatpush2.msra.mxu0 0.0
        %3400 = vmatprep.subr.mxu0 0.0
        %3401 = vmatpush2.msra.mxu0 0.0
        %3402 = vmatprep.subr.mxu0 0.0
        %3403 = vmatpush2.msra.mxu0 0.0
        %3404 = vmatprep.subr.mxu0 0.0
        %3405 = vmatpush2.msra.mxu0 0.0
        %3406 = vmatprep.subr.mxu0 0.0
        %3407 = vmatpush2.msra.mxu0 0.0
        %3408 = vmatprep.subr.mxu0 0.0
        %3409 = vmatpush2.msra.mxu0 0.0
        %3410 = vmatprep.subr.mxu0 0.0
        %3411 = vmatpush2.msra.mxu0 0.0
        %3412 = vmatprep.subr.mxu0 0.0
        %3413 = vmatpush2.msra.mxu0 0.0
        %3414 = vmatprep.subr.mxu0 0.0
        %3415 = vmatpush2.msra.mxu0 0.0
        %3416 = vmatprep.subr.mxu0 0.0
        %3417 = vmatpush2.msra.mxu0 0.0
        %3418 = vmatprep.subr.mxu0 0.0
        %3419 = vmatpush2.msra.mxu0 0.0
        %3420 = vmatprep.subr.mxu0 0.0
        %3421 = vmatpush2.msra.mxu0 0.0
        %3422 = vmatprep.subr.mxu0 0.0
        %3423 = vmatpush2.msra.mxu0 0.0
        %3424 = vmatprep.subr.mxu0 0.0
        %3425 = vmatpush2.msra.mxu0 0.0
        %3426 = vmatprep.subr.mxu0 0.0
        %3427 = vmatpush2.msra.mxu0 0.0
        %3428 = vmatprep.subr.mxu0 0.0
        %3429 = vmatpush2.msra.mxu0 0.0
        %3430 = vmatprep.mubr.f32.mxu0 0.0
        %3431 = vmatmul.mubr.f32.gmra.mxu0 %v3080
        %v3432 = vpop.f32.mrf.mxu0
        %v3433 = vadd.f32 %v2333, %v3432
        %v3434 = vpop.f32.mrf.mxu0
        %v3435 = vadd.f32 %v2337, %v3434
        %3436 = vdwg.mxu0
        %3437 = vmatprep.subr.mxu0 0.0
        %3438 = vmatpush1.msra.mxu0 0.0
        %3439 = vmatprep.subr.mxu0 0.0
        %3440 = vmatpush1.msra.mxu0 0.0
        %3441 = vmatprep.subr.mxu0 0.0
        %3442 = vmatpush1.msra.mxu0 0.0
        %3443 = vmatprep.subr.mxu0 0.0
        %3444 = vmatpush1.msra.mxu0 0.0
        %3445 = vmatprep.subr.mxu0 0.0
        %3446 = vmatpush1.msra.mxu0 0.0
        %3447 = vmatprep.subr.mxu0 0.0
        %3448 = vmatpush1.msra.mxu0 0.0
        %3449 = vmatprep.subr.mxu0 0.0
        %3450 = vmatpush1.msra.mxu0 0.0
        %3451 = vmatprep.subr.mxu0 0.0
        %3452 = vmatpush1.msra.mxu0 0.0
        %3453 = vmatprep.subr.mxu0 0.0
        %3454 = vmatpush1.msra.mxu0 0.0
        %3455 = vmatprep.subr.mxu0 0.0
        %3456 = vmatpush1.msra.mxu0 0.0
        %3457 = vmatprep.subr.mxu0 0.0
        %3458 = vmatpush1.msra.mxu0 0.0
        %3459 = vmatprep.subr.mxu0 0.0
        %3460 = vmatpush1.msra.mxu0 0.0
        %3461 = vmatprep.subr.mxu0 %v2113
        %3462 = vmatpush1.msra.mxu0 %v2112
        %3463 = vmatprep.subr.mxu0 %v1957
        %3464 = vmatpush1.msra.mxu0 %v1956
        %3465 = vmatprep.subr.mxu0 %v1801
        %3466 = vmatpush1.msra.mxu0 %v1800
        %3467 = vmatprep.subr.mxu0 %v1645
        %3468 = vmatpush1.msra.mxu0 %v1644
        %3469 = vmatprep.subr.mxu0 0.0
        %3470 = vmatpush2.msra.mxu0 0.0
        %3471 = vmatprep.subr.mxu0 0.0
        %3472 = vmatpush2.msra.mxu0 0.0
        %3473 = vmatprep.subr.mxu0 0.0
        %3474 = vmatpush2.msra.mxu0 0.0
        %3475 = vmatprep.subr.mxu0 0.0
        %3476 = vmatpush2.msra.mxu0 0.0
        %3477 = vmatprep.subr.mxu0 0.0
        %3478 = vmatpush2.msra.mxu0 0.0
        %3479 = vmatprep.subr.mxu0 0.0
        %3480 = vmatpush2.msra.mxu0 0.0
        %3481 = vmatprep.subr.mxu0 0.0
        %3482 = vmatpush2.msra.mxu0 0.0
        %3483 = vmatprep.subr.mxu0 0.0
        %3484 = vmatpush2.msra.mxu0 0.0
        %3485 = vmatprep.subr.mxu0 0.0
        %3486 = vmatpush2.msra.mxu0 0.0
        %3487 = vmatprep.subr.mxu0 0.0
        %3488 = vmatpush2.msra.mxu0 0.0
        %3489 = vmatprep.subr.mxu0 0.0
        %3490 = vmatpush2.msra.mxu0 0.0
        %3491 = vmatprep.subr.mxu0 0.0
        %3492 = vmatpush2.msra.mxu0 0.0
        %3493 = vmatprep.subr.mxu0 0.0
        %3494 = vmatpush2.msra.mxu0 0.0
        %3495 = vmatprep.subr.mxu0 0.0
        %3496 = vmatpush2.msra.mxu0 0.0
        %3497 = vmatprep.subr.mxu0 0.0
        %3498 = vmatpush2.msra.mxu0 0.0
        %3499 = vmatprep.subr.mxu0 0.0
        %3500 = vmatpush2.msra.mxu0 0.0
        %3501 = vmatprep.mubr.f32.mxu0 0.0
        %3502 = vmatmul.mubr.f32.gmra.mxu0 %v3080
        %v3503 = vpop.f32.mrf.mxu0
        %v3504 = vadd.f32 %v2341, %v3503
        %v3505 = vpop.f32.mrf.mxu0
        %v3506 = vadd.f32 %v2345, %v3505
        %3507 = vdwg.mxu0
        %3508 = vmatprep.subr.mxu0 0.0
        %3509 = vmatpush1.msra.mxu0 0.0
        %3510 = vmatprep.subr.mxu0 0.0
        %3511 = vmatpush1.msra.mxu0 0.0
        %3512 = vmatprep.subr.mxu0 0.0
        %3513 = vmatpush1.msra.mxu0 0.0
        %3514 = vmatprep.subr.mxu0 0.0
        %3515 = vmatpush1.msra.mxu0 0.0
        %3516 = vmatprep.subr.mxu0 0.0
        %3517 = vmatpush1.msra.mxu0 0.0
        %3518 = vmatprep.subr.mxu0 0.0
        %3519 = vmatpush1.msra.mxu0 0.0
        %3520 = vmatprep.subr.mxu0 0.0
        %3521 = vmatpush1.msra.mxu0 0.0
        %3522 = vmatprep.subr.mxu0 0.0
        %3523 = vmatpush1.msra.mxu0 0.0
        %3524 = vmatprep.subr.mxu0 0.0
        %3525 = vmatpush1.msra.mxu0 0.0
        %3526 = vmatprep.subr.mxu0 0.0
        %3527 = vmatpush1.msra.mxu0 0.0
        %3528 = vmatprep.subr.mxu0 0.0
        %3529 = vmatpush1.msra.mxu0 0.0
        %3530 = vmatprep.subr.mxu0 0.0
        %3531 = vmatpush1.msra.mxu0 0.0
        %3532 = vmatprep.subr.mxu0 %v2115
        %3533 = vmatpush1.msra.mxu0 %v2114
        %3534 = vmatprep.subr.mxu0 %v1959
        %3535 = vmatpush1.msra.mxu0 %v1958
        %3536 = vmatprep.subr.mxu0 %v1803
        %3537 = vmatpush1.msra.mxu0 %v1802
        %3538 = vmatprep.subr.mxu0 %v1647
        %3539 = vmatpush1.msra.mxu0 %v1646
        %3540 = vmatprep.subr.mxu0 0.0
        %3541 = vmatpush2.msra.mxu0 0.0
        %3542 = vmatprep.subr.mxu0 0.0
        %3543 = vmatpush2.msra.mxu0 0.0
        %3544 = vmatprep.subr.mxu0 0.0
        %3545 = vmatpush2.msra.mxu0 0.0
        %3546 = vmatprep.subr.mxu0 0.0
        %3547 = vmatpush2.msra.mxu0 0.0
        %3548 = vmatprep.subr.mxu0 0.0
        %3549 = vmatpush2.msra.mxu0 0.0
        %3550 = vmatprep.subr.mxu0 0.0
        %3551 = vmatpush2.msra.mxu0 0.0
        %3552 = vmatprep.subr.mxu0 0.0
        %3553 = vmatpush2.msra.mxu0 0.0
        %3554 = vmatprep.subr.mxu0 0.0
        %3555 = vmatpush2.msra.mxu0 0.0
        %3556 = vmatprep.subr.mxu0 0.0
        %3557 = vmatpush2.msra.mxu0 0.0
        %3558 = vmatprep.subr.mxu0 0.0
        %3559 = vmatpush2.msra.mxu0 0.0
        %3560 = vmatprep.subr.mxu0 0.0
        %3561 = vmatpush2.msra.mxu0 0.0
        %3562 = vmatprep.subr.mxu0 0.0
        %3563 = vmatpush2.msra.mxu0 0.0
        %3564 = vmatprep.subr.mxu0 0.0
        %3565 = vmatpush2.msra.mxu0 0.0
        %3566 = vmatprep.subr.mxu0 0.0
        %3567 = vmatpush2.msra.mxu0 0.0
        %3568 = vmatprep.subr.mxu0 0.0
        %3569 = vmatpush2.msra.mxu0 0.0
        %3570 = vmatprep.subr.mxu0 0.0
        %3571 = vmatpush2.msra.mxu0 0.0
        %3572 = vmatprep.mubr.f32.mxu0 0.0
        %3573 = vmatmul.mubr.f32.gmra.mxu0 %v3080
        %v3574 = vpop.f32.mrf.mxu0
        %v3575 = vadd.f32 %v2349, %v3574
        %v3576 = vpop.f32.mrf.mxu0
        %v3577 = vadd.f32 %v2353, %v3576
        %3578 = vdwg.mxu0
        %3579 = vmatprep.subr.mxu0 0.0
        %3580 = vmatpush1.msra.mxu0 0.0
        %3581 = vmatprep.subr.mxu0 0.0
        %3582 = vmatpush1.msra.mxu0 0.0
        %3583 = vmatprep.subr.mxu0 0.0
        %3584 = vmatpush1.msra.mxu0 0.0
        %3585 = vmatprep.subr.mxu0 0.0
        %3586 = vmatpush1.msra.mxu0 0.0
        %3587 = vmatprep.subr.mxu0 0.0
        %3588 = vmatpush1.msra.mxu0 0.0
        %3589 = vmatprep.subr.mxu0 0.0
        %3590 = vmatpush1.msra.mxu0 0.0
        %3591 = vmatprep.subr.mxu0 0.0
        %3592 = vmatpush1.msra.mxu0 0.0
        %3593 = vmatprep.subr.mxu0 0.0
        %3594 = vmatpush1.msra.mxu0 0.0
        %3595 = vmatprep.subr.mxu0 0.0
        %3596 = vmatpush1.msra.mxu0 0.0
        %3597 = vmatprep.subr.mxu0 0.0
        %3598 = vmatpush1.msra.mxu0 0.0
        %3599 = vmatprep.subr.mxu0 0.0
        %3600 = vmatpush1.msra.mxu0 0.0
        %3601 = vmatprep.subr.mxu0 0.0
        %3602 = vmatpush1.msra.mxu0 0.0
        %3603 = vmatprep.subr.mxu0 %v2117
        %3604 = vmatpush1.msra.mxu0 %v2116
        %3605 = vmatprep.subr.mxu0 %v1961
        %3606 = vmatpush1.msra.mxu0 %v1960
        %3607 = vmatprep.subr.mxu0 %v1805
        %3608 = vmatpush1.msra.mxu0 %v1804
        %3609 = vmatprep.subr.mxu0 %v1649
        %3610 = vmatpush1.msra.mxu0 %v1648
        %3611 = vmatprep.subr.mxu0 0.0
        %3612 = vmatpush2.msra.mxu0 0.0
        %3613 = vmatprep.subr.mxu0 0.0
        %3614 = vmatpush2.msra.mxu0 0.0
        %3615 = vmatprep.subr.mxu0 0.0
        %3616 = vmatpush2.msra.mxu0 0.0
        %3617 = vmatprep.subr.mxu0 0.0
        %3618 = vmatpush2.msra.mxu0 0.0
        %3619 = vmatprep.subr.mxu0 0.0
        %3620 = vmatpush2.msra.mxu0 0.0
        %3621 = vmatprep.subr.mxu0 0.0
        %3622 = vmatpush2.msra.mxu0 0.0
        %3623 = vmatprep.subr.mxu0 0.0
        %3624 = vmatpush2.msra.mxu0 0.0
        %3625 = vmatprep.subr.mxu0 0.0
        %3626 = vmatpush2.msra.mxu0 0.0
        %3627 = vmatprep.subr.mxu0 0.0
        %3628 = vmatpush2.msra.mxu0 0.0
        %3629 = vmatprep.subr.mxu0 0.0
        %3630 = vmatpush2.msra.mxu0 0.0
        %3631 = vmatprep.subr.mxu0 0.0
        %3632 = vmatpush2.msra.mxu0 0.0
        %3633 = vmatprep.subr.mxu0 0.0
        %3634 = vmatpush2.msra.mxu0 0.0
        %3635 = vmatprep.subr.mxu0 0.0
        %3636 = vmatpush2.msra.mxu0 0.0
        %3637 = vmatprep.subr.mxu0 0.0
        %3638 = vmatpush2.msra.mxu0 0.0
        %3639 = vmatprep.subr.mxu0 0.0
        %3640 = vmatpush2.msra.mxu0 0.0
        %3641 = vmatprep.subr.mxu0 0.0
        %3642 = vmatpush2.msra.mxu0 0.0
        %3643 = vmatprep.mubr.f32.mxu0 0.0
        %3644 = vmatmul.mubr.f32.gmra.mxu0 %v3080
        %v3645 = vpop.f32.mrf.mxu0
        %v3646 = vadd.f32 %v2357, %v3645
        %v3647 = vpop.f32.mrf.mxu0
        %v3648 = vadd.f32 %v2361, %v3647
        %3649 = vdwg.mxu0
        %3650 = vmatprep.subr.mxu0 0.0
        %3651 = vmatpush1.msra.mxu0 0.0
        %3652 = vmatprep.subr.mxu0 0.0
        %3653 = vmatpush1.msra.mxu0 0.0
        %3654 = vmatprep.subr.mxu0 0.0
        %3655 = vmatpush1.msra.mxu0 0.0
        %3656 = vmatprep.subr.mxu0 0.0
        %3657 = vmatpush1.msra.mxu0 0.0
        %3658 = vmatprep.subr.mxu0 0.0
        %3659 = vmatpush1.msra.mxu0 0.0
        %3660 = vmatprep.subr.mxu0 0.0
        %3661 = vmatpush1.msra.mxu0 0.0
        %3662 = vmatprep.subr.mxu0 0.0
        %3663 = vmatpush1.msra.mxu0 0.0
        %3664 = vmatprep.subr.mxu0 0.0
        %3665 = vmatpush1.msra.mxu0 0.0
        %3666 = vmatprep.subr.mxu0 0.0
        %3667 = vmatpush1.msra.mxu0 0.0
        %3668 = vmatprep.subr.mxu0 0.0
        %3669 = vmatpush1.msra.mxu0 0.0
        %3670 = vmatprep.subr.mxu0 0.0
        %3671 = vmatpush1.msra.mxu0 0.0
        %3672 = vmatprep.subr.mxu0 0.0
        %3673 = vmatpush1.msra.mxu0 0.0
        %3674 = vmatprep.subr.mxu0 %v2119
        %3675 = vmatpush1.msra.mxu0 %v2118
        %3676 = vmatprep.subr.mxu0 %v1963
        %3677 = vmatpush1.msra.mxu0 %v1962
        %3678 = vmatprep.subr.mxu0 %v1807
        %3679 = vmatpush1.msra.mxu0 %v1806
        %3680 = vmatprep.subr.mxu0 %v1651
        %3681 = vmatpush1.msra.mxu0 %v1650
        %3682 = vmatprep.subr.mxu0 0.0
        %3683 = vmatpush2.msra.mxu0 0.0
        %3684 = vmatprep.subr.mxu0 0.0
        %3685 = vmatpush2.msra.mxu0 0.0
        %3686 = vmatprep.subr.mxu0 0.0
        %3687 = vmatpush2.msra.mxu0 0.0
        %3688 = vmatprep.subr.mxu0 0.0
        %3689 = vmatpush2.msra.mxu0 0.0
        %3690 = vmatprep.subr.mxu0 0.0
        %3691 = vmatpush2.msra.mxu0 0.0
        %3692 = vmatprep.subr.mxu0 0.0
        %3693 = vmatpush2.msra.mxu0 0.0
        %3694 = vmatprep.subr.mxu0 0.0
        %3695 = vmatpush2.msra.mxu0 0.0
        %3696 = vmatprep.subr.mxu0 0.0
        %3697 = vmatpush2.msra.mxu0 0.0
        %3698 = vmatprep.subr.mxu0 0.0
        %3699 = vmatpush2.msra.mxu0 0.0
        %3700 = vmatprep.subr.mxu0 0.0
        %3701 = vmatpush2.msra.mxu0 0.0
        %3702 = vmatprep.subr.mxu0 0.0
        %3703 = vmatpush2.msra.mxu0 0.0
        %3704 = vmatprep.subr.mxu0 0.0
        %3705 = vmatpush2.msra.mxu0 0.0
        %3706 = vmatprep.subr.mxu0 0.0
        %3707 = vmatpush2.msra.mxu0 0.0
        %3708 = vmatprep.subr.mxu0 0.0
        %3709 = vmatpush2.msra.mxu0 0.0
        %3710 = vmatprep.subr.mxu0 0.0
        %3711 = vmatpush2.msra.mxu0 0.0
        %3712 = vmatprep.subr.mxu0 0.0
        %3713 = vmatpush2.msra.mxu0 0.0
        %3714 = vmatprep.mubr.f32.mxu0 0.0
        %3715 = vmatmul.mubr.f32.gmra.mxu0 %v3080
        %v3716 = vpop.f32.mrf.mxu0
        %v3717 = vadd.f32 %v2365, %v3716
        %v3718 = vpop.f32.mrf.mxu0
        %v3719 = vadd.f32 %v2369, %v3718
        %3720 = vdwg.mxu0
        %3721 = vmatprep.subr.mxu0 0.0
        %3722 = vmatpush1.msra.mxu0 0.0
        %3723 = vmatprep.subr.mxu0 0.0
        %3724 = vmatpush1.msra.mxu0 0.0
        %3725 = vmatprep.subr.mxu0 0.0
        %3726 = vmatpush1.msra.mxu0 0.0
        %3727 = vmatprep.subr.mxu0 0.0
        %3728 = vmatpush1.msra.mxu0 0.0
        %3729 = vmatprep.subr.mxu0 0.0
        %3730 = vmatpush1.msra.mxu0 0.0
        %3731 = vmatprep.subr.mxu0 0.0
        %3732 = vmatpush1.msra.mxu0 0.0
        %3733 = vmatprep.subr.mxu0 0.0
        %3734 = vmatpush1.msra.mxu0 0.0
        %3735 = vmatprep.subr.mxu0 0.0
        %3736 = vmatpush1.msra.mxu0 0.0
        %3737 = vmatprep.subr.mxu0 0.0
        %3738 = vmatpush1.msra.mxu0 0.0
        %3739 = vmatprep.subr.mxu0 0.0
        %3740 = vmatpush1.msra.mxu0 0.0
        %3741 = vmatprep.subr.mxu0 0.0
        %3742 = vmatpush1.msra.mxu0 0.0
        %3743 = vmatprep.subr.mxu0 0.0
        %3744 = vmatpush1.msra.mxu0 0.0
        %3745 = vmatprep.subr.mxu0 %v2121
        %3746 = vmatpush1.msra.mxu0 %v2120
        %3747 = vmatprep.subr.mxu0 %v1965
        %3748 = vmatpush1.msra.mxu0 %v1964
        %3749 = vmatprep.subr.mxu0 %v1809
        %3750 = vmatpush1.msra.mxu0 %v1808
        %3751 = vmatprep.subr.mxu0 %v1653
        %3752 = vmatpush1.msra.mxu0 %v1652
        %3753 = vmatprep.subr.mxu0 0.0
        %3754 = vmatpush2.msra.mxu0 0.0
        %3755 = vmatprep.subr.mxu0 0.0
        %3756 = vmatpush2.msra.mxu0 0.0
        %3757 = vmatprep.subr.mxu0 0.0
        %3758 = vmatpush2.msra.mxu0 0.0
        %3759 = vmatprep.subr.mxu0 0.0
        %3760 = vmatpush2.msra.mxu0 0.0
        %3761 = vmatprep.subr.mxu0 0.0
        %3762 = vmatpush2.msra.mxu0 0.0
        %3763 = vmatprep.subr.mxu0 0.0
        %3764 = vmatpush2.msra.mxu0 0.0
        %3765 = vmatprep.subr.mxu0 0.0
        %3766 = vmatpush2.msra.mxu0 0.0
        %3767 = vmatprep.subr.mxu0 0.0
        %3768 = vmatpush2.msra.mxu0 0.0
        %3769 = vmatprep.subr.mxu0 0.0
        %3770 = vmatpush2.msra.mxu0 0.0
        %3771 = vmatprep.subr.mxu0 0.0
        %3772 = vmatpush2.msra.mxu0 0.0
        %3773 = vmatprep.subr.mxu0 0.0
        %3774 = vmatpush2.msra.mxu0 0.0
        %3775 = vmatprep.subr.mxu0 0.0
        %3776 = vmatpush2.msra.mxu0 0.0
        %3777 = vmatprep.subr.mxu0 0.0
        %3778 = vmatpush2.msra.mxu0 0.0
        %3779 = vmatprep.subr.mxu0 0.0
        %3780 = vmatpush2.msra.mxu0 0.0
        %3781 = vmatprep.subr.mxu0 0.0
        %3782 = vmatpush2.msra.mxu0 0.0
        %3783 = vmatprep.subr.mxu0 0.0
        %3784 = vmatpush2.msra.mxu0 0.0
        %3785 = vmatprep.mubr.f32.mxu0 0.0
        %3786 = vmatmul.mubr.f32.gmra.mxu0 %v3080
        %v3787 = vpop.f32.mrf.mxu0
        %v3788 = vadd.f32 %v2373, %v3787
        %v3789 = vpop.f32.mrf.mxu0
        %v3790 = vadd.f32 %v2377, %v3789
        %3791 = vdwg.mxu0
        %3792 = vmatprep.subr.mxu0 0.0
        %3793 = vmatpush1.msra.mxu0 0.0
        %3794 = vmatprep.subr.mxu0 0.0
        %3795 = vmatpush1.msra.mxu0 0.0
        %3796 = vmatprep.subr.mxu0 0.0
        %3797 = vmatpush1.msra.mxu0 0.0
        %3798 = vmatprep.subr.mxu0 0.0
        %3799 = vmatpush1.msra.mxu0 0.0
        %3800 = vmatprep.subr.mxu0 0.0
        %3801 = vmatpush1.msra.mxu0 0.0
        %3802 = vmatprep.subr.mxu0 0.0
        %3803 = vmatpush1.msra.mxu0 0.0
        %3804 = vmatprep.subr.mxu0 0.0
        %3805 = vmatpush1.msra.mxu0 0.0
        %3806 = vmatprep.subr.mxu0 0.0
        %3807 = vmatpush1.msra.mxu0 0.0
        %3808 = vmatprep.subr.mxu0 0.0
        %3809 = vmatpush1.msra.mxu0 0.0
        %3810 = vmatprep.subr.mxu0 0.0
        %3811 = vmatpush1.msra.mxu0 0.0
        %3812 = vmatprep.subr.mxu0 0.0
        %3813 = vmatpush1.msra.mxu0 0.0
        %3814 = vmatprep.subr.mxu0 0.0
        %3815 = vmatpush1.msra.mxu0 0.0
        %3816 = vmatprep.subr.mxu0 %v2123
        %3817 = vmatpush1.msra.mxu0 %v2122
        %3818 = vmatprep.subr.mxu0 %v1967
        %3819 = vmatpush1.msra.mxu0 %v1966
        %3820 = vmatprep.subr.mxu0 %v1811
        %3821 = vmatpush1.msra.mxu0 %v1810
        %3822 = vmatprep.subr.mxu0 %v1655
        %3823 = vmatpush1.msra.mxu0 %v1654
        %3824 = vmatprep.subr.mxu0 0.0
        %3825 = vmatpush2.msra.mxu0 0.0
        %3826 = vmatprep.subr.mxu0 0.0
        %3827 = vmatpush2.msra.mxu0 0.0
        %3828 = vmatprep.subr.mxu0 0.0
        %3829 = vmatpush2.msra.mxu0 0.0
        %3830 = vmatprep.subr.mxu0 0.0
        %3831 = vmatpush2.msra.mxu0 0.0
        %3832 = vmatprep.subr.mxu0 0.0
        %3833 = vmatpush2.msra.mxu0 0.0
        %3834 = vmatprep.subr.mxu0 0.0
        %3835 = vmatpush2.msra.mxu0 0.0
        %3836 = vmatprep.subr.mxu0 0.0
        %3837 = vmatpush2.msra.mxu0 0.0
        %3838 = vmatprep.subr.mxu0 0.0
        %3839 = vmatpush2.msra.mxu0 0.0
        %3840 = vmatprep.subr.mxu0 0.0
        %3841 = vmatpush2.msra.mxu0 0.0
        %3842 = vmatprep.subr.mxu0 0.0
        %3843 = vmatpush2.msra.mxu0 0.0
        %3844 = vmatprep.subr.mxu0 0.0
        %3845 = vmatpush2.msra.mxu0 0.0
        %3846 = vmatprep.subr.mxu0 0.0
        %3847 = vmatpush2.msra.mxu0 0.0
        %3848 = vmatprep.subr.mxu0 0.0
        %3849 = vmatpush2.msra.mxu0 0.0
        %3850 = vmatprep.subr.mxu0 0.0
        %3851 = vmatpush2.msra.mxu0 0.0
        %3852 = vmatprep.subr.mxu0 0.0
        %3853 = vmatpush2.msra.mxu0 0.0
        %3854 = vmatprep.subr.mxu0 0.0
        %3855 = vmatpush2.msra.mxu0 0.0
        %3856 = vmatprep.mubr.f32.mxu0 0.0
        %3857 = vmatmul.mubr.f32.gmra.mxu0 %v3080
        %v3858 = vpop.f32.mrf.mxu0
        %v3859 = vadd.f32 %v2381, %v3858
        %v3860 = vpop.f32.mrf.mxu0
        %v3861 = vadd.f32 %v2385, %v3860
        %3862 = vdwg.mxu0
        %3863 = vmatprep.subr.mxu0 0.0
        %3864 = vmatpush1.msra.mxu0 0.0
        %3865 = vmatprep.subr.mxu0 0.0
        %3866 = vmatpush1.msra.mxu0 0.0
        %3867 = vmatprep.subr.mxu0 0.0
        %3868 = vmatpush1.msra.mxu0 0.0
        %3869 = vmatprep.subr.mxu0 0.0
        %3870 = vmatpush1.msra.mxu0 0.0
        %3871 = vmatprep.subr.mxu0 0.0
        %3872 = vmatpush1.msra.mxu0 0.0
        %3873 = vmatprep.subr.mxu0 0.0
        %3874 = vmatpush1.msra.mxu0 0.0
        %3875 = vmatprep.subr.mxu0 0.0
        %3876 = vmatpush1.msra.mxu0 0.0
        %3877 = vmatprep.subr.mxu0 0.0
        %3878 = vmatpush1.msra.mxu0 0.0
        %3879 = vmatprep.subr.mxu0 0.0
        %3880 = vmatpush1.msra.mxu0 0.0
        %3881 = vmatprep.subr.mxu0 0.0
        %3882 = vmatpush1.msra.mxu0 0.0
        %3883 = vmatprep.subr.mxu0 0.0
        %3884 = vmatpush1.msra.mxu0 0.0
        %3885 = vmatprep.subr.mxu0 0.0
        %3886 = vmatpush1.msra.mxu0 0.0
        %3887 = vmatprep.subr.mxu0 %v2125
        %3888 = vmatpush1.msra.mxu0 %v2124
        %3889 = vmatprep.subr.mxu0 %v1969
        %3890 = vmatpush1.msra.mxu0 %v1968
        %3891 = vmatprep.subr.mxu0 %v1813
        %3892 = vmatpush1.msra.mxu0 %v1812
        %3893 = vmatprep.subr.mxu0 %v1657
        %3894 = vmatpush1.msra.mxu0 %v1656
        %3895 = vmatprep.subr.mxu0 0.0
        %3896 = vmatpush2.msra.mxu0 0.0
        %3897 = vmatprep.subr.mxu0 0.0
        %3898 = vmatpush2.msra.mxu0 0.0
        %3899 = vmatprep.subr.mxu0 0.0
        %3900 = vmatpush2.msra.mxu0 0.0
        %3901 = vmatprep.subr.mxu0 0.0
        %3902 = vmatpush2.msra.mxu0 0.0
        %3903 = vmatprep.subr.mxu0 0.0
        %3904 = vmatpush2.msra.mxu0 0.0
        %3905 = vmatprep.subr.mxu0 0.0
        %3906 = vmatpush2.msra.mxu0 0.0
        %3907 = vmatprep.subr.mxu0 0.0
        %3908 = vmatpush2.msra.mxu0 0.0
        %3909 = vmatprep.subr.mxu0 0.0
        %3910 = vmatpush2.msra.mxu0 0.0
        %3911 = vmatprep.subr.mxu0 0.0
        %3912 = vmatpush2.msra.mxu0 0.0
        %3913 = vmatprep.subr.mxu0 0.0
        %3914 = vmatpush2.msra.mxu0 0.0
        %3915 = vmatprep.subr.mxu0 0.0
        %3916 = vmatpush2.msra.mxu0 0.0
        %3917 = vmatprep.subr.mxu0 0.0
        %3918 = vmatpush2.msra.mxu0 0.0
        %3919 = vmatprep.subr.mxu0 0.0
        %3920 = vmatpush2.msra.mxu0 0.0
        %3921 = vmatprep.subr.mxu0 0.0
        %3922 = vmatpush2.msra.mxu0 0.0
        %3923 = vmatprep.subr.mxu0 0.0
        %3924 = vmatpush2.msra.mxu0 0.0
        %3925 = vmatprep.subr.mxu0 0.0
        %3926 = vmatpush2.msra.mxu0 0.0
        %3927 = vmatprep.mubr.f32.mxu0 0.0
        %3928 = vmatmul.mubr.f32.gmra.mxu0 %v3080
        %v3929 = vpop.f32.mrf.mxu0
        %v3930 = vadd.f32 %v2389, %v3929
        %v3931 = vpop.f32.mrf.mxu0
        %v3932 = vadd.f32 %v2393, %v3931
        %3933 = vdwg.mxu0
        %3934 = vmatprep.subr.mxu0 0.0
        %3935 = vmatpush1.msra.mxu0 0.0
        %3936 = vmatprep.subr.mxu0 0.0
        %3937 = vmatpush1.msra.mxu0 0.0
        %3938 = vmatprep.subr.mxu0 0.0
        %3939 = vmatpush1.msra.mxu0 0.0
        %3940 = vmatprep.subr.mxu0 0.0
        %3941 = vmatpush1.msra.mxu0 0.0
        %3942 = vmatprep.subr.mxu0 0.0
        %3943 = vmatpush1.msra.mxu0 0.0
        %3944 = vmatprep.subr.mxu0 0.0
        %3945 = vmatpush1.msra.mxu0 0.0
        %3946 = vmatprep.subr.mxu0 0.0
        %3947 = vmatpush1.msra.mxu0 0.0
        %3948 = vmatprep.subr.mxu0 0.0
        %3949 = vmatpush1.msra.mxu0 0.0
        %3950 = vmatprep.subr.mxu0 0.0
        %3951 = vmatpush1.msra.mxu0 0.0
        %3952 = vmatprep.subr.mxu0 0.0
        %3953 = vmatpush1.msra.mxu0 0.0
        %3954 = vmatprep.subr.mxu0 0.0
        %3955 = vmatpush1.msra.mxu0 0.0
        %3956 = vmatprep.subr.mxu0 0.0
        %3957 = vmatpush1.msra.mxu0 0.0
        %3958 = vmatprep.subr.mxu0 %v2127
        %3959 = vmatpush1.msra.mxu0 %v2126
        %3960 = vmatprep.subr.mxu0 %v1971
        %3961 = vmatpush1.msra.mxu0 %v1970
        %3962 = vmatprep.subr.mxu0 %v1815
        %3963 = vmatpush1.msra.mxu0 %v1814
        %3964 = vmatprep.subr.mxu0 %v1659
        %3965 = vmatpush1.msra.mxu0 %v1658
        %3966 = vmatprep.subr.mxu0 0.0
        %3967 = vmatpush2.msra.mxu0 0.0
        %3968 = vmatprep.subr.mxu0 0.0
        %3969 = vmatpush2.msra.mxu0 0.0
        %3970 = vmatprep.subr.mxu0 0.0
        %3971 = vmatpush2.msra.mxu0 0.0
        %3972 = vmatprep.subr.mxu0 0.0
        %3973 = vmatpush2.msra.mxu0 0.0
        %3974 = vmatprep.subr.mxu0 0.0
        %3975 = vmatpush2.msra.mxu0 0.0
        %3976 = vmatprep.subr.mxu0 0.0
        %3977 = vmatpush2.msra.mxu0 0.0
        %3978 = vmatprep.subr.mxu0 0.0
        %3979 = vmatpush2.msra.mxu0 0.0
        %3980 = vmatprep.subr.mxu0 0.0
        %3981 = vmatpush2.msra.mxu0 0.0
        %3982 = vmatprep.subr.mxu0 0.0
        %3983 = vmatpush2.msra.mxu0 0.0
        %3984 = vmatprep.subr.mxu0 0.0
        %3985 = vmatpush2.msra.mxu0 0.0
        %3986 = vmatprep.subr.mxu0 0.0
        %3987 = vmatpush2.msra.mxu0 0.0
        %3988 = vmatprep.subr.mxu0 0.0
        %3989 = vmatpush2.msra.mxu0 0.0
        %3990 = vmatprep.subr.mxu0 0.0
        %3991 = vmatpush2.msra.mxu0 0.0
        %3992 = vmatprep.subr.mxu0 0.0
        %3993 = vmatpush2.msra.mxu0 0.0
        %3994 = vmatprep.subr.mxu0 0.0
        %3995 = vmatpush2.msra.mxu0 0.0
        %3996 = vmatprep.subr.mxu0 0.0
        %3997 = vmatpush2.msra.mxu0 0.0
        %3998 = vmatprep.mubr.f32.mxu0 0.0
        %3999 = vmatmul.mubr.f32.gmra.mxu0 %v3080
        %v4000 = vpop.f32.mrf.mxu0
        %v4001 = vadd.f32 %v2397, %v4000
        %v4002 = vpop.f32.mrf.mxu0
        %v4003 = vadd.f32 %v2401, %v4002
        %4004 = vdwg.mxu0
        %4005 = vmatprep.subr.mxu0 0.0
        %4006 = vmatpush1.msra.mxu0 0.0
        %4007 = vmatprep.subr.mxu0 0.0
        %4008 = vmatpush1.msra.mxu0 0.0
        %4009 = vmatprep.subr.mxu0 0.0
        %4010 = vmatpush1.msra.mxu0 0.0
        %4011 = vmatprep.subr.mxu0 0.0
        %4012 = vmatpush1.msra.mxu0 0.0
        %4013 = vmatprep.subr.mxu0 0.0
        %4014 = vmatpush1.msra.mxu0 0.0
        %4015 = vmatprep.subr.mxu0 0.0
        %4016 = vmatpush1.msra.mxu0 0.0
        %4017 = vmatprep.subr.mxu0 0.0
        %4018 = vmatpush1.msra.mxu0 0.0
        %4019 = vmatprep.subr.mxu0 0.0
        %4020 = vmatpush1.msra.mxu0 0.0
        %4021 = vmatprep.subr.mxu0 0.0
        %4022 = vmatpush1.msra.mxu0 0.0
        %4023 = vmatprep.subr.mxu0 0.0
        %4024 = vmatpush1.msra.mxu0 0.0
        %4025 = vmatprep.subr.mxu0 0.0
        %4026 = vmatpush1.msra.mxu0 0.0
        %4027 = vmatprep.subr.mxu0 0.0
        %4028 = vmatpush1.msra.mxu0 0.0
        %4029 = vmatprep.subr.mxu0 %v2129
        %4030 = vmatpush1.msra.mxu0 %v2128
        %4031 = vmatprep.subr.mxu0 %v1973
        %4032 = vmatpush1.msra.mxu0 %v1972
        %4033 = vmatprep.subr.mxu0 %v1817
        %4034 = vmatpush1.msra.mxu0 %v1816
        %4035 = vmatprep.subr.mxu0 %v1661
        %4036 = vmatpush1.msra.mxu0 %v1660
        %4037 = vmatprep.subr.mxu0 0.0
        %4038 = vmatpush2.msra.mxu0 0.0
        %4039 = vmatprep.subr.mxu0 0.0
        %4040 = vmatpush2.msra.mxu0 0.0
        %4041 = vmatprep.subr.mxu0 0.0
        %4042 = vmatpush2.msra.mxu0 0.0
        %4043 = vmatprep.subr.mxu0 0.0
        %4044 = vmatpush2.msra.mxu0 0.0
        %4045 = vmatprep.subr.mxu0 0.0
        %4046 = vmatpush2.msra.mxu0 0.0
        %4047 = vmatprep.subr.mxu0 0.0
        %4048 = vmatpush2.msra.mxu0 0.0
        %4049 = vmatprep.subr.mxu0 0.0
        %4050 = vmatpush2.msra.mxu0 0.0
        %4051 = vmatprep.subr.mxu0 0.0
        %4052 = vmatpush2.msra.mxu0 0.0
        %4053 = vmatprep.subr.mxu0 0.0
        %4054 = vmatpush2.msra.mxu0 0.0
        %4055 = vmatprep.subr.mxu0 0.0
        %4056 = vmatpush2.msra.mxu0 0.0
        %4057 = vmatprep.subr.mxu0 0.0
        %4058 = vmatpush2.msra.mxu0 0.0
        %4059 = vmatprep.subr.mxu0 0.0
        %4060 = vmatpush2.msra.mxu0 0.0
        %4061 = vmatprep.subr.mxu0 0.0
        %4062 = vmatpush2.msra.mxu0 0.0
        %4063 = vmatprep.subr.mxu0 0.0
        %4064 = vmatpush2.msra.mxu0 0.0
        %4065 = vmatprep.subr.mxu0 0.0
        %4066 = vmatpush2.msra.mxu0 0.0
        %4067 = vmatprep.subr.mxu0 0.0
        %4068 = vmatpush2.msra.mxu0 0.0
        %4069 = vmatprep.mubr.f32.mxu0 0.0
        %4070 = vmatmul.mubr.f32.gmra.mxu0 %v3080
        %v4071 = vpop.f32.mrf.mxu0
        %v4072 = vadd.f32 %v2405, %v4071
        %v4073 = vpop.f32.mrf.mxu0
        %v4074 = vadd.f32 %v2409, %v4073
        %4075 = vdwg.mxu0
        %4076 = vmatprep.subr.mxu0 0.0
        %4077 = vmatpush1.msra.mxu0 0.0
        %4078 = vmatprep.subr.mxu0 0.0
        %4079 = vmatpush1.msra.mxu0 0.0
        %4080 = vmatprep.subr.mxu0 0.0
        %4081 = vmatpush1.msra.mxu0 0.0
        %4082 = vmatprep.subr.mxu0 0.0
        %4083 = vmatpush1.msra.mxu0 0.0
        %4084 = vmatprep.subr.mxu0 0.0
        %4085 = vmatpush1.msra.mxu0 0.0
        %4086 = vmatprep.subr.mxu0 0.0
        %4087 = vmatpush1.msra.mxu0 0.0
        %4088 = vmatprep.subr.mxu0 0.0
        %4089 = vmatpush1.msra.mxu0 0.0
        %4090 = vmatprep.subr.mxu0 0.0
        %4091 = vmatpush1.msra.mxu0 0.0
        %4092 = vmatprep.subr.mxu0 0.0
        %4093 = vmatpush1.msra.mxu0 0.0
        %4094 = vmatprep.subr.mxu0 0.0
        %4095 = vmatpush1.msra.mxu0 0.0
        %4096 = vmatprep.subr.mxu0 0.0
        %4097 = vmatpush1.msra.mxu0 0.0
        %4098 = vmatprep.subr.mxu0 0.0
        %4099 = vmatpush1.msra.mxu0 0.0
        %4100 = vmatprep.subr.mxu0 %v2131
        %4101 = vmatpush1.msra.mxu0 %v2130
        %4102 = vmatprep.subr.mxu0 %v1975
        %4103 = vmatpush1.msra.mxu0 %v1974
        %4104 = vmatprep.subr.mxu0 %v1819
        %4105 = vmatpush1.msra.mxu0 %v1818
        %4106 = vmatprep.subr.mxu0 %v1663
        %4107 = vmatpush1.msra.mxu0 %v1662
        %4108 = vmatprep.subr.mxu0 0.0
        %4109 = vmatpush2.msra.mxu0 0.0
        %4110 = vmatprep.subr.mxu0 0.0
        %4111 = vmatpush2.msra.mxu0 0.0
        %4112 = vmatprep.subr.mxu0 0.0
        %4113 = vmatpush2.msra.mxu0 0.0
        %4114 = vmatprep.subr.mxu0 0.0
        %4115 = vmatpush2.msra.mxu0 0.0
        %4116 = vmatprep.subr.mxu0 0.0
        %4117 = vmatpush2.msra.mxu0 0.0
        %4118 = vmatprep.subr.mxu0 0.0
        %4119 = vmatpush2.msra.mxu0 0.0
        %4120 = vmatprep.subr.mxu0 0.0
        %4121 = vmatpush2.msra.mxu0 0.0
        %4122 = vmatprep.subr.mxu0 0.0
        %4123 = vmatpush2.msra.mxu0 0.0
        %4124 = vmatprep.subr.mxu0 0.0
        %4125 = vmatpush2.msra.mxu0 0.0
        %4126 = vmatprep.subr.mxu0 0.0
        %4127 = vmatpush2.msra.mxu0 0.0
        %4128 = vmatprep.subr.mxu0 0.0
        %4129 = vmatpush2.msra.mxu0 0.0
        %4130 = vmatprep.subr.mxu0 0.0
        %4131 = vmatpush2.msra.mxu0 0.0
        %4132 = vmatprep.subr.mxu0 0.0
        %4133 = vmatpush2.msra.mxu0 0.0
        %4134 = vmatprep.subr.mxu0 0.0
        %4135 = vmatpush2.msra.mxu0 0.0
        %4136 = vmatprep.subr.mxu0 0.0
        %4137 = vmatpush2.msra.mxu0 0.0
        %4138 = vmatprep.subr.mxu0 0.0
        %4139 = vmatpush2.msra.mxu0 0.0
        %4140 = vmatprep.mubr.f32.mxu0 0.0
        %4141 = vmatmul.mubr.f32.gmra.mxu0 %v3080
        %v4142 = vpop.f32.mrf.mxu0
        %v4143 = vadd.f32 %v2413, %v4142
        %v4144 = vpop.f32.mrf.mxu0
        %v4145 = vadd.f32 %v2417, %v4144
        %4146 = vdwg.mxu0
        %4147 = vmatprep.subr.mxu0 0.0
        %4148 = vmatpush1.msra.mxu0 0.0
        %4149 = vmatprep.subr.mxu0 0.0
        %4150 = vmatpush1.msra.mxu0 0.0
        %4151 = vmatprep.subr.mxu0 0.0
        %4152 = vmatpush1.msra.mxu0 0.0
        %4153 = vmatprep.subr.mxu0 0.0
        %4154 = vmatpush1.msra.mxu0 0.0
        %4155 = vmatprep.subr.mxu0 0.0
        %4156 = vmatpush1.msra.mxu0 0.0
        %4157 = vmatprep.subr.mxu0 0.0
        %4158 = vmatpush1.msra.mxu0 0.0
        %4159 = vmatprep.subr.mxu0 0.0
        %4160 = vmatpush1.msra.mxu0 0.0
        %4161 = vmatprep.subr.mxu0 0.0
        %4162 = vmatpush1.msra.mxu0 0.0
        %4163 = vmatprep.subr.mxu0 0.0
        %4164 = vmatpush1.msra.mxu0 0.0
        %4165 = vmatprep.subr.mxu0 0.0
        %4166 = vmatpush1.msra.mxu0 0.0
        %4167 = vmatprep.subr.mxu0 0.0
        %4168 = vmatpush1.msra.mxu0 0.0
        %4169 = vmatprep.subr.mxu0 0.0
        %4170 = vmatpush1.msra.mxu0 0.0
        %4171 = vmatprep.subr.mxu0 %v2133
        %4172 = vmatpush1.msra.mxu0 %v2132
        %4173 = vmatprep.subr.mxu0 %v1977
        %4174 = vmatpush1.msra.mxu0 %v1976
        %4175 = vmatprep.subr.mxu0 %v1821
        %4176 = vmatpush1.msra.mxu0 %v1820
        %4177 = vmatprep.subr.mxu0 %v1665
        %4178 = vmatpush1.msra.mxu0 %v1664
        %4179 = vmatprep.subr.mxu0 0.0
        %4180 = vmatpush2.msra.mxu0 0.0
        %4181 = vmatprep.subr.mxu0 0.0
        %4182 = vmatpush2.msra.mxu0 0.0
        %4183 = vmatprep.subr.mxu0 0.0
        %4184 = vmatpush2.msra.mxu0 0.0
        %4185 = vmatprep.subr.mxu0 0.0
        %4186 = vmatpush2.msra.mxu0 0.0
        %4187 = vmatprep.subr.mxu0 0.0
        %4188 = vmatpush2.msra.mxu0 0.0
        %4189 = vmatprep.subr.mxu0 0.0
        %4190 = vmatpush2.msra.mxu0 0.0
        %4191 = vmatprep.subr.mxu0 0.0
        %4192 = vmatpush2.msra.mxu0 0.0
        %4193 = vmatprep.subr.mxu0 0.0
        %4194 = vmatpush2.msra.mxu0 0.0
        %4195 = vmatprep.subr.mxu0 0.0
        %4196 = vmatpush2.msra.mxu0 0.0
        %4197 = vmatprep.subr.mxu0 0.0
        %4198 = vmatpush2.msra.mxu0 0.0
        %4199 = vmatprep.subr.mxu0 0.0
        %4200 = vmatpush2.msra.mxu0 0.0
        %4201 = vmatprep.subr.mxu0 0.0
        %4202 = vmatpush2.msra.mxu0 0.0
        %4203 = vmatprep.subr.mxu0 0.0
        %4204 = vmatpush2.msra.mxu0 0.0
        %4205 = vmatprep.subr.mxu0 0.0
        %4206 = vmatpush2.msra.mxu0 0.0
        %4207 = vmatprep.subr.mxu0 0.0
        %4208 = vmatpush2.msra.mxu0 0.0
        %4209 = vmatprep.subr.mxu0 0.0
        %4210 = vmatpush2.msra.mxu0 0.0
        %4211 = vmatprep.mubr.f32.mxu0 0.0
        %4212 = vmatmul.mubr.f32.gmra.mxu0 %v3080
        %v4213 = vpop.f32.mrf.mxu0
        %v4214 = vadd.f32 %v2421, %v4213
        %v4215 = vpop.f32.mrf.mxu0
        %v4216 = vadd.f32 %v2425, %v4215
        %4217 = vdwg.mxu0
        %4218 = vmatprep.subr.mxu0 0.0
        %4219 = vmatpush1.msra.mxu0 0.0
        %4220 = vmatprep.subr.mxu0 0.0
        %4221 = vmatpush1.msra.mxu0 0.0
        %4222 = vmatprep.subr.mxu0 0.0
        %4223 = vmatpush1.msra.mxu0 0.0
        %4224 = vmatprep.subr.mxu0 0.0
        %4225 = vmatpush1.msra.mxu0 0.0
        %4226 = vmatprep.subr.mxu0 0.0
        %4227 = vmatpush1.msra.mxu0 0.0
        %4228 = vmatprep.subr.mxu0 0.0
        %4229 = vmatpush1.msra.mxu0 0.0
        %4230 = vmatprep.subr.mxu0 0.0
        %4231 = vmatpush1.msra.mxu0 0.0
        %4232 = vmatprep.subr.mxu0 0.0
        %4233 = vmatpush1.msra.mxu0 0.0
        %4234 = vmatprep.subr.mxu0 0.0
        %4235 = vmatpush1.msra.mxu0 0.0
        %4236 = vmatprep.subr.mxu0 0.0
        %4237 = vmatpush1.msra.mxu0 0.0
        %4238 = vmatprep.subr.mxu0 0.0
        %4239 = vmatpush1.msra.mxu0 0.0
        %4240 = vmatprep.subr.mxu0 0.0
        %4241 = vmatpush1.msra.mxu0 0.0
        %4242 = vmatprep.subr.mxu0 %v2135
        %4243 = vmatpush1.msra.mxu0 %v2134
        %4244 = vmatprep.subr.mxu0 %v1979
        %4245 = vmatpush1.msra.mxu0 %v1978
        %4246 = vmatprep.subr.mxu0 %v1823
        %4247 = vmatpush1.msra.mxu0 %v1822
        %4248 = vmatprep.subr.mxu0 %v1667
        %4249 = vmatpush1.msra.mxu0 %v1666
        %4250 = vmatprep.subr.mxu0 0.0
        %4251 = vmatpush2.msra.mxu0 0.0
        %4252 = vmatprep.subr.mxu0 0.0
        %4253 = vmatpush2.msra.mxu0 0.0
        %4254 = vmatprep.subr.mxu0 0.0
        %4255 = vmatpush2.msra.mxu0 0.0
        %4256 = vmatprep.subr.mxu0 0.0
        %4257 = vmatpush2.msra.mxu0 0.0
        %4258 = vmatprep.subr.mxu0 0.0
        %4259 = vmatpush2.msra.mxu0 0.0
        %4260 = vmatprep.subr.mxu0 0.0
        %4261 = vmatpush2.msra.mxu0 0.0
        %4262 = vmatprep.subr.mxu0 0.0
        %4263 = vmatpush2.msra.mxu0 0.0
        %4264 = vmatprep.subr.mxu0 0.0
        %4265 = vmatpush2.msra.mxu0 0.0
        %4266 = vmatprep.subr.mxu0 0.0
        %4267 = vmatpush2.msra.mxu0 0.0
        %4268 = vmatprep.subr.mxu0 0.0
        %4269 = vmatpush2.msra.mxu0 0.0
        %4270 = vmatprep.subr.mxu0 0.0
        %4271 = vmatpush2.msra.mxu0 0.0
        %4272 = vmatprep.subr.mxu0 0.0
        %4273 = vmatpush2.msra.mxu0 0.0
        %4274 = vmatprep.subr.mxu0 0.0
        %4275 = vmatpush2.msra.mxu0 0.0
        %4276 = vmatprep.subr.mxu0 0.0
        %4277 = vmatpush2.msra.mxu0 0.0
        %4278 = vmatprep.subr.mxu0 0.0
        %4279 = vmatpush2.msra.mxu0 0.0
        %4280 = vmatprep.subr.mxu0 0.0
        %4281 = vmatpush2.msra.mxu0 0.0
        %4282 = vmatprep.mubr.f32.mxu0 0.0
        %4283 = vmatmul.mubr.f32.gmra.mxu0 %v3080
        %v4284 = vpop.f32.mrf.mxu0
        %v4285 = vadd.f32 %v2429, %v4284
        %v4286 = vpop.f32.mrf.mxu0
        %v4287 = vadd.f32 %v2433, %v4286
        %4288 = vdwg.mxu0
        %4289 = vmatprep.subr.mxu0 0.0
        %4290 = vmatpush1.msra.mxu0 0.0
        %4291 = vmatprep.subr.mxu0 0.0
        %4292 = vmatpush1.msra.mxu0 0.0
        %4293 = vmatprep.subr.mxu0 0.0
        %4294 = vmatpush1.msra.mxu0 0.0
        %4295 = vmatprep.subr.mxu0 0.0
        %4296 = vmatpush1.msra.mxu0 0.0
        %4297 = vmatprep.subr.mxu0 0.0
        %4298 = vmatpush1.msra.mxu0 0.0
        %4299 = vmatprep.subr.mxu0 0.0
        %4300 = vmatpush1.msra.mxu0 0.0
        %4301 = vmatprep.subr.mxu0 0.0
        %4302 = vmatpush1.msra.mxu0 0.0
        %4303 = vmatprep.subr.mxu0 0.0
        %4304 = vmatpush1.msra.mxu0 0.0
        %4305 = vmatprep.subr.mxu0 0.0
        %4306 = vmatpush1.msra.mxu0 0.0
        %4307 = vmatprep.subr.mxu0 0.0
        %4308 = vmatpush1.msra.mxu0 0.0
        %4309 = vmatprep.subr.mxu0 0.0
        %4310 = vmatpush1.msra.mxu0 0.0
        %4311 = vmatprep.subr.mxu0 0.0
        %4312 = vmatpush1.msra.mxu0 0.0
        %4313 = vmatprep.subr.mxu0 %v2137
        %4314 = vmatpush1.msra.mxu0 %v2136
        %4315 = vmatprep.subr.mxu0 %v1981
        %4316 = vmatpush1.msra.mxu0 %v1980
        %4317 = vmatprep.subr.mxu0 %v1825
        %4318 = vmatpush1.msra.mxu0 %v1824
        %4319 = vmatprep.subr.mxu0 %v1669
        %4320 = vmatpush1.msra.mxu0 %v1668
        %4321 = vmatprep.subr.mxu0 0.0
        %4322 = vmatpush2.msra.mxu0 0.0
        %4323 = vmatprep.subr.mxu0 0.0
        %4324 = vmatpush2.msra.mxu0 0.0
        %4325 = vmatprep.subr.mxu0 0.0
        %4326 = vmatpush2.msra.mxu0 0.0
        %4327 = vmatprep.subr.mxu0 0.0
        %4328 = vmatpush2.msra.mxu0 0.0
        %4329 = vmatprep.subr.mxu0 0.0
        %4330 = vmatpush2.msra.mxu0 0.0
        %4331 = vmatprep.subr.mxu0 0.0
        %4332 = vmatpush2.msra.mxu0 0.0
        %4333 = vmatprep.subr.mxu0 0.0
        %4334 = vmatpush2.msra.mxu0 0.0
        %4335 = vmatprep.subr.mxu0 0.0
        %4336 = vmatpush2.msra.mxu0 0.0
        %4337 = vmatprep.subr.mxu0 0.0
        %4338 = vmatpush2.msra.mxu0 0.0
        %4339 = vmatprep.subr.mxu0 0.0
        %4340 = vmatpush2.msra.mxu0 0.0
        %4341 = vmatprep.subr.mxu0 0.0
        %4342 = vmatpush2.msra.mxu0 0.0
        %4343 = vmatprep.subr.mxu0 0.0
        %4344 = vmatpush2.msra.mxu0 0.0
        %4345 = vmatprep.subr.mxu0 0.0
        %4346 = vmatpush2.msra.mxu0 0.0
        %4347 = vmatprep.subr.mxu0 0.0
        %4348 = vmatpush2.msra.mxu0 0.0
        %4349 = vmatprep.subr.mxu0 0.0
        %4350 = vmatpush2.msra.mxu0 0.0
        %4351 = vmatprep.subr.mxu0 0.0
        %4352 = vmatpush2.msra.mxu0 0.0
        %4353 = vmatprep.mubr.f32.mxu0 0.0
        %4354 = vmatmul.mubr.f32.gmra.mxu0 %v3080
        %v4355 = vpop.f32.mrf.mxu0
        %v4356 = vadd.f32 %v2437, %v4355
        %v4357 = vpop.f32.mrf.mxu0
        %v4358 = vadd.f32 %v2441, %v4357
        %4359 = vdwg.mxu0
        %4360 = vmatprep.subr.mxu0 0.0
        %4361 = vmatpush1.msra.mxu0 0.0
        %4362 = vmatprep.subr.mxu0 0.0
        %4363 = vmatpush1.msra.mxu0 0.0
        %4364 = vmatprep.subr.mxu0 0.0
        %4365 = vmatpush1.msra.mxu0 0.0
        %4366 = vmatprep.subr.mxu0 0.0
        %4367 = vmatpush1.msra.mxu0 0.0
        %4368 = vmatprep.subr.mxu0 0.0
        %4369 = vmatpush1.msra.mxu0 0.0
        %4370 = vmatprep.subr.mxu0 0.0
        %4371 = vmatpush1.msra.mxu0 0.0
        %4372 = vmatprep.subr.mxu0 0.0
        %4373 = vmatpush1.msra.mxu0 0.0
        %4374 = vmatprep.subr.mxu0 0.0
        %4375 = vmatpush1.msra.mxu0 0.0
        %4376 = vmatprep.subr.mxu0 0.0
        %4377 = vmatpush1.msra.mxu0 0.0
        %4378 = vmatprep.subr.mxu0 0.0
        %4379 = vmatpush1.msra.mxu0 0.0
        %4380 = vmatprep.subr.mxu0 0.0
        %4381 = vmatpush1.msra.mxu0 0.0
        %4382 = vmatprep.subr.mxu0 0.0
        %4383 = vmatpush1.msra.mxu0 0.0
        %4384 = vmatprep.subr.mxu0 %v2139
        %4385 = vmatpush1.msra.mxu0 %v2138
        %4386 = vmatprep.subr.mxu0 %v1983
        %4387 = vmatpush1.msra.mxu0 %v1982
        %4388 = vmatprep.subr.mxu0 %v1827
        %4389 = vmatpush1.msra.mxu0 %v1826
        %4390 = vmatprep.subr.mxu0 %v1671
        %4391 = vmatpush1.msra.mxu0 %v1670
        %4392 = vmatprep.subr.mxu0 0.0
        %4393 = vmatpush2.msra.mxu0 0.0
        %4394 = vmatprep.subr.mxu0 0.0
        %4395 = vmatpush2.msra.mxu0 0.0
        %4396 = vmatprep.subr.mxu0 0.0
        %4397 = vmatpush2.msra.mxu0 0.0
        %4398 = vmatprep.subr.mxu0 0.0
        %4399 = vmatpush2.msra.mxu0 0.0
        %4400 = vmatprep.subr.mxu0 0.0
        %4401 = vmatpush2.msra.mxu0 0.0
        %4402 = vmatprep.subr.mxu0 0.0
        %4403 = vmatpush2.msra.mxu0 0.0
        %4404 = vmatprep.subr.mxu0 0.0
        %4405 = vmatpush2.msra.mxu0 0.0
        %4406 = vmatprep.subr.mxu0 0.0
        %4407 = vmatpush2.msra.mxu0 0.0
        %4408 = vmatprep.subr.mxu0 0.0
        %4409 = vmatpush2.msra.mxu0 0.0
        %4410 = vmatprep.subr.mxu0 0.0
        %4411 = vmatpush2.msra.mxu0 0.0
        %4412 = vmatprep.subr.mxu0 0.0
        %4413 = vmatpush2.msra.mxu0 0.0
        %4414 = vmatprep.subr.mxu0 0.0
        %4415 = vmatpush2.msra.mxu0 0.0
        %4416 = vmatprep.subr.mxu0 0.0
        %4417 = vmatpush2.msra.mxu0 0.0
        %4418 = vmatprep.subr.mxu0 0.0
        %4419 = vmatpush2.msra.mxu0 0.0
        %4420 = vmatprep.subr.mxu0 0.0
        %4421 = vmatpush2.msra.mxu0 0.0
        %4422 = vmatprep.subr.mxu0 0.0
        %4423 = vmatpush2.msra.mxu0 0.0
        %4424 = vmatprep.mubr.f32.mxu0 0.0
        %4425 = vmatmul.mubr.f32.gmra.mxu0 %v3080
        %v4426 = vpop.f32.mrf.mxu0
        %v4427 = vadd.f32 %v2445, %v4426
        %v4428 = vpop.f32.mrf.mxu0
        %v4429 = vadd.f32 %v2449, %v4428
        %4430 = vdwg.mxu0
        %4431 = vmatprep.subr.mxu0 0.0
        %4432 = vmatpush1.msra.mxu0 0.0
        %4433 = vmatprep.subr.mxu0 0.0
        %4434 = vmatpush1.msra.mxu0 0.0
        %4435 = vmatprep.subr.mxu0 0.0
        %4436 = vmatpush1.msra.mxu0 0.0
        %4437 = vmatprep.subr.mxu0 0.0
        %4438 = vmatpush1.msra.mxu0 0.0
        %4439 = vmatprep.subr.mxu0 0.0
        %4440 = vmatpush1.msra.mxu0 0.0
        %4441 = vmatprep.subr.mxu0 0.0
        %4442 = vmatpush1.msra.mxu0 0.0
        %4443 = vmatprep.subr.mxu0 0.0
        %4444 = vmatpush1.msra.mxu0 0.0
        %4445 = vmatprep.subr.mxu0 0.0
        %4446 = vmatpush1.msra.mxu0 0.0
        %4447 = vmatprep.subr.mxu0 0.0
        %4448 = vmatpush1.msra.mxu0 0.0
        %4449 = vmatprep.subr.mxu0 0.0
        %4450 = vmatpush1.msra.mxu0 0.0
        %4451 = vmatprep.subr.mxu0 0.0
        %4452 = vmatpush1.msra.mxu0 0.0
        %4453 = vmatprep.subr.mxu0 0.0
        %4454 = vmatpush1.msra.mxu0 0.0
        %4455 = vmatprep.subr.mxu0 %v2141
        %4456 = vmatpush1.msra.mxu0 %v2140
        %4457 = vmatprep.subr.mxu0 %v1985
        %4458 = vmatpush1.msra.mxu0 %v1984
        %4459 = vmatprep.subr.mxu0 %v1829
        %4460 = vmatpush1.msra.mxu0 %v1828
        %4461 = vmatprep.subr.mxu0 %v1673
        %4462 = vmatpush1.msra.mxu0 %v1672
        %4463 = vmatprep.subr.mxu0 0.0
        %4464 = vmatpush2.msra.mxu0 0.0
        %4465 = vmatprep.subr.mxu0 0.0
        %4466 = vmatpush2.msra.mxu0 0.0
        %4467 = vmatprep.subr.mxu0 0.0
        %4468 = vmatpush2.msra.mxu0 0.0
        %4469 = vmatprep.subr.mxu0 0.0
        %4470 = vmatpush2.msra.mxu0 0.0
        %4471 = vmatprep.subr.mxu0 0.0
        %4472 = vmatpush2.msra.mxu0 0.0
        %4473 = vmatprep.subr.mxu0 0.0
        %4474 = vmatpush2.msra.mxu0 0.0
        %4475 = vmatprep.subr.mxu0 0.0
        %4476 = vmatpush2.msra.mxu0 0.0
        %4477 = vmatprep.subr.mxu0 0.0
        %4478 = vmatpush2.msra.mxu0 0.0
        %4479 = vmatprep.subr.mxu0 0.0
        %4480 = vmatpush2.msra.mxu0 0.0
        %4481 = vmatprep.subr.mxu0 0.0
        %4482 = vmatpush2.msra.mxu0 0.0
        %4483 = vmatprep.subr.mxu0 0.0
        %4484 = vmatpush2.msra.mxu0 0.0
        %4485 = vmatprep.subr.mxu0 0.0
        %4486 = vmatpush2.msra.mxu0 0.0
        %4487 = vmatprep.subr.mxu0 0.0
        %4488 = vmatpush2.msra.mxu0 0.0
        %4489 = vmatprep.subr.mxu0 0.0
        %4490 = vmatpush2.msra.mxu0 0.0
        %4491 = vmatprep.subr.mxu0 0.0
        %4492 = vmatpush2.msra.mxu0 0.0
        %4493 = vmatprep.subr.mxu0 0.0
        %4494 = vmatpush2.msra.mxu0 0.0
        %4495 = vmatprep.mubr.f32.mxu0 0.0
        %4496 = vmatmul.mubr.f32.gmra.mxu0 %v3080
        %v4497 = vpop.f32.mrf.mxu0
        %v4498 = vadd.f32 %v2453, %v4497
        %v4499 = vpop.f32.mrf.mxu0
        %v4500 = vadd.f32 %v2457, %v4499
        %4501 = vdwg.mxu0
        %4502 = vmatprep.subr.mxu0 0.0
        %4503 = vmatpush1.msra.mxu0 0.0
        %4504 = vmatprep.subr.mxu0 0.0
        %4505 = vmatpush1.msra.mxu0 0.0
        %4506 = vmatprep.subr.mxu0 0.0
        %4507 = vmatpush1.msra.mxu0 0.0
        %4508 = vmatprep.subr.mxu0 0.0
        %4509 = vmatpush1.msra.mxu0 0.0
        %4510 = vmatprep.subr.mxu0 0.0
        %4511 = vmatpush1.msra.mxu0 0.0
        %4512 = vmatprep.subr.mxu0 0.0
        %4513 = vmatpush1.msra.mxu0 0.0
        %4514 = vmatprep.subr.mxu0 0.0
        %4515 = vmatpush1.msra.mxu0 0.0
        %4516 = vmatprep.subr.mxu0 0.0
        %4517 = vmatpush1.msra.mxu0 0.0
        %4518 = vmatprep.subr.mxu0 0.0
        %4519 = vmatpush1.msra.mxu0 0.0
        %4520 = vmatprep.subr.mxu0 0.0
        %4521 = vmatpush1.msra.mxu0 0.0
        %4522 = vmatprep.subr.mxu0 0.0
        %4523 = vmatpush1.msra.mxu0 0.0
        %4524 = vmatprep.subr.mxu0 0.0
        %4525 = vmatpush1.msra.mxu0 0.0
        %4526 = vmatprep.subr.mxu0 %v2143
        %4527 = vmatpush1.msra.mxu0 %v2142
        %4528 = vmatprep.subr.mxu0 %v1987
        %4529 = vmatpush1.msra.mxu0 %v1986
        %4530 = vmatprep.subr.mxu0 %v1831
        %4531 = vmatpush1.msra.mxu0 %v1830
        %4532 = vmatprep.subr.mxu0 %v1675
        %4533 = vmatpush1.msra.mxu0 %v1674
        %4534 = vmatprep.subr.mxu0 0.0
        %4535 = vmatpush2.msra.mxu0 0.0
        %4536 = vmatprep.subr.mxu0 0.0
        %4537 = vmatpush2.msra.mxu0 0.0
        %4538 = vmatprep.subr.mxu0 0.0
        %4539 = vmatpush2.msra.mxu0 0.0
        %4540 = vmatprep.subr.mxu0 0.0
        %4541 = vmatpush2.msra.mxu0 0.0
        %4542 = vmatprep.subr.mxu0 0.0
        %4543 = vmatpush2.msra.mxu0 0.0
        %4544 = vmatprep.subr.mxu0 0.0
        %4545 = vmatpush2.msra.mxu0 0.0
        %4546 = vmatprep.subr.mxu0 0.0
        %4547 = vmatpush2.msra.mxu0 0.0
        %4548 = vmatprep.subr.mxu0 0.0
        %4549 = vmatpush2.msra.mxu0 0.0
        %4550 = vmatprep.subr.mxu0 0.0
        %4551 = vmatpush2.msra.mxu0 0.0
        %4552 = vmatprep.subr.mxu0 0.0
        %4553 = vmatpush2.msra.mxu0 0.0
        %4554 = vmatprep.subr.mxu0 0.0
        %4555 = vmatpush2.msra.mxu0 0.0
        %4556 = vmatprep.subr.mxu0 0.0
        %4557 = vmatpush2.msra.mxu0 0.0
        %4558 = vmatprep.subr.mxu0 0.0
        %4559 = vmatpush2.msra.mxu0 0.0
        %4560 = vmatprep.subr.mxu0 0.0
        %4561 = vmatpush2.msra.mxu0 0.0
        %4562 = vmatprep.subr.mxu0 0.0
        %4563 = vmatpush2.msra.mxu0 0.0
        %4564 = vmatprep.subr.mxu0 0.0
        %4565 = vmatpush2.msra.mxu0 0.0
        %4566 = vmatprep.mubr.f32.mxu0 0.0
        %4567 = vmatmul.mubr.f32.gmra.mxu0 %v3080
        %v4568 = vpop.f32.mrf.mxu0
        %v4569 = vadd.f32 %v2461, %v4568
        %v4570 = vpop.f32.mrf.mxu0
        %v4571 = vadd.f32 %v2465, %v4570
        %4572 = vdwg.mxu0
        %4573 = vmatprep.subr.mxu0 0.0
        %4574 = vmatpush1.msra.mxu0 0.0
        %4575 = vmatprep.subr.mxu0 0.0
        %4576 = vmatpush1.msra.mxu0 0.0
        %4577 = vmatprep.subr.mxu0 0.0
        %4578 = vmatpush1.msra.mxu0 0.0
        %4579 = vmatprep.subr.mxu0 0.0
        %4580 = vmatpush1.msra.mxu0 0.0
        %4581 = vmatprep.subr.mxu0 0.0
        %4582 = vmatpush1.msra.mxu0 0.0
        %4583 = vmatprep.subr.mxu0 0.0
        %4584 = vmatpush1.msra.mxu0 0.0
        %4585 = vmatprep.subr.mxu0 0.0
        %4586 = vmatpush1.msra.mxu0 0.0
        %4587 = vmatprep.subr.mxu0 0.0
        %4588 = vmatpush1.msra.mxu0 0.0
        %4589 = vmatprep.subr.mxu0 0.0
        %4590 = vmatpush1.msra.mxu0 0.0
        %4591 = vmatprep.subr.mxu0 0.0
        %4592 = vmatpush1.msra.mxu0 0.0
        %4593 = vmatprep.subr.mxu0 0.0
        %4594 = vmatpush1.msra.mxu0 0.0
        %4595 = vmatprep.subr.mxu0 0.0
        %4596 = vmatpush1.msra.mxu0 0.0
        %4597 = vmatprep.subr.mxu0 %v2145
        %4598 = vmatpush1.msra.mxu0 %v2144
        %4599 = vmatprep.subr.mxu0 %v1989
        %4600 = vmatpush1.msra.mxu0 %v1988
        %4601 = vmatprep.subr.mxu0 %v1833
        %4602 = vmatpush1.msra.mxu0 %v1832
        %4603 = vmatprep.subr.mxu0 %v1677
        %4604 = vmatpush1.msra.mxu0 %v1676
        %4605 = vmatprep.subr.mxu0 0.0
        %4606 = vmatpush2.msra.mxu0 0.0
        %4607 = vmatprep.subr.mxu0 0.0
        %4608 = vmatpush2.msra.mxu0 0.0
        %4609 = vmatprep.subr.mxu0 0.0
        %4610 = vmatpush2.msra.mxu0 0.0
        %4611 = vmatprep.subr.mxu0 0.0
        %4612 = vmatpush2.msra.mxu0 0.0
        %4613 = vmatprep.subr.mxu0 0.0
        %4614 = vmatpush2.msra.mxu0 0.0
        %4615 = vmatprep.subr.mxu0 0.0
        %4616 = vmatpush2.msra.mxu0 0.0
        %4617 = vmatprep.subr.mxu0 0.0
        %4618 = vmatpush2.msra.mxu0 0.0
        %4619 = vmatprep.subr.mxu0 0.0
        %4620 = vmatpush2.msra.mxu0 0.0
        %4621 = vmatprep.subr.mxu0 0.0
        %4622 = vmatpush2.msra.mxu0 0.0
        %4623 = vmatprep.subr.mxu0 0.0
        %4624 = vmatpush2.msra.mxu0 0.0
        %4625 = vmatprep.subr.mxu0 0.0
        %4626 = vmatpush2.msra.mxu0 0.0
        %4627 = vmatprep.subr.mxu0 0.0
        %4628 = vmatpush2.msra.mxu0 0.0
        %4629 = vmatprep.subr.mxu0 0.0
        %4630 = vmatpush2.msra.mxu0 0.0
        %4631 = vmatprep.subr.mxu0 0.0
        %4632 = vmatpush2.msra.mxu0 0.0
        %4633 = vmatprep.subr.mxu0 0.0
        %4634 = vmatpush2.msra.mxu0 0.0
        %4635 = vmatprep.subr.mxu0 0.0
        %4636 = vmatpush2.msra.mxu0 0.0
        %4637 = vmatprep.mubr.f32.mxu0 0.0
        %4638 = vmatmul.mubr.f32.gmra.mxu0 %v3080
        %v4639 = vpop.f32.mrf.mxu0
        %v4640 = vadd.f32 %v2469, %v4639
        %v4641 = vpop.f32.mrf.mxu0
        %v4642 = vadd.f32 %v2473, %v4641
        %4643 = vdwg.mxu0
        %4644 = vmatprep.subr.mxu0 0.0
        %4645 = vmatpush1.msra.mxu0 0.0
        %4646 = vmatprep.subr.mxu0 0.0
        %4647 = vmatpush1.msra.mxu0 0.0
        %4648 = vmatprep.subr.mxu0 0.0
        %4649 = vmatpush1.msra.mxu0 0.0
        %4650 = vmatprep.subr.mxu0 0.0
        %4651 = vmatpush1.msra.mxu0 0.0
        %4652 = vmatprep.subr.mxu0 0.0
        %4653 = vmatpush1.msra.mxu0 0.0
        %4654 = vmatprep.subr.mxu0 0.0
        %4655 = vmatpush1.msra.mxu0 0.0
        %4656 = vmatprep.subr.mxu0 0.0
        %4657 = vmatpush1.msra.mxu0 0.0
        %4658 = vmatprep.subr.mxu0 0.0
        %4659 = vmatpush1.msra.mxu0 0.0
        %4660 = vmatprep.subr.mxu0 0.0
        %4661 = vmatpush1.msra.mxu0 0.0
        %4662 = vmatprep.subr.mxu0 0.0
        %4663 = vmatpush1.msra.mxu0 0.0
        %4664 = vmatprep.subr.mxu0 0.0
        %4665 = vmatpush1.msra.mxu0 0.0
        %4666 = vmatprep.subr.mxu0 0.0
        %4667 = vmatpush1.msra.mxu0 0.0
        %4668 = vmatprep.subr.mxu0 %v2147
        %4669 = vmatpush1.msra.mxu0 %v2146
        %4670 = vmatprep.subr.mxu0 %v1991
        %4671 = vmatpush1.msra.mxu0 %v1990
        %4672 = vmatprep.subr.mxu0 %v1835
        %4673 = vmatpush1.msra.mxu0 %v1834
        %4674 = vmatprep.subr.mxu0 %v1679
        %4675 = vmatpush1.msra.mxu0 %v1678
        %4676 = vmatprep.subr.mxu0 0.0
        %4677 = vmatpush2.msra.mxu0 0.0
        %4678 = vmatprep.subr.mxu0 0.0
        %4679 = vmatpush2.msra.mxu0 0.0
        %4680 = vmatprep.subr.mxu0 0.0
        %4681 = vmatpush2.msra.mxu0 0.0
        %4682 = vmatprep.subr.mxu0 0.0
        %4683 = vmatpush2.msra.mxu0 0.0
        %4684 = vmatprep.subr.mxu0 0.0
        %4685 = vmatpush2.msra.mxu0 0.0
        %4686 = vmatprep.subr.mxu0 0.0
        %4687 = vmatpush2.msra.mxu0 0.0
        %4688 = vmatprep.subr.mxu0 0.0
        %4689 = vmatpush2.msra.mxu0 0.0
        %4690 = vmatprep.subr.mxu0 0.0
        %4691 = vmatpush2.msra.mxu0 0.0
        %4692 = vmatprep.subr.mxu0 0.0
        %4693 = vmatpush2.msra.mxu0 0.0
        %4694 = vmatprep.subr.mxu0 0.0
        %4695 = vmatpush2.msra.mxu0 0.0
        %4696 = vmatprep.subr.mxu0 0.0
        %4697 = vmatpush2.msra.mxu0 0.0
        %4698 = vmatprep.subr.mxu0 0.0
        %4699 = vmatpush2.msra.mxu0 0.0
        %4700 = vmatprep.subr.mxu0 0.0
        %4701 = vmatpush2.msra.mxu0 0.0
        %4702 = vmatprep.subr.mxu0 0.0
        %4703 = vmatpush2.msra.mxu0 0.0
        %4704 = vmatprep.subr.mxu0 0.0
        %4705 = vmatpush2.msra.mxu0 0.0
        %4706 = vmatprep.subr.mxu0 0.0
        %4707 = vmatpush2.msra.mxu0 0.0
        %4708 = vmatprep.mubr.f32.mxu0 0.0
        %4709 = vmatmul.mubr.f32.gmra.mxu0 %v3080
        %v4710 = vpop.f32.mrf.mxu0
        %v4711 = vadd.f32 %v2477, %v4710
        %v4712 = vpop.f32.mrf.mxu0
        %v4713 = vadd.f32 %v2481, %v4712
        %4714 = vdwg.mxu0
        %4715 = vmatprep.subr.mxu0 0.0
        %4716 = vmatpush1.msra.mxu0 0.0
        %4717 = vmatprep.subr.mxu0 0.0
        %4718 = vmatpush1.msra.mxu0 0.0
        %4719 = vmatprep.subr.mxu0 0.0
        %4720 = vmatpush1.msra.mxu0 0.0
        %4721 = vmatprep.subr.mxu0 0.0
        %4722 = vmatpush1.msra.mxu0 0.0
        %4723 = vmatprep.subr.mxu0 0.0
        %4724 = vmatpush1.msra.mxu0 0.0
        %4725 = vmatprep.subr.mxu0 0.0
        %4726 = vmatpush1.msra.mxu0 0.0
        %4727 = vmatprep.subr.mxu0 0.0
        %4728 = vmatpush1.msra.mxu0 0.0
        %4729 = vmatprep.subr.mxu0 0.0
        %4730 = vmatpush1.msra.mxu0 0.0
        %4731 = vmatprep.subr.mxu0 0.0
        %4732 = vmatpush1.msra.mxu0 0.0
        %4733 = vmatprep.subr.mxu0 0.0
        %4734 = vmatpush1.msra.mxu0 0.0
        %4735 = vmatprep.subr.mxu0 0.0
        %4736 = vmatpush1.msra.mxu0 0.0
        %4737 = vmatprep.subr.mxu0 0.0
        %4738 = vmatpush1.msra.mxu0 0.0
        %4739 = vmatprep.subr.mxu0 %v2149
        %4740 = vmatpush1.msra.mxu0 %v2148
        %4741 = vmatprep.subr.mxu0 %v1993
        %4742 = vmatpush1.msra.mxu0 %v1992
        %4743 = vmatprep.subr.mxu0 %v1837
        %4744 = vmatpush1.msra.mxu0 %v1836
        %4745 = vmatprep.subr.mxu0 %v1681
        %4746 = vmatpush1.msra.mxu0 %v1680
        %4747 = vmatprep.subr.mxu0 0.0
        %4748 = vmatpush2.msra.mxu0 0.0
        %4749 = vmatprep.subr.mxu0 0.0
        %4750 = vmatpush2.msra.mxu0 0.0
        %4751 = vmatprep.subr.mxu0 0.0
        %4752 = vmatpush2.msra.mxu0 0.0
        %4753 = vmatprep.subr.mxu0 0.0
        %4754 = vmatpush2.msra.mxu0 0.0
        %4755 = vmatprep.subr.mxu0 0.0
        %4756 = vmatpush2.msra.mxu0 0.0
        %4757 = vmatprep.subr.mxu0 0.0
        %4758 = vmatpush2.msra.mxu0 0.0
        %4759 = vmatprep.subr.mxu0 0.0
        %4760 = vmatpush2.msra.mxu0 0.0
        %4761 = vmatprep.subr.mxu0 0.0
        %4762 = vmatpush2.msra.mxu0 0.0
        %4763 = vmatprep.subr.mxu0 0.0
        %4764 = vmatpush2.msra.mxu0 0.0
        %4765 = vmatprep.subr.mxu0 0.0
        %4766 = vmatpush2.msra.mxu0 0.0
        %4767 = vmatprep.subr.mxu0 0.0
        %4768 = vmatpush2.msra.mxu0 0.0
        %4769 = vmatprep.subr.mxu0 0.0
        %4770 = vmatpush2.msra.mxu0 0.0
        %4771 = vmatprep.subr.mxu0 0.0
        %4772 = vmatpush2.msra.mxu0 0.0
        %4773 = vmatprep.subr.mxu0 0.0
        %4774 = vmatpush2.msra.mxu0 0.0
        %4775 = vmatprep.subr.mxu0 0.0
        %4776 = vmatpush2.msra.mxu0 0.0
        %4777 = vmatprep.subr.mxu0 0.0
        %4778 = vmatpush2.msra.mxu0 0.0
        %4779 = vmatprep.mubr.f32.mxu0 0.0
        %4780 = vmatmul.mubr.f32.gmra.mxu0 %v3080
        %v4781 = vpop.f32.mrf.mxu0
        %v4782 = vadd.f32 %v2485, %v4781
        %v4783 = vpop.f32.mrf.mxu0
        %v4784 = vadd.f32 %v2489, %v4783
        %4785 = vdwg.mxu0
        %4786 = vmatprep.subr.mxu0 0.0
        %4787 = vmatpush1.msra.mxu0 0.0
        %4788 = vmatprep.subr.mxu0 0.0
        %4789 = vmatpush1.msra.mxu0 0.0
        %4790 = vmatprep.subr.mxu0 0.0
        %4791 = vmatpush1.msra.mxu0 0.0
        %4792 = vmatprep.subr.mxu0 0.0
        %4793 = vmatpush1.msra.mxu0 0.0
        %4794 = vmatprep.subr.mxu0 0.0
        %4795 = vmatpush1.msra.mxu0 0.0
        %4796 = vmatprep.subr.mxu0 0.0
        %4797 = vmatpush1.msra.mxu0 0.0
        %4798 = vmatprep.subr.mxu0 0.0
        %4799 = vmatpush1.msra.mxu0 0.0
        %4800 = vmatprep.subr.mxu0 0.0
        %4801 = vmatpush1.msra.mxu0 0.0
        %4802 = vmatprep.subr.mxu0 0.0
        %4803 = vmatpush1.msra.mxu0 0.0
        %4804 = vmatprep.subr.mxu0 0.0
        %4805 = vmatpush1.msra.mxu0 0.0
        %4806 = vmatprep.subr.mxu0 0.0
        %4807 = vmatpush1.msra.mxu0 0.0
        %4808 = vmatprep.subr.mxu0 0.0
        %4809 = vmatpush1.msra.mxu0 0.0
        %4810 = vmatprep.subr.mxu0 %v2151
        %4811 = vmatpush1.msra.mxu0 %v2150
        %4812 = vmatprep.subr.mxu0 %v1995
        %4813 = vmatpush1.msra.mxu0 %v1994
        %4814 = vmatprep.subr.mxu0 %v1839
        %4815 = vmatpush1.msra.mxu0 %v1838
        %4816 = vmatprep.subr.mxu0 %v1683
        %4817 = vmatpush1.msra.mxu0 %v1682
        %4818 = vmatprep.subr.mxu0 0.0
        %4819 = vmatpush2.msra.mxu0 0.0
        %4820 = vmatprep.subr.mxu0 0.0
        %4821 = vmatpush2.msra.mxu0 0.0
        %4822 = vmatprep.subr.mxu0 0.0
        %4823 = vmatpush2.msra.mxu0 0.0
        %4824 = vmatprep.subr.mxu0 0.0
        %4825 = vmatpush2.msra.mxu0 0.0
        %4826 = vmatprep.subr.mxu0 0.0
        %4827 = vmatpush2.msra.mxu0 0.0
        %4828 = vmatprep.subr.mxu0 0.0
        %4829 = vmatpush2.msra.mxu0 0.0
        %4830 = vmatprep.subr.mxu0 0.0
        %4831 = vmatpush2.msra.mxu0 0.0
        %4832 = vmatprep.subr.mxu0 0.0
        %4833 = vmatpush2.msra.mxu0 0.0
        %4834 = vmatprep.subr.mxu0 0.0
        %4835 = vmatpush2.msra.mxu0 0.0
        %4836 = vmatprep.subr.mxu0 0.0
        %4837 = vmatpush2.msra.mxu0 0.0
        %4838 = vmatprep.subr.mxu0 0.0
        %4839 = vmatpush2.msra.mxu0 0.0
        %4840 = vmatprep.subr.mxu0 0.0
        %4841 = vmatpush2.msra.mxu0 0.0
        %4842 = vmatprep.subr.mxu0 0.0
        %4843 = vmatpush2.msra.mxu0 0.0
        %4844 = vmatprep.subr.mxu0 0.0
        %4845 = vmatpush2.msra.mxu0 0.0
        %4846 = vmatprep.subr.mxu0 0.0
        %4847 = vmatpush2.msra.mxu0 0.0
        %4848 = vmatprep.subr.mxu0 0.0
        %4849 = vmatpush2.msra.mxu0 0.0
        %4850 = vmatprep.mubr.f32.mxu0 0.0
        %4851 = vmatmul.mubr.f32.gmra.mxu0 %v3080
        %v4852 = vpop.f32.mrf.mxu0
        %v4853 = vadd.f32 %v2493, %v4852
        %v4854 = vpop.f32.mrf.mxu0
        %v4855 = vadd.f32 %v2497, %v4854
        %4856 = vdwg.mxu0
        %4857 = vmatprep.subr.mxu0 0.0
        %4858 = vmatpush1.msra.mxu0 0.0
        %4859 = vmatprep.subr.mxu0 0.0
        %4860 = vmatpush1.msra.mxu0 0.0
        %4861 = vmatprep.subr.mxu0 0.0
        %4862 = vmatpush1.msra.mxu0 0.0
        %4863 = vmatprep.subr.mxu0 0.0
        %4864 = vmatpush1.msra.mxu0 0.0
        %4865 = vmatprep.subr.mxu0 0.0
        %4866 = vmatpush1.msra.mxu0 0.0
        %4867 = vmatprep.subr.mxu0 0.0
        %4868 = vmatpush1.msra.mxu0 0.0
        %4869 = vmatprep.subr.mxu0 0.0
        %4870 = vmatpush1.msra.mxu0 0.0
        %4871 = vmatprep.subr.mxu0 0.0
        %4872 = vmatpush1.msra.mxu0 0.0
        %4873 = vmatprep.subr.mxu0 0.0
        %4874 = vmatpush1.msra.mxu0 0.0
        %4875 = vmatprep.subr.mxu0 0.0
        %4876 = vmatpush1.msra.mxu0 0.0
        %4877 = vmatprep.subr.mxu0 0.0
        %4878 = vmatpush1.msra.mxu0 0.0
        %4879 = vmatprep.subr.mxu0 0.0
        %4880 = vmatpush1.msra.mxu0 0.0
        %4881 = vmatprep.subr.mxu0 %v2153
        %4882 = vmatpush1.msra.mxu0 %v2152
        %4883 = vmatprep.subr.mxu0 %v1997
        %4884 = vmatpush1.msra.mxu0 %v1996
        %4885 = vmatprep.subr.mxu0 %v1841
        %4886 = vmatpush1.msra.mxu0 %v1840
        %4887 = vmatprep.subr.mxu0 %v1685
        %4888 = vmatpush1.msra.mxu0 %v1684
        %4889 = vmatprep.subr.mxu0 0.0
        %4890 = vmatpush2.msra.mxu0 0.0
        %4891 = vmatprep.subr.mxu0 0.0
        %4892 = vmatpush2.msra.mxu0 0.0
        %4893 = vmatprep.subr.mxu0 0.0
        %4894 = vmatpush2.msra.mxu0 0.0
        %4895 = vmatprep.subr.mxu0 0.0
        %4896 = vmatpush2.msra.mxu0 0.0
        %4897 = vmatprep.subr.mxu0 0.0
        %4898 = vmatpush2.msra.mxu0 0.0
        %4899 = vmatprep.subr.mxu0 0.0
        %4900 = vmatpush2.msra.mxu0 0.0
        %4901 = vmatprep.subr.mxu0 0.0
        %4902 = vmatpush2.msra.mxu0 0.0
        %4903 = vmatprep.subr.mxu0 0.0
        %4904 = vmatpush2.msra.mxu0 0.0
        %4905 = vmatprep.subr.mxu0 0.0
        %4906 = vmatpush2.msra.mxu0 0.0
        %4907 = vmatprep.subr.mxu0 0.0
        %4908 = vmatpush2.msra.mxu0 0.0
        %4909 = vmatprep.subr.mxu0 0.0
        %4910 = vmatpush2.msra.mxu0 0.0
        %4911 = vmatprep.subr.mxu0 0.0
        %4912 = vmatpush2.msra.mxu0 0.0
        %4913 = vmatprep.subr.mxu0 0.0
        %4914 = vmatpush2.msra.mxu0 0.0
        %4915 = vmatprep.subr.mxu0 0.0
        %4916 = vmatpush2.msra.mxu0 0.0
        %4917 = vmatprep.subr.mxu0 0.0
        %4918 = vmatpush2.msra.mxu0 0.0
        %4919 = vmatprep.subr.mxu0 0.0
        %4920 = vmatpush2.msra.mxu0 0.0
        %4921 = vmatprep.mubr.f32.mxu0 0.0
        %4922 = vmatmul.mubr.f32.gmra.mxu0 %v3080
        %v4923 = vpop.f32.mrf.mxu0
        %v4924 = vadd.f32 %v2501, %v4923
        %v4925 = vpop.f32.mrf.mxu0
        %v4926 = vadd.f32 %v2505, %v4925
        %4927 = vdwg.mxu0
        %4928 = vmatprep.subr.mxu0 0.0
        %4929 = vmatpush1.msra.mxu0 0.0
        %4930 = vmatprep.subr.mxu0 0.0
        %4931 = vmatpush1.msra.mxu0 0.0
        %4932 = vmatprep.subr.mxu0 0.0
        %4933 = vmatpush1.msra.mxu0 0.0
        %4934 = vmatprep.subr.mxu0 0.0
        %4935 = vmatpush1.msra.mxu0 0.0
        %4936 = vmatprep.subr.mxu0 0.0
        %4937 = vmatpush1.msra.mxu0 0.0
        %4938 = vmatprep.subr.mxu0 0.0
        %4939 = vmatpush1.msra.mxu0 0.0
        %4940 = vmatprep.subr.mxu0 0.0
        %4941 = vmatpush1.msra.mxu0 0.0
        %4942 = vmatprep.subr.mxu0 0.0
        %4943 = vmatpush1.msra.mxu0 0.0
        %4944 = vmatprep.subr.mxu0 0.0
        %4945 = vmatpush1.msra.mxu0 0.0
        %4946 = vmatprep.subr.mxu0 0.0
        %4947 = vmatpush1.msra.mxu0 0.0
        %4948 = vmatprep.subr.mxu0 0.0
        %4949 = vmatpush1.msra.mxu0 0.0
        %4950 = vmatprep.subr.mxu0 0.0
        %4951 = vmatpush1.msra.mxu0 0.0
        %4952 = vmatprep.subr.mxu0 %v2155
        %4953 = vmatpush1.msra.mxu0 %v2154
        %4954 = vmatprep.subr.mxu0 %v1999
        %4955 = vmatpush1.msra.mxu0 %v1998
        %4956 = vmatprep.subr.mxu0 %v1843
        %4957 = vmatpush1.msra.mxu0 %v1842
        %4958 = vmatprep.subr.mxu0 %v1687
        %4959 = vmatpush1.msra.mxu0 %v1686
        %4960 = vmatprep.subr.mxu0 0.0
        %4961 = vmatpush2.msra.mxu0 0.0
        %4962 = vmatprep.subr.mxu0 0.0
        %4963 = vmatpush2.msra.mxu0 0.0
        %4964 = vmatprep.subr.mxu0 0.0
        %4965 = vmatpush2.msra.mxu0 0.0
        %4966 = vmatprep.subr.mxu0 0.0
        %4967 = vmatpush2.msra.mxu0 0.0
        %4968 = vmatprep.subr.mxu0 0.0
        %4969 = vmatpush2.msra.mxu0 0.0
        %4970 = vmatprep.subr.mxu0 0.0
        %4971 = vmatpush2.msra.mxu0 0.0
        %4972 = vmatprep.subr.mxu0 0.0
        %4973 = vmatpush2.msra.mxu0 0.0
        %4974 = vmatprep.subr.mxu0 0.0
        %4975 = vmatpush2.msra.mxu0 0.0
        %4976 = vmatprep.subr.mxu0 0.0
        %4977 = vmatpush2.msra.mxu0 0.0
        %4978 = vmatprep.subr.mxu0 0.0
        %4979 = vmatpush2.msra.mxu0 0.0
        %4980 = vmatprep.subr.mxu0 0.0
        %4981 = vmatpush2.msra.mxu0 0.0
        %4982 = vmatprep.subr.mxu0 0.0
        %4983 = vmatpush2.msra.mxu0 0.0
        %4984 = vmatprep.subr.mxu0 0.0
        %4985 = vmatpush2.msra.mxu0 0.0
        %4986 = vmatprep.subr.mxu0 0.0
        %4987 = vmatpush2.msra.mxu0 0.0
        %4988 = vmatprep.subr.mxu0 0.0
        %4989 = vmatpush2.msra.mxu0 0.0
        %4990 = vmatprep.subr.mxu0 0.0
        %4991 = vmatpush2.msra.mxu0 0.0
        %4992 = vmatprep.mubr.f32.mxu0 0.0
        %4993 = vmatmul.mubr.f32.gmra.mxu0 %v3080
        %v4994 = vpop.f32.mrf.mxu0
        %v4995 = vadd.f32 %v2509, %v4994
        %v4996 = vpop.f32.mrf.mxu0
        %v4997 = vadd.f32 %v2513, %v4996
        %4998 = vdwg.mxu0
        %4999 = vmatprep.subr.mxu0 0.0
        %5000 = vmatpush1.msra.mxu0 0.0
        %5001 = vmatprep.subr.mxu0 0.0
        %5002 = vmatpush1.msra.mxu0 0.0
        %5003 = vmatprep.subr.mxu0 0.0
        %5004 = vmatpush1.msra.mxu0 0.0
        %5005 = vmatprep.subr.mxu0 0.0
        %5006 = vmatpush1.msra.mxu0 0.0
        %5007 = vmatprep.subr.mxu0 0.0
        %5008 = vmatpush1.msra.mxu0 0.0
        %5009 = vmatprep.subr.mxu0 0.0
        %5010 = vmatpush1.msra.mxu0 0.0
        %5011 = vmatprep.subr.mxu0 0.0
        %5012 = vmatpush1.msra.mxu0 0.0
        %5013 = vmatprep.subr.mxu0 0.0
        %5014 = vmatpush1.msra.mxu0 0.0
        %5015 = vmatprep.subr.mxu0 0.0
        %5016 = vmatpush1.msra.mxu0 0.0
        %5017 = vmatprep.subr.mxu0 0.0
        %5018 = vmatpush1.msra.mxu0 0.0
        %5019 = vmatprep.subr.mxu0 0.0
        %5020 = vmatpush1.msra.mxu0 0.0
        %5021 = vmatprep.subr.mxu0 0.0
        %5022 = vmatpush1.msra.mxu0 0.0
        %5023 = vmatprep.subr.mxu0 %v2157
        %5024 = vmatpush1.msra.mxu0 %v2156
        %5025 = vmatprep.subr.mxu0 %v2001
        %5026 = vmatpush1.msra.mxu0 %v2000
        %5027 = vmatprep.subr.mxu0 %v1845
        %5028 = vmatpush1.msra.mxu0 %v1844
        %5029 = vmatprep.subr.mxu0 %v1689
        %5030 = vmatpush1.msra.mxu0 %v1688
        %5031 = vmatprep.subr.mxu0 0.0
        %5032 = vmatpush2.msra.mxu0 0.0
        %5033 = vmatprep.subr.mxu0 0.0
        %5034 = vmatpush2.msra.mxu0 0.0
        %5035 = vmatprep.subr.mxu0 0.0
        %5036 = vmatpush2.msra.mxu0 0.0
        %5037 = vmatprep.subr.mxu0 0.0
        %5038 = vmatpush2.msra.mxu0 0.0
        %5039 = vmatprep.subr.mxu0 0.0
        %5040 = vmatpush2.msra.mxu0 0.0
        %5041 = vmatprep.subr.mxu0 0.0
        %5042 = vmatpush2.msra.mxu0 0.0
        %5043 = vmatprep.subr.mxu0 0.0
        %5044 = vmatpush2.msra.mxu0 0.0
        %5045 = vmatprep.subr.mxu0 0.0
        %5046 = vmatpush2.msra.mxu0 0.0
        %5047 = vmatprep.subr.mxu0 0.0
        %5048 = vmatpush2.msra.mxu0 0.0
        %5049 = vmatprep.subr.mxu0 0.0
        %5050 = vmatpush2.msra.mxu0 0.0
        %5051 = vmatprep.subr.mxu0 0.0
        %5052 = vmatpush2.msra.mxu0 0.0
        %5053 = vmatprep.subr.mxu0 0.0
        %5054 = vmatpush2.msra.mxu0 0.0
        %5055 = vmatprep.subr.mxu0 0.0
        %5056 = vmatpush2.msra.mxu0 0.0
        %5057 = vmatprep.subr.mxu0 0.0
        %5058 = vmatpush2.msra.mxu0 0.0
        %5059 = vmatprep.subr.mxu0 0.0
        %5060 = vmatpush2.msra.mxu0 0.0
        %5061 = vmatprep.subr.mxu0 0.0
        %5062 = vmatpush2.msra.mxu0 0.0
        %5063 = vmatprep.mubr.f32.mxu0 0.0
        %5064 = vmatmul.mubr.f32.gmra.mxu0 %v3080
        %v5065 = vpop.f32.mrf.mxu0
        %v5066 = vadd.f32 %v2517, %v5065
        %v5067 = vpop.f32.mrf.mxu0
        %v5068 = vadd.f32 %v2521, %v5067
        %5069 = vdwg.mxu0
        %5070 = vmatprep.subr.mxu0 0.0
        %5071 = vmatpush1.msra.mxu0 0.0
        %5072 = vmatprep.subr.mxu0 0.0
        %5073 = vmatpush1.msra.mxu0 0.0
        %5074 = vmatprep.subr.mxu0 0.0
        %5075 = vmatpush1.msra.mxu0 0.0
        %5076 = vmatprep.subr.mxu0 0.0
        %5077 = vmatpush1.msra.mxu0 0.0
        %5078 = vmatprep.subr.mxu0 0.0
        %5079 = vmatpush1.msra.mxu0 0.0
        %5080 = vmatprep.subr.mxu0 0.0
        %5081 = vmatpush1.msra.mxu0 0.0
        %5082 = vmatprep.subr.mxu0 0.0
        %5083 = vmatpush1.msra.mxu0 0.0
        %5084 = vmatprep.subr.mxu0 0.0
        %5085 = vmatpush1.msra.mxu0 0.0
        %5086 = vmatprep.subr.mxu0 0.0
        %5087 = vmatpush1.msra.mxu0 0.0
        %5088 = vmatprep.subr.mxu0 0.0
        %5089 = vmatpush1.msra.mxu0 0.0
        %5090 = vmatprep.subr.mxu0 0.0
        %5091 = vmatpush1.msra.mxu0 0.0
        %5092 = vmatprep.subr.mxu0 0.0
        %5093 = vmatpush1.msra.mxu0 0.0
        %5094 = vmatprep.subr.mxu0 %v2159
        %5095 = vmatpush1.msra.mxu0 %v2158
        %5096 = vmatprep.subr.mxu0 %v2003
        %5097 = vmatpush1.msra.mxu0 %v2002
        %5098 = vmatprep.subr.mxu0 %v1847
        %5099 = vmatpush1.msra.mxu0 %v1846
        %5100 = vmatprep.subr.mxu0 %v1691
        %5101 = vmatpush1.msra.mxu0 %v1690
        %5102 = vmatprep.subr.mxu0 0.0
        %5103 = vmatpush2.msra.mxu0 0.0
        %5104 = vmatprep.subr.mxu0 0.0
        %5105 = vmatpush2.msra.mxu0 0.0
        %5106 = vmatprep.subr.mxu0 0.0
        %5107 = vmatpush2.msra.mxu0 0.0
        %5108 = vmatprep.subr.mxu0 0.0
        %5109 = vmatpush2.msra.mxu0 0.0
        %5110 = vmatprep.subr.mxu0 0.0
        %5111 = vmatpush2.msra.mxu0 0.0
        %5112 = vmatprep.subr.mxu0 0.0
        %5113 = vmatpush2.msra.mxu0 0.0
        %5114 = vmatprep.subr.mxu0 0.0
        %5115 = vmatpush2.msra.mxu0 0.0
        %5116 = vmatprep.subr.mxu0 0.0
        %5117 = vmatpush2.msra.mxu0 0.0
        %5118 = vmatprep.subr.mxu0 0.0
        %5119 = vmatpush2.msra.mxu0 0.0
        %5120 = vmatprep.subr.mxu0 0.0
        %5121 = vmatpush2.msra.mxu0 0.0
        %5122 = vmatprep.subr.mxu0 0.0
        %5123 = vmatpush2.msra.mxu0 0.0
        %5124 = vmatprep.subr.mxu0 0.0
        %5125 = vmatpush2.msra.mxu0 0.0
        %5126 = vmatprep.subr.mxu0 0.0
        %5127 = vmatpush2.msra.mxu0 0.0
        %5128 = vmatprep.subr.mxu0 0.0
        %5129 = vmatpush2.msra.mxu0 0.0
        %5130 = vmatprep.subr.mxu0 0.0
        %5131 = vmatpush2.msra.mxu0 0.0
        %5132 = vmatprep.subr.mxu0 0.0
        %5133 = vmatpush2.msra.mxu0 0.0
        %5134 = vmatprep.mubr.f32.mxu0 0.0
        %5135 = vmatmul.mubr.f32.gmra.mxu0 %v3080
        %v5136 = vpop.f32.mrf.mxu0
        %v5137 = vadd.f32 %v2525, %v5136
        %v5138 = vpop.f32.mrf.mxu0
        %v5139 = vadd.f32 %v2529, %v5138
        %5140 = vdwg.mxu0
        %5141 = vmatprep.subr.mxu0 0.0
        %5142 = vmatpush1.msra.mxu0 0.0
        %5143 = vmatprep.subr.mxu0 0.0
        %5144 = vmatpush1.msra.mxu0 0.0
        %5145 = vmatprep.subr.mxu0 0.0
        %5146 = vmatpush1.msra.mxu0 0.0
        %5147 = vmatprep.subr.mxu0 0.0
        %5148 = vmatpush1.msra.mxu0 0.0
        %5149 = vmatprep.subr.mxu0 0.0
        %5150 = vmatpush1.msra.mxu0 0.0
        %5151 = vmatprep.subr.mxu0 0.0
        %5152 = vmatpush1.msra.mxu0 0.0
        %5153 = vmatprep.subr.mxu0 0.0
        %5154 = vmatpush1.msra.mxu0 0.0
        %5155 = vmatprep.subr.mxu0 0.0
        %5156 = vmatpush1.msra.mxu0 0.0
        %5157 = vmatprep.subr.mxu0 0.0
        %5158 = vmatpush1.msra.mxu0 0.0
        %5159 = vmatprep.subr.mxu0 0.0
        %5160 = vmatpush1.msra.mxu0 0.0
        %5161 = vmatprep.subr.mxu0 0.0
        %5162 = vmatpush1.msra.mxu0 0.0
        %5163 = vmatprep.subr.mxu0 0.0
        %5164 = vmatpush1.msra.mxu0 0.0
        %5165 = vmatprep.subr.mxu0 %v2161
        %5166 = vmatpush1.msra.mxu0 %v2160
        %5167 = vmatprep.subr.mxu0 %v2005
        %5168 = vmatpush1.msra.mxu0 %v2004
        %5169 = vmatprep.subr.mxu0 %v1849
        %5170 = vmatpush1.msra.mxu0 %v1848
        %5171 = vmatprep.subr.mxu0 %v1693
        %5172 = vmatpush1.msra.mxu0 %v1692
        %5173 = vmatprep.subr.mxu0 0.0
        %5174 = vmatpush2.msra.mxu0 0.0
        %5175 = vmatprep.subr.mxu0 0.0
        %5176 = vmatpush2.msra.mxu0 0.0
        %5177 = vmatprep.subr.mxu0 0.0
        %5178 = vmatpush2.msra.mxu0 0.0
        %5179 = vmatprep.subr.mxu0 0.0
        %5180 = vmatpush2.msra.mxu0 0.0
        %5181 = vmatprep.subr.mxu0 0.0
        %5182 = vmatpush2.msra.mxu0 0.0
        %5183 = vmatprep.subr.mxu0 0.0
        %5184 = vmatpush2.msra.mxu0 0.0
        %5185 = vmatprep.subr.mxu0 0.0
        %5186 = vmatpush2.msra.mxu0 0.0
        %5187 = vmatprep.subr.mxu0 0.0
        %5188 = vmatpush2.msra.mxu0 0.0
        %5189 = vmatprep.subr.mxu0 0.0
        %5190 = vmatpush2.msra.mxu0 0.0
        %5191 = vmatprep.subr.mxu0 0.0
        %5192 = vmatpush2.msra.mxu0 0.0
        %5193 = vmatprep.subr.mxu0 0.0
        %5194 = vmatpush2.msra.mxu0 0.0
        %5195 = vmatprep.subr.mxu0 0.0
        %5196 = vmatpush2.msra.mxu0 0.0
        %5197 = vmatprep.subr.mxu0 0.0
        %5198 = vmatpush2.msra.mxu0 0.0
        %5199 = vmatprep.subr.mxu0 0.0
        %5200 = vmatpush2.msra.mxu0 0.0
        %5201 = vmatprep.subr.mxu0 0.0
        %5202 = vmatpush2.msra.mxu0 0.0
        %5203 = vmatprep.subr.mxu0 0.0
        %5204 = vmatpush2.msra.mxu0 0.0
        %5205 = vmatprep.mubr.f32.mxu0 0.0
        %5206 = vmatmul.mubr.f32.gmra.mxu0 %v3080
        %v5207 = vpop.f32.mrf.mxu0
        %v5208 = vadd.f32 %v2533, %v5207
        %v5209 = vpop.f32.mrf.mxu0
        %v5210 = vadd.f32 %v2537, %v5209
        %5211 = vdwg.mxu0
        %5212 = vmatprep.subr.mxu0 0.0
        %5213 = vmatpush1.msra.mxu0 0.0
        %5214 = vmatprep.subr.mxu0 0.0
        %5215 = vmatpush1.msra.mxu0 0.0
        %5216 = vmatprep.subr.mxu0 0.0
        %5217 = vmatpush1.msra.mxu0 0.0
        %5218 = vmatprep.subr.mxu0 0.0
        %5219 = vmatpush1.msra.mxu0 0.0
        %5220 = vmatprep.subr.mxu0 0.0
        %5221 = vmatpush1.msra.mxu0 0.0
        %5222 = vmatprep.subr.mxu0 0.0
        %5223 = vmatpush1.msra.mxu0 0.0
        %5224 = vmatprep.subr.mxu0 0.0
        %5225 = vmatpush1.msra.mxu0 0.0
        %5226 = vmatprep.subr.mxu0 0.0
        %5227 = vmatpush1.msra.mxu0 0.0
        %5228 = vmatprep.subr.mxu0 0.0
        %5229 = vmatpush1.msra.mxu0 0.0
        %5230 = vmatprep.subr.mxu0 0.0
        %5231 = vmatpush1.msra.mxu0 0.0
        %5232 = vmatprep.subr.mxu0 0.0
        %5233 = vmatpush1.msra.mxu0 0.0
        %5234 = vmatprep.subr.mxu0 0.0
        %5235 = vmatpush1.msra.mxu0 0.0
        %5236 = vmatprep.subr.mxu0 %v2163
        %5237 = vmatpush1.msra.mxu0 %v2162
        %5238 = vmatprep.subr.mxu0 %v2007
        %5239 = vmatpush1.msra.mxu0 %v2006
        %5240 = vmatprep.subr.mxu0 %v1851
        %5241 = vmatpush1.msra.mxu0 %v1850
        %5242 = vmatprep.subr.mxu0 %v1695
        %5243 = vmatpush1.msra.mxu0 %v1694
        %5244 = vmatprep.subr.mxu0 0.0
        %5245 = vmatpush2.msra.mxu0 0.0
        %5246 = vmatprep.subr.mxu0 0.0
        %5247 = vmatpush2.msra.mxu0 0.0
        %5248 = vmatprep.subr.mxu0 0.0
        %5249 = vmatpush2.msra.mxu0 0.0
        %5250 = vmatprep.subr.mxu0 0.0
        %5251 = vmatpush2.msra.mxu0 0.0
        %5252 = vmatprep.subr.mxu0 0.0
        %5253 = vmatpush2.msra.mxu0 0.0
        %5254 = vmatprep.subr.mxu0 0.0
        %5255 = vmatpush2.msra.mxu0 0.0
        %5256 = vmatprep.subr.mxu0 0.0
        %5257 = vmatpush2.msra.mxu0 0.0
        %5258 = vmatprep.subr.mxu0 0.0
        %5259 = vmatpush2.msra.mxu0 0.0
        %5260 = vmatprep.subr.mxu0 0.0
        %5261 = vmatpush2.msra.mxu0 0.0
        %5262 = vmatprep.subr.mxu0 0.0
        %5263 = vmatpush2.msra.mxu0 0.0
        %5264 = vmatprep.subr.mxu0 0.0
        %5265 = vmatpush2.msra.mxu0 0.0
        %5266 = vmatprep.subr.mxu0 0.0
        %5267 = vmatpush2.msra.mxu0 0.0
        %5268 = vmatprep.subr.mxu0 0.0
        %5269 = vmatpush2.msra.mxu0 0.0
        %5270 = vmatprep.subr.mxu0 0.0
        %5271 = vmatpush2.msra.mxu0 0.0
        %5272 = vmatprep.subr.mxu0 0.0
        %5273 = vmatpush2.msra.mxu0 0.0
        %5274 = vmatprep.subr.mxu0 0.0
        %5275 = vmatpush2.msra.mxu0 0.0
        %5276 = vmatprep.mubr.f32.mxu0 0.0
        %5277 = vmatmul.mubr.f32.gmra.mxu0 %v3080
        %v5278 = vpop.f32.mrf.mxu0
        %v5279 = vadd.f32 %v2541, %v5278
        %v5280 = vpop.f32.mrf.mxu0
        %v5281 = vadd.f32 %v2545, %v5280
        %5282 = vdwg.mxu0
        %5283 = vmatprep.subr.mxu0 0.0
        %5284 = vmatpush1.msra.mxu0 0.0
        %5285 = vmatprep.subr.mxu0 0.0
        %5286 = vmatpush1.msra.mxu0 0.0
        %5287 = vmatprep.subr.mxu0 0.0
        %5288 = vmatpush1.msra.mxu0 0.0
        %5289 = vmatprep.subr.mxu0 0.0
        %5290 = vmatpush1.msra.mxu0 0.0
        %5291 = vmatprep.subr.mxu0 0.0
        %5292 = vmatpush1.msra.mxu0 0.0
        %5293 = vmatprep.subr.mxu0 0.0
        %5294 = vmatpush1.msra.mxu0 0.0
        %5295 = vmatprep.subr.mxu0 0.0
        %5296 = vmatpush1.msra.mxu0 0.0
        %5297 = vmatprep.subr.mxu0 0.0
        %5298 = vmatpush1.msra.mxu0 0.0
        %5299 = vmatprep.subr.mxu0 0.0
        %5300 = vmatpush1.msra.mxu0 0.0
        %5301 = vmatprep.subr.mxu0 0.0
        %5302 = vmatpush1.msra.mxu0 0.0
        %5303 = vmatprep.subr.mxu0 0.0
        %5304 = vmatpush1.msra.mxu0 0.0
        %5305 = vmatprep.subr.mxu0 0.0
        %5306 = vmatpush1.msra.mxu0 0.0
        %5307 = vmatprep.subr.mxu0 %v2165
        %5308 = vmatpush1.msra.mxu0 %v2164
        %5309 = vmatprep.subr.mxu0 %v2009
        %5310 = vmatpush1.msra.mxu0 %v2008
        %5311 = vmatprep.subr.mxu0 %v1853
        %5312 = vmatpush1.msra.mxu0 %v1852
        %5313 = vmatprep.subr.mxu0 %v1697
        %5314 = vmatpush1.msra.mxu0 %v1696
        %5315 = vmatprep.subr.mxu0 0.0
        %5316 = vmatpush2.msra.mxu0 0.0
        %5317 = vmatprep.subr.mxu0 0.0
        %5318 = vmatpush2.msra.mxu0 0.0
        %5319 = vmatprep.subr.mxu0 0.0
        %5320 = vmatpush2.msra.mxu0 0.0
        %5321 = vmatprep.subr.mxu0 0.0
        %5322 = vmatpush2.msra.mxu0 0.0
        %5323 = vmatprep.subr.mxu0 0.0
        %5324 = vmatpush2.msra.mxu0 0.0
        %5325 = vmatprep.subr.mxu0 0.0
        %5326 = vmatpush2.msra.mxu0 0.0
        %5327 = vmatprep.subr.mxu0 0.0
        %5328 = vmatpush2.msra.mxu0 0.0
        %5329 = vmatprep.subr.mxu0 0.0
        %5330 = vmatpush2.msra.mxu0 0.0
        %5331 = vmatprep.subr.mxu0 0.0
        %5332 = vmatpush2.msra.mxu0 0.0
        %5333 = vmatprep.subr.mxu0 0.0
        %5334 = vmatpush2.msra.mxu0 0.0
        %5335 = vmatprep.subr.mxu0 0.0
        %5336 = vmatpush2.msra.mxu0 0.0
        %5337 = vmatprep.subr.mxu0 0.0
        %5338 = vmatpush2.msra.mxu0 0.0
        %5339 = vmatprep.subr.mxu0 0.0
        %5340 = vmatpush2.msra.mxu0 0.0
        %5341 = vmatprep.subr.mxu0 0.0
        %5342 = vmatpush2.msra.mxu0 0.0
        %5343 = vmatprep.subr.mxu0 0.0
        %5344 = vmatpush2.msra.mxu0 0.0
        %5345 = vmatprep.subr.mxu0 0.0
        %5346 = vmatpush2.msra.mxu0 0.0
        %5347 = vmatprep.mubr.f32.mxu0 0.0
        %5348 = vmatmul.mubr.f32.gmra.mxu0 %v3080
        %v5349 = vpop.f32.mrf.mxu0
        %v5350 = vadd.f32 %v2549, %v5349
        %v5351 = vpop.f32.mrf.mxu0
        %v5352 = vadd.f32 %v2553, %v5351
        %5353 = vdwg.mxu0
        %5354 = vmatprep.subr.mxu0 0.0
        %5355 = vmatpush1.msra.mxu0 0.0
        %5356 = vmatprep.subr.mxu0 0.0
        %5357 = vmatpush1.msra.mxu0 0.0
        %5358 = vmatprep.subr.mxu0 0.0
        %5359 = vmatpush1.msra.mxu0 0.0
        %5360 = vmatprep.subr.mxu0 0.0
        %5361 = vmatpush1.msra.mxu0 0.0
        %5362 = vmatprep.subr.mxu0 0.0
        %5363 = vmatpush1.msra.mxu0 0.0
        %5364 = vmatprep.subr.mxu0 0.0
        %5365 = vmatpush1.msra.mxu0 0.0
        %5366 = vmatprep.subr.mxu0 0.0
        %5367 = vmatpush1.msra.mxu0 0.0
        %5368 = vmatprep.subr.mxu0 0.0
        %5369 = vmatpush1.msra.mxu0 0.0
        %5370 = vmatprep.subr.mxu0 0.0
        %5371 = vmatpush1.msra.mxu0 0.0
        %5372 = vmatprep.subr.mxu0 0.0
        %5373 = vmatpush1.msra.mxu0 0.0
        %5374 = vmatprep.subr.mxu0 0.0
        %5375 = vmatpush1.msra.mxu0 0.0
        %5376 = vmatprep.subr.mxu0 0.0
        %5377 = vmatpush1.msra.mxu0 0.0
        %5378 = vmatprep.subr.mxu0 %v2167
        %5379 = vmatpush1.msra.mxu0 %v2166
        %5380 = vmatprep.subr.mxu0 %v2011
        %5381 = vmatpush1.msra.mxu0 %v2010
        %5382 = vmatprep.subr.mxu0 %v1855
        %5383 = vmatpush1.msra.mxu0 %v1854
        %5384 = vmatprep.subr.mxu0 %v1699
        %5385 = vmatpush1.msra.mxu0 %v1698
        %5386 = vmatprep.subr.mxu0 0.0
        %5387 = vmatpush2.msra.mxu0 0.0
        %5388 = vmatprep.subr.mxu0 0.0
        %5389 = vmatpush2.msra.mxu0 0.0
        %5390 = vmatprep.subr.mxu0 0.0
        %5391 = vmatpush2.msra.mxu0 0.0
        %5392 = vmatprep.subr.mxu0 0.0
        %5393 = vmatpush2.msra.mxu0 0.0
        %5394 = vmatprep.subr.mxu0 0.0
        %5395 = vmatpush2.msra.mxu0 0.0
        %5396 = vmatprep.subr.mxu0 0.0
        %5397 = vmatpush2.msra.mxu0 0.0
        %5398 = vmatprep.subr.mxu0 0.0
        %5399 = vmatpush2.msra.mxu0 0.0
        %5400 = vmatprep.subr.mxu0 0.0
        %5401 = vmatpush2.msra.mxu0 0.0
        %5402 = vmatprep.subr.mxu0 0.0
        %5403 = vmatpush2.msra.mxu0 0.0
        %5404 = vmatprep.subr.mxu0 0.0
        %5405 = vmatpush2.msra.mxu0 0.0
        %5406 = vmatprep.subr.mxu0 0.0
        %5407 = vmatpush2.msra.mxu0 0.0
        %5408 = vmatprep.subr.mxu0 0.0
        %5409 = vmatpush2.msra.mxu0 0.0
        %5410 = vmatprep.subr.mxu0 0.0
        %5411 = vmatpush2.msra.mxu0 0.0
        %5412 = vmatprep.subr.mxu0 0.0
        %5413 = vmatpush2.msra.mxu0 0.0
        %5414 = vmatprep.subr.mxu0 0.0
        %5415 = vmatpush2.msra.mxu0 0.0
        %5416 = vmatprep.subr.mxu0 0.0
        %5417 = vmatpush2.msra.mxu0 0.0
        %5418 = vmatprep.mubr.f32.mxu0 0.0
        %5419 = vmatmul.mubr.f32.gmra.mxu0 %v3080
        %v5420 = vpop.f32.mrf.mxu0
        %v5421 = vadd.f32 %v2557, %v5420
        %v5422 = vpop.f32.mrf.mxu0
        %v5423 = vadd.f32 %v2561, %v5422
        %5424 = vdwg.mxu0
        %5425 = vmatprep.subr.mxu0 0.0
        %5426 = vmatpush1.msra.mxu0 0.0
        %5427 = vmatprep.subr.mxu0 0.0
        %5428 = vmatpush1.msra.mxu0 0.0
        %5429 = vmatprep.subr.mxu0 0.0
        %5430 = vmatpush1.msra.mxu0 0.0
        %5431 = vmatprep.subr.mxu0 0.0
        %5432 = vmatpush1.msra.mxu0 0.0
        %5433 = vmatprep.subr.mxu0 0.0
        %5434 = vmatpush1.msra.mxu0 0.0
        %5435 = vmatprep.subr.mxu0 0.0
        %5436 = vmatpush1.msra.mxu0 0.0
        %5437 = vmatprep.subr.mxu0 0.0
        %5438 = vmatpush1.msra.mxu0 0.0
        %5439 = vmatprep.subr.mxu0 0.0
        %5440 = vmatpush1.msra.mxu0 0.0
        %5441 = vmatprep.subr.mxu0 0.0
        %5442 = vmatpush1.msra.mxu0 0.0
        %5443 = vmatprep.subr.mxu0 0.0
        %5444 = vmatpush1.msra.mxu0 0.0
        %5445 = vmatprep.subr.mxu0 0.0
        %5446 = vmatpush1.msra.mxu0 0.0
        %5447 = vmatprep.subr.mxu0 0.0
        %5448 = vmatpush1.msra.mxu0 0.0
        %5449 = vmatprep.subr.mxu0 %v2169
        %5450 = vmatpush1.msra.mxu0 %v2168
        %5451 = vmatprep.subr.mxu0 %v2013
        %5452 = vmatpush1.msra.mxu0 %v2012
        %5453 = vmatprep.subr.mxu0 %v1857
        %5454 = vmatpush1.msra.mxu0 %v1856
        %5455 = vmatprep.subr.mxu0 %v1701
        %5456 = vmatpush1.msra.mxu0 %v1700
        %5457 = vmatprep.subr.mxu0 0.0
        %5458 = vmatpush2.msra.mxu0 0.0
        %5459 = vmatprep.subr.mxu0 0.0
        %5460 = vmatpush2.msra.mxu0 0.0
        %5461 = vmatprep.subr.mxu0 0.0
        %5462 = vmatpush2.msra.mxu0 0.0
        %5463 = vmatprep.subr.mxu0 0.0
        %5464 = vmatpush2.msra.mxu0 0.0
        %5465 = vmatprep.subr.mxu0 0.0
        %5466 = vmatpush2.msra.mxu0 0.0
        %5467 = vmatprep.subr.mxu0 0.0
        %5468 = vmatpush2.msra.mxu0 0.0
        %5469 = vmatprep.subr.mxu0 0.0
        %5470 = vmatpush2.msra.mxu0 0.0
        %5471 = vmatprep.subr.mxu0 0.0
        %5472 = vmatpush2.msra.mxu0 0.0
        %5473 = vmatprep.subr.mxu0 0.0
        %5474 = vmatpush2.msra.mxu0 0.0
        %5475 = vmatprep.subr.mxu0 0.0
        %5476 = vmatpush2.msra.mxu0 0.0
        %5477 = vmatprep.subr.mxu0 0.0
        %5478 = vmatpush2.msra.mxu0 0.0
        %5479 = vmatprep.subr.mxu0 0.0
        %5480 = vmatpush2.msra.mxu0 0.0
        %5481 = vmatprep.subr.mxu0 0.0
        %5482 = vmatpush2.msra.mxu0 0.0
        %5483 = vmatprep.subr.mxu0 0.0
        %5484 = vmatpush2.msra.mxu0 0.0
        %5485 = vmatprep.subr.mxu0 0.0
        %5486 = vmatpush2.msra.mxu0 0.0
        %5487 = vmatprep.subr.mxu0 0.0
        %5488 = vmatpush2.msra.mxu0 0.0
        %5489 = vmatprep.mubr.f32.mxu0 0.0
        %5490 = vmatmul.mubr.f32.gmra.mxu0 %v3080
        %v5491 = vpop.f32.mrf.mxu0
        %v5492 = vadd.f32 %v2565, %v5491
        %v5493 = vpop.f32.mrf.mxu0
        %v5494 = vadd.f32 %v2569, %v5493
        %5495 = vdwg.mxu0
        %5496 = vmatprep.subr.mxu0 0.0
        %5497 = vmatpush1.msra.mxu0 0.0
        %5498 = vmatprep.subr.mxu0 0.0
        %5499 = vmatpush1.msra.mxu0 0.0
        %5500 = vmatprep.subr.mxu0 0.0
        %5501 = vmatpush1.msra.mxu0 0.0
        %5502 = vmatprep.subr.mxu0 0.0
        %5503 = vmatpush1.msra.mxu0 0.0
        %5504 = vmatprep.subr.mxu0 0.0
        %5505 = vmatpush1.msra.mxu0 0.0
        %5506 = vmatprep.subr.mxu0 0.0
        %5507 = vmatpush1.msra.mxu0 0.0
        %5508 = vmatprep.subr.mxu0 0.0
        %5509 = vmatpush1.msra.mxu0 0.0
        %5510 = vmatprep.subr.mxu0 0.0
        %5511 = vmatpush1.msra.mxu0 0.0
        %5512 = vmatprep.subr.mxu0 0.0
        %5513 = vmatpush1.msra.mxu0 0.0
        %5514 = vmatprep.subr.mxu0 0.0
        %5515 = vmatpush1.msra.mxu0 0.0
        %5516 = vmatprep.subr.mxu0 0.0
        %5517 = vmatpush1.msra.mxu0 0.0
        %5518 = vmatprep.subr.mxu0 0.0
        %5519 = vmatpush1.msra.mxu0 0.0
        %5520 = vmatprep.subr.mxu0 %v2171
        %5521 = vmatpush1.msra.mxu0 %v2170
        %5522 = vmatprep.subr.mxu0 %v2015
        %5523 = vmatpush1.msra.mxu0 %v2014
        %5524 = vmatprep.subr.mxu0 %v1859
        %5525 = vmatpush1.msra.mxu0 %v1858
        %5526 = vmatprep.subr.mxu0 %v1703
        %5527 = vmatpush1.msra.mxu0 %v1702
        %5528 = vmatprep.subr.mxu0 0.0
        %5529 = vmatpush2.msra.mxu0 0.0
        %5530 = vmatprep.subr.mxu0 0.0
        %5531 = vmatpush2.msra.mxu0 0.0
        %5532 = vmatprep.subr.mxu0 0.0
        %5533 = vmatpush2.msra.mxu0 0.0
        %5534 = vmatprep.subr.mxu0 0.0
        %5535 = vmatpush2.msra.mxu0 0.0
        %5536 = vmatprep.subr.mxu0 0.0
        %5537 = vmatpush2.msra.mxu0 0.0
        %5538 = vmatprep.subr.mxu0 0.0
        %5539 = vmatpush2.msra.mxu0 0.0
        %5540 = vmatprep.subr.mxu0 0.0
        %5541 = vmatpush2.msra.mxu0 0.0
        %5542 = vmatprep.subr.mxu0 0.0
        %5543 = vmatpush2.msra.mxu0 0.0
        %5544 = vmatprep.subr.mxu0 0.0
        %5545 = vmatpush2.msra.mxu0 0.0
        %5546 = vmatprep.subr.mxu0 0.0
        %5547 = vmatpush2.msra.mxu0 0.0
        %5548 = vmatprep.subr.mxu0 0.0
        %5549 = vmatpush2.msra.mxu0 0.0
        %5550 = vmatprep.subr.mxu0 0.0
        %5551 = vmatpush2.msra.mxu0 0.0
        %5552 = vmatprep.subr.mxu0 0.0
        %5553 = vmatpush2.msra.mxu0 0.0
        %5554 = vmatprep.subr.mxu0 0.0
        %5555 = vmatpush2.msra.mxu0 0.0
        %5556 = vmatprep.subr.mxu0 0.0
        %5557 = vmatpush2.msra.mxu0 0.0
        %5558 = vmatprep.subr.mxu0 0.0
        %5559 = vmatpush2.msra.mxu0 0.0
        %5560 = vmatprep.mubr.f32.mxu0 0.0
        %5561 = vmatmul.mubr.f32.gmra.mxu0 %v3080
        %v5562 = vpop.f32.mrf.mxu0
        %v5563 = vadd.f32 %v2573, %v5562
        %v5564 = vpop.f32.mrf.mxu0
        %v5565 = vadd.f32 %v2577, %v5564
        %5566 = vdwg.mxu0
        %5567 = vmatprep.subr.mxu0 0.0
        %5568 = vmatpush1.msra.mxu0 0.0
        %5569 = vmatprep.subr.mxu0 0.0
        %5570 = vmatpush1.msra.mxu0 0.0
        %5571 = vmatprep.subr.mxu0 0.0
        %5572 = vmatpush1.msra.mxu0 0.0
        %5573 = vmatprep.subr.mxu0 0.0
        %5574 = vmatpush1.msra.mxu0 0.0
        %5575 = vmatprep.subr.mxu0 0.0
        %5576 = vmatpush1.msra.mxu0 0.0
        %5577 = vmatprep.subr.mxu0 0.0
        %5578 = vmatpush1.msra.mxu0 0.0
        %5579 = vmatprep.subr.mxu0 0.0
        %5580 = vmatpush1.msra.mxu0 0.0
        %5581 = vmatprep.subr.mxu0 0.0
        %5582 = vmatpush1.msra.mxu0 0.0
        %5583 = vmatprep.subr.mxu0 0.0
        %5584 = vmatpush1.msra.mxu0 0.0
        %5585 = vmatprep.subr.mxu0 0.0
        %5586 = vmatpush1.msra.mxu0 0.0
        %5587 = vmatprep.subr.mxu0 0.0
        %5588 = vmatpush1.msra.mxu0 0.0
        %5589 = vmatprep.subr.mxu0 0.0
        %5590 = vmatpush1.msra.mxu0 0.0
        %5591 = vmatprep.subr.mxu0 %v2173
        %5592 = vmatpush1.msra.mxu0 %v2172
        %5593 = vmatprep.subr.mxu0 %v2017
        %5594 = vmatpush1.msra.mxu0 %v2016
        %5595 = vmatprep.subr.mxu0 %v1861
        %5596 = vmatpush1.msra.mxu0 %v1860
        %5597 = vmatprep.subr.mxu0 %v1705
        %5598 = vmatpush1.msra.mxu0 %v1704
        %5599 = vmatprep.subr.mxu0 0.0
        %5600 = vmatpush2.msra.mxu0 0.0
        %5601 = vmatprep.subr.mxu0 0.0
        %5602 = vmatpush2.msra.mxu0 0.0
        %5603 = vmatprep.subr.mxu0 0.0
        %5604 = vmatpush2.msra.mxu0 0.0
        %5605 = vmatprep.subr.mxu0 0.0
        %5606 = vmatpush2.msra.mxu0 0.0
        %5607 = vmatprep.subr.mxu0 0.0
        %5608 = vmatpush2.msra.mxu0 0.0
        %5609 = vmatprep.subr.mxu0 0.0
        %5610 = vmatpush2.msra.mxu0 0.0
        %5611 = vmatprep.subr.mxu0 0.0
        %5612 = vmatpush2.msra.mxu0 0.0
        %5613 = vmatprep.subr.mxu0 0.0
        %5614 = vmatpush2.msra.mxu0 0.0
        %5615 = vmatprep.subr.mxu0 0.0
        %5616 = vmatpush2.msra.mxu0 0.0
        %5617 = vmatprep.subr.mxu0 0.0
        %5618 = vmatpush2.msra.mxu0 0.0
        %5619 = vmatprep.subr.mxu0 0.0
        %5620 = vmatpush2.msra.mxu0 0.0
        %5621 = vmatprep.subr.mxu0 0.0
        %5622 = vmatpush2.msra.mxu0 0.0
        %5623 = vmatprep.subr.mxu0 0.0
        %5624 = vmatpush2.msra.mxu0 0.0
        %5625 = vmatprep.subr.mxu0 0.0
        %5626 = vmatpush2.msra.mxu0 0.0
        %5627 = vmatprep.subr.mxu0 0.0
        %5628 = vmatpush2.msra.mxu0 0.0
        %5629 = vmatprep.subr.mxu0 0.0
        %5630 = vmatpush2.msra.mxu0 0.0
        %5631 = vmatprep.mubr.f32.mxu0 0.0
        %5632 = vmatmul.mubr.f32.gmra.mxu0 %v3080
        %v5633 = vpop.f32.mrf.mxu0
        %v5634 = vadd.f32 %v2581, %v5633
        %v5635 = vpop.f32.mrf.mxu0
        %v5636 = vadd.f32 %v2585, %v5635
        %5637 = vdwg.mxu0
        %5638 = vmatprep.subr.mxu0 0.0
        %5639 = vmatpush1.msra.mxu0 0.0
        %5640 = vmatprep.subr.mxu0 0.0
        %5641 = vmatpush1.msra.mxu0 0.0
        %5642 = vmatprep.subr.mxu0 0.0
        %5643 = vmatpush1.msra.mxu0 0.0
        %5644 = vmatprep.subr.mxu0 0.0
        %5645 = vmatpush1.msra.mxu0 0.0
        %5646 = vmatprep.subr.mxu0 0.0
        %5647 = vmatpush1.msra.mxu0 0.0
        %5648 = vmatprep.subr.mxu0 0.0
        %5649 = vmatpush1.msra.mxu0 0.0
        %5650 = vmatprep.subr.mxu0 0.0
        %5651 = vmatpush1.msra.mxu0 0.0
        %5652 = vmatprep.subr.mxu0 0.0
        %5653 = vmatpush1.msra.mxu0 0.0
        %5654 = vmatprep.subr.mxu0 0.0
        %5655 = vmatpush1.msra.mxu0 0.0
        %5656 = vmatprep.subr.mxu0 0.0
        %5657 = vmatpush1.msra.mxu0 0.0
        %5658 = vmatprep.subr.mxu0 0.0
        %5659 = vmatpush1.msra.mxu0 0.0
        %5660 = vmatprep.subr.mxu0 0.0
        %5661 = vmatpush1.msra.mxu0 0.0
        %5662 = vmatprep.subr.mxu0 %v2175
        %5663 = vmatpush1.msra.mxu0 %v2174
        %5664 = vmatprep.subr.mxu0 %v2019
        %5665 = vmatpush1.msra.mxu0 %v2018
        %5666 = vmatprep.subr.mxu0 %v1863
        %5667 = vmatpush1.msra.mxu0 %v1862
        %5668 = vmatprep.subr.mxu0 %v1707
        %5669 = vmatpush1.msra.mxu0 %v1706
        %5670 = vmatprep.subr.mxu0 0.0
        %5671 = vmatpush2.msra.mxu0 0.0
        %5672 = vmatprep.subr.mxu0 0.0
        %5673 = vmatpush2.msra.mxu0 0.0
        %5674 = vmatprep.subr.mxu0 0.0
        %5675 = vmatpush2.msra.mxu0 0.0
        %5676 = vmatprep.subr.mxu0 0.0
        %5677 = vmatpush2.msra.mxu0 0.0
        %5678 = vmatprep.subr.mxu0 0.0
        %5679 = vmatpush2.msra.mxu0 0.0
        %5680 = vmatprep.subr.mxu0 0.0
        %5681 = vmatpush2.msra.mxu0 0.0
        %5682 = vmatprep.subr.mxu0 0.0
        %5683 = vmatpush2.msra.mxu0 0.0
        %5684 = vmatprep.subr.mxu0 0.0
        %5685 = vmatpush2.msra.mxu0 0.0
        %5686 = vmatprep.subr.mxu0 0.0
        %5687 = vmatpush2.msra.mxu0 0.0
        %5688 = vmatprep.subr.mxu0 0.0
        %5689 = vmatpush2.msra.mxu0 0.0
        %5690 = vmatprep.subr.mxu0 0.0
        %5691 = vmatpush2.msra.mxu0 0.0
        %5692 = vmatprep.subr.mxu0 0.0
        %5693 = vmatpush2.msra.mxu0 0.0
        %5694 = vmatprep.subr.mxu0 0.0
        %5695 = vmatpush2.msra.mxu0 0.0
        %5696 = vmatprep.subr.mxu0 0.0
        %5697 = vmatpush2.msra.mxu0 0.0
        %5698 = vmatprep.subr.mxu0 0.0
        %5699 = vmatpush2.msra.mxu0 0.0
        %5700 = vmatprep.subr.mxu0 0.0
        %5701 = vmatpush2.msra.mxu0 0.0
        %5702 = vmatprep.mubr.f32.mxu0 0.0
        %5703 = vmatmul.mubr.f32.gmra.mxu0 %v3080
        %v5704 = vpop.f32.mrf.mxu0
        %v5705 = vadd.f32 %v2589, %v5704
        %v5706 = vpop.f32.mrf.mxu0
        %v5707 = vadd.f32 %v2593, %v5706
        %5708 = vdwg.mxu0
        %5709 = vmatprep.subr.mxu0 0.0
        %5710 = vmatpush1.msra.mxu0 0.0
        %5711 = vmatprep.subr.mxu0 0.0
        %5712 = vmatpush1.msra.mxu0 0.0
        %5713 = vmatprep.subr.mxu0 0.0
        %5714 = vmatpush1.msra.mxu0 0.0
        %5715 = vmatprep.subr.mxu0 0.0
        %5716 = vmatpush1.msra.mxu0 0.0
        %5717 = vmatprep.subr.mxu0 0.0
        %5718 = vmatpush1.msra.mxu0 0.0
        %5719 = vmatprep.subr.mxu0 0.0
        %5720 = vmatpush1.msra.mxu0 0.0
        %5721 = vmatprep.subr.mxu0 0.0
        %5722 = vmatpush1.msra.mxu0 0.0
        %5723 = vmatprep.subr.mxu0 0.0
        %5724 = vmatpush1.msra.mxu0 0.0
        %5725 = vmatprep.subr.mxu0 0.0
        %5726 = vmatpush1.msra.mxu0 0.0
        %5727 = vmatprep.subr.mxu0 0.0
        %5728 = vmatpush1.msra.mxu0 0.0
        %5729 = vmatprep.subr.mxu0 0.0
        %5730 = vmatpush1.msra.mxu0 0.0
        %5731 = vmatprep.subr.mxu0 0.0
        %5732 = vmatpush1.msra.mxu0 0.0
        %5733 = vmatprep.subr.mxu0 %v2177
        %5734 = vmatpush1.msra.mxu0 %v2176
        %5735 = vmatprep.subr.mxu0 %v2021
        %5736 = vmatpush1.msra.mxu0 %v2020
        %5737 = vmatprep.subr.mxu0 %v1865
        %5738 = vmatpush1.msra.mxu0 %v1864
        %5739 = vmatprep.subr.mxu0 %v1709
        %5740 = vmatpush1.msra.mxu0 %v1708
        %5741 = vmatprep.subr.mxu0 0.0
        %5742 = vmatpush2.msra.mxu0 0.0
        %5743 = vmatprep.subr.mxu0 0.0
        %5744 = vmatpush2.msra.mxu0 0.0
        %5745 = vmatprep.subr.mxu0 0.0
        %5746 = vmatpush2.msra.mxu0 0.0
        %5747 = vmatprep.subr.mxu0 0.0
        %5748 = vmatpush2.msra.mxu0 0.0
        %5749 = vmatprep.subr.mxu0 0.0
        %5750 = vmatpush2.msra.mxu0 0.0
        %5751 = vmatprep.subr.mxu0 0.0
        %5752 = vmatpush2.msra.mxu0 0.0
        %5753 = vmatprep.subr.mxu0 0.0
        %5754 = vmatpush2.msra.mxu0 0.0
        %5755 = vmatprep.subr.mxu0 0.0
        %5756 = vmatpush2.msra.mxu0 0.0
        %5757 = vmatprep.subr.mxu0 0.0
        %5758 = vmatpush2.msra.mxu0 0.0
        %5759 = vmatprep.subr.mxu0 0.0
        %5760 = vmatpush2.msra.mxu0 0.0
        %5761 = vmatprep.subr.mxu0 0.0
        %5762 = vmatpush2.msra.mxu0 0.0
        %5763 = vmatprep.subr.mxu0 0.0
        %5764 = vmatpush2.msra.mxu0 0.0
        %5765 = vmatprep.subr.mxu0 0.0
        %5766 = vmatpush2.msra.mxu0 0.0
        %5767 = vmatprep.subr.mxu0 0.0
        %5768 = vmatpush2.msra.mxu0 0.0
        %5769 = vmatprep.subr.mxu0 0.0
        %5770 = vmatpush2.msra.mxu0 0.0
        %5771 = vmatprep.subr.mxu0 0.0
        %5772 = vmatpush2.msra.mxu0 0.0
        %5773 = vmatprep.mubr.f32.mxu0 0.0
        %5774 = vmatmul.mubr.f32.gmra.mxu0 %v3080
        %v5775 = vpop.f32.mrf.mxu0
        %v5776 = vadd.f32 %v2597, %v5775
        %v5777 = vpop.f32.mrf.mxu0
        %v5778 = vadd.f32 %v2601, %v5777
        %5779 = vdwg.mxu0
        %5780 = vmatprep.subr.mxu0 0.0
        %5781 = vmatpush1.msra.mxu0 0.0
        %5782 = vmatprep.subr.mxu0 0.0
        %5783 = vmatpush1.msra.mxu0 0.0
        %5784 = vmatprep.subr.mxu0 0.0
        %5785 = vmatpush1.msra.mxu0 0.0
        %5786 = vmatprep.subr.mxu0 0.0
        %5787 = vmatpush1.msra.mxu0 0.0
        %5788 = vmatprep.subr.mxu0 0.0
        %5789 = vmatpush1.msra.mxu0 0.0
        %5790 = vmatprep.subr.mxu0 0.0
        %5791 = vmatpush1.msra.mxu0 0.0
        %5792 = vmatprep.subr.mxu0 0.0
        %5793 = vmatpush1.msra.mxu0 0.0
        %5794 = vmatprep.subr.mxu0 0.0
        %5795 = vmatpush1.msra.mxu0 0.0
        %5796 = vmatprep.subr.mxu0 0.0
        %5797 = vmatpush1.msra.mxu0 0.0
        %5798 = vmatprep.subr.mxu0 0.0
        %5799 = vmatpush1.msra.mxu0 0.0
        %5800 = vmatprep.subr.mxu0 0.0
        %5801 = vmatpush1.msra.mxu0 0.0
        %5802 = vmatprep.subr.mxu0 0.0
        %5803 = vmatpush1.msra.mxu0 0.0
        %5804 = vmatprep.subr.mxu0 %v2179
        %5805 = vmatpush1.msra.mxu0 %v2178
        %5806 = vmatprep.subr.mxu0 %v2023
        %5807 = vmatpush1.msra.mxu0 %v2022
        %5808 = vmatprep.subr.mxu0 %v1867
        %5809 = vmatpush1.msra.mxu0 %v1866
        %5810 = vmatprep.subr.mxu0 %v1711
        %5811 = vmatpush1.msra.mxu0 %v1710
        %5812 = vmatprep.subr.mxu0 0.0
        %5813 = vmatpush2.msra.mxu0 0.0
        %5814 = vmatprep.subr.mxu0 0.0
        %5815 = vmatpush2.msra.mxu0 0.0
        %5816 = vmatprep.subr.mxu0 0.0
        %5817 = vmatpush2.msra.mxu0 0.0
        %5818 = vmatprep.subr.mxu0 0.0
        %5819 = vmatpush2.msra.mxu0 0.0
        %5820 = vmatprep.subr.mxu0 0.0
        %5821 = vmatpush2.msra.mxu0 0.0
        %5822 = vmatprep.subr.mxu0 0.0
        %5823 = vmatpush2.msra.mxu0 0.0
        %5824 = vmatprep.subr.mxu0 0.0
        %5825 = vmatpush2.msra.mxu0 0.0
        %5826 = vmatprep.subr.mxu0 0.0
        %5827 = vmatpush2.msra.mxu0 0.0
        %5828 = vmatprep.subr.mxu0 0.0
        %5829 = vmatpush2.msra.mxu0 0.0
        %5830 = vmatprep.subr.mxu0 0.0
        %5831 = vmatpush2.msra.mxu0 0.0
        %5832 = vmatprep.subr.mxu0 0.0
        %5833 = vmatpush2.msra.mxu0 0.0
        %5834 = vmatprep.subr.mxu0 0.0
        %5835 = vmatpush2.msra.mxu0 0.0
        %5836 = vmatprep.subr.mxu0 0.0
        %5837 = vmatpush2.msra.mxu0 0.0
        %5838 = vmatprep.subr.mxu0 0.0
        %5839 = vmatpush2.msra.mxu0 0.0
        %5840 = vmatprep.subr.mxu0 0.0
        %5841 = vmatpush2.msra.mxu0 0.0
        %5842 = vmatprep.subr.mxu0 0.0
        %5843 = vmatpush2.msra.mxu0 0.0
        %5844 = vmatprep.mubr.f32.mxu0 0.0
        %5845 = vmatmul.mubr.f32.gmra.mxu0 %v3080
        %v5846 = vpop.f32.mrf.mxu0
        %v5847 = vadd.f32 %v2605, %v5846
        %v5848 = vpop.f32.mrf.mxu0
        %v5849 = vadd.f32 %v2609, %v5848
        %5850 = vdwg.mxu0
        %5851 = vmatprep.subr.mxu0 0.0
        %5852 = vmatpush1.msra.mxu0 0.0
        %5853 = vmatprep.subr.mxu0 0.0
        %5854 = vmatpush1.msra.mxu0 0.0
        %5855 = vmatprep.subr.mxu0 0.0
        %5856 = vmatpush1.msra.mxu0 0.0
        %5857 = vmatprep.subr.mxu0 0.0
        %5858 = vmatpush1.msra.mxu0 0.0
        %5859 = vmatprep.subr.mxu0 0.0
        %5860 = vmatpush1.msra.mxu0 0.0
        %5861 = vmatprep.subr.mxu0 0.0
        %5862 = vmatpush1.msra.mxu0 0.0
        %5863 = vmatprep.subr.mxu0 0.0
        %5864 = vmatpush1.msra.mxu0 0.0
        %5865 = vmatprep.subr.mxu0 0.0
        %5866 = vmatpush1.msra.mxu0 0.0
        %5867 = vmatprep.subr.mxu0 0.0
        %5868 = vmatpush1.msra.mxu0 0.0
        %5869 = vmatprep.subr.mxu0 0.0
        %5870 = vmatpush1.msra.mxu0 0.0
        %5871 = vmatprep.subr.mxu0 0.0
        %5872 = vmatpush1.msra.mxu0 0.0
        %5873 = vmatprep.subr.mxu0 0.0
        %5874 = vmatpush1.msra.mxu0 0.0
        %5875 = vmatprep.subr.mxu0 %v2181
        %5876 = vmatpush1.msra.mxu0 %v2180
        %5877 = vmatprep.subr.mxu0 %v2025
        %5878 = vmatpush1.msra.mxu0 %v2024
        %5879 = vmatprep.subr.mxu0 %v1869
        %5880 = vmatpush1.msra.mxu0 %v1868
        %5881 = vmatprep.subr.mxu0 %v1713
        %5882 = vmatpush1.msra.mxu0 %v1712
        %5883 = vmatprep.subr.mxu0 0.0
        %5884 = vmatpush2.msra.mxu0 0.0
        %5885 = vmatprep.subr.mxu0 0.0
        %5886 = vmatpush2.msra.mxu0 0.0
        %5887 = vmatprep.subr.mxu0 0.0
        %5888 = vmatpush2.msra.mxu0 0.0
        %5889 = vmatprep.subr.mxu0 0.0
        %5890 = vmatpush2.msra.mxu0 0.0
        %5891 = vmatprep.subr.mxu0 0.0
        %5892 = vmatpush2.msra.mxu0 0.0
        %5893 = vmatprep.subr.mxu0 0.0
        %5894 = vmatpush2.msra.mxu0 0.0
        %5895 = vmatprep.subr.mxu0 0.0
        %5896 = vmatpush2.msra.mxu0 0.0
        %5897 = vmatprep.subr.mxu0 0.0
        %5898 = vmatpush2.msra.mxu0 0.0
        %5899 = vmatprep.subr.mxu0 0.0
        %5900 = vmatpush2.msra.mxu0 0.0
        %5901 = vmatprep.subr.mxu0 0.0
        %5902 = vmatpush2.msra.mxu0 0.0
        %5903 = vmatprep.subr.mxu0 0.0
        %5904 = vmatpush2.msra.mxu0 0.0
        %5905 = vmatprep.subr.mxu0 0.0
        %5906 = vmatpush2.msra.mxu0 0.0
        %5907 = vmatprep.subr.mxu0 0.0
        %5908 = vmatpush2.msra.mxu0 0.0
        %5909 = vmatprep.subr.mxu0 0.0
        %5910 = vmatpush2.msra.mxu0 0.0
        %5911 = vmatprep.subr.mxu0 0.0
        %5912 = vmatpush2.msra.mxu0 0.0
        %5913 = vmatprep.subr.mxu0 0.0
        %5914 = vmatpush2.msra.mxu0 0.0
        %5915 = vmatprep.mubr.f32.mxu0 0.0
        %5916 = vmatmul.mubr.f32.gmra.mxu0 %v3080
        %v5917 = vpop.f32.mrf.mxu0
        %v5918 = vadd.f32 %v2613, %v5917
        %v5919 = vpop.f32.mrf.mxu0
        %v5920 = vadd.f32 %v2617, %v5919
        %5921 = vdwg.mxu0
        %5922 = vmatprep.subr.mxu0 0.0
        %5923 = vmatpush1.msra.mxu0 0.0
        %5924 = vmatprep.subr.mxu0 0.0
        %5925 = vmatpush1.msra.mxu0 0.0
        %5926 = vmatprep.subr.mxu0 0.0
        %5927 = vmatpush1.msra.mxu0 0.0
        %5928 = vmatprep.subr.mxu0 0.0
        %5929 = vmatpush1.msra.mxu0 0.0
        %5930 = vmatprep.subr.mxu0 0.0
        %5931 = vmatpush1.msra.mxu0 0.0
        %5932 = vmatprep.subr.mxu0 0.0
        %5933 = vmatpush1.msra.mxu0 0.0
        %5934 = vmatprep.subr.mxu0 0.0
        %5935 = vmatpush1.msra.mxu0 0.0
        %5936 = vmatprep.subr.mxu0 0.0
        %5937 = vmatpush1.msra.mxu0 0.0
        %5938 = vmatprep.subr.mxu0 0.0
        %5939 = vmatpush1.msra.mxu0 0.0
        %5940 = vmatprep.subr.mxu0 0.0
        %5941 = vmatpush1.msra.mxu0 0.0
        %5942 = vmatprep.subr.mxu0 0.0
        %5943 = vmatpush1.msra.mxu0 0.0
        %5944 = vmatprep.subr.mxu0 0.0
        %5945 = vmatpush1.msra.mxu0 0.0
        %5946 = vmatprep.subr.mxu0 %v2183
        %5947 = vmatpush1.msra.mxu0 %v2182
        %5948 = vmatprep.subr.mxu0 %v2027
        %5949 = vmatpush1.msra.mxu0 %v2026
        %5950 = vmatprep.subr.mxu0 %v1871
        %5951 = vmatpush1.msra.mxu0 %v1870
        %5952 = vmatprep.subr.mxu0 %v1715
        %5953 = vmatpush1.msra.mxu0 %v1714
        %5954 = vmatprep.subr.mxu0 0.0
        %5955 = vmatpush2.msra.mxu0 0.0
        %5956 = vmatprep.subr.mxu0 0.0
        %5957 = vmatpush2.msra.mxu0 0.0
        %5958 = vmatprep.subr.mxu0 0.0
        %5959 = vmatpush2.msra.mxu0 0.0
        %5960 = vmatprep.subr.mxu0 0.0
        %5961 = vmatpush2.msra.mxu0 0.0
        %5962 = vmatprep.subr.mxu0 0.0
        %5963 = vmatpush2.msra.mxu0 0.0
        %5964 = vmatprep.subr.mxu0 0.0
        %5965 = vmatpush2.msra.mxu0 0.0
        %5966 = vmatprep.subr.mxu0 0.0
        %5967 = vmatpush2.msra.mxu0 0.0
        %5968 = vmatprep.subr.mxu0 0.0
        %5969 = vmatpush2.msra.mxu0 0.0
        %5970 = vmatprep.subr.mxu0 0.0
        %5971 = vmatpush2.msra.mxu0 0.0
        %5972 = vmatprep.subr.mxu0 0.0
        %5973 = vmatpush2.msra.mxu0 0.0
        %5974 = vmatprep.subr.mxu0 0.0
        %5975 = vmatpush2.msra.mxu0 0.0
        %5976 = vmatprep.subr.mxu0 0.0
        %5977 = vmatpush2.msra.mxu0 0.0
        %5978 = vmatprep.subr.mxu0 0.0
        %5979 = vmatpush2.msra.mxu0 0.0
        %5980 = vmatprep.subr.mxu0 0.0
        %5981 = vmatpush2.msra.mxu0 0.0
        %5982 = vmatprep.subr.mxu0 0.0
        %5983 = vmatpush2.msra.mxu0 0.0
        %5984 = vmatprep.subr.mxu0 0.0
        %5985 = vmatpush2.msra.mxu0 0.0
        %5986 = vmatprep.mubr.f32.mxu0 0.0
        %5987 = vmatmul.mubr.f32.gmra.mxu0 %v3080
        %v5988 = vpop.f32.mrf.mxu0
        %v5989 = vadd.f32 %v2621, %v5988
        %v5990 = vpop.f32.mrf.mxu0
        %v5991 = vadd.f32 %v2625, %v5990
        %5992 = vdwg.mxu0
        %5993 = vmatprep.subr.mxu0 0.0
        %5994 = vmatpush1.msra.mxu0 0.0
        %5995 = vmatprep.subr.mxu0 0.0
        %5996 = vmatpush1.msra.mxu0 0.0
        %5997 = vmatprep.subr.mxu0 0.0
        %5998 = vmatpush1.msra.mxu0 0.0
        %5999 = vmatprep.subr.mxu0 0.0
        %6000 = vmatpush1.msra.mxu0 0.0
        %6001 = vmatprep.subr.mxu0 0.0
        %6002 = vmatpush1.msra.mxu0 0.0
        %6003 = vmatprep.subr.mxu0 0.0
        %6004 = vmatpush1.msra.mxu0 0.0
        %6005 = vmatprep.subr.mxu0 0.0
        %6006 = vmatpush1.msra.mxu0 0.0
        %6007 = vmatprep.subr.mxu0 0.0
        %6008 = vmatpush1.msra.mxu0 0.0
        %6009 = vmatprep.subr.mxu0 0.0
        %6010 = vmatpush1.msra.mxu0 0.0
        %6011 = vmatprep.subr.mxu0 0.0
        %6012 = vmatpush1.msra.mxu0 0.0
        %6013 = vmatprep.subr.mxu0 0.0
        %6014 = vmatpush1.msra.mxu0 0.0
        %6015 = vmatprep.subr.mxu0 0.0
        %6016 = vmatpush1.msra.mxu0 0.0
        %6017 = vmatprep.subr.mxu0 %v2185
        %6018 = vmatpush1.msra.mxu0 %v2184
        %6019 = vmatprep.subr.mxu0 %v2029
        %6020 = vmatpush1.msra.mxu0 %v2028
        %6021 = vmatprep.subr.mxu0 %v1873
        %6022 = vmatpush1.msra.mxu0 %v1872
        %6023 = vmatprep.subr.mxu0 %v1717
        %6024 = vmatpush1.msra.mxu0 %v1716
        %6025 = vmatprep.subr.mxu0 0.0
        %6026 = vmatpush2.msra.mxu0 0.0
        %6027 = vmatprep.subr.mxu0 0.0
        %6028 = vmatpush2.msra.mxu0 0.0
        %6029 = vmatprep.subr.mxu0 0.0
        %6030 = vmatpush2.msra.mxu0 0.0
        %6031 = vmatprep.subr.mxu0 0.0
        %6032 = vmatpush2.msra.mxu0 0.0
        %6033 = vmatprep.subr.mxu0 0.0
        %6034 = vmatpush2.msra.mxu0 0.0
        %6035 = vmatprep.subr.mxu0 0.0
        %6036 = vmatpush2.msra.mxu0 0.0
        %6037 = vmatprep.subr.mxu0 0.0
        %6038 = vmatpush2.msra.mxu0 0.0
        %6039 = vmatprep.subr.mxu0 0.0
        %6040 = vmatpush2.msra.mxu0 0.0
        %6041 = vmatprep.subr.mxu0 0.0
        %6042 = vmatpush2.msra.mxu0 0.0
        %6043 = vmatprep.subr.mxu0 0.0
        %6044 = vmatpush2.msra.mxu0 0.0
        %6045 = vmatprep.subr.mxu0 0.0
        %6046 = vmatpush2.msra.mxu0 0.0
        %6047 = vmatprep.subr.mxu0 0.0
        %6048 = vmatpush2.msra.mxu0 0.0
        %6049 = vmatprep.subr.mxu0 0.0
        %6050 = vmatpush2.msra.mxu0 0.0
        %6051 = vmatprep.subr.mxu0 0.0
        %6052 = vmatpush2.msra.mxu0 0.0
        %6053 = vmatprep.subr.mxu0 0.0
        %6054 = vmatpush2.msra.mxu0 0.0
        %6055 = vmatprep.subr.mxu0 0.0
        %6056 = vmatpush2.msra.mxu0 0.0
        %6057 = vmatprep.mubr.f32.mxu0 0.0
        %6058 = vmatmul.mubr.f32.gmra.mxu0 %v3080
        %v6059 = vpop.f32.mrf.mxu0
        %v6060 = vadd.f32 %v2629, %v6059
        %v6061 = vpop.f32.mrf.mxu0
        %v6062 = vadd.f32 %v2633, %v6061
        %6063 = vdwg.mxu0
        %6064 = vmatprep.subr.mxu0 0.0
        %6065 = vmatpush1.msra.mxu0 0.0
        %6066 = vmatprep.subr.mxu0 0.0
        %6067 = vmatpush1.msra.mxu0 0.0
        %6068 = vmatprep.subr.mxu0 0.0
        %6069 = vmatpush1.msra.mxu0 0.0
        %6070 = vmatprep.subr.mxu0 0.0
        %6071 = vmatpush1.msra.mxu0 0.0
        %6072 = vmatprep.subr.mxu0 0.0
        %6073 = vmatpush1.msra.mxu0 0.0
        %6074 = vmatprep.subr.mxu0 0.0
        %6075 = vmatpush1.msra.mxu0 0.0
        %6076 = vmatprep.subr.mxu0 0.0
        %6077 = vmatpush1.msra.mxu0 0.0
        %6078 = vmatprep.subr.mxu0 0.0
        %6079 = vmatpush1.msra.mxu0 0.0
        %6080 = vmatprep.subr.mxu0 0.0
        %6081 = vmatpush1.msra.mxu0 0.0
        %6082 = vmatprep.subr.mxu0 0.0
        %6083 = vmatpush1.msra.mxu0 0.0
        %6084 = vmatprep.subr.mxu0 0.0
        %6085 = vmatpush1.msra.mxu0 0.0
        %6086 = vmatprep.subr.mxu0 0.0
        %6087 = vmatpush1.msra.mxu0 0.0
        %6088 = vmatprep.subr.mxu0 %v2187
        %6089 = vmatpush1.msra.mxu0 %v2186
        %6090 = vmatprep.subr.mxu0 %v2031
        %6091 = vmatpush1.msra.mxu0 %v2030
        %6092 = vmatprep.subr.mxu0 %v1875
        %6093 = vmatpush1.msra.mxu0 %v1874
        %6094 = vmatprep.subr.mxu0 %v1719
        %6095 = vmatpush1.msra.mxu0 %v1718
        %6096 = vmatprep.subr.mxu0 0.0
        %6097 = vmatpush2.msra.mxu0 0.0
        %6098 = vmatprep.subr.mxu0 0.0
        %6099 = vmatpush2.msra.mxu0 0.0
        %6100 = vmatprep.subr.mxu0 0.0
        %6101 = vmatpush2.msra.mxu0 0.0
        %6102 = vmatprep.subr.mxu0 0.0
        %6103 = vmatpush2.msra.mxu0 0.0
        %6104 = vmatprep.subr.mxu0 0.0
        %6105 = vmatpush2.msra.mxu0 0.0
        %6106 = vmatprep.subr.mxu0 0.0
        %6107 = vmatpush2.msra.mxu0 0.0
        %6108 = vmatprep.subr.mxu0 0.0
        %6109 = vmatpush2.msra.mxu0 0.0
        %6110 = vmatprep.subr.mxu0 0.0
        %6111 = vmatpush2.msra.mxu0 0.0
        %6112 = vmatprep.subr.mxu0 0.0
        %6113 = vmatpush2.msra.mxu0 0.0
        %6114 = vmatprep.subr.mxu0 0.0
        %6115 = vmatpush2.msra.mxu0 0.0
        %6116 = vmatprep.subr.mxu0 0.0
        %6117 = vmatpush2.msra.mxu0 0.0
        %6118 = vmatprep.subr.mxu0 0.0
        %6119 = vmatpush2.msra.mxu0 0.0
        %6120 = vmatprep.subr.mxu0 0.0
        %6121 = vmatpush2.msra.mxu0 0.0
        %6122 = vmatprep.subr.mxu0 0.0
        %6123 = vmatpush2.msra.mxu0 0.0
        %6124 = vmatprep.subr.mxu0 0.0
        %6125 = vmatpush2.msra.mxu0 0.0
        %6126 = vmatprep.subr.mxu0 0.0
        %6127 = vmatpush2.msra.mxu0 0.0
        %6128 = vmatprep.mubr.f32.mxu0 0.0
        %6129 = vmatmul.mubr.f32.gmra.mxu0 %v3080
        %v6130 = vpop.f32.mrf.mxu0
        %v6131 = vadd.f32 %v2637, %v6130
        %v6132 = vpop.f32.mrf.mxu0
        %v6133 = vadd.f32 %v2641, %v6132
        %6134 = vdwg.mxu0
        %6135 = vmatprep.subr.mxu0 0.0
        %6136 = vmatpush1.msra.mxu0 0.0
        %6137 = vmatprep.subr.mxu0 0.0
        %6138 = vmatpush1.msra.mxu0 0.0
        %6139 = vmatprep.subr.mxu0 0.0
        %6140 = vmatpush1.msra.mxu0 0.0
        %6141 = vmatprep.subr.mxu0 0.0
        %6142 = vmatpush1.msra.mxu0 0.0
        %6143 = vmatprep.subr.mxu0 0.0
        %6144 = vmatpush1.msra.mxu0 0.0
        %6145 = vmatprep.subr.mxu0 0.0
        %6146 = vmatpush1.msra.mxu0 0.0
        %6147 = vmatprep.subr.mxu0 0.0
        %6148 = vmatpush1.msra.mxu0 0.0
        %6149 = vmatprep.subr.mxu0 0.0
        %6150 = vmatpush1.msra.mxu0 0.0
        %6151 = vmatprep.subr.mxu0 0.0
        %6152 = vmatpush1.msra.mxu0 0.0
        %6153 = vmatprep.subr.mxu0 0.0
        %6154 = vmatpush1.msra.mxu0 0.0
        %6155 = vmatprep.subr.mxu0 0.0
        %6156 = vmatpush1.msra.mxu0 0.0
        %6157 = vmatprep.subr.mxu0 0.0
        %6158 = vmatpush1.msra.mxu0 0.0
        %6159 = vmatprep.subr.mxu0 %v2189
        %6160 = vmatpush1.msra.mxu0 %v2188
        %6161 = vmatprep.subr.mxu0 %v2033
        %6162 = vmatpush1.msra.mxu0 %v2032
        %6163 = vmatprep.subr.mxu0 %v1877
        %6164 = vmatpush1.msra.mxu0 %v1876
        %6165 = vmatprep.subr.mxu0 %v1721
        %6166 = vmatpush1.msra.mxu0 %v1720
        %6167 = vmatprep.subr.mxu0 0.0
        %6168 = vmatpush2.msra.mxu0 0.0
        %6169 = vmatprep.subr.mxu0 0.0
        %6170 = vmatpush2.msra.mxu0 0.0
        %6171 = vmatprep.subr.mxu0 0.0
        %6172 = vmatpush2.msra.mxu0 0.0
        %6173 = vmatprep.subr.mxu0 0.0
        %6174 = vmatpush2.msra.mxu0 0.0
        %6175 = vmatprep.subr.mxu0 0.0
        %6176 = vmatpush2.msra.mxu0 0.0
        %6177 = vmatprep.subr.mxu0 0.0
        %6178 = vmatpush2.msra.mxu0 0.0
        %6179 = vmatprep.subr.mxu0 0.0
        %6180 = vmatpush2.msra.mxu0 0.0
        %6181 = vmatprep.subr.mxu0 0.0
        %6182 = vmatpush2.msra.mxu0 0.0
        %6183 = vmatprep.subr.mxu0 0.0
        %6184 = vmatpush2.msra.mxu0 0.0
        %6185 = vmatprep.subr.mxu0 0.0
        %6186 = vmatpush2.msra.mxu0 0.0
        %6187 = vmatprep.subr.mxu0 0.0
        %6188 = vmatpush2.msra.mxu0 0.0
        %6189 = vmatprep.subr.mxu0 0.0
        %6190 = vmatpush2.msra.mxu0 0.0
        %6191 = vmatprep.subr.mxu0 0.0
        %6192 = vmatpush2.msra.mxu0 0.0
        %6193 = vmatprep.subr.mxu0 0.0
        %6194 = vmatpush2.msra.mxu0 0.0
        %6195 = vmatprep.subr.mxu0 0.0
        %6196 = vmatpush2.msra.mxu0 0.0
        %6197 = vmatprep.subr.mxu0 0.0
        %6198 = vmatpush2.msra.mxu0 0.0
        %6199 = vmatprep.mubr.f32.mxu0 0.0
        %6200 = vmatmul.mubr.f32.gmra.mxu0 %v3080
        %v6201 = vpop.f32.mrf.mxu0
        %v6202 = vadd.f32 %v2645, %v6201
        %v6203 = vpop.f32.mrf.mxu0
        %v6204 = vadd.f32 %v2649, %v6203
        %6205 = vdwg.mxu0
        %6206 = vmatprep.subr.mxu0 0.0
        %6207 = vmatpush1.msra.mxu0 0.0
        %6208 = vmatprep.subr.mxu0 0.0
        %6209 = vmatpush1.msra.mxu0 0.0
        %6210 = vmatprep.subr.mxu0 0.0
        %6211 = vmatpush1.msra.mxu0 0.0
        %6212 = vmatprep.subr.mxu0 0.0
        %6213 = vmatpush1.msra.mxu0 0.0
        %6214 = vmatprep.subr.mxu0 0.0
        %6215 = vmatpush1.msra.mxu0 0.0
        %6216 = vmatprep.subr.mxu0 0.0
        %6217 = vmatpush1.msra.mxu0 0.0
        %6218 = vmatprep.subr.mxu0 0.0
        %6219 = vmatpush1.msra.mxu0 0.0
        %6220 = vmatprep.subr.mxu0 0.0
        %6221 = vmatpush1.msra.mxu0 0.0
        %6222 = vmatprep.subr.mxu0 0.0
        %6223 = vmatpush1.msra.mxu0 0.0
        %6224 = vmatprep.subr.mxu0 0.0
        %6225 = vmatpush1.msra.mxu0 0.0
        %6226 = vmatprep.subr.mxu0 0.0
        %6227 = vmatpush1.msra.mxu0 0.0
        %6228 = vmatprep.subr.mxu0 0.0
        %6229 = vmatpush1.msra.mxu0 0.0
        %6230 = vmatprep.subr.mxu0 %v2191
        %6231 = vmatpush1.msra.mxu0 %v2190
        %6232 = vmatprep.subr.mxu0 %v2035
        %6233 = vmatpush1.msra.mxu0 %v2034
        %6234 = vmatprep.subr.mxu0 %v1879
        %6235 = vmatpush1.msra.mxu0 %v1878
        %6236 = vmatprep.subr.mxu0 %v1723
        %6237 = vmatpush1.msra.mxu0 %v1722
        %6238 = vmatprep.subr.mxu0 0.0
        %6239 = vmatpush2.msra.mxu0 0.0
        %6240 = vmatprep.subr.mxu0 0.0
        %6241 = vmatpush2.msra.mxu0 0.0
        %6242 = vmatprep.subr.mxu0 0.0
        %6243 = vmatpush2.msra.mxu0 0.0
        %6244 = vmatprep.subr.mxu0 0.0
        %6245 = vmatpush2.msra.mxu0 0.0
        %6246 = vmatprep.subr.mxu0 0.0
        %6247 = vmatpush2.msra.mxu0 0.0
        %6248 = vmatprep.subr.mxu0 0.0
        %6249 = vmatpush2.msra.mxu0 0.0
        %6250 = vmatprep.subr.mxu0 0.0
        %6251 = vmatpush2.msra.mxu0 0.0
        %6252 = vmatprep.subr.mxu0 0.0
        %6253 = vmatpush2.msra.mxu0 0.0
        %6254 = vmatprep.subr.mxu0 0.0
        %6255 = vmatpush2.msra.mxu0 0.0
        %6256 = vmatprep.subr.mxu0 0.0
        %6257 = vmatpush2.msra.mxu0 0.0
        %6258 = vmatprep.subr.mxu0 0.0
        %6259 = vmatpush2.msra.mxu0 0.0
        %6260 = vmatprep.subr.mxu0 0.0
        %6261 = vmatpush2.msra.mxu0 0.0
        %6262 = vmatprep.subr.mxu0 0.0
        %6263 = vmatpush2.msra.mxu0 0.0
        %6264 = vmatprep.subr.mxu0 0.0
        %6265 = vmatpush2.msra.mxu0 0.0
        %6266 = vmatprep.subr.mxu0 0.0
        %6267 = vmatpush2.msra.mxu0 0.0
        %6268 = vmatprep.subr.mxu0 0.0
        %6269 = vmatpush2.msra.mxu0 0.0
        %6270 = vmatprep.mubr.f32.mxu0 0.0
        %6271 = vmatmul.mubr.f32.gmra.mxu0 %v3080
        %v6272 = vpop.f32.mrf.mxu0
        %v6273 = vadd.f32 %v2653, %v6272
        %v6274 = vpop.f32.mrf.mxu0
        %v6275 = vadd.f32 %v2657, %v6274
        %6276 = vdwg.mxu0
        %6277 = vmatprep.subr.mxu0 0.0
        %6278 = vmatpush1.msra.mxu0 0.0
        %6279 = vmatprep.subr.mxu0 0.0
        %6280 = vmatpush1.msra.mxu0 0.0
        %6281 = vmatprep.subr.mxu0 0.0
        %6282 = vmatpush1.msra.mxu0 0.0
        %6283 = vmatprep.subr.mxu0 0.0
        %6284 = vmatpush1.msra.mxu0 0.0
        %6285 = vmatprep.subr.mxu0 0.0
        %6286 = vmatpush1.msra.mxu0 0.0
        %6287 = vmatprep.subr.mxu0 0.0
        %6288 = vmatpush1.msra.mxu0 0.0
        %6289 = vmatprep.subr.mxu0 0.0
        %6290 = vmatpush1.msra.mxu0 0.0
        %6291 = vmatprep.subr.mxu0 0.0
        %6292 = vmatpush1.msra.mxu0 0.0
        %6293 = vmatprep.subr.mxu0 0.0
        %6294 = vmatpush1.msra.mxu0 0.0
        %6295 = vmatprep.subr.mxu0 0.0
        %6296 = vmatpush1.msra.mxu0 0.0
        %6297 = vmatprep.subr.mxu0 0.0
        %6298 = vmatpush1.msra.mxu0 0.0
        %6299 = vmatprep.subr.mxu0 0.0
        %6300 = vmatpush1.msra.mxu0 0.0
        %6301 = vmatprep.subr.mxu0 %v2193
        %6302 = vmatpush1.msra.mxu0 %v2192
        %6303 = vmatprep.subr.mxu0 %v2037
        %6304 = vmatpush1.msra.mxu0 %v2036
        %6305 = vmatprep.subr.mxu0 %v1881
        %6306 = vmatpush1.msra.mxu0 %v1880
        %6307 = vmatprep.subr.mxu0 %v1725
        %6308 = vmatpush1.msra.mxu0 %v1724
        %6309 = vmatprep.subr.mxu0 0.0
        %6310 = vmatpush2.msra.mxu0 0.0
        %6311 = vmatprep.subr.mxu0 0.0
        %6312 = vmatpush2.msra.mxu0 0.0
        %6313 = vmatprep.subr.mxu0 0.0
        %6314 = vmatpush2.msra.mxu0 0.0
        %6315 = vmatprep.subr.mxu0 0.0
        %6316 = vmatpush2.msra.mxu0 0.0
        %6317 = vmatprep.subr.mxu0 0.0
        %6318 = vmatpush2.msra.mxu0 0.0
        %6319 = vmatprep.subr.mxu0 0.0
        %6320 = vmatpush2.msra.mxu0 0.0
        %6321 = vmatprep.subr.mxu0 0.0
        %6322 = vmatpush2.msra.mxu0 0.0
        %6323 = vmatprep.subr.mxu0 0.0
        %6324 = vmatpush2.msra.mxu0 0.0
        %6325 = vmatprep.subr.mxu0 0.0
        %6326 = vmatpush2.msra.mxu0 0.0
        %6327 = vmatprep.subr.mxu0 0.0
        %6328 = vmatpush2.msra.mxu0 0.0
        %6329 = vmatprep.subr.mxu0 0.0
        %6330 = vmatpush2.msra.mxu0 0.0
        %6331 = vmatprep.subr.mxu0 0.0
        %6332 = vmatpush2.msra.mxu0 0.0
        %6333 = vmatprep.subr.mxu0 0.0
        %6334 = vmatpush2.msra.mxu0 0.0
        %6335 = vmatprep.subr.mxu0 0.0
        %6336 = vmatpush2.msra.mxu0 0.0
        %6337 = vmatprep.subr.mxu0 0.0
        %6338 = vmatpush2.msra.mxu0 0.0
        %6339 = vmatprep.subr.mxu0 0.0
        %6340 = vmatpush2.msra.mxu0 0.0
        %6341 = vmatprep.mubr.f32.mxu0 0.0
        %6342 = vmatmul.mubr.f32.gmra.mxu0 %v3080
        %v6343 = vpop.f32.mrf.mxu0
        %v6344 = vadd.f32 %v2661, %v6343
        %v6345 = vpop.f32.mrf.mxu0
        %v6346 = vadd.f32 %v2665, %v6345
        %6347 = vdwg.mxu0
        %6348 = vmatprep.subr.mxu0 0.0
        %6349 = vmatpush1.msra.mxu0 0.0
        %6350 = vmatprep.subr.mxu0 0.0
        %6351 = vmatpush1.msra.mxu0 0.0
        %6352 = vmatprep.subr.mxu0 0.0
        %6353 = vmatpush1.msra.mxu0 0.0
        %6354 = vmatprep.subr.mxu0 0.0
        %6355 = vmatpush1.msra.mxu0 0.0
        %6356 = vmatprep.subr.mxu0 0.0
        %6357 = vmatpush1.msra.mxu0 0.0
        %6358 = vmatprep.subr.mxu0 0.0
        %6359 = vmatpush1.msra.mxu0 0.0
        %6360 = vmatprep.subr.mxu0 0.0
        %6361 = vmatpush1.msra.mxu0 0.0
        %6362 = vmatprep.subr.mxu0 0.0
        %6363 = vmatpush1.msra.mxu0 0.0
        %6364 = vmatprep.subr.mxu0 0.0
        %6365 = vmatpush1.msra.mxu0 0.0
        %6366 = vmatprep.subr.mxu0 0.0
        %6367 = vmatpush1.msra.mxu0 0.0
        %6368 = vmatprep.subr.mxu0 0.0
        %6369 = vmatpush1.msra.mxu0 0.0
        %6370 = vmatprep.subr.mxu0 0.0
        %6371 = vmatpush1.msra.mxu0 0.0
        %6372 = vmatprep.subr.mxu0 %v2195
        %6373 = vmatpush1.msra.mxu0 %v2194
        %6374 = vmatprep.subr.mxu0 %v2039
        %6375 = vmatpush1.msra.mxu0 %v2038
        %6376 = vmatprep.subr.mxu0 %v1883
        %6377 = vmatpush1.msra.mxu0 %v1882
        %6378 = vmatprep.subr.mxu0 %v1727
        %6379 = vmatpush1.msra.mxu0 %v1726
        %6380 = vmatprep.subr.mxu0 0.0
        %6381 = vmatpush2.msra.mxu0 0.0
        %6382 = vmatprep.subr.mxu0 0.0
        %6383 = vmatpush2.msra.mxu0 0.0
        %6384 = vmatprep.subr.mxu0 0.0
        %6385 = vmatpush2.msra.mxu0 0.0
        %6386 = vmatprep.subr.mxu0 0.0
        %6387 = vmatpush2.msra.mxu0 0.0
        %6388 = vmatprep.subr.mxu0 0.0
        %6389 = vmatpush2.msra.mxu0 0.0
        %6390 = vmatprep.subr.mxu0 0.0
        %6391 = vmatpush2.msra.mxu0 0.0
        %6392 = vmatprep.subr.mxu0 0.0
        %6393 = vmatpush2.msra.mxu0 0.0
        %6394 = vmatprep.subr.mxu0 0.0
        %6395 = vmatpush2.msra.mxu0 0.0
        %6396 = vmatprep.subr.mxu0 0.0
        %6397 = vmatpush2.msra.mxu0 0.0
        %6398 = vmatprep.subr.mxu0 0.0
        %6399 = vmatpush2.msra.mxu0 0.0
        %6400 = vmatprep.subr.mxu0 0.0
        %6401 = vmatpush2.msra.mxu0 0.0
        %6402 = vmatprep.subr.mxu0 0.0
        %6403 = vmatpush2.msra.mxu0 0.0
        %6404 = vmatprep.subr.mxu0 0.0
        %6405 = vmatpush2.msra.mxu0 0.0
        %6406 = vmatprep.subr.mxu0 0.0
        %6407 = vmatpush2.msra.mxu0 0.0
        %6408 = vmatprep.subr.mxu0 0.0
        %6409 = vmatpush2.msra.mxu0 0.0
        %6410 = vmatprep.subr.mxu0 0.0
        %6411 = vmatpush2.msra.mxu0 0.0
        %6412 = vmatprep.mubr.f32.mxu0 0.0
        %6413 = vmatmul.mubr.f32.gmra.mxu0 %v3080
        %v6414 = vpop.f32.mrf.mxu0
        %v6415 = vadd.f32 %v2669, %v6414
        %v6416 = vpop.f32.mrf.mxu0
        %v6417 = vadd.f32 %v2673, %v6416
        %6418 = vdwg.mxu0
        %6419 = vmatprep.subr.mxu0 0.0
        %6420 = vmatpush1.msra.mxu0 0.0
        %6421 = vmatprep.subr.mxu0 0.0
        %6422 = vmatpush1.msra.mxu0 0.0
        %6423 = vmatprep.subr.mxu0 0.0
        %6424 = vmatpush1.msra.mxu0 0.0
        %6425 = vmatprep.subr.mxu0 0.0
        %6426 = vmatpush1.msra.mxu0 0.0
        %6427 = vmatprep.subr.mxu0 0.0
        %6428 = vmatpush1.msra.mxu0 0.0
        %6429 = vmatprep.subr.mxu0 0.0
        %6430 = vmatpush1.msra.mxu0 0.0
        %6431 = vmatprep.subr.mxu0 0.0
        %6432 = vmatpush1.msra.mxu0 0.0
        %6433 = vmatprep.subr.mxu0 0.0
        %6434 = vmatpush1.msra.mxu0 0.0
        %6435 = vmatprep.subr.mxu0 0.0
        %6436 = vmatpush1.msra.mxu0 0.0
        %6437 = vmatprep.subr.mxu0 0.0
        %6438 = vmatpush1.msra.mxu0 0.0
        %6439 = vmatprep.subr.mxu0 0.0
        %6440 = vmatpush1.msra.mxu0 0.0
        %6441 = vmatprep.subr.mxu0 0.0
        %6442 = vmatpush1.msra.mxu0 0.0
        %6443 = vmatprep.subr.mxu0 %v2197
        %6444 = vmatpush1.msra.mxu0 %v2196
        %6445 = vmatprep.subr.mxu0 %v2041
        %6446 = vmatpush1.msra.mxu0 %v2040
        %6447 = vmatprep.subr.mxu0 %v1885
        %6448 = vmatpush1.msra.mxu0 %v1884
        %6449 = vmatprep.subr.mxu0 %v1729
        %6450 = vmatpush1.msra.mxu0 %v1728
        %6451 = vmatprep.subr.mxu0 0.0
        %6452 = vmatpush2.msra.mxu0 0.0
        %6453 = vmatprep.subr.mxu0 0.0
        %6454 = vmatpush2.msra.mxu0 0.0
        %6455 = vmatprep.subr.mxu0 0.0
        %6456 = vmatpush2.msra.mxu0 0.0
        %6457 = vmatprep.subr.mxu0 0.0
        %6458 = vmatpush2.msra.mxu0 0.0
        %6459 = vmatprep.subr.mxu0 0.0
        %6460 = vmatpush2.msra.mxu0 0.0
        %6461 = vmatprep.subr.mxu0 0.0
        %6462 = vmatpush2.msra.mxu0 0.0
        %6463 = vmatprep.subr.mxu0 0.0
        %6464 = vmatpush2.msra.mxu0 0.0
        %6465 = vmatprep.subr.mxu0 0.0
        %6466 = vmatpush2.msra.mxu0 0.0
        %6467 = vmatprep.subr.mxu0 0.0
        %6468 = vmatpush2.msra.mxu0 0.0
        %6469 = vmatprep.subr.mxu0 0.0
        %6470 = vmatpush2.msra.mxu0 0.0
        %6471 = vmatprep.subr.mxu0 0.0
        %6472 = vmatpush2.msra.mxu0 0.0
        %6473 = vmatprep.subr.mxu0 0.0
        %6474 = vmatpush2.msra.mxu0 0.0
        %6475 = vmatprep.subr.mxu0 0.0
        %6476 = vmatpush2.msra.mxu0 0.0
        %6477 = vmatprep.subr.mxu0 0.0
        %6478 = vmatpush2.msra.mxu0 0.0
        %6479 = vmatprep.subr.mxu0 0.0
        %6480 = vmatpush2.msra.mxu0 0.0
        %6481 = vmatprep.subr.mxu0 0.0
        %6482 = vmatpush2.msra.mxu0 0.0
        %6483 = vmatprep.mubr.f32.mxu0 0.0
        %6484 = vmatmul.mubr.f32.gmra.mxu0 %v3080
        %v6485 = vpop.f32.mrf.mxu0
        %v6486 = vadd.f32 %v2677, %v6485
        %v6487 = vpop.f32.mrf.mxu0
        %v6488 = vadd.f32 %v2681, %v6487
        %6489 = vdwg.mxu0
        %6490 = vmatprep.subr.mxu0 0.0
        %6491 = vmatpush1.msra.mxu0 0.0
        %6492 = vmatprep.subr.mxu0 0.0
        %6493 = vmatpush1.msra.mxu0 0.0
        %6494 = vmatprep.subr.mxu0 0.0
        %6495 = vmatpush1.msra.mxu0 0.0
        %6496 = vmatprep.subr.mxu0 0.0
        %6497 = vmatpush1.msra.mxu0 0.0
        %6498 = vmatprep.subr.mxu0 0.0
        %6499 = vmatpush1.msra.mxu0 0.0
        %6500 = vmatprep.subr.mxu0 0.0
        %6501 = vmatpush1.msra.mxu0 0.0
        %6502 = vmatprep.subr.mxu0 0.0
        %6503 = vmatpush1.msra.mxu0 0.0
        %6504 = vmatprep.subr.mxu0 0.0
        %6505 = vmatpush1.msra.mxu0 0.0
        %6506 = vmatprep.subr.mxu0 0.0
        %6507 = vmatpush1.msra.mxu0 0.0
        %6508 = vmatprep.subr.mxu0 0.0
        %6509 = vmatpush1.msra.mxu0 0.0
        %6510 = vmatprep.subr.mxu0 0.0
        %6511 = vmatpush1.msra.mxu0 0.0
        %6512 = vmatprep.subr.mxu0 0.0
        %6513 = vmatpush1.msra.mxu0 0.0
        %6514 = vmatprep.subr.mxu0 %v2199
        %6515 = vmatpush1.msra.mxu0 %v2198
        %6516 = vmatprep.subr.mxu0 %v2043
        %6517 = vmatpush1.msra.mxu0 %v2042
        %6518 = vmatprep.subr.mxu0 %v1887
        %6519 = vmatpush1.msra.mxu0 %v1886
        %6520 = vmatprep.subr.mxu0 %v1731
        %6521 = vmatpush1.msra.mxu0 %v1730
        %6522 = vmatprep.subr.mxu0 0.0
        %6523 = vmatpush2.msra.mxu0 0.0
        %6524 = vmatprep.subr.mxu0 0.0
        %6525 = vmatpush2.msra.mxu0 0.0
        %6526 = vmatprep.subr.mxu0 0.0
        %6527 = vmatpush2.msra.mxu0 0.0
        %6528 = vmatprep.subr.mxu0 0.0
        %6529 = vmatpush2.msra.mxu0 0.0
        %6530 = vmatprep.subr.mxu0 0.0
        %6531 = vmatpush2.msra.mxu0 0.0
        %6532 = vmatprep.subr.mxu0 0.0
        %6533 = vmatpush2.msra.mxu0 0.0
        %6534 = vmatprep.subr.mxu0 0.0
        %6535 = vmatpush2.msra.mxu0 0.0
        %6536 = vmatprep.subr.mxu0 0.0
        %6537 = vmatpush2.msra.mxu0 0.0
        %6538 = vmatprep.subr.mxu0 0.0
        %6539 = vmatpush2.msra.mxu0 0.0
        %6540 = vmatprep.subr.mxu0 0.0
        %6541 = vmatpush2.msra.mxu0 0.0
        %6542 = vmatprep.subr.mxu0 0.0
        %6543 = vmatpush2.msra.mxu0 0.0
        %6544 = vmatprep.subr.mxu0 0.0
        %6545 = vmatpush2.msra.mxu0 0.0
        %6546 = vmatprep.subr.mxu0 0.0
        %6547 = vmatpush2.msra.mxu0 0.0
        %6548 = vmatprep.subr.mxu0 0.0
        %6549 = vmatpush2.msra.mxu0 0.0
        %6550 = vmatprep.subr.mxu0 0.0
        %6551 = vmatpush2.msra.mxu0 0.0
        %6552 = vmatprep.subr.mxu0 0.0
        %6553 = vmatpush2.msra.mxu0 0.0
        %6554 = vmatprep.mubr.f32.mxu0 0.0
        %6555 = vmatmul.mubr.f32.gmra.mxu0 %v3080
        %v6556 = vpop.f32.mrf.mxu0
        %v6557 = vadd.f32 %v2685, %v6556
        %v6558 = vpop.f32.mrf.mxu0
        %v6559 = vadd.f32 %v2689, %v6558
        %6560 = vdwg.mxu0
        %6561 = vmatprep.subr.mxu0 0.0
        %6562 = vmatpush1.msra.mxu0 0.0
        %6563 = vmatprep.subr.mxu0 0.0
        %6564 = vmatpush1.msra.mxu0 0.0
        %6565 = vmatprep.subr.mxu0 0.0
        %6566 = vmatpush1.msra.mxu0 0.0
        %6567 = vmatprep.subr.mxu0 0.0
        %6568 = vmatpush1.msra.mxu0 0.0
        %6569 = vmatprep.subr.mxu0 0.0
        %6570 = vmatpush1.msra.mxu0 0.0
        %6571 = vmatprep.subr.mxu0 0.0
        %6572 = vmatpush1.msra.mxu0 0.0
        %6573 = vmatprep.subr.mxu0 0.0
        %6574 = vmatpush1.msra.mxu0 0.0
        %6575 = vmatprep.subr.mxu0 0.0
        %6576 = vmatpush1.msra.mxu0 0.0
        %6577 = vmatprep.subr.mxu0 0.0
        %6578 = vmatpush1.msra.mxu0 0.0
        %6579 = vmatprep.subr.mxu0 0.0
        %6580 = vmatpush1.msra.mxu0 0.0
        %6581 = vmatprep.subr.mxu0 0.0
        %6582 = vmatpush1.msra.mxu0 0.0
        %6583 = vmatprep.subr.mxu0 0.0
        %6584 = vmatpush1.msra.mxu0 0.0
        %6585 = vmatprep.subr.mxu0 %v2201
        %6586 = vmatpush1.msra.mxu0 %v2200
        %6587 = vmatprep.subr.mxu0 %v2045
        %6588 = vmatpush1.msra.mxu0 %v2044
        %6589 = vmatprep.subr.mxu0 %v1889
        %6590 = vmatpush1.msra.mxu0 %v1888
        %6591 = vmatprep.subr.mxu0 %v1733
        %6592 = vmatpush1.msra.mxu0 %v1732
        %6593 = vmatprep.subr.mxu0 0.0
        %6594 = vmatpush2.msra.mxu0 0.0
        %6595 = vmatprep.subr.mxu0 0.0
        %6596 = vmatpush2.msra.mxu0 0.0
        %6597 = vmatprep.subr.mxu0 0.0
        %6598 = vmatpush2.msra.mxu0 0.0
        %6599 = vmatprep.subr.mxu0 0.0
        %6600 = vmatpush2.msra.mxu0 0.0
        %6601 = vmatprep.subr.mxu0 0.0
        %6602 = vmatpush2.msra.mxu0 0.0
        %6603 = vmatprep.subr.mxu0 0.0
        %6604 = vmatpush2.msra.mxu0 0.0
        %6605 = vmatprep.subr.mxu0 0.0
        %6606 = vmatpush2.msra.mxu0 0.0
        %6607 = vmatprep.subr.mxu0 0.0
        %6608 = vmatpush2.msra.mxu0 0.0
        %6609 = vmatprep.subr.mxu0 0.0
        %6610 = vmatpush2.msra.mxu0 0.0
        %6611 = vmatprep.subr.mxu0 0.0
        %6612 = vmatpush2.msra.mxu0 0.0
        %6613 = vmatprep.subr.mxu0 0.0
        %6614 = vmatpush2.msra.mxu0 0.0
        %6615 = vmatprep.subr.mxu0 0.0
        %6616 = vmatpush2.msra.mxu0 0.0
        %6617 = vmatprep.subr.mxu0 0.0
        %6618 = vmatpush2.msra.mxu0 0.0
        %6619 = vmatprep.subr.mxu0 0.0
        %6620 = vmatpush2.msra.mxu0 0.0
        %6621 = vmatprep.subr.mxu0 0.0
        %6622 = vmatpush2.msra.mxu0 0.0
        %6623 = vmatprep.subr.mxu0 0.0
        %6624 = vmatpush2.msra.mxu0 0.0
        %6625 = vmatprep.mubr.f32.mxu0 0.0
        %6626 = vmatmul.mubr.f32.gmra.mxu0 %v3080
        %v6627 = vpop.f32.mrf.mxu0
        %v6628 = vadd.f32 %v2693, %v6627
        %v6629 = vpop.f32.mrf.mxu0
        %v6630 = vadd.f32 %v2697, %v6629
        %6631 = vdwg.mxu0
        %6632 = vmatprep.subr.mxu0 0.0
        %6633 = vmatpush1.msra.mxu0 0.0
        %6634 = vmatprep.subr.mxu0 0.0
        %6635 = vmatpush1.msra.mxu0 0.0
        %6636 = vmatprep.subr.mxu0 0.0
        %6637 = vmatpush1.msra.mxu0 0.0
        %6638 = vmatprep.subr.mxu0 0.0
        %6639 = vmatpush1.msra.mxu0 0.0
        %6640 = vmatprep.subr.mxu0 0.0
        %6641 = vmatpush1.msra.mxu0 0.0
        %6642 = vmatprep.subr.mxu0 0.0
        %6643 = vmatpush1.msra.mxu0 0.0
        %6644 = vmatprep.subr.mxu0 0.0
        %6645 = vmatpush1.msra.mxu0 0.0
        %6646 = vmatprep.subr.mxu0 0.0
        %6647 = vmatpush1.msra.mxu0 0.0
        %6648 = vmatprep.subr.mxu0 0.0
        %6649 = vmatpush1.msra.mxu0 0.0
        %6650 = vmatprep.subr.mxu0 0.0
        %6651 = vmatpush1.msra.mxu0 0.0
        %6652 = vmatprep.subr.mxu0 0.0
        %6653 = vmatpush1.msra.mxu0 0.0
        %6654 = vmatprep.subr.mxu0 0.0
        %6655 = vmatpush1.msra.mxu0 0.0
        %6656 = vmatprep.subr.mxu0 %v2203
        %6657 = vmatpush1.msra.mxu0 %v2202
        %6658 = vmatprep.subr.mxu0 %v2047
        %6659 = vmatpush1.msra.mxu0 %v2046
        %6660 = vmatprep.subr.mxu0 %v1891
        %6661 = vmatpush1.msra.mxu0 %v1890
        %6662 = vmatprep.subr.mxu0 %v1735
        %6663 = vmatpush1.msra.mxu0 %v1734
        %6664 = vmatprep.subr.mxu0 0.0
        %6665 = vmatpush2.msra.mxu0 0.0
        %6666 = vmatprep.subr.mxu0 0.0
        %6667 = vmatpush2.msra.mxu0 0.0
        %6668 = vmatprep.subr.mxu0 0.0
        %6669 = vmatpush2.msra.mxu0 0.0
        %6670 = vmatprep.subr.mxu0 0.0
        %6671 = vmatpush2.msra.mxu0 0.0
        %6672 = vmatprep.subr.mxu0 0.0
        %6673 = vmatpush2.msra.mxu0 0.0
        %6674 = vmatprep.subr.mxu0 0.0
        %6675 = vmatpush2.msra.mxu0 0.0
        %6676 = vmatprep.subr.mxu0 0.0
        %6677 = vmatpush2.msra.mxu0 0.0
        %6678 = vmatprep.subr.mxu0 0.0
        %6679 = vmatpush2.msra.mxu0 0.0
        %6680 = vmatprep.subr.mxu0 0.0
        %6681 = vmatpush2.msra.mxu0 0.0
        %6682 = vmatprep.subr.mxu0 0.0
        %6683 = vmatpush2.msra.mxu0 0.0
        %6684 = vmatprep.subr.mxu0 0.0
        %6685 = vmatpush2.msra.mxu0 0.0
        %6686 = vmatprep.subr.mxu0 0.0
        %6687 = vmatpush2.msra.mxu0 0.0
        %6688 = vmatprep.subr.mxu0 0.0
        %6689 = vmatpush2.msra.mxu0 0.0
        %6690 = vmatprep.subr.mxu0 0.0
        %6691 = vmatpush2.msra.mxu0 0.0
        %6692 = vmatprep.subr.mxu0 0.0
        %6693 = vmatpush2.msra.mxu0 0.0
        %6694 = vmatprep.subr.mxu0 0.0
        %6695 = vmatpush2.msra.mxu0 0.0
        %6696 = vmatprep.mubr.f32.mxu0 0.0
        %6697 = vmatmul.mubr.f32.gmra.mxu0 %v3080
        %v6698 = vpop.f32.mrf.mxu0
        %v6699 = vadd.f32 %v2701, %v6698
        %v6700 = vpop.f32.mrf.mxu0
        %v6701 = vadd.f32 %v2705, %v6700
        %6702 = vdwg.mxu0
        %6703 = vmatprep.subr.mxu0 0.0
        %6704 = vmatpush1.msra.mxu0 0.0
        %6705 = vmatprep.subr.mxu0 0.0
        %6706 = vmatpush1.msra.mxu0 0.0
        %6707 = vmatprep.subr.mxu0 0.0
        %6708 = vmatpush1.msra.mxu0 0.0
        %6709 = vmatprep.subr.mxu0 0.0
        %6710 = vmatpush1.msra.mxu0 0.0
        %6711 = vmatprep.subr.mxu0 0.0
        %6712 = vmatpush1.msra.mxu0 0.0
        %6713 = vmatprep.subr.mxu0 0.0
        %6714 = vmatpush1.msra.mxu0 0.0
        %6715 = vmatprep.subr.mxu0 0.0
        %6716 = vmatpush1.msra.mxu0 0.0
        %6717 = vmatprep.subr.mxu0 0.0
        %6718 = vmatpush1.msra.mxu0 0.0
        %6719 = vmatprep.subr.mxu0 0.0
        %6720 = vmatpush1.msra.mxu0 0.0
        %6721 = vmatprep.subr.mxu0 0.0
        %6722 = vmatpush1.msra.mxu0 0.0
        %6723 = vmatprep.subr.mxu0 0.0
        %6724 = vmatpush1.msra.mxu0 0.0
        %6725 = vmatprep.subr.mxu0 0.0
        %6726 = vmatpush1.msra.mxu0 0.0
        %6727 = vmatprep.subr.mxu0 %v2205
        %6728 = vmatpush1.msra.mxu0 %v2204
        %6729 = vmatprep.subr.mxu0 %v2049
        %6730 = vmatpush1.msra.mxu0 %v2048
        %6731 = vmatprep.subr.mxu0 %v1893
        %6732 = vmatpush1.msra.mxu0 %v1892
        %6733 = vmatprep.subr.mxu0 %v1737
        %6734 = vmatpush1.msra.mxu0 %v1736
        %6735 = vmatprep.subr.mxu0 0.0
        %6736 = vmatpush2.msra.mxu0 0.0
        %6737 = vmatprep.subr.mxu0 0.0
        %6738 = vmatpush2.msra.mxu0 0.0
        %6739 = vmatprep.subr.mxu0 0.0
        %6740 = vmatpush2.msra.mxu0 0.0
        %6741 = vmatprep.subr.mxu0 0.0
        %6742 = vmatpush2.msra.mxu0 0.0
        %6743 = vmatprep.subr.mxu0 0.0
        %6744 = vmatpush2.msra.mxu0 0.0
        %6745 = vmatprep.subr.mxu0 0.0
        %6746 = vmatpush2.msra.mxu0 0.0
        %6747 = vmatprep.subr.mxu0 0.0
        %6748 = vmatpush2.msra.mxu0 0.0
        %6749 = vmatprep.subr.mxu0 0.0
        %6750 = vmatpush2.msra.mxu0 0.0
        %6751 = vmatprep.subr.mxu0 0.0
        %6752 = vmatpush2.msra.mxu0 0.0
        %6753 = vmatprep.subr.mxu0 0.0
        %6754 = vmatpush2.msra.mxu0 0.0
        %6755 = vmatprep.subr.mxu0 0.0
        %6756 = vmatpush2.msra.mxu0 0.0
        %6757 = vmatprep.subr.mxu0 0.0
        %6758 = vmatpush2.msra.mxu0 0.0
        %6759 = vmatprep.subr.mxu0 0.0
        %6760 = vmatpush2.msra.mxu0 0.0
        %6761 = vmatprep.subr.mxu0 0.0
        %6762 = vmatpush2.msra.mxu0 0.0
        %6763 = vmatprep.subr.mxu0 0.0
        %6764 = vmatpush2.msra.mxu0 0.0
        %6765 = vmatprep.subr.mxu0 0.0
        %6766 = vmatpush2.msra.mxu0 0.0
        %6767 = vmatprep.mubr.f32.mxu0 0.0
        %6768 = vmatmul.mubr.f32.gmra.mxu0 %v3080
        %v6769 = vpop.f32.mrf.mxu0
        %v6770 = vadd.f32 %v2709, %v6769
        %v6771 = vpop.f32.mrf.mxu0
        %v6772 = vadd.f32 %v2713, %v6771
        %6773 = vdwg.mxu0
        %6774 = vmatprep.subr.mxu0 0.0
        %6775 = vmatpush1.msra.mxu0 0.0
        %6776 = vmatprep.subr.mxu0 0.0
        %6777 = vmatpush1.msra.mxu0 0.0
        %6778 = vmatprep.subr.mxu0 0.0
        %6779 = vmatpush1.msra.mxu0 0.0
        %6780 = vmatprep.subr.mxu0 0.0
        %6781 = vmatpush1.msra.mxu0 0.0
        %6782 = vmatprep.subr.mxu0 0.0
        %6783 = vmatpush1.msra.mxu0 0.0
        %6784 = vmatprep.subr.mxu0 0.0
        %6785 = vmatpush1.msra.mxu0 0.0
        %6786 = vmatprep.subr.mxu0 0.0
        %6787 = vmatpush1.msra.mxu0 0.0
        %6788 = vmatprep.subr.mxu0 0.0
        %6789 = vmatpush1.msra.mxu0 0.0
        %6790 = vmatprep.subr.mxu0 0.0
        %6791 = vmatpush1.msra.mxu0 0.0
        %6792 = vmatprep.subr.mxu0 0.0
        %6793 = vmatpush1.msra.mxu0 0.0
        %6794 = vmatprep.subr.mxu0 0.0
        %6795 = vmatpush1.msra.mxu0 0.0
        %6796 = vmatprep.subr.mxu0 0.0
        %6797 = vmatpush1.msra.mxu0 0.0
        %6798 = vmatprep.subr.mxu0 %v2207
        %6799 = vmatpush1.msra.mxu0 %v2206
        %6800 = vmatprep.subr.mxu0 %v2051
        %6801 = vmatpush1.msra.mxu0 %v2050
        %6802 = vmatprep.subr.mxu0 %v1895
        %6803 = vmatpush1.msra.mxu0 %v1894
        %6804 = vmatprep.subr.mxu0 %v1739
        %6805 = vmatpush1.msra.mxu0 %v1738
        %6806 = vmatprep.subr.mxu0 0.0
        %6807 = vmatpush2.msra.mxu0 0.0
        %6808 = vmatprep.subr.mxu0 0.0
        %6809 = vmatpush2.msra.mxu0 0.0
        %6810 = vmatprep.subr.mxu0 0.0
        %6811 = vmatpush2.msra.mxu0 0.0
        %6812 = vmatprep.subr.mxu0 0.0
        %6813 = vmatpush2.msra.mxu0 0.0
        %6814 = vmatprep.subr.mxu0 0.0
        %6815 = vmatpush2.msra.mxu0 0.0
        %6816 = vmatprep.subr.mxu0 0.0
        %6817 = vmatpush2.msra.mxu0 0.0
        %6818 = vmatprep.subr.mxu0 0.0
        %6819 = vmatpush2.msra.mxu0 0.0
        %6820 = vmatprep.subr.mxu0 0.0
        %6821 = vmatpush2.msra.mxu0 0.0
        %6822 = vmatprep.subr.mxu0 0.0
        %6823 = vmatpush2.msra.mxu0 0.0
        %6824 = vmatprep.subr.mxu0 0.0
        %6825 = vmatpush2.msra.mxu0 0.0
        %6826 = vmatprep.subr.mxu0 0.0
        %6827 = vmatpush2.msra.mxu0 0.0
        %6828 = vmatprep.subr.mxu0 0.0
        %6829 = vmatpush2.msra.mxu0 0.0
        %6830 = vmatprep.subr.mxu0 0.0
        %6831 = vmatpush2.msra.mxu0 0.0
        %6832 = vmatprep.subr.mxu0 0.0
        %6833 = vmatpush2.msra.mxu0 0.0
        %6834 = vmatprep.subr.mxu0 0.0
        %6835 = vmatpush2.msra.mxu0 0.0
        %6836 = vmatprep.subr.mxu0 0.0
        %6837 = vmatpush2.msra.mxu0 0.0
        %6838 = vmatprep.mubr.f32.mxu0 0.0
        %6839 = vmatmul.mubr.f32.gmra.mxu0 %v3080
        %v6840 = vpop.f32.mrf.mxu0
        %v6841 = vadd.f32 %v2717, %v6840
        %v6842 = vpop.f32.mrf.mxu0
        %v6843 = vadd.f32 %v2721, %v6842
        %6844 = vdwg.mxu0
        %6845 = vmatprep.subr.mxu0 0.0
        %6846 = vmatpush1.msra.mxu0 0.0
        %6847 = vmatprep.subr.mxu0 0.0
        %6848 = vmatpush1.msra.mxu0 0.0
        %6849 = vmatprep.subr.mxu0 0.0
        %6850 = vmatpush1.msra.mxu0 0.0
        %6851 = vmatprep.subr.mxu0 0.0
        %6852 = vmatpush1.msra.mxu0 0.0
        %6853 = vmatprep.subr.mxu0 0.0
        %6854 = vmatpush1.msra.mxu0 0.0
        %6855 = vmatprep.subr.mxu0 0.0
        %6856 = vmatpush1.msra.mxu0 0.0
        %6857 = vmatprep.subr.mxu0 0.0
        %6858 = vmatpush1.msra.mxu0 0.0
        %6859 = vmatprep.subr.mxu0 0.0
        %6860 = vmatpush1.msra.mxu0 0.0
        %6861 = vmatprep.subr.mxu0 0.0
        %6862 = vmatpush1.msra.mxu0 0.0
        %6863 = vmatprep.subr.mxu0 0.0
        %6864 = vmatpush1.msra.mxu0 0.0
        %6865 = vmatprep.subr.mxu0 0.0
        %6866 = vmatpush1.msra.mxu0 0.0
        %6867 = vmatprep.subr.mxu0 0.0
        %6868 = vmatpush1.msra.mxu0 0.0
        %6869 = vmatprep.subr.mxu0 %v2209
        %6870 = vmatpush1.msra.mxu0 %v2208
        %6871 = vmatprep.subr.mxu0 %v2053
        %6872 = vmatpush1.msra.mxu0 %v2052
        %6873 = vmatprep.subr.mxu0 %v1897
        %6874 = vmatpush1.msra.mxu0 %v1896
        %6875 = vmatprep.subr.mxu0 %v1741
        %6876 = vmatpush1.msra.mxu0 %v1740
        %6877 = vmatprep.subr.mxu0 0.0
        %6878 = vmatpush2.msra.mxu0 0.0
        %6879 = vmatprep.subr.mxu0 0.0
        %6880 = vmatpush2.msra.mxu0 0.0
        %6881 = vmatprep.subr.mxu0 0.0
        %6882 = vmatpush2.msra.mxu0 0.0
        %6883 = vmatprep.subr.mxu0 0.0
        %6884 = vmatpush2.msra.mxu0 0.0
        %6885 = vmatprep.subr.mxu0 0.0
        %6886 = vmatpush2.msra.mxu0 0.0
        %6887 = vmatprep.subr.mxu0 0.0
        %6888 = vmatpush2.msra.mxu0 0.0
        %6889 = vmatprep.subr.mxu0 0.0
        %6890 = vmatpush2.msra.mxu0 0.0
        %6891 = vmatprep.subr.mxu0 0.0
        %6892 = vmatpush2.msra.mxu0 0.0
        %6893 = vmatprep.subr.mxu0 0.0
        %6894 = vmatpush2.msra.mxu0 0.0
        %6895 = vmatprep.subr.mxu0 0.0
        %6896 = vmatpush2.msra.mxu0 0.0
        %6897 = vmatprep.subr.mxu0 0.0
        %6898 = vmatpush2.msra.mxu0 0.0
        %6899 = vmatprep.subr.mxu0 0.0
        %6900 = vmatpush2.msra.mxu0 0.0
        %6901 = vmatprep.subr.mxu0 0.0
        %6902 = vmatpush2.msra.mxu0 0.0
        %6903 = vmatprep.subr.mxu0 0.0
        %6904 = vmatpush2.msra.mxu0 0.0
        %6905 = vmatprep.subr.mxu0 0.0
        %6906 = vmatpush2.msra.mxu0 0.0
        %6907 = vmatprep.subr.mxu0 0.0
        %6908 = vmatpush2.msra.mxu0 0.0
        %6909 = vmatprep.mubr.f32.mxu0 0.0
        %6910 = vmatmul.mubr.f32.gmra.mxu0 %v3080
        %v6911 = vpop.f32.mrf.mxu0
        %v6912 = vadd.f32 %v2725, %v6911
        %v6913 = vpop.f32.mrf.mxu0
        %v6914 = vadd.f32 %v2729, %v6913
        %6915 = vdwg.mxu0
        %6916 = vmatprep.subr.mxu0 0.0
        %6917 = vmatpush1.msra.mxu0 0.0
        %6918 = vmatprep.subr.mxu0 0.0
        %6919 = vmatpush1.msra.mxu0 0.0
        %6920 = vmatprep.subr.mxu0 0.0
        %6921 = vmatpush1.msra.mxu0 0.0
        %6922 = vmatprep.subr.mxu0 0.0
        %6923 = vmatpush1.msra.mxu0 0.0
        %6924 = vmatprep.subr.mxu0 0.0
        %6925 = vmatpush1.msra.mxu0 0.0
        %6926 = vmatprep.subr.mxu0 0.0
        %6927 = vmatpush1.msra.mxu0 0.0
        %6928 = vmatprep.subr.mxu0 0.0
        %6929 = vmatpush1.msra.mxu0 0.0
        %6930 = vmatprep.subr.mxu0 0.0
        %6931 = vmatpush1.msra.mxu0 0.0
        %6932 = vmatprep.subr.mxu0 0.0
        %6933 = vmatpush1.msra.mxu0 0.0
        %6934 = vmatprep.subr.mxu0 0.0
        %6935 = vmatpush1.msra.mxu0 0.0
        %6936 = vmatprep.subr.mxu0 0.0
        %6937 = vmatpush1.msra.mxu0 0.0
        %6938 = vmatprep.subr.mxu0 0.0
        %6939 = vmatpush1.msra.mxu0 0.0
        %6940 = vmatprep.subr.mxu0 %v2211
        %6941 = vmatpush1.msra.mxu0 %v2210
        %6942 = vmatprep.subr.mxu0 %v2055
        %6943 = vmatpush1.msra.mxu0 %v2054
        %6944 = vmatprep.subr.mxu0 %v1899
        %6945 = vmatpush1.msra.mxu0 %v1898
        %6946 = vmatprep.subr.mxu0 %v1743
        %6947 = vmatpush1.msra.mxu0 %v1742
        %6948 = vmatprep.subr.mxu0 0.0
        %6949 = vmatpush2.msra.mxu0 0.0
        %6950 = vmatprep.subr.mxu0 0.0
        %6951 = vmatpush2.msra.mxu0 0.0
        %6952 = vmatprep.subr.mxu0 0.0
        %6953 = vmatpush2.msra.mxu0 0.0
        %6954 = vmatprep.subr.mxu0 0.0
        %6955 = vmatpush2.msra.mxu0 0.0
        %6956 = vmatprep.subr.mxu0 0.0
        %6957 = vmatpush2.msra.mxu0 0.0
        %6958 = vmatprep.subr.mxu0 0.0
        %6959 = vmatpush2.msra.mxu0 0.0
        %6960 = vmatprep.subr.mxu0 0.0
        %6961 = vmatpush2.msra.mxu0 0.0
        %6962 = vmatprep.subr.mxu0 0.0
        %6963 = vmatpush2.msra.mxu0 0.0
        %6964 = vmatprep.subr.mxu0 0.0
        %6965 = vmatpush2.msra.mxu0 0.0
        %6966 = vmatprep.subr.mxu0 0.0
        %6967 = vmatpush2.msra.mxu0 0.0
        %6968 = vmatprep.subr.mxu0 0.0
        %6969 = vmatpush2.msra.mxu0 0.0
        %6970 = vmatprep.subr.mxu0 0.0
        %6971 = vmatpush2.msra.mxu0 0.0
        %6972 = vmatprep.subr.mxu0 0.0
        %6973 = vmatpush2.msra.mxu0 0.0
        %6974 = vmatprep.subr.mxu0 0.0
        %6975 = vmatpush2.msra.mxu0 0.0
        %6976 = vmatprep.subr.mxu0 0.0
        %6977 = vmatpush2.msra.mxu0 0.0
        %6978 = vmatprep.subr.mxu0 0.0
        %6979 = vmatpush2.msra.mxu0 0.0
        %6980 = vmatprep.mubr.f32.mxu0 0.0
        %6981 = vmatmul.mubr.f32.gmra.mxu0 %v3080
        %v6982 = vpop.f32.mrf.mxu0
        %v6983 = vadd.f32 %v2733, %v6982
        %v6984 = vpop.f32.mrf.mxu0
        %v6985 = vadd.f32 %v2737, %v6984
        %6986 = vdwg.mxu0
        %6987 = vmatprep.subr.mxu0 0.0
        %6988 = vmatpush1.msra.mxu0 0.0
        %6989 = vmatprep.subr.mxu0 0.0
        %6990 = vmatpush1.msra.mxu0 0.0
        %6991 = vmatprep.subr.mxu0 0.0
        %6992 = vmatpush1.msra.mxu0 0.0
        %6993 = vmatprep.subr.mxu0 0.0
        %6994 = vmatpush1.msra.mxu0 0.0
        %6995 = vmatprep.subr.mxu0 0.0
        %6996 = vmatpush1.msra.mxu0 0.0
        %6997 = vmatprep.subr.mxu0 0.0
        %6998 = vmatpush1.msra.mxu0 0.0
        %6999 = vmatprep.subr.mxu0 0.0
        %7000 = vmatpush1.msra.mxu0 0.0
        %7001 = vmatprep.subr.mxu0 0.0
        %7002 = vmatpush1.msra.mxu0 0.0
        %7003 = vmatprep.subr.mxu0 0.0
        %7004 = vmatpush1.msra.mxu0 0.0
        %7005 = vmatprep.subr.mxu0 0.0
        %7006 = vmatpush1.msra.mxu0 0.0
        %7007 = vmatprep.subr.mxu0 0.0
        %7008 = vmatpush1.msra.mxu0 0.0
        %7009 = vmatprep.subr.mxu0 0.0
        %7010 = vmatpush1.msra.mxu0 0.0
        %7011 = vmatprep.subr.mxu0 %v2213
        %7012 = vmatpush1.msra.mxu0 %v2212
        %7013 = vmatprep.subr.mxu0 %v2057
        %7014 = vmatpush1.msra.mxu0 %v2056
        %7015 = vmatprep.subr.mxu0 %v1901
        %7016 = vmatpush1.msra.mxu0 %v1900
        %7017 = vmatprep.subr.mxu0 %v1745
        %7018 = vmatpush1.msra.mxu0 %v1744
        %7019 = vmatprep.subr.mxu0 0.0
        %7020 = vmatpush2.msra.mxu0 0.0
        %7021 = vmatprep.subr.mxu0 0.0
        %7022 = vmatpush2.msra.mxu0 0.0
        %7023 = vmatprep.subr.mxu0 0.0
        %7024 = vmatpush2.msra.mxu0 0.0
        %7025 = vmatprep.subr.mxu0 0.0
        %7026 = vmatpush2.msra.mxu0 0.0
        %7027 = vmatprep.subr.mxu0 0.0
        %7028 = vmatpush2.msra.mxu0 0.0
        %7029 = vmatprep.subr.mxu0 0.0
        %7030 = vmatpush2.msra.mxu0 0.0
        %7031 = vmatprep.subr.mxu0 0.0
        %7032 = vmatpush2.msra.mxu0 0.0
        %7033 = vmatprep.subr.mxu0 0.0
        %7034 = vmatpush2.msra.mxu0 0.0
        %7035 = vmatprep.subr.mxu0 0.0
        %7036 = vmatpush2.msra.mxu0 0.0
        %7037 = vmatprep.subr.mxu0 0.0
        %7038 = vmatpush2.msra.mxu0 0.0
        %7039 = vmatprep.subr.mxu0 0.0
        %7040 = vmatpush2.msra.mxu0 0.0
        %7041 = vmatprep.subr.mxu0 0.0
        %7042 = vmatpush2.msra.mxu0 0.0
        %7043 = vmatprep.subr.mxu0 0.0
        %7044 = vmatpush2.msra.mxu0 0.0
        %7045 = vmatprep.subr.mxu0 0.0
        %7046 = vmatpush2.msra.mxu0 0.0
        %7047 = vmatprep.subr.mxu0 0.0
        %7048 = vmatpush2.msra.mxu0 0.0
        %7049 = vmatprep.subr.mxu0 0.0
        %7050 = vmatpush2.msra.mxu0 0.0
        %7051 = vmatprep.mubr.f32.mxu0 0.0
        %7052 = vmatmul.mubr.f32.gmra.mxu0 %v3080
        %v7053 = vpop.f32.mrf.mxu0
        %v7054 = vadd.f32 %v2741, %v7053
        %v7055 = vpop.f32.mrf.mxu0
        %v7056 = vadd.f32 %v2745, %v7055
        %7057 = vdwg.mxu0
        %7058 = vmatprep.subr.mxu0 0.0
        %7059 = vmatpush1.msra.mxu0 0.0
        %7060 = vmatprep.subr.mxu0 0.0
        %7061 = vmatpush1.msra.mxu0 0.0
        %7062 = vmatprep.subr.mxu0 0.0
        %7063 = vmatpush1.msra.mxu0 0.0
        %7064 = vmatprep.subr.mxu0 0.0
        %7065 = vmatpush1.msra.mxu0 0.0
        %7066 = vmatprep.subr.mxu0 0.0
        %7067 = vmatpush1.msra.mxu0 0.0
        %7068 = vmatprep.subr.mxu0 0.0
        %7069 = vmatpush1.msra.mxu0 0.0
        %7070 = vmatprep.subr.mxu0 0.0
        %7071 = vmatpush1.msra.mxu0 0.0
        %7072 = vmatprep.subr.mxu0 0.0
        %7073 = vmatpush1.msra.mxu0 0.0
        %7074 = vmatprep.subr.mxu0 0.0
        %7075 = vmatpush1.msra.mxu0 0.0
        %7076 = vmatprep.subr.mxu0 0.0
        %7077 = vmatpush1.msra.mxu0 0.0
        %7078 = vmatprep.subr.mxu0 0.0
        %7079 = vmatpush1.msra.mxu0 0.0
        %7080 = vmatprep.subr.mxu0 0.0
        %7081 = vmatpush1.msra.mxu0 0.0
        %7082 = vmatprep.subr.mxu0 %v2215
        %7083 = vmatpush1.msra.mxu0 %v2214
        %7084 = vmatprep.subr.mxu0 %v2059
        %7085 = vmatpush1.msra.mxu0 %v2058
        %7086 = vmatprep.subr.mxu0 %v1903
        %7087 = vmatpush1.msra.mxu0 %v1902
        %7088 = vmatprep.subr.mxu0 %v1747
        %7089 = vmatpush1.msra.mxu0 %v1746
        %7090 = vmatprep.subr.mxu0 0.0
        %7091 = vmatpush2.msra.mxu0 0.0
        %7092 = vmatprep.subr.mxu0 0.0
        %7093 = vmatpush2.msra.mxu0 0.0
        %7094 = vmatprep.subr.mxu0 0.0
        %7095 = vmatpush2.msra.mxu0 0.0
        %7096 = vmatprep.subr.mxu0 0.0
        %7097 = vmatpush2.msra.mxu0 0.0
        %7098 = vmatprep.subr.mxu0 0.0
        %7099 = vmatpush2.msra.mxu0 0.0
        %7100 = vmatprep.subr.mxu0 0.0
        %7101 = vmatpush2.msra.mxu0 0.0
        %7102 = vmatprep.subr.mxu0 0.0
        %7103 = vmatpush2.msra.mxu0 0.0
        %7104 = vmatprep.subr.mxu0 0.0
        %7105 = vmatpush2.msra.mxu0 0.0
        %7106 = vmatprep.subr.mxu0 0.0
        %7107 = vmatpush2.msra.mxu0 0.0
        %7108 = vmatprep.subr.mxu0 0.0
        %7109 = vmatpush2.msra.mxu0 0.0
        %7110 = vmatprep.subr.mxu0 0.0
        %7111 = vmatpush2.msra.mxu0 0.0
        %7112 = vmatprep.subr.mxu0 0.0
        %7113 = vmatpush2.msra.mxu0 0.0
        %7114 = vmatprep.subr.mxu0 0.0
        %7115 = vmatpush2.msra.mxu0 0.0
        %7116 = vmatprep.subr.mxu0 0.0
        %7117 = vmatpush2.msra.mxu0 0.0
        %7118 = vmatprep.subr.mxu0 0.0
        %7119 = vmatpush2.msra.mxu0 0.0
        %7120 = vmatprep.subr.mxu0 0.0
        %7121 = vmatpush2.msra.mxu0 0.0
        %7122 = vmatprep.mubr.f32.mxu0 0.0
        %7123 = vmatmul.mubr.f32.gmra.mxu0 %v3080
        %v7124 = vpop.f32.mrf.mxu0
        %v7125 = vadd.f32 %v2749, %v7124
        %v7126 = vpop.f32.mrf.mxu0
        %v7127 = vadd.f32 %v2753, %v7126
        %7128 = vdwg.mxu0
        %7129 = vmatprep.subr.mxu0 0.0
        %7130 = vmatpush1.msra.mxu0 0.0
        %7131 = vmatprep.subr.mxu0 0.0
        %7132 = vmatpush1.msra.mxu0 0.0
        %7133 = vmatprep.subr.mxu0 0.0
        %7134 = vmatpush1.msra.mxu0 0.0
        %7135 = vmatprep.subr.mxu0 0.0
        %7136 = vmatpush1.msra.mxu0 0.0
        %7137 = vmatprep.subr.mxu0 0.0
        %7138 = vmatpush1.msra.mxu0 0.0
        %7139 = vmatprep.subr.mxu0 0.0
        %7140 = vmatpush1.msra.mxu0 0.0
        %7141 = vmatprep.subr.mxu0 0.0
        %7142 = vmatpush1.msra.mxu0 0.0
        %7143 = vmatprep.subr.mxu0 0.0
        %7144 = vmatpush1.msra.mxu0 0.0
        %7145 = vmatprep.subr.mxu0 0.0
        %7146 = vmatpush1.msra.mxu0 0.0
        %7147 = vmatprep.subr.mxu0 0.0
        %7148 = vmatpush1.msra.mxu0 0.0
        %7149 = vmatprep.subr.mxu0 0.0
        %7150 = vmatpush1.msra.mxu0 0.0
        %7151 = vmatprep.subr.mxu0 0.0
        %7152 = vmatpush1.msra.mxu0 0.0
        %7153 = vmatprep.subr.mxu0 %v2217
        %7154 = vmatpush1.msra.mxu0 %v2216
        %7155 = vmatprep.subr.mxu0 %v2061
        %7156 = vmatpush1.msra.mxu0 %v2060
        %7157 = vmatprep.subr.mxu0 %v1905
        %7158 = vmatpush1.msra.mxu0 %v1904
        %7159 = vmatprep.subr.mxu0 %v1749
        %7160 = vmatpush1.msra.mxu0 %v1748
        %7161 = vmatprep.subr.mxu0 0.0
        %7162 = vmatpush2.msra.mxu0 0.0
        %7163 = vmatprep.subr.mxu0 0.0
        %7164 = vmatpush2.msra.mxu0 0.0
        %7165 = vmatprep.subr.mxu0 0.0
        %7166 = vmatpush2.msra.mxu0 0.0
        %7167 = vmatprep.subr.mxu0 0.0
        %7168 = vmatpush2.msra.mxu0 0.0
        %7169 = vmatprep.subr.mxu0 0.0
        %7170 = vmatpush2.msra.mxu0 0.0
        %7171 = vmatprep.subr.mxu0 0.0
        %7172 = vmatpush2.msra.mxu0 0.0
        %7173 = vmatprep.subr.mxu0 0.0
        %7174 = vmatpush2.msra.mxu0 0.0
        %7175 = vmatprep.subr.mxu0 0.0
        %7176 = vmatpush2.msra.mxu0 0.0
        %7177 = vmatprep.subr.mxu0 0.0
        %7178 = vmatpush2.msra.mxu0 0.0
        %7179 = vmatprep.subr.mxu0 0.0
        %7180 = vmatpush2.msra.mxu0 0.0
        %7181 = vmatprep.subr.mxu0 0.0
        %7182 = vmatpush2.msra.mxu0 0.0
        %7183 = vmatprep.subr.mxu0 0.0
        %7184 = vmatpush2.msra.mxu0 0.0
        %7185 = vmatprep.subr.mxu0 0.0
        %7186 = vmatpush2.msra.mxu0 0.0
        %7187 = vmatprep.subr.mxu0 0.0
        %7188 = vmatpush2.msra.mxu0 0.0
        %7189 = vmatprep.subr.mxu0 0.0
        %7190 = vmatpush2.msra.mxu0 0.0
        %7191 = vmatprep.subr.mxu0 0.0
        %7192 = vmatpush2.msra.mxu0 0.0
        %7193 = vmatprep.mubr.f32.mxu0 0.0
        %7194 = vmatmul.mubr.f32.gmra.mxu0 %v3080
        %v7195 = vpop.f32.mrf.mxu0
        %v7196 = vadd.f32 %v2757, %v7195
        %v7197 = vpop.f32.mrf.mxu0
        %v7198 = vadd.f32 %v2761, %v7197
        %7199 = vdwg.mxu0
        %7200 = vmatprep.subr.mxu0 0.0
        %7201 = vmatpush1.msra.mxu0 0.0
        %7202 = vmatprep.subr.mxu0 0.0
        %7203 = vmatpush1.msra.mxu0 0.0
        %7204 = vmatprep.subr.mxu0 0.0
        %7205 = vmatpush1.msra.mxu0 0.0
        %7206 = vmatprep.subr.mxu0 0.0
        %7207 = vmatpush1.msra.mxu0 0.0
        %7208 = vmatprep.subr.mxu0 0.0
        %7209 = vmatpush1.msra.mxu0 0.0
        %7210 = vmatprep.subr.mxu0 0.0
        %7211 = vmatpush1.msra.mxu0 0.0
        %7212 = vmatprep.subr.mxu0 0.0
        %7213 = vmatpush1.msra.mxu0 0.0
        %7214 = vmatprep.subr.mxu0 0.0
        %7215 = vmatpush1.msra.mxu0 0.0
        %7216 = vmatprep.subr.mxu0 0.0
        %7217 = vmatpush1.msra.mxu0 0.0
        %7218 = vmatprep.subr.mxu0 0.0
        %7219 = vmatpush1.msra.mxu0 0.0
        %7220 = vmatprep.subr.mxu0 0.0
        %7221 = vmatpush1.msra.mxu0 0.0
        %7222 = vmatprep.subr.mxu0 0.0
        %7223 = vmatpush1.msra.mxu0 0.0
        %7224 = vmatprep.subr.mxu0 %v2219
        %7225 = vmatpush1.msra.mxu0 %v2218
        %7226 = vmatprep.subr.mxu0 %v2063
        %7227 = vmatpush1.msra.mxu0 %v2062
        %7228 = vmatprep.subr.mxu0 %v1907
        %7229 = vmatpush1.msra.mxu0 %v1906
        %7230 = vmatprep.subr.mxu0 %v1751
        %7231 = vmatpush1.msra.mxu0 %v1750
        %7232 = vmatprep.subr.mxu0 0.0
        %7233 = vmatpush2.msra.mxu0 0.0
        %7234 = vmatprep.subr.mxu0 0.0
        %7235 = vmatpush2.msra.mxu0 0.0
        %7236 = vmatprep.subr.mxu0 0.0
        %7237 = vmatpush2.msra.mxu0 0.0
        %7238 = vmatprep.subr.mxu0 0.0
        %7239 = vmatpush2.msra.mxu0 0.0
        %7240 = vmatprep.subr.mxu0 0.0
        %7241 = vmatpush2.msra.mxu0 0.0
        %7242 = vmatprep.subr.mxu0 0.0
        %7243 = vmatpush2.msra.mxu0 0.0
        %7244 = vmatprep.subr.mxu0 0.0
        %7245 = vmatpush2.msra.mxu0 0.0
        %7246 = vmatprep.subr.mxu0 0.0
        %7247 = vmatpush2.msra.mxu0 0.0
        %7248 = vmatprep.subr.mxu0 0.0
        %7249 = vmatpush2.msra.mxu0 0.0
        %7250 = vmatprep.subr.mxu0 0.0
        %7251 = vmatpush2.msra.mxu0 0.0
        %7252 = vmatprep.subr.mxu0 0.0
        %7253 = vmatpush2.msra.mxu0 0.0
        %7254 = vmatprep.subr.mxu0 0.0
        %7255 = vmatpush2.msra.mxu0 0.0
        %7256 = vmatprep.subr.mxu0 0.0
        %7257 = vmatpush2.msra.mxu0 0.0
        %7258 = vmatprep.subr.mxu0 0.0
        %7259 = vmatpush2.msra.mxu0 0.0
        %7260 = vmatprep.subr.mxu0 0.0
        %7261 = vmatpush2.msra.mxu0 0.0
        %7262 = vmatprep.subr.mxu0 0.0
        %7263 = vmatpush2.msra.mxu0 0.0
        %7264 = vmatprep.mubr.f32.mxu0 0.0
        %7265 = vmatmul.mubr.f32.gmra.mxu0 %v3080
        %v7266 = vpop.f32.mrf.mxu0
        %v7267 = vadd.f32 %v2765, %v7266
        %v7268 = vpop.f32.mrf.mxu0
        %v7269 = vadd.f32 %v2769, %v7268
        %7270 = vdwg.mxu0
        %7271 = vmatprep.subr.mxu0 0.0
        %7272 = vmatpush1.msra.mxu0 0.0
        %7273 = vmatprep.subr.mxu0 0.0
        %7274 = vmatpush1.msra.mxu0 0.0
        %7275 = vmatprep.subr.mxu0 0.0
        %7276 = vmatpush1.msra.mxu0 0.0
        %7277 = vmatprep.subr.mxu0 0.0
        %7278 = vmatpush1.msra.mxu0 0.0
        %7279 = vmatprep.subr.mxu0 0.0
        %7280 = vmatpush1.msra.mxu0 0.0
        %7281 = vmatprep.subr.mxu0 0.0
        %7282 = vmatpush1.msra.mxu0 0.0
        %7283 = vmatprep.subr.mxu0 0.0
        %7284 = vmatpush1.msra.mxu0 0.0
        %7285 = vmatprep.subr.mxu0 0.0
        %7286 = vmatpush1.msra.mxu0 0.0
        %7287 = vmatprep.subr.mxu0 0.0
        %7288 = vmatpush1.msra.mxu0 0.0
        %7289 = vmatprep.subr.mxu0 0.0
        %7290 = vmatpush1.msra.mxu0 0.0
        %7291 = vmatprep.subr.mxu0 0.0
        %7292 = vmatpush1.msra.mxu0 0.0
        %7293 = vmatprep.subr.mxu0 0.0
        %7294 = vmatpush1.msra.mxu0 0.0
        %7295 = vmatprep.subr.mxu0 %v2221
        %7296 = vmatpush1.msra.mxu0 %v2220
        %7297 = vmatprep.subr.mxu0 %v2065
        %7298 = vmatpush1.msra.mxu0 %v2064
        %7299 = vmatprep.subr.mxu0 %v1909
        %7300 = vmatpush1.msra.mxu0 %v1908
        %7301 = vmatprep.subr.mxu0 %v1753
        %7302 = vmatpush1.msra.mxu0 %v1752
        %7303 = vmatprep.subr.mxu0 0.0
        %7304 = vmatpush2.msra.mxu0 0.0
        %7305 = vmatprep.subr.mxu0 0.0
        %7306 = vmatpush2.msra.mxu0 0.0
        %7307 = vmatprep.subr.mxu0 0.0
        %7308 = vmatpush2.msra.mxu0 0.0
        %7309 = vmatprep.subr.mxu0 0.0
        %7310 = vmatpush2.msra.mxu0 0.0
        %7311 = vmatprep.subr.mxu0 0.0
        %7312 = vmatpush2.msra.mxu0 0.0
        %7313 = vmatprep.subr.mxu0 0.0
        %7314 = vmatpush2.msra.mxu0 0.0
        %7315 = vmatprep.subr.mxu0 0.0
        %7316 = vmatpush2.msra.mxu0 0.0
        %7317 = vmatprep.subr.mxu0 0.0
        %7318 = vmatpush2.msra.mxu0 0.0
        %7319 = vmatprep.subr.mxu0 0.0
        %7320 = vmatpush2.msra.mxu0 0.0
        %7321 = vmatprep.subr.mxu0 0.0
        %7322 = vmatpush2.msra.mxu0 0.0
        %7323 = vmatprep.subr.mxu0 0.0
        %7324 = vmatpush2.msra.mxu0 0.0
        %7325 = vmatprep.subr.mxu0 0.0
        %7326 = vmatpush2.msra.mxu0 0.0
        %7327 = vmatprep.subr.mxu0 0.0
        %7328 = vmatpush2.msra.mxu0 0.0
        %7329 = vmatprep.subr.mxu0 0.0
        %7330 = vmatpush2.msra.mxu0 0.0
        %7331 = vmatprep.subr.mxu0 0.0
        %7332 = vmatpush2.msra.mxu0 0.0
        %7333 = vmatprep.subr.mxu0 0.0
        %7334 = vmatpush2.msra.mxu0 0.0
        %7335 = vmatprep.mubr.f32.mxu0 0.0
        %7336 = vmatmul.mubr.f32.gmra.mxu0 %v3080
        %v7337 = vpop.f32.mrf.mxu0
        %v7338 = vadd.f32 %v2773, %v7337
        %v7339 = vpop.f32.mrf.mxu0
        %v7340 = vadd.f32 %v2777, %v7339
        %7341 = vdwg.mxu0
        %7342 = vmatprep.subr.mxu0 0.0
        %7343 = vmatpush1.msra.mxu0 0.0
        %7344 = vmatprep.subr.mxu0 0.0
        %7345 = vmatpush1.msra.mxu0 0.0
        %7346 = vmatprep.subr.mxu0 0.0
        %7347 = vmatpush1.msra.mxu0 0.0
        %7348 = vmatprep.subr.mxu0 0.0
        %7349 = vmatpush1.msra.mxu0 0.0
        %7350 = vmatprep.subr.mxu0 0.0
        %7351 = vmatpush1.msra.mxu0 0.0
        %7352 = vmatprep.subr.mxu0 0.0
        %7353 = vmatpush1.msra.mxu0 0.0
        %7354 = vmatprep.subr.mxu0 0.0
        %7355 = vmatpush1.msra.mxu0 0.0
        %7356 = vmatprep.subr.mxu0 0.0
        %7357 = vmatpush1.msra.mxu0 0.0
        %7358 = vmatprep.subr.mxu0 0.0
        %7359 = vmatpush1.msra.mxu0 0.0
        %7360 = vmatprep.subr.mxu0 0.0
        %7361 = vmatpush1.msra.mxu0 0.0
        %7362 = vmatprep.subr.mxu0 0.0
        %7363 = vmatpush1.msra.mxu0 0.0
        %7364 = vmatprep.subr.mxu0 0.0
        %7365 = vmatpush1.msra.mxu0 0.0
        %7366 = vmatprep.subr.mxu0 %v2223
        %7367 = vmatpush1.msra.mxu0 %v2222
        %7368 = vmatprep.subr.mxu0 %v2067
        %7369 = vmatpush1.msra.mxu0 %v2066
        %7370 = vmatprep.subr.mxu0 %v1911
        %7371 = vmatpush1.msra.mxu0 %v1910
        %7372 = vmatprep.subr.mxu0 %v1755
        %7373 = vmatpush1.msra.mxu0 %v1754
        %7374 = vmatprep.subr.mxu0 0.0
        %7375 = vmatpush2.msra.mxu0 0.0
        %7376 = vmatprep.subr.mxu0 0.0
        %7377 = vmatpush2.msra.mxu0 0.0
        %7378 = vmatprep.subr.mxu0 0.0
        %7379 = vmatpush2.msra.mxu0 0.0
        %7380 = vmatprep.subr.mxu0 0.0
        %7381 = vmatpush2.msra.mxu0 0.0
        %7382 = vmatprep.subr.mxu0 0.0
        %7383 = vmatpush2.msra.mxu0 0.0
        %7384 = vmatprep.subr.mxu0 0.0
        %7385 = vmatpush2.msra.mxu0 0.0
        %7386 = vmatprep.subr.mxu0 0.0
        %7387 = vmatpush2.msra.mxu0 0.0
        %7388 = vmatprep.subr.mxu0 0.0
        %7389 = vmatpush2.msra.mxu0 0.0
        %7390 = vmatprep.subr.mxu0 0.0
        %7391 = vmatpush2.msra.mxu0 0.0
        %7392 = vmatprep.subr.mxu0 0.0
        %7393 = vmatpush2.msra.mxu0 0.0
        %7394 = vmatprep.subr.mxu0 0.0
        %7395 = vmatpush2.msra.mxu0 0.0
        %7396 = vmatprep.subr.mxu0 0.0
        %7397 = vmatpush2.msra.mxu0 0.0
        %7398 = vmatprep.subr.mxu0 0.0
        %7399 = vmatpush2.msra.mxu0 0.0
        %7400 = vmatprep.subr.mxu0 0.0
        %7401 = vmatpush2.msra.mxu0 0.0
        %7402 = vmatprep.subr.mxu0 0.0
        %7403 = vmatpush2.msra.mxu0 0.0
        %7404 = vmatprep.subr.mxu0 0.0
        %7405 = vmatpush2.msra.mxu0 0.0
        %7406 = vmatprep.mubr.f32.mxu0 0.0
        %7407 = vmatmul.mubr.f32.gmra.mxu0 %v3080
        %v7408 = vpop.f32.mrf.mxu0
        %v7409 = vadd.f32 %v2781, %v7408
        %v7410 = vpop.f32.mrf.mxu0
        %v7411 = vadd.f32 %v2785, %v7410
        %7412 = vdwg.mxu0
        %7413 = vmatprep.subr.mxu0 0.0
        %7414 = vmatpush1.msra.mxu0 0.0
        %7415 = vmatprep.subr.mxu0 0.0
        %7416 = vmatpush1.msra.mxu0 0.0
        %7417 = vmatprep.subr.mxu0 0.0
        %7418 = vmatpush1.msra.mxu0 0.0
        %7419 = vmatprep.subr.mxu0 0.0
        %7420 = vmatpush1.msra.mxu0 0.0
        %7421 = vmatprep.subr.mxu0 0.0
        %7422 = vmatpush1.msra.mxu0 0.0
        %7423 = vmatprep.subr.mxu0 0.0
        %7424 = vmatpush1.msra.mxu0 0.0
        %7425 = vmatprep.subr.mxu0 0.0
        %7426 = vmatpush1.msra.mxu0 0.0
        %7427 = vmatprep.subr.mxu0 0.0
        %7428 = vmatpush1.msra.mxu0 0.0
        %7429 = vmatprep.subr.mxu0 0.0
        %7430 = vmatpush1.msra.mxu0 0.0
        %7431 = vmatprep.subr.mxu0 0.0
        %7432 = vmatpush1.msra.mxu0 0.0
        %7433 = vmatprep.subr.mxu0 0.0
        %7434 = vmatpush1.msra.mxu0 0.0
        %7435 = vmatprep.subr.mxu0 0.0
        %7436 = vmatpush1.msra.mxu0 0.0
        %7437 = vmatprep.subr.mxu0 %v2225
        %7438 = vmatpush1.msra.mxu0 %v2224
        %7439 = vmatprep.subr.mxu0 %v2069
        %7440 = vmatpush1.msra.mxu0 %v2068
        %7441 = vmatprep.subr.mxu0 %v1913
        %7442 = vmatpush1.msra.mxu0 %v1912
        %7443 = vmatprep.subr.mxu0 %v1757
        %7444 = vmatpush1.msra.mxu0 %v1756
        %7445 = vmatprep.subr.mxu0 0.0
        %7446 = vmatpush2.msra.mxu0 0.0
        %7447 = vmatprep.subr.mxu0 0.0
        %7448 = vmatpush2.msra.mxu0 0.0
        %7449 = vmatprep.subr.mxu0 0.0
        %7450 = vmatpush2.msra.mxu0 0.0
        %7451 = vmatprep.subr.mxu0 0.0
        %7452 = vmatpush2.msra.mxu0 0.0
        %7453 = vmatprep.subr.mxu0 0.0
        %7454 = vmatpush2.msra.mxu0 0.0
        %7455 = vmatprep.subr.mxu0 0.0
        %7456 = vmatpush2.msra.mxu0 0.0
        %7457 = vmatprep.subr.mxu0 0.0
        %7458 = vmatpush2.msra.mxu0 0.0
        %7459 = vmatprep.subr.mxu0 0.0
        %7460 = vmatpush2.msra.mxu0 0.0
        %7461 = vmatprep.subr.mxu0 0.0
        %7462 = vmatpush2.msra.mxu0 0.0
        %7463 = vmatprep.subr.mxu0 0.0
        %7464 = vmatpush2.msra.mxu0 0.0
        %7465 = vmatprep.subr.mxu0 0.0
        %7466 = vmatpush2.msra.mxu0 0.0
        %7467 = vmatprep.subr.mxu0 0.0
        %7468 = vmatpush2.msra.mxu0 0.0
        %7469 = vmatprep.subr.mxu0 0.0
        %7470 = vmatpush2.msra.mxu0 0.0
        %7471 = vmatprep.subr.mxu0 0.0
        %7472 = vmatpush2.msra.mxu0 0.0
        %7473 = vmatprep.subr.mxu0 0.0
        %7474 = vmatpush2.msra.mxu0 0.0
        %7475 = vmatprep.subr.mxu0 0.0
        %7476 = vmatpush2.msra.mxu0 0.0
        %7477 = vmatprep.mubr.f32.mxu0 0.0
        %7478 = vmatmul.mubr.f32.gmra.mxu0 %v3080
        %v7479 = vpop.f32.mrf.mxu0
        %v7480 = vadd.f32 %v2789, %v7479
        %v7481 = vpop.f32.mrf.mxu0
        %v7482 = vadd.f32 %v2793, %v7481
        %7483 = vdwg.mxu0
        %7484 = vmatprep.subr.mxu0 0.0
        %7485 = vmatpush1.msra.mxu0 0.0
        %7486 = vmatprep.subr.mxu0 0.0
        %7487 = vmatpush1.msra.mxu0 0.0
        %7488 = vmatprep.subr.mxu0 0.0
        %7489 = vmatpush1.msra.mxu0 0.0
        %7490 = vmatprep.subr.mxu0 0.0
        %7491 = vmatpush1.msra.mxu0 0.0
        %7492 = vmatprep.subr.mxu0 0.0
        %7493 = vmatpush1.msra.mxu0 0.0
        %7494 = vmatprep.subr.mxu0 0.0
        %7495 = vmatpush1.msra.mxu0 0.0
        %7496 = vmatprep.subr.mxu0 0.0
        %7497 = vmatpush1.msra.mxu0 0.0
        %7498 = vmatprep.subr.mxu0 0.0
        %7499 = vmatpush1.msra.mxu0 0.0
        %7500 = vmatprep.subr.mxu0 0.0
        %7501 = vmatpush1.msra.mxu0 0.0
        %7502 = vmatprep.subr.mxu0 0.0
        %7503 = vmatpush1.msra.mxu0 0.0
        %7504 = vmatprep.subr.mxu0 0.0
        %7505 = vmatpush1.msra.mxu0 0.0
        %7506 = vmatprep.subr.mxu0 0.0
        %7507 = vmatpush1.msra.mxu0 0.0
        %7508 = vmatprep.subr.mxu0 %v2227
        %7509 = vmatpush1.msra.mxu0 %v2226
        %7510 = vmatprep.subr.mxu0 %v2071
        %7511 = vmatpush1.msra.mxu0 %v2070
        %7512 = vmatprep.subr.mxu0 %v1915
        %7513 = vmatpush1.msra.mxu0 %v1914
        %7514 = vmatprep.subr.mxu0 %v1759
        %7515 = vmatpush1.msra.mxu0 %v1758
        %7516 = vmatprep.subr.mxu0 0.0
        %7517 = vmatpush2.msra.mxu0 0.0
        %7518 = vmatprep.subr.mxu0 0.0
        %7519 = vmatpush2.msra.mxu0 0.0
        %7520 = vmatprep.subr.mxu0 0.0
        %7521 = vmatpush2.msra.mxu0 0.0
        %7522 = vmatprep.subr.mxu0 0.0
        %7523 = vmatpush2.msra.mxu0 0.0
        %7524 = vmatprep.subr.mxu0 0.0
        %7525 = vmatpush2.msra.mxu0 0.0
        %7526 = vmatprep.subr.mxu0 0.0
        %7527 = vmatpush2.msra.mxu0 0.0
        %7528 = vmatprep.subr.mxu0 0.0
        %7529 = vmatpush2.msra.mxu0 0.0
        %7530 = vmatprep.subr.mxu0 0.0
        %7531 = vmatpush2.msra.mxu0 0.0
        %7532 = vmatprep.subr.mxu0 0.0
        %7533 = vmatpush2.msra.mxu0 0.0
        %7534 = vmatprep.subr.mxu0 0.0
        %7535 = vmatpush2.msra.mxu0 0.0
        %7536 = vmatprep.subr.mxu0 0.0
        %7537 = vmatpush2.msra.mxu0 0.0
        %7538 = vmatprep.subr.mxu0 0.0
        %7539 = vmatpush2.msra.mxu0 0.0
        %7540 = vmatprep.subr.mxu0 0.0
        %7541 = vmatpush2.msra.mxu0 0.0
        %7542 = vmatprep.subr.mxu0 0.0
        %7543 = vmatpush2.msra.mxu0 0.0
        %7544 = vmatprep.subr.mxu0 0.0
        %7545 = vmatpush2.msra.mxu0 0.0
        %7546 = vmatprep.subr.mxu0 0.0
        %7547 = vmatpush2.msra.mxu0 0.0
        %7548 = vmatprep.mubr.f32.mxu0 0.0
        %7549 = vmatmul.mubr.f32.gmra.mxu0 %v3080
        %v7550 = vpop.f32.mrf.mxu0
        %v7551 = vadd.f32 %v2797, %v7550
        %v7552 = vpop.f32.mrf.mxu0
        %v7553 = vadd.f32 %v2801, %v7552
        %7554 = vdwg.mxu0
        %7555 = vmatprep.subr.mxu0 0.0
        %7556 = vmatpush1.msra.mxu0 0.0
        %7557 = vmatprep.subr.mxu0 0.0
        %7558 = vmatpush1.msra.mxu0 0.0
        %7559 = vmatprep.subr.mxu0 0.0
        %7560 = vmatpush1.msra.mxu0 0.0
        %7561 = vmatprep.subr.mxu0 0.0
        %7562 = vmatpush1.msra.mxu0 0.0
        %7563 = vmatprep.subr.mxu0 0.0
        %7564 = vmatpush1.msra.mxu0 0.0
        %7565 = vmatprep.subr.mxu0 0.0
        %7566 = vmatpush1.msra.mxu0 0.0
        %7567 = vmatprep.subr.mxu0 0.0
        %7568 = vmatpush1.msra.mxu0 0.0
        %7569 = vmatprep.subr.mxu0 0.0
        %7570 = vmatpush1.msra.mxu0 0.0
        %7571 = vmatprep.subr.mxu0 0.0
        %7572 = vmatpush1.msra.mxu0 0.0
        %7573 = vmatprep.subr.mxu0 0.0
        %7574 = vmatpush1.msra.mxu0 0.0
        %7575 = vmatprep.subr.mxu0 0.0
        %7576 = vmatpush1.msra.mxu0 0.0
        %7577 = vmatprep.subr.mxu0 0.0
        %7578 = vmatpush1.msra.mxu0 0.0
        %7579 = vmatprep.subr.mxu0 %v2229
        %7580 = vmatpush1.msra.mxu0 %v2228
        %7581 = vmatprep.subr.mxu0 %v2073
        %7582 = vmatpush1.msra.mxu0 %v2072
        %7583 = vmatprep.subr.mxu0 %v1917
        %7584 = vmatpush1.msra.mxu0 %v1916
        %7585 = vmatprep.subr.mxu0 %v1761
        %7586 = vmatpush1.msra.mxu0 %v1760
        %7587 = vmatprep.subr.mxu0 0.0
        %7588 = vmatpush2.msra.mxu0 0.0
        %7589 = vmatprep.subr.mxu0 0.0
        %7590 = vmatpush2.msra.mxu0 0.0
        %7591 = vmatprep.subr.mxu0 0.0
        %7592 = vmatpush2.msra.mxu0 0.0
        %7593 = vmatprep.subr.mxu0 0.0
        %7594 = vmatpush2.msra.mxu0 0.0
        %7595 = vmatprep.subr.mxu0 0.0
        %7596 = vmatpush2.msra.mxu0 0.0
        %7597 = vmatprep.subr.mxu0 0.0
        %7598 = vmatpush2.msra.mxu0 0.0
        %7599 = vmatprep.subr.mxu0 0.0
        %7600 = vmatpush2.msra.mxu0 0.0
        %7601 = vmatprep.subr.mxu0 0.0
        %7602 = vmatpush2.msra.mxu0 0.0
        %7603 = vmatprep.subr.mxu0 0.0
        %7604 = vmatpush2.msra.mxu0 0.0
        %7605 = vmatprep.subr.mxu0 0.0
        %7606 = vmatpush2.msra.mxu0 0.0
        %7607 = vmatprep.subr.mxu0 0.0
        %7608 = vmatpush2.msra.mxu0 0.0
        %7609 = vmatprep.subr.mxu0 0.0
        %7610 = vmatpush2.msra.mxu0 0.0
        %7611 = vmatprep.subr.mxu0 0.0
        %7612 = vmatpush2.msra.mxu0 0.0
        %7613 = vmatprep.subr.mxu0 0.0
        %7614 = vmatpush2.msra.mxu0 0.0
        %7615 = vmatprep.subr.mxu0 0.0
        %7616 = vmatpush2.msra.mxu0 0.0
        %7617 = vmatprep.subr.mxu0 0.0
        %7618 = vmatpush2.msra.mxu0 0.0
        %7619 = vmatprep.mubr.f32.mxu0 0.0
        %7620 = vmatmul.mubr.f32.gmra.mxu0 %v3080
        %v7621 = vpop.f32.mrf.mxu0
        %v7622 = vadd.f32 %v2805, %v7621
        %v7623 = vpop.f32.mrf.mxu0
        %v7624 = vadd.f32 %v2809, %v7623
        %7625 = vdwg.mxu0
        %7626 = vmatprep.subr.mxu0 0.0
        %7627 = vmatpush1.msra.mxu0 0.0
        %7628 = vmatprep.subr.mxu0 0.0
        %7629 = vmatpush1.msra.mxu0 0.0
        %7630 = vmatprep.subr.mxu0 0.0
        %7631 = vmatpush1.msra.mxu0 0.0
        %7632 = vmatprep.subr.mxu0 0.0
        %7633 = vmatpush1.msra.mxu0 0.0
        %7634 = vmatprep.subr.mxu0 0.0
        %7635 = vmatpush1.msra.mxu0 0.0
        %7636 = vmatprep.subr.mxu0 0.0
        %7637 = vmatpush1.msra.mxu0 0.0
        %7638 = vmatprep.subr.mxu0 0.0
        %7639 = vmatpush1.msra.mxu0 0.0
        %7640 = vmatprep.subr.mxu0 0.0
        %7641 = vmatpush1.msra.mxu0 0.0
        %7642 = vmatprep.subr.mxu0 0.0
        %7643 = vmatpush1.msra.mxu0 0.0
        %7644 = vmatprep.subr.mxu0 0.0
        %7645 = vmatpush1.msra.mxu0 0.0
        %7646 = vmatprep.subr.mxu0 0.0
        %7647 = vmatpush1.msra.mxu0 0.0
        %7648 = vmatprep.subr.mxu0 0.0
        %7649 = vmatpush1.msra.mxu0 0.0
        %7650 = vmatprep.subr.mxu0 %v2231
        %7651 = vmatpush1.msra.mxu0 %v2230
        %7652 = vmatprep.subr.mxu0 %v2075
        %7653 = vmatpush1.msra.mxu0 %v2074
        %7654 = vmatprep.subr.mxu0 %v1919
        %7655 = vmatpush1.msra.mxu0 %v1918
        %7656 = vmatprep.subr.mxu0 %v1763
        %7657 = vmatpush1.msra.mxu0 %v1762
        %7658 = vmatprep.subr.mxu0 0.0
        %7659 = vmatpush2.msra.mxu0 0.0
        %7660 = vmatprep.subr.mxu0 0.0
        %7661 = vmatpush2.msra.mxu0 0.0
        %7662 = vmatprep.subr.mxu0 0.0
        %7663 = vmatpush2.msra.mxu0 0.0
        %7664 = vmatprep.subr.mxu0 0.0
        %7665 = vmatpush2.msra.mxu0 0.0
        %7666 = vmatprep.subr.mxu0 0.0
        %7667 = vmatpush2.msra.mxu0 0.0
        %7668 = vmatprep.subr.mxu0 0.0
        %7669 = vmatpush2.msra.mxu0 0.0
        %7670 = vmatprep.subr.mxu0 0.0
        %7671 = vmatpush2.msra.mxu0 0.0
        %7672 = vmatprep.subr.mxu0 0.0
        %7673 = vmatpush2.msra.mxu0 0.0
        %7674 = vmatprep.subr.mxu0 0.0
        %7675 = vmatpush2.msra.mxu0 0.0
        %7676 = vmatprep.subr.mxu0 0.0
        %7677 = vmatpush2.msra.mxu0 0.0
        %7678 = vmatprep.subr.mxu0 0.0
        %7679 = vmatpush2.msra.mxu0 0.0
        %7680 = vmatprep.subr.mxu0 0.0
        %7681 = vmatpush2.msra.mxu0 0.0
        %7682 = vmatprep.subr.mxu0 0.0
        %7683 = vmatpush2.msra.mxu0 0.0
        %7684 = vmatprep.subr.mxu0 0.0
        %7685 = vmatpush2.msra.mxu0 0.0
        %7686 = vmatprep.subr.mxu0 0.0
        %7687 = vmatpush2.msra.mxu0 0.0
        %7688 = vmatprep.subr.mxu0 0.0
        %7689 = vmatpush2.msra.mxu0 0.0
        %7690 = vmatprep.mubr.f32.mxu0 0.0
        %7691 = vmatmul.mubr.f32.gmra.mxu0 %v3080
        %v7692 = vpop.f32.mrf.mxu0
        %v7693 = vadd.f32 %v2813, %v7692
        %v7694 = vpop.f32.mrf.mxu0
        %v7695 = vadd.f32 %v2817, %v7694
        %7696 = vdwg.mxu0
        %7697 = vmatprep.subr.mxu0 0.0
        %7698 = vmatpush1.msra.mxu0 0.0
        %7699 = vmatprep.subr.mxu0 0.0
        %7700 = vmatpush1.msra.mxu0 0.0
        %7701 = vmatprep.subr.mxu0 0.0
        %7702 = vmatpush1.msra.mxu0 0.0
        %7703 = vmatprep.subr.mxu0 0.0
        %7704 = vmatpush1.msra.mxu0 0.0
        %7705 = vmatprep.subr.mxu0 0.0
        %7706 = vmatpush1.msra.mxu0 0.0
        %7707 = vmatprep.subr.mxu0 0.0
        %7708 = vmatpush1.msra.mxu0 0.0
        %7709 = vmatprep.subr.mxu0 0.0
        %7710 = vmatpush1.msra.mxu0 0.0
        %7711 = vmatprep.subr.mxu0 0.0
        %7712 = vmatpush1.msra.mxu0 0.0
        %7713 = vmatprep.subr.mxu0 0.0
        %7714 = vmatpush1.msra.mxu0 0.0
        %7715 = vmatprep.subr.mxu0 0.0
        %7716 = vmatpush1.msra.mxu0 0.0
        %7717 = vmatprep.subr.mxu0 0.0
        %7718 = vmatpush1.msra.mxu0 0.0
        %7719 = vmatprep.subr.mxu0 0.0
        %7720 = vmatpush1.msra.mxu0 0.0
        %7721 = vmatprep.subr.mxu0 %v2233
        %7722 = vmatpush1.msra.mxu0 %v2232
        %7723 = vmatprep.subr.mxu0 %v2077
        %7724 = vmatpush1.msra.mxu0 %v2076
        %7725 = vmatprep.subr.mxu0 %v1921
        %7726 = vmatpush1.msra.mxu0 %v1920
        %7727 = vmatprep.subr.mxu0 %v1765
        %7728 = vmatpush1.msra.mxu0 %v1764
        %7729 = vmatprep.subr.mxu0 0.0
        %7730 = vmatpush2.msra.mxu0 0.0
        %7731 = vmatprep.subr.mxu0 0.0
        %7732 = vmatpush2.msra.mxu0 0.0
        %7733 = vmatprep.subr.mxu0 0.0
        %7734 = vmatpush2.msra.mxu0 0.0
        %7735 = vmatprep.subr.mxu0 0.0
        %7736 = vmatpush2.msra.mxu0 0.0
        %7737 = vmatprep.subr.mxu0 0.0
        %7738 = vmatpush2.msra.mxu0 0.0
        %7739 = vmatprep.subr.mxu0 0.0
        %7740 = vmatpush2.msra.mxu0 0.0
        %7741 = vmatprep.subr.mxu0 0.0
        %7742 = vmatpush2.msra.mxu0 0.0
        %7743 = vmatprep.subr.mxu0 0.0
        %7744 = vmatpush2.msra.mxu0 0.0
        %7745 = vmatprep.subr.mxu0 0.0
        %7746 = vmatpush2.msra.mxu0 0.0
        %7747 = vmatprep.subr.mxu0 0.0
        %7748 = vmatpush2.msra.mxu0 0.0
        %7749 = vmatprep.subr.mxu0 0.0
        %7750 = vmatpush2.msra.mxu0 0.0
        %7751 = vmatprep.subr.mxu0 0.0
        %7752 = vmatpush2.msra.mxu0 0.0
        %7753 = vmatprep.subr.mxu0 0.0
        %7754 = vmatpush2.msra.mxu0 0.0
        %7755 = vmatprep.subr.mxu0 0.0
        %7756 = vmatpush2.msra.mxu0 0.0
        %7757 = vmatprep.subr.mxu0 0.0
        %7758 = vmatpush2.msra.mxu0 0.0
        %7759 = vmatprep.subr.mxu0 0.0
        %7760 = vmatpush2.msra.mxu0 0.0
        %7761 = vmatprep.mubr.f32.mxu0 0.0
        %7762 = vmatmul.mubr.f32.gmra.mxu0 %v3080
        %v7763 = vpop.f32.mrf.mxu0
        %v7764 = vadd.f32 %v2821, %v7763
        %v7765 = vpop.f32.mrf.mxu0
        %v7766 = vadd.f32 %v2825, %v7765
        %7767 = vdwg.mxu0
        %7768 = vmatprep.subr.mxu0 0.0
        %7769 = vmatpush1.msra.mxu0 0.0
        %7770 = vmatprep.subr.mxu0 0.0
        %7771 = vmatpush1.msra.mxu0 0.0
        %7772 = vmatprep.subr.mxu0 0.0
        %7773 = vmatpush1.msra.mxu0 0.0
        %7774 = vmatprep.subr.mxu0 0.0
        %7775 = vmatpush1.msra.mxu0 0.0
        %7776 = vmatprep.subr.mxu0 0.0
        %7777 = vmatpush1.msra.mxu0 0.0
        %7778 = vmatprep.subr.mxu0 0.0
        %7779 = vmatpush1.msra.mxu0 0.0
        %7780 = vmatprep.subr.mxu0 0.0
        %7781 = vmatpush1.msra.mxu0 0.0
        %7782 = vmatprep.subr.mxu0 0.0
        %7783 = vmatpush1.msra.mxu0 0.0
        %7784 = vmatprep.subr.mxu0 0.0
        %7785 = vmatpush1.msra.mxu0 0.0
        %7786 = vmatprep.subr.mxu0 0.0
        %7787 = vmatpush1.msra.mxu0 0.0
        %7788 = vmatprep.subr.mxu0 0.0
        %7789 = vmatpush1.msra.mxu0 0.0
        %7790 = vmatprep.subr.mxu0 0.0
        %7791 = vmatpush1.msra.mxu0 0.0
        %7792 = vmatprep.subr.mxu0 %v2235
        %7793 = vmatpush1.msra.mxu0 %v2234
        %7794 = vmatprep.subr.mxu0 %v2079
        %7795 = vmatpush1.msra.mxu0 %v2078
        %7796 = vmatprep.subr.mxu0 %v1923
        %7797 = vmatpush1.msra.mxu0 %v1922
        %7798 = vmatprep.subr.mxu0 %v1767
        %7799 = vmatpush1.msra.mxu0 %v1766
        %7800 = vmatprep.subr.mxu0 0.0
        %7801 = vmatpush2.msra.mxu0 0.0
        %7802 = vmatprep.subr.mxu0 0.0
        %7803 = vmatpush2.msra.mxu0 0.0
        %7804 = vmatprep.subr.mxu0 0.0
        %7805 = vmatpush2.msra.mxu0 0.0
        %7806 = vmatprep.subr.mxu0 0.0
        %7807 = vmatpush2.msra.mxu0 0.0
        %7808 = vmatprep.subr.mxu0 0.0
        %7809 = vmatpush2.msra.mxu0 0.0
        %7810 = vmatprep.subr.mxu0 0.0
        %7811 = vmatpush2.msra.mxu0 0.0
        %7812 = vmatprep.subr.mxu0 0.0
        %7813 = vmatpush2.msra.mxu0 0.0
        %7814 = vmatprep.subr.mxu0 0.0
        %7815 = vmatpush2.msra.mxu0 0.0
        %7816 = vmatprep.subr.mxu0 0.0
        %7817 = vmatpush2.msra.mxu0 0.0
        %7818 = vmatprep.subr.mxu0 0.0
        %7819 = vmatpush2.msra.mxu0 0.0
        %7820 = vmatprep.subr.mxu0 0.0
        %7821 = vmatpush2.msra.mxu0 0.0
        %7822 = vmatprep.subr.mxu0 0.0
        %7823 = vmatpush2.msra.mxu0 0.0
        %7824 = vmatprep.subr.mxu0 0.0
        %7825 = vmatpush2.msra.mxu0 0.0
        %7826 = vmatprep.subr.mxu0 0.0
        %7827 = vmatpush2.msra.mxu0 0.0
        %7828 = vmatprep.subr.mxu0 0.0
        %7829 = vmatpush2.msra.mxu0 0.0
        %7830 = vmatprep.subr.mxu0 0.0
        %7831 = vmatpush2.msra.mxu0 0.0
        %7832 = vmatprep.mubr.f32.mxu0 0.0
        %7833 = vmatmul.mubr.f32.gmra.mxu0 %v3080
        %v7834 = vpop.f32.mrf.mxu0
        %v7835 = vadd.f32 %v2829, %v7834
        %v7836 = vpop.f32.mrf.mxu0
        %v7837 = vadd.f32 %v2833, %v7836
        %7838 = vdwg.mxu0
        %7839 = vmatprep.subr.mxu0 0.0
        %7840 = vmatpush1.msra.mxu0 0.0
        %7841 = vmatprep.subr.mxu0 0.0
        %7842 = vmatpush1.msra.mxu0 0.0
        %7843 = vmatprep.subr.mxu0 0.0
        %7844 = vmatpush1.msra.mxu0 0.0
        %7845 = vmatprep.subr.mxu0 0.0
        %7846 = vmatpush1.msra.mxu0 0.0
        %7847 = vmatprep.subr.mxu0 0.0
        %7848 = vmatpush1.msra.mxu0 0.0
        %7849 = vmatprep.subr.mxu0 0.0
        %7850 = vmatpush1.msra.mxu0 0.0
        %7851 = vmatprep.subr.mxu0 0.0
        %7852 = vmatpush1.msra.mxu0 0.0
        %7853 = vmatprep.subr.mxu0 0.0
        %7854 = vmatpush1.msra.mxu0 0.0
        %7855 = vmatprep.subr.mxu0 0.0
        %7856 = vmatpush1.msra.mxu0 0.0
        %7857 = vmatprep.subr.mxu0 0.0
        %7858 = vmatpush1.msra.mxu0 0.0
        %7859 = vmatprep.subr.mxu0 0.0
        %7860 = vmatpush1.msra.mxu0 0.0
        %7861 = vmatprep.subr.mxu0 0.0
        %7862 = vmatpush1.msra.mxu0 0.0
        %7863 = vmatprep.subr.mxu0 %v2237
        %7864 = vmatpush1.msra.mxu0 %v2236
        %7865 = vmatprep.subr.mxu0 %v2081
        %7866 = vmatpush1.msra.mxu0 %v2080
        %7867 = vmatprep.subr.mxu0 %v1925
        %7868 = vmatpush1.msra.mxu0 %v1924
        %7869 = vmatprep.subr.mxu0 %v1769
        %7870 = vmatpush1.msra.mxu0 %v1768
        %7871 = vmatprep.subr.mxu0 0.0
        %7872 = vmatpush2.msra.mxu0 0.0
        %7873 = vmatprep.subr.mxu0 0.0
        %7874 = vmatpush2.msra.mxu0 0.0
        %7875 = vmatprep.subr.mxu0 0.0
        %7876 = vmatpush2.msra.mxu0 0.0
        %7877 = vmatprep.subr.mxu0 0.0
        %7878 = vmatpush2.msra.mxu0 0.0
        %7879 = vmatprep.subr.mxu0 0.0
        %7880 = vmatpush2.msra.mxu0 0.0
        %7881 = vmatprep.subr.mxu0 0.0
        %7882 = vmatpush2.msra.mxu0 0.0
        %7883 = vmatprep.subr.mxu0 0.0
        %7884 = vmatpush2.msra.mxu0 0.0
        %7885 = vmatprep.subr.mxu0 0.0
        %7886 = vmatpush2.msra.mxu0 0.0
        %7887 = vmatprep.subr.mxu0 0.0
        %7888 = vmatpush2.msra.mxu0 0.0
        %7889 = vmatprep.subr.mxu0 0.0
        %7890 = vmatpush2.msra.mxu0 0.0
        %7891 = vmatprep.subr.mxu0 0.0
        %7892 = vmatpush2.msra.mxu0 0.0
        %7893 = vmatprep.subr.mxu0 0.0
        %7894 = vmatpush2.msra.mxu0 0.0
        %7895 = vmatprep.subr.mxu0 0.0
        %7896 = vmatpush2.msra.mxu0 0.0
        %7897 = vmatprep.subr.mxu0 0.0
        %7898 = vmatpush2.msra.mxu0 0.0
        %7899 = vmatprep.subr.mxu0 0.0
        %7900 = vmatpush2.msra.mxu0 0.0
        %7901 = vmatprep.subr.mxu0 0.0
        %7902 = vmatpush2.msra.mxu0 0.0
        %7903 = vmatprep.mubr.f32.mxu0 0.0
        %7904 = vmatmul.mubr.f32.gmra.mxu0 %v3080
        %v7905 = vpop.f32.mrf.mxu0
        %v7906 = vadd.f32 %v2837, %v7905
        %v7907 = vpop.f32.mrf.mxu0
        %v7908 = vadd.f32 %v2841, %v7907
        %7909 = vdwg.mxu0
        %7910 = vmatprep.subr.mxu0 0.0
        %7911 = vmatpush1.msra.mxu0 0.0
        %7912 = vmatprep.subr.mxu0 0.0
        %7913 = vmatpush1.msra.mxu0 0.0
        %7914 = vmatprep.subr.mxu0 0.0
        %7915 = vmatpush1.msra.mxu0 0.0
        %7916 = vmatprep.subr.mxu0 0.0
        %7917 = vmatpush1.msra.mxu0 0.0
        %7918 = vmatprep.subr.mxu0 0.0
        %7919 = vmatpush1.msra.mxu0 0.0
        %7920 = vmatprep.subr.mxu0 0.0
        %7921 = vmatpush1.msra.mxu0 0.0
        %7922 = vmatprep.subr.mxu0 0.0
        %7923 = vmatpush1.msra.mxu0 0.0
        %7924 = vmatprep.subr.mxu0 0.0
        %7925 = vmatpush1.msra.mxu0 0.0
        %7926 = vmatprep.subr.mxu0 0.0
        %7927 = vmatpush1.msra.mxu0 0.0
        %7928 = vmatprep.subr.mxu0 0.0
        %7929 = vmatpush1.msra.mxu0 0.0
        %7930 = vmatprep.subr.mxu0 0.0
        %7931 = vmatpush1.msra.mxu0 0.0
        %7932 = vmatprep.subr.mxu0 0.0
        %7933 = vmatpush1.msra.mxu0 0.0
        %7934 = vmatprep.subr.mxu0 %v2239
        %7935 = vmatpush1.msra.mxu0 %v2238
        %7936 = vmatprep.subr.mxu0 %v2083
        %7937 = vmatpush1.msra.mxu0 %v2082
        %7938 = vmatprep.subr.mxu0 %v1927
        %7939 = vmatpush1.msra.mxu0 %v1926
        %7940 = vmatprep.subr.mxu0 %v1771
        %7941 = vmatpush1.msra.mxu0 %v1770
        %7942 = vmatprep.subr.mxu0 0.0
        %7943 = vmatpush2.msra.mxu0 0.0
        %7944 = vmatprep.subr.mxu0 0.0
        %7945 = vmatpush2.msra.mxu0 0.0
        %7946 = vmatprep.subr.mxu0 0.0
        %7947 = vmatpush2.msra.mxu0 0.0
        %7948 = vmatprep.subr.mxu0 0.0
        %7949 = vmatpush2.msra.mxu0 0.0
        %7950 = vmatprep.subr.mxu0 0.0
        %7951 = vmatpush2.msra.mxu0 0.0
        %7952 = vmatprep.subr.mxu0 0.0
        %7953 = vmatpush2.msra.mxu0 0.0
        %7954 = vmatprep.subr.mxu0 0.0
        %7955 = vmatpush2.msra.mxu0 0.0
        %7956 = vmatprep.subr.mxu0 0.0
        %7957 = vmatpush2.msra.mxu0 0.0
        %7958 = vmatprep.subr.mxu0 0.0
        %7959 = vmatpush2.msra.mxu0 0.0
        %7960 = vmatprep.subr.mxu0 0.0
        %7961 = vmatpush2.msra.mxu0 0.0
        %7962 = vmatprep.subr.mxu0 0.0
        %7963 = vmatpush2.msra.mxu0 0.0
        %7964 = vmatprep.subr.mxu0 0.0
        %7965 = vmatpush2.msra.mxu0 0.0
        %7966 = vmatprep.subr.mxu0 0.0
        %7967 = vmatpush2.msra.mxu0 0.0
        %7968 = vmatprep.subr.mxu0 0.0
        %7969 = vmatpush2.msra.mxu0 0.0
        %7970 = vmatprep.subr.mxu0 0.0
        %7971 = vmatpush2.msra.mxu0 0.0
        %7972 = vmatprep.subr.mxu0 0.0
        %7973 = vmatpush2.msra.mxu0 0.0
        %7974 = vmatprep.mubr.f32.mxu0 0.0
        %7975 = vmatmul.mubr.f32.gmra.mxu0 %v3080
        %v7976 = vpop.f32.mrf.mxu0
        %v7977 = vadd.f32 %v2845, %v7976
        %v7978 = vpop.f32.mrf.mxu0
        %v7979 = vadd.f32 %v2849, %v7978
        %7980 = vdwg.mxu0
        %7981 = vmatprep.subr.mxu0 0.0
        %7982 = vmatpush1.msra.mxu0 0.0
        %7983 = vmatprep.subr.mxu0 0.0
        %7984 = vmatpush1.msra.mxu0 0.0
        %7985 = vmatprep.subr.mxu0 0.0
        %7986 = vmatpush1.msra.mxu0 0.0
        %7987 = vmatprep.subr.mxu0 0.0
        %7988 = vmatpush1.msra.mxu0 0.0
        %7989 = vmatprep.subr.mxu0 0.0
        %7990 = vmatpush1.msra.mxu0 0.0
        %7991 = vmatprep.subr.mxu0 0.0
        %7992 = vmatpush1.msra.mxu0 0.0
        %7993 = vmatprep.subr.mxu0 0.0
        %7994 = vmatpush1.msra.mxu0 0.0
        %7995 = vmatprep.subr.mxu0 0.0
        %7996 = vmatpush1.msra.mxu0 0.0
        %7997 = vmatprep.subr.mxu0 0.0
        %7998 = vmatpush1.msra.mxu0 0.0
        %7999 = vmatprep.subr.mxu0 0.0
        %8000 = vmatpush1.msra.mxu0 0.0
        %8001 = vmatprep.subr.mxu0 0.0
        %8002 = vmatpush1.msra.mxu0 0.0
        %8003 = vmatprep.subr.mxu0 0.0
        %8004 = vmatpush1.msra.mxu0 0.0
        %8005 = vmatprep.subr.mxu0 %v2241
        %8006 = vmatpush1.msra.mxu0 %v2240
        %8007 = vmatprep.subr.mxu0 %v2085
        %8008 = vmatpush1.msra.mxu0 %v2084
        %8009 = vmatprep.subr.mxu0 %v1929
        %8010 = vmatpush1.msra.mxu0 %v1928
        %8011 = vmatprep.subr.mxu0 %v1773
        %8012 = vmatpush1.msra.mxu0 %v1772
        %8013 = vmatprep.subr.mxu0 0.0
        %8014 = vmatpush2.msra.mxu0 0.0
        %8015 = vmatprep.subr.mxu0 0.0
        %8016 = vmatpush2.msra.mxu0 0.0
        %8017 = vmatprep.subr.mxu0 0.0
        %8018 = vmatpush2.msra.mxu0 0.0
        %8019 = vmatprep.subr.mxu0 0.0
        %8020 = vmatpush2.msra.mxu0 0.0
        %8021 = vmatprep.subr.mxu0 0.0
        %8022 = vmatpush2.msra.mxu0 0.0
        %8023 = vmatprep.subr.mxu0 0.0
        %8024 = vmatpush2.msra.mxu0 0.0
        %8025 = vmatprep.subr.mxu0 0.0
        %8026 = vmatpush2.msra.mxu0 0.0
        %8027 = vmatprep.subr.mxu0 0.0
        %8028 = vmatpush2.msra.mxu0 0.0
        %8029 = vmatprep.subr.mxu0 0.0
        %8030 = vmatpush2.msra.mxu0 0.0
        %8031 = vmatprep.subr.mxu0 0.0
        %8032 = vmatpush2.msra.mxu0 0.0
        %8033 = vmatprep.subr.mxu0 0.0
        %8034 = vmatpush2.msra.mxu0 0.0
        %8035 = vmatprep.subr.mxu0 0.0
        %8036 = vmatpush2.msra.mxu0 0.0
        %8037 = vmatprep.subr.mxu0 0.0
        %8038 = vmatpush2.msra.mxu0 0.0
        %8039 = vmatprep.subr.mxu0 0.0
        %8040 = vmatpush2.msra.mxu0 0.0
        %8041 = vmatprep.subr.mxu0 0.0
        %8042 = vmatpush2.msra.mxu0 0.0
        %8043 = vmatprep.subr.mxu0 0.0
        %8044 = vmatpush2.msra.mxu0 0.0
        %8045 = vmatprep.mubr.f32.mxu0 0.0
        %8046 = vmatmul.mubr.f32.gmra.mxu0 %v3080
        %v8047 = vpop.f32.mrf.mxu0
        %v8048 = vadd.f32 %v2853, %v8047
        %v8049 = vpop.f32.mrf.mxu0
        %v8050 = vadd.f32 %v2857, %v8049
        %8051 = vdwg.mxu0
        %8052 = vmatprep.subr.mxu0 0.0
        %8053 = vmatpush1.msra.mxu0 0.0
        %8054 = vmatprep.subr.mxu0 0.0
        %8055 = vmatpush1.msra.mxu0 0.0
        %8056 = vmatprep.subr.mxu0 0.0
        %8057 = vmatpush1.msra.mxu0 0.0
        %8058 = vmatprep.subr.mxu0 0.0
        %8059 = vmatpush1.msra.mxu0 0.0
        %8060 = vmatprep.subr.mxu0 0.0
        %8061 = vmatpush1.msra.mxu0 0.0
        %8062 = vmatprep.subr.mxu0 0.0
        %8063 = vmatpush1.msra.mxu0 0.0
        %8064 = vmatprep.subr.mxu0 0.0
        %8065 = vmatpush1.msra.mxu0 0.0
        %8066 = vmatprep.subr.mxu0 0.0
        %8067 = vmatpush1.msra.mxu0 0.0
        %8068 = vmatprep.subr.mxu0 0.0
        %8069 = vmatpush1.msra.mxu0 0.0
        %8070 = vmatprep.subr.mxu0 0.0
        %8071 = vmatpush1.msra.mxu0 0.0
        %8072 = vmatprep.subr.mxu0 0.0
        %8073 = vmatpush1.msra.mxu0 0.0
        %8074 = vmatprep.subr.mxu0 0.0
        %8075 = vmatpush1.msra.mxu0 0.0
        %8076 = vmatprep.subr.mxu0 %v2243
        %8077 = vmatpush1.msra.mxu0 %v2242
        %8078 = vmatprep.subr.mxu0 %v2087
        %8079 = vmatpush1.msra.mxu0 %v2086
        %8080 = vmatprep.subr.mxu0 %v1931
        %8081 = vmatpush1.msra.mxu0 %v1930
        %8082 = vmatprep.subr.mxu0 %v1775
        %8083 = vmatpush1.msra.mxu0 %v1774
        %8084 = vmatprep.subr.mxu0 0.0
        %8085 = vmatpush2.msra.mxu0 0.0
        %8086 = vmatprep.subr.mxu0 0.0
        %8087 = vmatpush2.msra.mxu0 0.0
        %8088 = vmatprep.subr.mxu0 0.0
        %8089 = vmatpush2.msra.mxu0 0.0
        %8090 = vmatprep.subr.mxu0 0.0
        %8091 = vmatpush2.msra.mxu0 0.0
        %8092 = vmatprep.subr.mxu0 0.0
        %8093 = vmatpush2.msra.mxu0 0.0
        %8094 = vmatprep.subr.mxu0 0.0
        %8095 = vmatpush2.msra.mxu0 0.0
        %8096 = vmatprep.subr.mxu0 0.0
        %8097 = vmatpush2.msra.mxu0 0.0
        %8098 = vmatprep.subr.mxu0 0.0
        %8099 = vmatpush2.msra.mxu0 0.0
        %8100 = vmatprep.subr.mxu0 0.0
        %8101 = vmatpush2.msra.mxu0 0.0
        %8102 = vmatprep.subr.mxu0 0.0
        %8103 = vmatpush2.msra.mxu0 0.0
        %8104 = vmatprep.subr.mxu0 0.0
        %8105 = vmatpush2.msra.mxu0 0.0
        %8106 = vmatprep.subr.mxu0 0.0
        %8107 = vmatpush2.msra.mxu0 0.0
        %8108 = vmatprep.subr.mxu0 0.0
        %8109 = vmatpush2.msra.mxu0 0.0
        %8110 = vmatprep.subr.mxu0 0.0
        %8111 = vmatpush2.msra.mxu0 0.0
        %8112 = vmatprep.subr.mxu0 0.0
        %8113 = vmatpush2.msra.mxu0 0.0
        %8114 = vmatprep.subr.mxu0 0.0
        %8115 = vmatpush2.msra.mxu0 0.0
        %8116 = vmatprep.mubr.f32.mxu0 0.0
        %8117 = vmatmul.mubr.f32.gmra.mxu0 %v3080
        %v8118 = vpop.f32.mrf.mxu0
        %v8119 = vadd.f32 %v2861, %v8118
        %v8120 = vpop.f32.mrf.mxu0
        %v8121 = vadd.f32 %v2865, %v8120
        %8122 = vdwg.mxu0
        %8123 = vmatprep.subr.mxu0 0.0
        %8124 = vmatpush1.msra.mxu0 0.0
        %8125 = vmatprep.subr.mxu0 0.0
        %8126 = vmatpush1.msra.mxu0 0.0
        %8127 = vmatprep.subr.mxu0 0.0
        %8128 = vmatpush1.msra.mxu0 0.0
        %8129 = vmatprep.subr.mxu0 0.0
        %8130 = vmatpush1.msra.mxu0 0.0
        %8131 = vmatprep.subr.mxu0 0.0
        %8132 = vmatpush1.msra.mxu0 0.0
        %8133 = vmatprep.subr.mxu0 0.0
        %8134 = vmatpush1.msra.mxu0 0.0
        %8135 = vmatprep.subr.mxu0 0.0
        %8136 = vmatpush1.msra.mxu0 0.0
        %8137 = vmatprep.subr.mxu0 0.0
        %8138 = vmatpush1.msra.mxu0 0.0
        %8139 = vmatprep.subr.mxu0 0.0
        %8140 = vmatpush1.msra.mxu0 0.0
        %8141 = vmatprep.subr.mxu0 0.0
        %8142 = vmatpush1.msra.mxu0 0.0
        %8143 = vmatprep.subr.mxu0 0.0
        %8144 = vmatpush1.msra.mxu0 0.0
        %8145 = vmatprep.subr.mxu0 0.0
        %8146 = vmatpush1.msra.mxu0 0.0
        %8147 = vmatprep.subr.mxu0 %v2245
        %8148 = vmatpush1.msra.mxu0 %v2244
        %8149 = vmatprep.subr.mxu0 %v2089
        %8150 = vmatpush1.msra.mxu0 %v2088
        %8151 = vmatprep.subr.mxu0 %v1933
        %8152 = vmatpush1.msra.mxu0 %v1932
        %8153 = vmatprep.subr.mxu0 %v1777
        %8154 = vmatpush1.msra.mxu0 %v1776
        %8155 = vmatprep.subr.mxu0 0.0
        %8156 = vmatpush2.msra.mxu0 0.0
        %8157 = vmatprep.subr.mxu0 0.0
        %8158 = vmatpush2.msra.mxu0 0.0
        %8159 = vmatprep.subr.mxu0 0.0
        %8160 = vmatpush2.msra.mxu0 0.0
        %8161 = vmatprep.subr.mxu0 0.0
        %8162 = vmatpush2.msra.mxu0 0.0
        %8163 = vmatprep.subr.mxu0 0.0
        %8164 = vmatpush2.msra.mxu0 0.0
        %8165 = vmatprep.subr.mxu0 0.0
        %8166 = vmatpush2.msra.mxu0 0.0
        %8167 = vmatprep.subr.mxu0 0.0
        %8168 = vmatpush2.msra.mxu0 0.0
        %8169 = vmatprep.subr.mxu0 0.0
        %8170 = vmatpush2.msra.mxu0 0.0
        %8171 = vmatprep.subr.mxu0 0.0
        %8172 = vmatpush2.msra.mxu0 0.0
        %8173 = vmatprep.subr.mxu0 0.0
        %8174 = vmatpush2.msra.mxu0 0.0
        %8175 = vmatprep.subr.mxu0 0.0
        %8176 = vmatpush2.msra.mxu0 0.0
        %8177 = vmatprep.subr.mxu0 0.0
        %8178 = vmatpush2.msra.mxu0 0.0
        %8179 = vmatprep.subr.mxu0 0.0
        %8180 = vmatpush2.msra.mxu0 0.0
        %8181 = vmatprep.subr.mxu0 0.0
        %8182 = vmatpush2.msra.mxu0 0.0
        %8183 = vmatprep.subr.mxu0 0.0
        %8184 = vmatpush2.msra.mxu0 0.0
        %8185 = vmatprep.subr.mxu0 0.0
        %8186 = vmatpush2.msra.mxu0 0.0
        %8187 = vmatprep.mubr.f32.mxu0 0.0
        %8188 = vmatmul.mubr.f32.gmra.mxu0 %v3080
        %v8189 = vpop.f32.mrf.mxu0
        %v8190 = vadd.f32 %v2869, %v8189
        %v8191 = vpop.f32.mrf.mxu0
        %v8192 = vadd.f32 %v2873, %v8191
        %8193 = vdwg.mxu0
        %8194 = vmatprep.subr.mxu0 0.0
        %8195 = vmatpush1.msra.mxu0 0.0
        %8196 = vmatprep.subr.mxu0 0.0
        %8197 = vmatpush1.msra.mxu0 0.0
        %8198 = vmatprep.subr.mxu0 0.0
        %8199 = vmatpush1.msra.mxu0 0.0
        %8200 = vmatprep.subr.mxu0 0.0
        %8201 = vmatpush1.msra.mxu0 0.0
        %8202 = vmatprep.subr.mxu0 0.0
        %8203 = vmatpush1.msra.mxu0 0.0
        %8204 = vmatprep.subr.mxu0 0.0
        %8205 = vmatpush1.msra.mxu0 0.0
        %8206 = vmatprep.subr.mxu0 0.0
        %8207 = vmatpush1.msra.mxu0 0.0
        %8208 = vmatprep.subr.mxu0 0.0
        %8209 = vmatpush1.msra.mxu0 0.0
        %8210 = vmatprep.subr.mxu0 0.0
        %8211 = vmatpush1.msra.mxu0 0.0
        %8212 = vmatprep.subr.mxu0 0.0
        %8213 = vmatpush1.msra.mxu0 0.0
        %8214 = vmatprep.subr.mxu0 0.0
        %8215 = vmatpush1.msra.mxu0 0.0
        %8216 = vmatprep.subr.mxu0 0.0
        %8217 = vmatpush1.msra.mxu0 0.0
        %8218 = vmatprep.subr.mxu0 %v2247
        %8219 = vmatpush1.msra.mxu0 %v2246
        %8220 = vmatprep.subr.mxu0 %v2091
        %8221 = vmatpush1.msra.mxu0 %v2090
        %8222 = vmatprep.subr.mxu0 %v1935
        %8223 = vmatpush1.msra.mxu0 %v1934
        %8224 = vmatprep.subr.mxu0 %v1779
        %8225 = vmatpush1.msra.mxu0 %v1778
        %8226 = vmatprep.subr.mxu0 0.0
        %8227 = vmatpush2.msra.mxu0 0.0
        %8228 = vmatprep.subr.mxu0 0.0
        %8229 = vmatpush2.msra.mxu0 0.0
        %8230 = vmatprep.subr.mxu0 0.0
        %8231 = vmatpush2.msra.mxu0 0.0
        %8232 = vmatprep.subr.mxu0 0.0
        %8233 = vmatpush2.msra.mxu0 0.0
        %8234 = vmatprep.subr.mxu0 0.0
        %8235 = vmatpush2.msra.mxu0 0.0
        %8236 = vmatprep.subr.mxu0 0.0
        %8237 = vmatpush2.msra.mxu0 0.0
        %8238 = vmatprep.subr.mxu0 0.0
        %8239 = vmatpush2.msra.mxu0 0.0
        %8240 = vmatprep.subr.mxu0 0.0
        %8241 = vmatpush2.msra.mxu0 0.0
        %8242 = vmatprep.subr.mxu0 0.0
        %8243 = vmatpush2.msra.mxu0 0.0
        %8244 = vmatprep.subr.mxu0 0.0
        %8245 = vmatpush2.msra.mxu0 0.0
        %8246 = vmatprep.subr.mxu0 0.0
        %8247 = vmatpush2.msra.mxu0 0.0
        %8248 = vmatprep.subr.mxu0 0.0
        %8249 = vmatpush2.msra.mxu0 0.0
        %8250 = vmatprep.subr.mxu0 0.0
        %8251 = vmatpush2.msra.mxu0 0.0
        %8252 = vmatprep.subr.mxu0 0.0
        %8253 = vmatpush2.msra.mxu0 0.0
        %8254 = vmatprep.subr.mxu0 0.0
        %8255 = vmatpush2.msra.mxu0 0.0
        %8256 = vmatprep.subr.mxu0 0.0
        %8257 = vmatpush2.msra.mxu0 0.0
        %8258 = vmatprep.mubr.f32.mxu0 0.0
        %8259 = vmatmul.mubr.f32.gmra.mxu0 %v3080
        %v8260 = vpop.f32.mrf.mxu0
        %v8261 = vadd.f32 %v2877, %v8260
        %v8262 = vpop.f32.mrf.mxu0
        %v8263 = vadd.f32 %v2881, %v8262
        %8264 = vdwg.mxu0
        %8265 = vmatprep.subr.mxu0 0.0
        %8266 = vmatpush1.msra.mxu0 0.0
        %8267 = vmatprep.subr.mxu0 0.0
        %8268 = vmatpush1.msra.mxu0 0.0
        %8269 = vmatprep.subr.mxu0 0.0
        %8270 = vmatpush1.msra.mxu0 0.0
        %8271 = vmatprep.subr.mxu0 0.0
        %8272 = vmatpush1.msra.mxu0 0.0
        %8273 = vmatprep.subr.mxu0 0.0
        %8274 = vmatpush1.msra.mxu0 0.0
        %8275 = vmatprep.subr.mxu0 0.0
        %8276 = vmatpush1.msra.mxu0 0.0
        %8277 = vmatprep.subr.mxu0 0.0
        %8278 = vmatpush1.msra.mxu0 0.0
        %8279 = vmatprep.subr.mxu0 0.0
        %8280 = vmatpush1.msra.mxu0 0.0
        %8281 = vmatprep.subr.mxu0 0.0
        %8282 = vmatpush1.msra.mxu0 0.0
        %8283 = vmatprep.subr.mxu0 0.0
        %8284 = vmatpush1.msra.mxu0 0.0
        %8285 = vmatprep.subr.mxu0 0.0
        %8286 = vmatpush1.msra.mxu0 0.0
        %8287 = vmatprep.subr.mxu0 0.0
        %8288 = vmatpush1.msra.mxu0 0.0
        %8289 = vmatprep.subr.mxu0 %v2249
        %8290 = vmatpush1.msra.mxu0 %v2248
        %8291 = vmatprep.subr.mxu0 %v2093
        %8292 = vmatpush1.msra.mxu0 %v2092
        %8293 = vmatprep.subr.mxu0 %v1937
        %8294 = vmatpush1.msra.mxu0 %v1936
        %8295 = vmatprep.subr.mxu0 %v1781
        %8296 = vmatpush1.msra.mxu0 %v1780
        %8297 = vmatprep.subr.mxu0 0.0
        %8298 = vmatpush2.msra.mxu0 0.0
        %8299 = vmatprep.subr.mxu0 0.0
        %8300 = vmatpush2.msra.mxu0 0.0
        %8301 = vmatprep.subr.mxu0 0.0
        %8302 = vmatpush2.msra.mxu0 0.0
        %8303 = vmatprep.subr.mxu0 0.0
        %8304 = vmatpush2.msra.mxu0 0.0
        %8305 = vmatprep.subr.mxu0 0.0
        %8306 = vmatpush2.msra.mxu0 0.0
        %8307 = vmatprep.subr.mxu0 0.0
        %8308 = vmatpush2.msra.mxu0 0.0
        %8309 = vmatprep.subr.mxu0 0.0
        %8310 = vmatpush2.msra.mxu0 0.0
        %8311 = vmatprep.subr.mxu0 0.0
        %8312 = vmatpush2.msra.mxu0 0.0
        %8313 = vmatprep.subr.mxu0 0.0
        %8314 = vmatpush2.msra.mxu0 0.0
        %8315 = vmatprep.subr.mxu0 0.0
        %8316 = vmatpush2.msra.mxu0 0.0
        %8317 = vmatprep.subr.mxu0 0.0
        %8318 = vmatpush2.msra.mxu0 0.0
        %8319 = vmatprep.subr.mxu0 0.0
        %8320 = vmatpush2.msra.mxu0 0.0
        %8321 = vmatprep.subr.mxu0 0.0
        %8322 = vmatpush2.msra.mxu0 0.0
        %8323 = vmatprep.subr.mxu0 0.0
        %8324 = vmatpush2.msra.mxu0 0.0
        %8325 = vmatprep.subr.mxu0 0.0
        %8326 = vmatpush2.msra.mxu0 0.0
        %8327 = vmatprep.subr.mxu0 0.0
        %8328 = vmatpush2.msra.mxu0 0.0
        %8329 = vmatprep.mubr.f32.mxu0 0.0
        %8330 = vmatmul.mubr.f32.gmra.mxu0 %v3080
        %v8331 = vpop.f32.mrf.mxu0
        %v8332 = vadd.f32 %v2885, %v8331
        %v8333 = vpop.f32.mrf.mxu0
        %v8334 = vadd.f32 %v2889, %v8333
        %8335 = vdwg.mxu0
        %8336 = vmatprep.subr.mxu0 0.0
        %8337 = vmatpush1.msra.mxu0 0.0
        %8338 = vmatprep.subr.mxu0 0.0
        %8339 = vmatpush1.msra.mxu0 0.0
        %8340 = vmatprep.subr.mxu0 0.0
        %8341 = vmatpush1.msra.mxu0 0.0
        %8342 = vmatprep.subr.mxu0 0.0
        %8343 = vmatpush1.msra.mxu0 0.0
        %8344 = vmatprep.subr.mxu0 0.0
        %8345 = vmatpush1.msra.mxu0 0.0
        %8346 = vmatprep.subr.mxu0 0.0
        %8347 = vmatpush1.msra.mxu0 0.0
        %8348 = vmatprep.subr.mxu0 0.0
        %8349 = vmatpush1.msra.mxu0 0.0
        %8350 = vmatprep.subr.mxu0 0.0
        %8351 = vmatpush1.msra.mxu0 0.0
        %8352 = vmatprep.subr.mxu0 0.0
        %8353 = vmatpush1.msra.mxu0 0.0
        %8354 = vmatprep.subr.mxu0 0.0
        %8355 = vmatpush1.msra.mxu0 0.0
        %8356 = vmatprep.subr.mxu0 0.0
        %8357 = vmatpush1.msra.mxu0 0.0
        %8358 = vmatprep.subr.mxu0 0.0
        %8359 = vmatpush1.msra.mxu0 0.0
        %8360 = vmatprep.subr.mxu0 %v2251
        %8361 = vmatpush1.msra.mxu0 %v2250
        %8362 = vmatprep.subr.mxu0 %v2095
        %8363 = vmatpush1.msra.mxu0 %v2094
        %8364 = vmatprep.subr.mxu0 %v1939
        %8365 = vmatpush1.msra.mxu0 %v1938
        %8366 = vmatprep.subr.mxu0 %v1783
        %8367 = vmatpush1.msra.mxu0 %v1782
        %8368 = vmatprep.subr.mxu0 0.0
        %8369 = vmatpush2.msra.mxu0 0.0
        %8370 = vmatprep.subr.mxu0 0.0
        %8371 = vmatpush2.msra.mxu0 0.0
        %8372 = vmatprep.subr.mxu0 0.0
        %8373 = vmatpush2.msra.mxu0 0.0
        %8374 = vmatprep.subr.mxu0 0.0
        %8375 = vmatpush2.msra.mxu0 0.0
        %8376 = vmatprep.subr.mxu0 0.0
        %8377 = vmatpush2.msra.mxu0 0.0
        %8378 = vmatprep.subr.mxu0 0.0
        %8379 = vmatpush2.msra.mxu0 0.0
        %8380 = vmatprep.subr.mxu0 0.0
        %8381 = vmatpush2.msra.mxu0 0.0
        %8382 = vmatprep.subr.mxu0 0.0
        %8383 = vmatpush2.msra.mxu0 0.0
        %8384 = vmatprep.subr.mxu0 0.0
        %8385 = vmatpush2.msra.mxu0 0.0
        %8386 = vmatprep.subr.mxu0 0.0
        %8387 = vmatpush2.msra.mxu0 0.0
        %8388 = vmatprep.subr.mxu0 0.0
        %8389 = vmatpush2.msra.mxu0 0.0
        %8390 = vmatprep.subr.mxu0 0.0
        %8391 = vmatpush2.msra.mxu0 0.0
        %8392 = vmatprep.subr.mxu0 0.0
        %8393 = vmatpush2.msra.mxu0 0.0
        %8394 = vmatprep.subr.mxu0 0.0
        %8395 = vmatpush2.msra.mxu0 0.0
        %8396 = vmatprep.subr.mxu0 0.0
        %8397 = vmatpush2.msra.mxu0 0.0
        %8398 = vmatprep.subr.mxu0 0.0
        %8399 = vmatpush2.msra.mxu0 0.0
        %8400 = vmatprep.mubr.f32.mxu0 0.0
        %8401 = vmatmul.mubr.f32.gmra.mxu0 %v3080
        %v8402 = vpop.f32.mrf.mxu0
        %v8403 = vadd.f32 %v2893, %v8402
        %v8404 = vpop.f32.mrf.mxu0
        %v8405 = vadd.f32 %v2897, %v8404
        %8406 = vdwg.mxu0
        %8407 = vmatprep.subr.mxu0 0.0
        %8408 = vmatpush1.msra.mxu0 0.0
        %8409 = vmatprep.subr.mxu0 0.0
        %8410 = vmatpush1.msra.mxu0 0.0
        %8411 = vmatprep.subr.mxu0 0.0
        %8412 = vmatpush1.msra.mxu0 0.0
        %8413 = vmatprep.subr.mxu0 0.0
        %8414 = vmatpush1.msra.mxu0 0.0
        %8415 = vmatprep.subr.mxu0 0.0
        %8416 = vmatpush1.msra.mxu0 0.0
        %8417 = vmatprep.subr.mxu0 0.0
        %8418 = vmatpush1.msra.mxu0 0.0
        %8419 = vmatprep.subr.mxu0 0.0
        %8420 = vmatpush1.msra.mxu0 0.0
        %8421 = vmatprep.subr.mxu0 0.0
        %8422 = vmatpush1.msra.mxu0 0.0
        %8423 = vmatprep.subr.mxu0 0.0
        %8424 = vmatpush1.msra.mxu0 0.0
        %8425 = vmatprep.subr.mxu0 0.0
        %8426 = vmatpush1.msra.mxu0 0.0
        %8427 = vmatprep.subr.mxu0 0.0
        %8428 = vmatpush1.msra.mxu0 0.0
        %8429 = vmatprep.subr.mxu0 0.0
        %8430 = vmatpush1.msra.mxu0 0.0
        %8431 = vmatprep.subr.mxu0 %v2253
        %8432 = vmatpush1.msra.mxu0 %v2252
        %8433 = vmatprep.subr.mxu0 %v2097
        %8434 = vmatpush1.msra.mxu0 %v2096
        %8435 = vmatprep.subr.mxu0 %v1941
        %8436 = vmatpush1.msra.mxu0 %v1940
        %8437 = vmatprep.subr.mxu0 %v1785
        %8438 = vmatpush1.msra.mxu0 %v1784
        %8439 = vmatprep.subr.mxu0 0.0
        %8440 = vmatpush2.msra.mxu0 0.0
        %8441 = vmatprep.subr.mxu0 0.0
        %8442 = vmatpush2.msra.mxu0 0.0
        %8443 = vmatprep.subr.mxu0 0.0
        %8444 = vmatpush2.msra.mxu0 0.0
        %8445 = vmatprep.subr.mxu0 0.0
        %8446 = vmatpush2.msra.mxu0 0.0
        %8447 = vmatprep.subr.mxu0 0.0
        %8448 = vmatpush2.msra.mxu0 0.0
        %8449 = vmatprep.subr.mxu0 0.0
        %8450 = vmatpush2.msra.mxu0 0.0
        %8451 = vmatprep.subr.mxu0 0.0
        %8452 = vmatpush2.msra.mxu0 0.0
        %8453 = vmatprep.subr.mxu0 0.0
        %8454 = vmatpush2.msra.mxu0 0.0
        %8455 = vmatprep.subr.mxu0 0.0
        %8456 = vmatpush2.msra.mxu0 0.0
        %8457 = vmatprep.subr.mxu0 0.0
        %8458 = vmatpush2.msra.mxu0 0.0
        %8459 = vmatprep.subr.mxu0 0.0
        %8460 = vmatpush2.msra.mxu0 0.0
        %8461 = vmatprep.subr.mxu0 0.0
        %8462 = vmatpush2.msra.mxu0 0.0
        %8463 = vmatprep.subr.mxu0 0.0
        %8464 = vmatpush2.msra.mxu0 0.0
        %8465 = vmatprep.subr.mxu0 0.0
        %8466 = vmatpush2.msra.mxu0 0.0
        %8467 = vmatprep.subr.mxu0 0.0
        %8468 = vmatpush2.msra.mxu0 0.0
        %8469 = vmatprep.subr.mxu0 0.0
        %8470 = vmatpush2.msra.mxu0 0.0
        %8471 = vmatprep.mubr.f32.mxu0 0.0
        %8472 = vmatmul.mubr.f32.gmra.mxu0 %v3080
        %v8473 = vpop.f32.mrf.mxu0
        %v8474 = vadd.f32 %v2901, %v8473
        %v8475 = vpop.f32.mrf.mxu0
        %v8476 = vadd.f32 %v2905, %v8475
        %8477 = vdwg.mxu0
        %8478 = vmatprep.subr.mxu0 0.0
        %8479 = vmatpush1.msra.mxu0 0.0
        %8480 = vmatprep.subr.mxu0 0.0
        %8481 = vmatpush1.msra.mxu0 0.0
        %8482 = vmatprep.subr.mxu0 0.0
        %8483 = vmatpush1.msra.mxu0 0.0
        %8484 = vmatprep.subr.mxu0 0.0
        %8485 = vmatpush1.msra.mxu0 0.0
        %8486 = vmatprep.subr.mxu0 0.0
        %8487 = vmatpush1.msra.mxu0 0.0
        %8488 = vmatprep.subr.mxu0 0.0
        %8489 = vmatpush1.msra.mxu0 0.0
        %8490 = vmatprep.subr.mxu0 0.0
        %8491 = vmatpush1.msra.mxu0 0.0
        %8492 = vmatprep.subr.mxu0 0.0
        %8493 = vmatpush1.msra.mxu0 0.0
        %8494 = vmatprep.subr.mxu0 0.0
        %8495 = vmatpush1.msra.mxu0 0.0
        %8496 = vmatprep.subr.mxu0 0.0
        %8497 = vmatpush1.msra.mxu0 0.0
        %8498 = vmatprep.subr.mxu0 0.0
        %8499 = vmatpush1.msra.mxu0 0.0
        %8500 = vmatprep.subr.mxu0 0.0
        %8501 = vmatpush1.msra.mxu0 0.0
        %8502 = vmatprep.subr.mxu0 %v2255
        %8503 = vmatpush1.msra.mxu0 %v2254
        %8504 = vmatprep.subr.mxu0 %v2099
        %8505 = vmatpush1.msra.mxu0 %v2098
        %8506 = vmatprep.subr.mxu0 %v1943
        %8507 = vmatpush1.msra.mxu0 %v1942
        %8508 = vmatprep.subr.mxu0 %v1787
        %8509 = vmatpush1.msra.mxu0 %v1786
        %8510 = vmatprep.subr.mxu0 0.0
        %8511 = vmatpush2.msra.mxu0 0.0
        %8512 = vmatprep.subr.mxu0 0.0
        %8513 = vmatpush2.msra.mxu0 0.0
        %8514 = vmatprep.subr.mxu0 0.0
        %8515 = vmatpush2.msra.mxu0 0.0
        %8516 = vmatprep.subr.mxu0 0.0
        %8517 = vmatpush2.msra.mxu0 0.0
        %8518 = vmatprep.subr.mxu0 0.0
        %8519 = vmatpush2.msra.mxu0 0.0
        %8520 = vmatprep.subr.mxu0 0.0
        %8521 = vmatpush2.msra.mxu0 0.0
        %8522 = vmatprep.subr.mxu0 0.0
        %8523 = vmatpush2.msra.mxu0 0.0
        %8524 = vmatprep.subr.mxu0 0.0
        %8525 = vmatpush2.msra.mxu0 0.0
        %8526 = vmatprep.subr.mxu0 0.0
        %8527 = vmatpush2.msra.mxu0 0.0
        %8528 = vmatprep.subr.mxu0 0.0
        %8529 = vmatpush2.msra.mxu0 0.0
        %8530 = vmatprep.subr.mxu0 0.0
        %8531 = vmatpush2.msra.mxu0 0.0
        %8532 = vmatprep.subr.mxu0 0.0
        %8533 = vmatpush2.msra.mxu0 0.0
        %8534 = vmatprep.subr.mxu0 0.0
        %8535 = vmatpush2.msra.mxu0 0.0
        %8536 = vmatprep.subr.mxu0 0.0
        %8537 = vmatpush2.msra.mxu0 0.0
        %8538 = vmatprep.subr.mxu0 0.0
        %8539 = vmatpush2.msra.mxu0 0.0
        %8540 = vmatprep.subr.mxu0 0.0
        %8541 = vmatpush2.msra.mxu0 0.0
        %8542 = vmatprep.mubr.f32.mxu0 0.0
        %8543 = vmatmul.mubr.f32.gmra.mxu0 %v3080
        %v8544 = vpop.f32.mrf.mxu0
        %v8545 = vadd.f32 %v2909, %v8544
        %v8546 = vpop.f32.mrf.mxu0
        %v8547 = vadd.f32 %v2913, %v8546
        %8548 = vdwg.mxu0
        %8549 = vmatprep.subr.mxu0 0.0
        %8550 = vmatpush1.msra.mxu0 0.0
        %8551 = vmatprep.subr.mxu0 0.0
        %8552 = vmatpush1.msra.mxu0 0.0
        %8553 = vmatprep.subr.mxu0 0.0
        %8554 = vmatpush1.msra.mxu0 0.0
        %8555 = vmatprep.subr.mxu0 0.0
        %8556 = vmatpush1.msra.mxu0 0.0
        %8557 = vmatprep.subr.mxu0 0.0
        %8558 = vmatpush1.msra.mxu0 0.0
        %8559 = vmatprep.subr.mxu0 0.0
        %8560 = vmatpush1.msra.mxu0 0.0
        %8561 = vmatprep.subr.mxu0 0.0
        %8562 = vmatpush1.msra.mxu0 0.0
        %8563 = vmatprep.subr.mxu0 0.0
        %8564 = vmatpush1.msra.mxu0 0.0
        %8565 = vmatprep.subr.mxu0 0.0
        %8566 = vmatpush1.msra.mxu0 0.0
        %8567 = vmatprep.subr.mxu0 0.0
        %8568 = vmatpush1.msra.mxu0 0.0
        %8569 = vmatprep.subr.mxu0 0.0
        %8570 = vmatpush1.msra.mxu0 0.0
        %8571 = vmatprep.subr.mxu0 0.0
        %8572 = vmatpush1.msra.mxu0 0.0
        %8573 = vmatprep.subr.mxu0 %v2257
        %8574 = vmatpush1.msra.mxu0 %v2256
        %8575 = vmatprep.subr.mxu0 %v2101
        %8576 = vmatpush1.msra.mxu0 %v2100
        %8577 = vmatprep.subr.mxu0 %v1945
        %8578 = vmatpush1.msra.mxu0 %v1944
        %8579 = vmatprep.subr.mxu0 %v1789
        %8580 = vmatpush1.msra.mxu0 %v1788
        %8581 = vmatprep.subr.mxu0 0.0
        %8582 = vmatpush2.msra.mxu0 0.0
        %8583 = vmatprep.subr.mxu0 0.0
        %8584 = vmatpush2.msra.mxu0 0.0
        %8585 = vmatprep.subr.mxu0 0.0
        %8586 = vmatpush2.msra.mxu0 0.0
        %8587 = vmatprep.subr.mxu0 0.0
        %8588 = vmatpush2.msra.mxu0 0.0
        %8589 = vmatprep.subr.mxu0 0.0
        %8590 = vmatpush2.msra.mxu0 0.0
        %8591 = vmatprep.subr.mxu0 0.0
        %8592 = vmatpush2.msra.mxu0 0.0
        %8593 = vmatprep.subr.mxu0 0.0
        %8594 = vmatpush2.msra.mxu0 0.0
        %8595 = vmatprep.subr.mxu0 0.0
        %8596 = vmatpush2.msra.mxu0 0.0
        %8597 = vmatprep.subr.mxu0 0.0
        %8598 = vmatpush2.msra.mxu0 0.0
        %8599 = vmatprep.subr.mxu0 0.0
        %8600 = vmatpush2.msra.mxu0 0.0
        %8601 = vmatprep.subr.mxu0 0.0
        %8602 = vmatpush2.msra.mxu0 0.0
        %8603 = vmatprep.subr.mxu0 0.0
        %8604 = vmatpush2.msra.mxu0 0.0
        %8605 = vmatprep.subr.mxu0 0.0
        %8606 = vmatpush2.msra.mxu0 0.0
        %8607 = vmatprep.subr.mxu0 0.0
        %8608 = vmatpush2.msra.mxu0 0.0
        %8609 = vmatprep.subr.mxu0 0.0
        %8610 = vmatpush2.msra.mxu0 0.0
        %8611 = vmatprep.subr.mxu0 0.0
        %8612 = vmatpush2.msra.mxu0 0.0
        %8613 = vmatprep.mubr.f32.mxu0 0.0
        %8614 = vmatmul.mubr.f32.gmra.mxu0 %v3080
        %v8615 = vpop.f32.mrf.mxu0
        %v8616 = vadd.f32 %v2917, %v8615
        %v8617 = vpop.f32.mrf.mxu0
        %v8618 = vadd.f32 %v2921, %v8617
        %8619 = vdwg.mxu0
        %v8776 = vcombine.low %v3149, %v3151
        %v8777 = vcombine.low %v3220, %v3222
        %v8779 = vunpack.c.l.s4 1983009808
        %v8780 = vunpack.c.0.s8 %v8779
        %v8781 = vlaneseq
        %v8782 = vshrl.u32 %v8781, 7
        %v8783 = vsub.s32 %v8780, %v8782
        %v8784 = vrot.slane %v8776, %v8783
        %v8786 = vunpack.c.l.s4 1983009808
        %v8787 = vunpack.c.0.s8 %v8786
        %v8788 = vlaneseq
        %v8789 = vshrl.u32 %v8788, 7
        %v8790 = vsub.s32 %v8787, %v8789
        %v8791 = vrot.slane %v8777, %v8790
        %v8792 = vcombine.low %v8784, %v8791
        %v8793 = vcombine.low %v3291, %v3293
        %v8794 = vcombine.low %v3362, %v3364
        %v8796 = vunpack.c.l.s4 1983009808
        %v8797 = vunpack.c.0.s8 %v8796
        %v8798 = vlaneseq
        %v8799 = vshrl.u32 %v8798, 7
        %v8800 = vsub.s32 %v8797, %v8799
        %v8801 = vrot.slane %v8793, %v8800
        %v8803 = vunpack.c.l.s4 1983009808
        %v8804 = vunpack.c.0.s8 %v8803
        %v8805 = vlaneseq
        %v8806 = vshrl.u32 %v8805, 7
        %v8807 = vsub.s32 %v8804, %v8806
        %v8808 = vrot.slane %v8794, %v8807
        %v8809 = vcombine.low %v8801, %v8808
        %v8810 = vcombine.low %v3433, %v3435
        %v8811 = vcombine.low %v3504, %v3506
        %v8813 = vunpack.c.l.s4 1983009808
        %v8814 = vunpack.c.0.s8 %v8813
        %v8815 = vlaneseq
        %v8816 = vshrl.u32 %v8815, 7
        %v8817 = vsub.s32 %v8814, %v8816
        %v8818 = vrot.slane %v8810, %v8817
        %v8820 = vunpack.c.l.s4 1983009808
        %v8821 = vunpack.c.0.s8 %v8820
        %v8822 = vlaneseq
        %v8823 = vshrl.u32 %v8822, 7
        %v8824 = vsub.s32 %v8821, %v8823
        %v8825 = vrot.slane %v8811, %v8824
        %v8826 = vcombine.low %v8818, %v8825
        %v8827 = vcombine.low %v3575, %v3577
        %v8828 = vcombine.low %v3646, %v3648
        %v8830 = vunpack.c.l.s4 1983009808
        %v8831 = vunpack.c.0.s8 %v8830
        %v8832 = vlaneseq
        %v8833 = vshrl.u32 %v8832, 7
        %v8834 = vsub.s32 %v8831, %v8833
        %v8835 = vrot.slane %v8827, %v8834
        %v8837 = vunpack.c.l.s4 1983009808
        %v8838 = vunpack.c.0.s8 %v8837
        %v8839 = vlaneseq
        %v8840 = vshrl.u32 %v8839, 7
        %v8841 = vsub.s32 %v8838, %v8840
        %v8842 = vrot.slane %v8828, %v8841
        %v8843 = vcombine.low %v8835, %v8842
        %v8844 = vcombine.low %v3717, %v3719
        %v8845 = vcombine.low %v3788, %v3790
        %v8847 = vunpack.c.l.s4 1983009808
        %v8848 = vunpack.c.0.s8 %v8847
        %v8849 = vlaneseq
        %v8850 = vshrl.u32 %v8849, 7
        %v8851 = vsub.s32 %v8848, %v8850
        %v8852 = vrot.slane %v8844, %v8851
        %v8854 = vunpack.c.l.s4 1983009808
        %v8855 = vunpack.c.0.s8 %v8854
        %v8856 = vlaneseq
        %v8857 = vshrl.u32 %v8856, 7
        %v8858 = vsub.s32 %v8855, %v8857
        %v8859 = vrot.slane %v8845, %v8858
        %v8860 = vcombine.low %v8852, %v8859
        %v8861 = vcombine.low %v3859, %v3861
        %v8862 = vcombine.low %v3930, %v3932
        %v8864 = vunpack.c.l.s4 1983009808
        %v8865 = vunpack.c.0.s8 %v8864
        %v8866 = vlaneseq
        %v8867 = vshrl.u32 %v8866, 7
        %v8868 = vsub.s32 %v8865, %v8867
        %v8869 = vrot.slane %v8861, %v8868
        %v8871 = vunpack.c.l.s4 1983009808
        %v8872 = vunpack.c.0.s8 %v8871
        %v8873 = vlaneseq
        %v8874 = vshrl.u32 %v8873, 7
        %v8875 = vsub.s32 %v8872, %v8874
        %v8876 = vrot.slane %v8862, %v8875
        %v8877 = vcombine.low %v8869, %v8876
        %v8878 = vcombine.low %v4001, %v4003
        %v8879 = vcombine.low %v4072, %v4074
        %v8881 = vunpack.c.l.s4 1983009808
        %v8882 = vunpack.c.0.s8 %v8881
        %v8883 = vlaneseq
        %v8884 = vshrl.u32 %v8883, 7
        %v8885 = vsub.s32 %v8882, %v8884
        %v8886 = vrot.slane %v8878, %v8885
        %v8888 = vunpack.c.l.s4 1983009808
        %v8889 = vunpack.c.0.s8 %v8888
        %v8890 = vlaneseq
        %v8891 = vshrl.u32 %v8890, 7
        %v8892 = vsub.s32 %v8889, %v8891
        %v8893 = vrot.slane %v8879, %v8892
        %v8894 = vcombine.low %v8886, %v8893
        %v8895 = vcombine.low %v4143, %v4145
        %v8896 = vcombine.low %v4214, %v4216
        %v8898 = vunpack.c.l.s4 1983009808
        %v8899 = vunpack.c.0.s8 %v8898
        %v8900 = vlaneseq
        %v8901 = vshrl.u32 %v8900, 7
        %v8902 = vsub.s32 %v8899, %v8901
        %v8903 = vrot.slane %v8895, %v8902
        %v8905 = vunpack.c.l.s4 1983009808
        %v8906 = vunpack.c.0.s8 %v8905
        %v8907 = vlaneseq
        %v8908 = vshrl.u32 %v8907, 7
        %v8909 = vsub.s32 %v8906, %v8908
        %v8910 = vrot.slane %v8896, %v8909
        %v8911 = vcombine.low %v8903, %v8910
        %v8912 = vcombine.low %v4285, %v4287
        %v8913 = vcombine.low %v4356, %v4358
        %v8915 = vunpack.c.l.s4 1983009808
        %v8916 = vunpack.c.0.s8 %v8915
        %v8917 = vlaneseq
        %v8918 = vshrl.u32 %v8917, 7
        %v8919 = vsub.s32 %v8916, %v8918
        %v8920 = vrot.slane %v8912, %v8919
        %v8922 = vunpack.c.l.s4 1983009808
        %v8923 = vunpack.c.0.s8 %v8922
        %v8924 = vlaneseq
        %v8925 = vshrl.u32 %v8924, 7
        %v8926 = vsub.s32 %v8923, %v8925
        %v8927 = vrot.slane %v8913, %v8926
        %v8928 = vcombine.low %v8920, %v8927
        %v8929 = vcombine.low %v4427, %v4429
        %v8930 = vcombine.low %v4498, %v4500
        %v8932 = vunpack.c.l.s4 1983009808
        %v8933 = vunpack.c.0.s8 %v8932
        %v8934 = vlaneseq
        %v8935 = vshrl.u32 %v8934, 7
        %v8936 = vsub.s32 %v8933, %v8935
        %v8937 = vrot.slane %v8929, %v8936
        %v8939 = vunpack.c.l.s4 1983009808
        %v8940 = vunpack.c.0.s8 %v8939
        %v8941 = vlaneseq
        %v8942 = vshrl.u32 %v8941, 7
        %v8943 = vsub.s32 %v8940, %v8942
        %v8944 = vrot.slane %v8930, %v8943
        %v8945 = vcombine.low %v8937, %v8944
        %v8946 = vcombine.low %v4569, %v4571
        %v8947 = vcombine.low %v4640, %v4642
        %v8949 = vunpack.c.l.s4 1983009808
        %v8950 = vunpack.c.0.s8 %v8949
        %v8951 = vlaneseq
        %v8952 = vshrl.u32 %v8951, 7
        %v8953 = vsub.s32 %v8950, %v8952
        %v8954 = vrot.slane %v8946, %v8953
        %v8956 = vunpack.c.l.s4 1983009808
        %v8957 = vunpack.c.0.s8 %v8956
        %v8958 = vlaneseq
        %v8959 = vshrl.u32 %v8958, 7
        %v8960 = vsub.s32 %v8957, %v8959
        %v8961 = vrot.slane %v8947, %v8960
        %v8962 = vcombine.low %v8954, %v8961
        %v8963 = vcombine.low %v4711, %v4713
        %v8964 = vcombine.low %v4782, %v4784
        %v8966 = vunpack.c.l.s4 1983009808
        %v8967 = vunpack.c.0.s8 %v8966
        %v8968 = vlaneseq
        %v8969 = vshrl.u32 %v8968, 7
        %v8970 = vsub.s32 %v8967, %v8969
        %v8971 = vrot.slane %v8963, %v8970
        %v8973 = vunpack.c.l.s4 1983009808
        %v8974 = vunpack.c.0.s8 %v8973
        %v8975 = vlaneseq
        %v8976 = vshrl.u32 %v8975, 7
        %v8977 = vsub.s32 %v8974, %v8976
        %v8978 = vrot.slane %v8964, %v8977
        %v8979 = vcombine.low %v8971, %v8978
        %v8980 = vcombine.low %v4853, %v4855
        %v8981 = vcombine.low %v4924, %v4926
        %v8983 = vunpack.c.l.s4 1983009808
        %v8984 = vunpack.c.0.s8 %v8983
        %v8985 = vlaneseq
        %v8986 = vshrl.u32 %v8985, 7
        %v8987 = vsub.s32 %v8984, %v8986
        %v8988 = vrot.slane %v8980, %v8987
        %v8990 = vunpack.c.l.s4 1983009808
        %v8991 = vunpack.c.0.s8 %v8990
        %v8992 = vlaneseq
        %v8993 = vshrl.u32 %v8992, 7
        %v8994 = vsub.s32 %v8991, %v8993
        %v8995 = vrot.slane %v8981, %v8994
        %v8996 = vcombine.low %v8988, %v8995
        %v8997 = vcombine.low %v4995, %v4997
        %v8998 = vcombine.low %v5066, %v5068
        %v9000 = vunpack.c.l.s4 1983009808
        %v9001 = vunpack.c.0.s8 %v9000
        %v9002 = vlaneseq
        %v9003 = vshrl.u32 %v9002, 7
        %v9004 = vsub.s32 %v9001, %v9003
        %v9005 = vrot.slane %v8997, %v9004
        %v9007 = vunpack.c.l.s4 1983009808
        %v9008 = vunpack.c.0.s8 %v9007
        %v9009 = vlaneseq
        %v9010 = vshrl.u32 %v9009, 7
        %v9011 = vsub.s32 %v9008, %v9010
        %v9012 = vrot.slane %v8998, %v9011
        %v9013 = vcombine.low %v9005, %v9012
        %v9014 = vcombine.low %v5137, %v5139
        %v9015 = vcombine.low %v5208, %v5210
        %v9017 = vunpack.c.l.s4 1983009808
        %v9018 = vunpack.c.0.s8 %v9017
        %v9019 = vlaneseq
        %v9020 = vshrl.u32 %v9019, 7
        %v9021 = vsub.s32 %v9018, %v9020
        %v9022 = vrot.slane %v9014, %v9021
        %v9024 = vunpack.c.l.s4 1983009808
        %v9025 = vunpack.c.0.s8 %v9024
        %v9026 = vlaneseq
        %v9027 = vshrl.u32 %v9026, 7
        %v9028 = vsub.s32 %v9025, %v9027
        %v9029 = vrot.slane %v9015, %v9028
        %v9030 = vcombine.low %v9022, %v9029
        %v9031 = vcombine.low %v5279, %v5281
        %v9032 = vcombine.low %v5350, %v5352
        %v9034 = vunpack.c.l.s4 1983009808
        %v9035 = vunpack.c.0.s8 %v9034
        %v9036 = vlaneseq
        %v9037 = vshrl.u32 %v9036, 7
        %v9038 = vsub.s32 %v9035, %v9037
        %v9039 = vrot.slane %v9031, %v9038
        %v9041 = vunpack.c.l.s4 1983009808
        %v9042 = vunpack.c.0.s8 %v9041
        %v9043 = vlaneseq
        %v9044 = vshrl.u32 %v9043, 7
        %v9045 = vsub.s32 %v9042, %v9044
        %v9046 = vrot.slane %v9032, %v9045
        %v9047 = vcombine.low %v9039, %v9046
        %v9048 = vcombine.low %v5421, %v5423
        %v9049 = vcombine.low %v5492, %v5494
        %v9051 = vunpack.c.l.s4 1983009808
        %v9052 = vunpack.c.0.s8 %v9051
        %v9053 = vlaneseq
        %v9054 = vshrl.u32 %v9053, 7
        %v9055 = vsub.s32 %v9052, %v9054
        %v9056 = vrot.slane %v9048, %v9055
        %v9058 = vunpack.c.l.s4 1983009808
        %v9059 = vunpack.c.0.s8 %v9058
        %v9060 = vlaneseq
        %v9061 = vshrl.u32 %v9060, 7
        %v9062 = vsub.s32 %v9059, %v9061
        %v9063 = vrot.slane %v9049, %v9062
        %v9064 = vcombine.low %v9056, %v9063
        %v9065 = vcombine.low %v5563, %v5565
        %v9066 = vcombine.low %v5634, %v5636
        %v9068 = vunpack.c.l.s4 1983009808
        %v9069 = vunpack.c.0.s8 %v9068
        %v9070 = vlaneseq
        %v9071 = vshrl.u32 %v9070, 7
        %v9072 = vsub.s32 %v9069, %v9071
        %v9073 = vrot.slane %v9065, %v9072
        %v9075 = vunpack.c.l.s4 1983009808
        %v9076 = vunpack.c.0.s8 %v9075
        %v9077 = vlaneseq
        %v9078 = vshrl.u32 %v9077, 7
        %v9079 = vsub.s32 %v9076, %v9078
        %v9080 = vrot.slane %v9066, %v9079
        %v9081 = vcombine.low %v9073, %v9080
        %v9082 = vcombine.low %v5705, %v5707
        %v9083 = vcombine.low %v5776, %v5778
        %v9085 = vunpack.c.l.s4 1983009808
        %v9086 = vunpack.c.0.s8 %v9085
        %v9087 = vlaneseq
        %v9088 = vshrl.u32 %v9087, 7
        %v9089 = vsub.s32 %v9086, %v9088
        %v9090 = vrot.slane %v9082, %v9089
        %v9092 = vunpack.c.l.s4 1983009808
        %v9093 = vunpack.c.0.s8 %v9092
        %v9094 = vlaneseq
        %v9095 = vshrl.u32 %v9094, 7
        %v9096 = vsub.s32 %v9093, %v9095
        %v9097 = vrot.slane %v9083, %v9096
        %v9098 = vcombine.low %v9090, %v9097
        %v9099 = vcombine.low %v5847, %v5849
        %v9100 = vcombine.low %v5918, %v5920
        %v9102 = vunpack.c.l.s4 1983009808
        %v9103 = vunpack.c.0.s8 %v9102
        %v9104 = vlaneseq
        %v9105 = vshrl.u32 %v9104, 7
        %v9106 = vsub.s32 %v9103, %v9105
        %v9107 = vrot.slane %v9099, %v9106
        %v9109 = vunpack.c.l.s4 1983009808
        %v9110 = vunpack.c.0.s8 %v9109
        %v9111 = vlaneseq
        %v9112 = vshrl.u32 %v9111, 7
        %v9113 = vsub.s32 %v9110, %v9112
        %v9114 = vrot.slane %v9100, %v9113
        %v9115 = vcombine.low %v9107, %v9114
        %v9116 = vcombine.low %v5989, %v5991
        %v9117 = vcombine.low %v6060, %v6062
        %v9119 = vunpack.c.l.s4 1983009808
        %v9120 = vunpack.c.0.s8 %v9119
        %v9121 = vlaneseq
        %v9122 = vshrl.u32 %v9121, 7
        %v9123 = vsub.s32 %v9120, %v9122
        %v9124 = vrot.slane %v9116, %v9123
        %v9126 = vunpack.c.l.s4 1983009808
        %v9127 = vunpack.c.0.s8 %v9126
        %v9128 = vlaneseq
        %v9129 = vshrl.u32 %v9128, 7
        %v9130 = vsub.s32 %v9127, %v9129
        %v9131 = vrot.slane %v9117, %v9130
        %v9132 = vcombine.low %v9124, %v9131
        %v9133 = vcombine.low %v6131, %v6133
        %v9134 = vcombine.low %v6202, %v6204
        %v9136 = vunpack.c.l.s4 1983009808
        %v9137 = vunpack.c.0.s8 %v9136
        %v9138 = vlaneseq
        %v9139 = vshrl.u32 %v9138, 7
        %v9140 = vsub.s32 %v9137, %v9139
        %v9141 = vrot.slane %v9133, %v9140
        %v9143 = vunpack.c.l.s4 1983009808
        %v9144 = vunpack.c.0.s8 %v9143
        %v9145 = vlaneseq
        %v9146 = vshrl.u32 %v9145, 7
        %v9147 = vsub.s32 %v9144, %v9146
        %v9148 = vrot.slane %v9134, %v9147
        %v9149 = vcombine.low %v9141, %v9148
        %v9150 = vcombine.low %v6273, %v6275
        %v9151 = vcombine.low %v6344, %v6346
        %v9153 = vunpack.c.l.s4 1983009808
        %v9154 = vunpack.c.0.s8 %v9153
        %v9155 = vlaneseq
        %v9156 = vshrl.u32 %v9155, 7
        %v9157 = vsub.s32 %v9154, %v9156
        %v9158 = vrot.slane %v9150, %v9157
        %v9160 = vunpack.c.l.s4 1983009808
        %v9161 = vunpack.c.0.s8 %v9160
        %v9162 = vlaneseq
        %v9163 = vshrl.u32 %v9162, 7
        %v9164 = vsub.s32 %v9161, %v9163
        %v9165 = vrot.slane %v9151, %v9164
        %v9166 = vcombine.low %v9158, %v9165
        %v9167 = vcombine.low %v6415, %v6417
        %v9168 = vcombine.low %v6486, %v6488
        %v9170 = vunpack.c.l.s4 1983009808
        %v9171 = vunpack.c.0.s8 %v9170
        %v9172 = vlaneseq
        %v9173 = vshrl.u32 %v9172, 7
        %v9174 = vsub.s32 %v9171, %v9173
        %v9175 = vrot.slane %v9167, %v9174
        %v9177 = vunpack.c.l.s4 1983009808
        %v9178 = vunpack.c.0.s8 %v9177
        %v9179 = vlaneseq
        %v9180 = vshrl.u32 %v9179, 7
        %v9181 = vsub.s32 %v9178, %v9180
        %v9182 = vrot.slane %v9168, %v9181
        %v9183 = vcombine.low %v9175, %v9182
        %v9184 = vcombine.low %v6557, %v6559
        %v9185 = vcombine.low %v6628, %v6630
        %v9187 = vunpack.c.l.s4 1983009808
        %v9188 = vunpack.c.0.s8 %v9187
        %v9189 = vlaneseq
        %v9190 = vshrl.u32 %v9189, 7
        %v9191 = vsub.s32 %v9188, %v9190
        %v9192 = vrot.slane %v9184, %v9191
        %v9194 = vunpack.c.l.s4 1983009808
        %v9195 = vunpack.c.0.s8 %v9194
        %v9196 = vlaneseq
        %v9197 = vshrl.u32 %v9196, 7
        %v9198 = vsub.s32 %v9195, %v9197
        %v9199 = vrot.slane %v9185, %v9198
        %v9200 = vcombine.low %v9192, %v9199
        %v9201 = vcombine.low %v6699, %v6701
        %v9202 = vcombine.low %v6770, %v6772
        %v9204 = vunpack.c.l.s4 1983009808
        %v9205 = vunpack.c.0.s8 %v9204
        %v9206 = vlaneseq
        %v9207 = vshrl.u32 %v9206, 7
        %v9208 = vsub.s32 %v9205, %v9207
        %v9209 = vrot.slane %v9201, %v9208
        %v9211 = vunpack.c.l.s4 1983009808
        %v9212 = vunpack.c.0.s8 %v9211
        %v9213 = vlaneseq
        %v9214 = vshrl.u32 %v9213, 7
        %v9215 = vsub.s32 %v9212, %v9214
        %v9216 = vrot.slane %v9202, %v9215
        %v9217 = vcombine.low %v9209, %v9216
        %v9218 = vcombine.low %v6841, %v6843
        %v9219 = vcombine.low %v6912, %v6914
        %v9221 = vunpack.c.l.s4 1983009808
        %v9222 = vunpack.c.0.s8 %v9221
        %v9223 = vlaneseq
        %v9224 = vshrl.u32 %v9223, 7
        %v9225 = vsub.s32 %v9222, %v9224
        %v9226 = vrot.slane %v9218, %v9225
        %v9228 = vunpack.c.l.s4 1983009808
        %v9229 = vunpack.c.0.s8 %v9228
        %v9230 = vlaneseq
        %v9231 = vshrl.u32 %v9230, 7
        %v9232 = vsub.s32 %v9229, %v9231
        %v9233 = vrot.slane %v9219, %v9232
        %v9234 = vcombine.low %v9226, %v9233
        %v9235 = vcombine.low %v6983, %v6985
        %v9236 = vcombine.low %v7054, %v7056
        %v9238 = vunpack.c.l.s4 1983009808
        %v9239 = vunpack.c.0.s8 %v9238
        %v9240 = vlaneseq
        %v9241 = vshrl.u32 %v9240, 7
        %v9242 = vsub.s32 %v9239, %v9241
        %v9243 = vrot.slane %v9235, %v9242
        %v9245 = vunpack.c.l.s4 1983009808
        %v9246 = vunpack.c.0.s8 %v9245
        %v9247 = vlaneseq
        %v9248 = vshrl.u32 %v9247, 7
        %v9249 = vsub.s32 %v9246, %v9248
        %v9250 = vrot.slane %v9236, %v9249
        %v9251 = vcombine.low %v9243, %v9250
        %v9252 = vcombine.low %v7125, %v7127
        %v9253 = vcombine.low %v7196, %v7198
        %v9255 = vunpack.c.l.s4 1983009808
        %v9256 = vunpack.c.0.s8 %v9255
        %v9257 = vlaneseq
        %v9258 = vshrl.u32 %v9257, 7
        %v9259 = vsub.s32 %v9256, %v9258
        %v9260 = vrot.slane %v9252, %v9259
        %v9262 = vunpack.c.l.s4 1983009808
        %v9263 = vunpack.c.0.s8 %v9262
        %v9264 = vlaneseq
        %v9265 = vshrl.u32 %v9264, 7
        %v9266 = vsub.s32 %v9263, %v9265
        %v9267 = vrot.slane %v9253, %v9266
        %v9268 = vcombine.low %v9260, %v9267
        %v9269 = vcombine.low %v7267, %v7269
        %v9270 = vcombine.low %v7338, %v7340
        %v9272 = vunpack.c.l.s4 1983009808
        %v9273 = vunpack.c.0.s8 %v9272
        %v9274 = vlaneseq
        %v9275 = vshrl.u32 %v9274, 7
        %v9276 = vsub.s32 %v9273, %v9275
        %v9277 = vrot.slane %v9269, %v9276
        %v9279 = vunpack.c.l.s4 1983009808
        %v9280 = vunpack.c.0.s8 %v9279
        %v9281 = vlaneseq
        %v9282 = vshrl.u32 %v9281, 7
        %v9283 = vsub.s32 %v9280, %v9282
        %v9284 = vrot.slane %v9270, %v9283
        %v9285 = vcombine.low %v9277, %v9284
        %v9286 = vcombine.low %v7409, %v7411
        %v9287 = vcombine.low %v7480, %v7482
        %v9289 = vunpack.c.l.s4 1983009808
        %v9290 = vunpack.c.0.s8 %v9289
        %v9291 = vlaneseq
        %v9292 = vshrl.u32 %v9291, 7
        %v9293 = vsub.s32 %v9290, %v9292
        %v9294 = vrot.slane %v9286, %v9293
        %v9296 = vunpack.c.l.s4 1983009808
        %v9297 = vunpack.c.0.s8 %v9296
        %v9298 = vlaneseq
        %v9299 = vshrl.u32 %v9298, 7
        %v9300 = vsub.s32 %v9297, %v9299
        %v9301 = vrot.slane %v9287, %v9300
        %v9302 = vcombine.low %v9294, %v9301
        %v9303 = vcombine.low %v7551, %v7553
        %v9304 = vcombine.low %v7622, %v7624
        %v9306 = vunpack.c.l.s4 1983009808
        %v9307 = vunpack.c.0.s8 %v9306
        %v9308 = vlaneseq
        %v9309 = vshrl.u32 %v9308, 7
        %v9310 = vsub.s32 %v9307, %v9309
        %v9311 = vrot.slane %v9303, %v9310
        %v9313 = vunpack.c.l.s4 1983009808
        %v9314 = vunpack.c.0.s8 %v9313
        %v9315 = vlaneseq
        %v9316 = vshrl.u32 %v9315, 7
        %v9317 = vsub.s32 %v9314, %v9316
        %v9318 = vrot.slane %v9304, %v9317
        %v9319 = vcombine.low %v9311, %v9318
        %v9320 = vcombine.low %v7693, %v7695
        %v9321 = vcombine.low %v7764, %v7766
        %v9323 = vunpack.c.l.s4 1983009808
        %v9324 = vunpack.c.0.s8 %v9323
        %v9325 = vlaneseq
        %v9326 = vshrl.u32 %v9325, 7
        %v9327 = vsub.s32 %v9324, %v9326
        %v9328 = vrot.slane %v9320, %v9327
        %v9330 = vunpack.c.l.s4 1983009808
        %v9331 = vunpack.c.0.s8 %v9330
        %v9332 = vlaneseq
        %v9333 = vshrl.u32 %v9332, 7
        %v9334 = vsub.s32 %v9331, %v9333
        %v9335 = vrot.slane %v9321, %v9334
        %v9336 = vcombine.low %v9328, %v9335
        %v9337 = vcombine.low %v7835, %v7837
        %v9338 = vcombine.low %v7906, %v7908
        %v9340 = vunpack.c.l.s4 1983009808
        %v9341 = vunpack.c.0.s8 %v9340
        %v9342 = vlaneseq
        %v9343 = vshrl.u32 %v9342, 7
        %v9344 = vsub.s32 %v9341, %v9343
        %v9345 = vrot.slane %v9337, %v9344
        %v9347 = vunpack.c.l.s4 1983009808
        %v9348 = vunpack.c.0.s8 %v9347
        %v9349 = vlaneseq
        %v9350 = vshrl.u32 %v9349, 7
        %v9351 = vsub.s32 %v9348, %v9350
        %v9352 = vrot.slane %v9338, %v9351
        %v9353 = vcombine.low %v9345, %v9352
        %v9354 = vcombine.low %v7977, %v7979
        %v9355 = vcombine.low %v8048, %v8050
        %v9357 = vunpack.c.l.s4 1983009808
        %v9358 = vunpack.c.0.s8 %v9357
        %v9359 = vlaneseq
        %v9360 = vshrl.u32 %v9359, 7
        %v9361 = vsub.s32 %v9358, %v9360
        %v9362 = vrot.slane %v9354, %v9361
        %v9364 = vunpack.c.l.s4 1983009808
        %v9365 = vunpack.c.0.s8 %v9364
        %v9366 = vlaneseq
        %v9367 = vshrl.u32 %v9366, 7
        %v9368 = vsub.s32 %v9365, %v9367
        %v9369 = vrot.slane %v9355, %v9368
        %v9370 = vcombine.low %v9362, %v9369
        %v9371 = vcombine.low %v8119, %v8121
        %v9372 = vcombine.low %v8190, %v8192
        %v9374 = vunpack.c.l.s4 1983009808
        %v9375 = vunpack.c.0.s8 %v9374
        %v9376 = vlaneseq
        %v9377 = vshrl.u32 %v9376, 7
        %v9378 = vsub.s32 %v9375, %v9377
        %v9379 = vrot.slane %v9371, %v9378
        %v9381 = vunpack.c.l.s4 1983009808
        %v9382 = vunpack.c.0.s8 %v9381
        %v9383 = vlaneseq
        %v9384 = vshrl.u32 %v9383, 7
        %v9385 = vsub.s32 %v9382, %v9384
        %v9386 = vrot.slane %v9372, %v9385
        %v9387 = vcombine.low %v9379, %v9386
        %v9388 = vcombine.low %v8261, %v8263
        %v9389 = vcombine.low %v8332, %v8334
        %v9391 = vunpack.c.l.s4 1983009808
        %v9392 = vunpack.c.0.s8 %v9391
        %v9393 = vlaneseq
        %v9394 = vshrl.u32 %v9393, 7
        %v9395 = vsub.s32 %v9392, %v9394
        %v9396 = vrot.slane %v9388, %v9395
        %v9398 = vunpack.c.l.s4 1983009808
        %v9399 = vunpack.c.0.s8 %v9398
        %v9400 = vlaneseq
        %v9401 = vshrl.u32 %v9400, 7
        %v9402 = vsub.s32 %v9399, %v9401
        %v9403 = vrot.slane %v9389, %v9402
        %v9404 = vcombine.low %v9396, %v9403
        %v9405 = vcombine.low %v8403, %v8405
        %v9406 = vcombine.low %v8474, %v8476
        %v9408 = vunpack.c.l.s4 1983009808
        %v9409 = vunpack.c.0.s8 %v9408
        %v9410 = vlaneseq
        %v9411 = vshrl.u32 %v9410, 7
        %v9412 = vsub.s32 %v9409, %v9411
        %v9413 = vrot.slane %v9405, %v9412
        %v9415 = vunpack.c.l.s4 1983009808
        %v9416 = vunpack.c.0.s8 %v9415
        %v9417 = vlaneseq
        %v9418 = vshrl.u32 %v9417, 7
        %v9419 = vsub.s32 %v9416, %v9418
        %v9420 = vrot.slane %v9406, %v9419
        %v9421 = vcombine.low %v9413, %v9420
        %v9422 = vcombine.low %v8545, %v8547
        %v9423 = vcombine.low %v8616, %v8618
        %v9425 = vunpack.c.l.s4 1983009808
        %v9426 = vunpack.c.0.s8 %v9425
        %v9427 = vlaneseq
        %v9428 = vshrl.u32 %v9427, 7
        %v9429 = vsub.s32 %v9426, %v9428
        %v9430 = vrot.slane %v9422, %v9429
        %v9432 = vunpack.c.l.s4 1983009808
        %v9433 = vunpack.c.0.s8 %v9432
        %v9434 = vlaneseq
        %v9435 = vshrl.u32 %v9434, 7
        %v9436 = vsub.s32 %v9433, %v9435
        %v9437 = vrot.slane %v9423, %v9436
        %v9438 = vcombine.low %v9430, %v9437
        %9478 = vst [vmem:[%s1529] sm:$0xff] %v8792
        %9479 = vst [vmem:[%s1529 + $0x8] sm:$0xff] %v8809
        %9480 = vst [vmem:[%s1529 + $0x10] sm:$0xff] %v8826
        %9481 = vst [vmem:[%s1529 + $0x18] sm:$0xff] %v8843
        %9482 = vst [vmem:[%s1529 + $0x20] sm:$0xff] %v8860
        %9483 = vst [vmem:[%s1529 + $0x28] sm:$0xff] %v8877
        %9484 = vst [vmem:[%s1529 + $0x30] sm:$0xff] %v8894
        %9485 = vst [vmem:[%s1529 + $0x38] sm:$0xff] %v8911
        %9486 = vst [vmem:[%s1529 + $0x40] sm:$0xff] %v8928
        %9487 = vst [vmem:[%s1529 + $0x48] sm:$0xff] %v8945
        %9488 = vst [vmem:[%s1529 + $0x50] sm:$0xff] %v8962
        %9489 = vst [vmem:[%s1529 + $0x58] sm:$0xff] %v8979
        %9490 = vst [vmem:[%s1529 + $0x60] sm:$0xff] %v8996
        %9491 = vst [vmem:[%s1529 + $0x68] sm:$0xff] %v9013
        %9492 = vst [vmem:[%s1529 + $0x70] sm:$0xff] %v9030
        %9493 = vst [vmem:[%s1529 + $0x78] sm:$0xff] %v9047
        %9494 = vst [vmem:[%s1529 + $0x80] sm:$0xff] %v9064
        %9495 = vst [vmem:[%s1529 + $0x88] sm:$0xff] %v9081
        %9496 = vst [vmem:[%s1529 + $0x90] sm:$0xff] %v9098
        %9497 = vst [vmem:[%s1529 + $0x98] sm:$0xff] %v9115
        %9498 = vst [vmem:[%s1529 + $0xa0] sm:$0xff] %v9132
        %9499 = vst [vmem:[%s1529 + $0xa8] sm:$0xff] %v9149
        %9500 = vst [vmem:[%s1529 + $0xb0] sm:$0xff] %v9166
        %9501 = vst [vmem:[%s1529 + $0xb8] sm:$0xff] %v9183
        %9502 = vst [vmem:[%s1529 + $0xc0] sm:$0xff] %v9200
        %9503 = vst [vmem:[%s1529 + $0xc8] sm:$0xff] %v9217
        %9504 = vst [vmem:[%s1529 + $0xd0] sm:$0xff] %v9234
        %9505 = vst [vmem:[%s1529 + $0xd8] sm:$0xff] %v9251
        %9506 = vst [vmem:[%s1529 + $0xe0] sm:$0xff] %v9268
        %9507 = vst [vmem:[%s1529 + $0xe8] sm:$0xff] %v9285
        %9508 = vst [vmem:[%s1529 + $0xf0] sm:$0xff] %v9302
        %9509 = vst [vmem:[%s1529 + $0xf8] sm:$0xff] %v9319
        %9510 = vst [vmem:[%s1529 + $0x100] sm:$0xff] %v9336
        %9511 = vst [vmem:[%s1529 + $0x108] sm:$0xff] %v9353
        %9512 = vst [vmem:[%s1529 + $0x110] sm:$0xff] %v9370
        %9513 = vst [vmem:[%s1529 + $0x118] sm:$0xff] %v9387
        %9514 = vst [vmem:[%s1529 + $0x120] sm:$0xff] %v9404
        %9515 = vst [vmem:[%s1529 + $0x128] sm:$0xff] %v9421
        %9516 = vst [vmem:[%s1529 + $0x130] sm:$0xff] %v9438
        %s9517 = sand.u32 %s164, 1
        %s9518 = scalar_lea.sflag [#allocation4], %s9517
        %s9519 = sand.u32 %s164, 1
        %s9520 = smul.addr %s9519, 312
        %s9521 = scalar_lea.vmem [#allocation3], %s9520
        // Predicated region
        $region68: #{basic_block_forward.1} parent=62 // pred_check
          %p9522 = pneg %p174
        $region69: #{basic_block_forward.1} parent=62 // pred_check_branch
          %9524 = sbr.rel (%p9522) target = $region71
        $region70: #{basic_block_forward.1} parent=62 // pred_region
          %s9525 = smul.u32 156, %s20
          %s9527 = ssub.s32 4992, 4992
          %9528 = vsyncadd %s9518, %s9527
          %s9529 = smul.addr %s9525, 32
          %s9530 = scalar_lea.hbm %s6, %s9529
          %s9532 = sshll.u32 %s9521, 4
          %s9533 = int_to_ptr.vmem [resolvable:$true] %s9532
          %9535 = dma.vmem_to_hbm [thread:$0]  %s9533, 4992, %s9530, %s9518
        $region71: #{basic_block_forward.1} parent=62 // pred_fallthru
          _
      $region63: #{basic_block_forward.1} parent=5 // pred_fallthru
        _
      %p9536 = scmp.le.s32.totalorder 2, %s15
      // Predicated region
      $region72: #{basic_block_forward.1} parent=5 // pred_check
        %p9537 = pneg %p9536
      $region73: #{basic_block_forward.1} parent=5 // pred_check_branch
        %9539 = sbr.rel (%p9537) target = $region75
      $region74: #{basic_block_forward.1} parent=5 // pred_region
        %s9540 = ssub.s32 %s15, 2
        // Predicated region
        $region76: #{basic_block_forward.1} parent=74 // pred_check
          %p9541 = pneg %p180
        $region77: #{basic_block_forward.1} parent=74 // pred_check_branch
          %9543 = sbr.rel (%p9541) target = $region79
        $region78: #{basic_block_forward.1} parent=74 // pred_region
          %s9544 = sand.u32 %s165, 1
          %s9545 = scalar_lea.sflag [#allocation4], %s9544
          %s9546 = sand.u32 %s165, 1
          %s9547 = smul.addr %s9546, 312
          %s9548 = scalar_lea.vmem [#allocation3], %s9547
          %9549 = dma.done %s9545, 4992
        $region79: #{basic_block_forward.1} parent=74 // pred_fallthru
          _
      $region75: #{basic_block_forward.1} parent=5 // pred_fallthru
        _
    $region6: #{basic_block_forward.1} parent=1 // loop_footer
      %s19 = sadd.s32 1, %s15
    $region7: #{basic_block_forward.1} parent=1 // loop_footer_branch
      %14 = sbr.rel target = $region3
    $region8: #{basic_block_forward.1} parent=1 // loop_exit
      _
    %9550 = vsyncpa [#allocation4], 1
    %s9551 = scalar_lea.sflag [#allocation4], 1
    %9552 = vsyncpa %s9551, 1

</llo_original>
